<compile_context>
chip_gen: v5e
topology: v5e:2x2
jax: 0.10.0
libtpu: 0.0.40
codegen_flags: <defaults>
</compile_context>

<pallas_src>
import functools

import jax
import jax.numpy as jnp
from jax.experimental import pallas as pl
from jax.experimental.pallas import tpu as pltpu

REP_DIM = 2048    # backbone hook output dim (hard-coded MLPHead(2048, ...))
OUT_DIM = 64      # output_dim
OUT_PAD = 128     # lane-dense padding of OUT_DIM
HID_DIM = 128     # hidden_dim
BN_EPS = 1e-5
NORM_EPS = 1e-12


def _pick_tk(in_dim):
    """K tile of the backbone GEMM; prefer one that divides in_dim exactly."""
    for tk in (1024, 512, 256, 128):
        if in_dim % tk == 0:
            return tk
    # K not a multiple of 128: fall back to one-time zero padding at prep time.
    return min(1024, ((in_dim + 127) // 128) * 128)


# --------------------------------------------------------------------------
# Kernel 1: backbone GEMM + fused projector Linear-1.
#   x1,x2 : (B, Kp)     f32  (cast to bf16 in VMEM, stacked to (2B, TK))
#   wbb   : (Kp, 2048)  bf16 (streamed, one K tile per grid step)
#   h     : (2B, 128)   f32  == (X @ Wbb + bbb) @ W1 + b1   (rep stays in VMEM)
# grid = (Kp // TK,)  -- pure K reduction, accumulator in f32 VMEM scratch.
# --------------------------------------------------------------------------
def backbone_proj_kernel(x1_ref, x2_ref, wbb_ref, bbb_ref, w1_ref, b1_ref,
                         h_ref, acc_ref):
    k = pl.program_id(0)

    @pl.when(k == 0)
    def _():
        acc_ref[...] = jnp.zeros_like(acc_ref)

    # Stack both augmented views in VMEM so the big GEMM is issued once.
    x = jnp.concatenate([x1_ref[...], x2_ref[...]], axis=0).astype(jnp.bfloat16)
    acc_ref[...] += jnp.dot(x, wbb_ref[...], preferred_element_type=jnp.float32)

    @pl.when(k == pl.num_programs(0) - 1)
    def _():
        rep = (acc_ref[...] + bbb_ref[...]).astype(jnp.bfloat16)     # (2B, 2048)
        h_ref[...] = (jnp.dot(rep, w1_ref[...],
                              preferred_element_type=jnp.float32)
                      + b1_ref[...])                                 # (2B, 128)


# --------------------------------------------------------------------------
# Kernel 2: rest of the heads + symmetric BYOL loss (everything tiny -> one
# gridless call fully resident in VMEM).
# --------------------------------------------------------------------------
def _l2_normalize(v):
    # F.normalize(v, dim=-1, p=2): v / max(||v||, eps) == v * rsqrt(max(||v||^2, eps^2))
    sq = jnp.sum(v * v, axis=-1, keepdims=True)
    return v * jax.lax.rsqrt(jnp.maximum(sq, NORM_EPS * NORM_EPS))


def _bn_relu_per_view(h, bsz):
    # BatchNorm1d in training mode (biased batch var, gamma=1, beta=0) + ReLU,
    # computed PER VIEW (rows [0,bsz) = view 1, [bsz,2bsz) = view 2), matching
    # PyTorch running the encoder separately on each view.
    def bn(hv):
        mu = jnp.mean(hv, axis=0, keepdims=True)
        d = hv - mu
        var = jnp.mean(d * d, axis=0, keepdims=True)
        return jnp.maximum(d * jax.lax.rsqrt(var + BN_EPS), 0.0)

    return jnp.concatenate([bn(h[:bsz]), bn(h[bsz:])], axis=0)


def head_loss_kernel(h_ref, w2_ref, b2_ref, w3_ref, b3_ref, w4_ref, b4_ref,
                     loss_ref, *, bsz):
    # h = rep @ W1 + b1 (pre-BN projector hidden), produced by kernel 1.
    h = _bn_relu_per_view(h_ref[...], bsz)                             # (2B, 128)
    # projector Linear-2 (online projector == target projector: fresh deepcopy)
    proj = jnp.dot(h, w2_ref[...],
                   preferred_element_type=jnp.float32) + b2_ref[...]   # (2B, 128p)
    # online predictor: Linear -> BN -> ReLU -> Linear
    g = jnp.dot(proj, w3_ref[...],
                preferred_element_type=jnp.float32) + b3_ref[...]
    g = _bn_relu_per_view(g, bsz)
    pred = jnp.dot(g, w4_ref[...],
                   preferred_element_type=jnp.float32) + b4_ref[...]   # (2B, 128p)

    npred = _l2_normalize(pred)
    nproj = _l2_normalize(proj)

    # loss_fn(pred_view1, target_proj_view2) + loss_fn(pred_view2, target_proj_view1)
    np1, np2 = npred[0:bsz], npred[bsz:]
    nq1, nq2 = nproj[0:bsz], nproj[bsz:]
    l1 = 2.0 - 2.0 * jnp.sum(np1 * nq2, axis=-1, keepdims=True)        # (B, 1)
    l2 = 2.0 - 2.0 * jnp.sum(np2 * nq1, axis=-1, keepdims=True)        # (B, 1)
    loss_ref[...] = jnp.mean(l1 + l2, keepdims=True)                   # (1, 1)


# --------------------------------------------------------------------------
# One-time parameter preparation (outside the forward): bf16 cast + K pad of
# the backbone weight, bf16 cast of w1, lane padding of the 64-wide tensors.
# --------------------------------------------------------------------------
def prepare_params(params, in_dim):
    tk = _pick_tk(in_dim)
    kp = pl.cdiv(in_dim, tk) * tk
    wbb = params["wbb"].astype(jnp.bfloat16)
    if kp != in_dim:
        wbb = jnp.pad(wbb, ((0, kp - in_dim), (0, 0)))
    pad = OUT_PAD - OUT_DIM
    return dict(
        wbb=wbb,
        bbb=params["bbb"].astype(jnp.float32),
        w1=params["w1"].astype(jnp.bfloat16),
        b1=params["b1"].astype(jnp.float32),
        w2=jnp.pad(params["w2"], ((0, 0), (0, pad))),
        b2=jnp.pad(params["b2"], ((0, 0), (0, pad))),
        w3=jnp.pad(params["w3"], ((0, pad), (0, 0))),
        b3=params["b3"],
        w4=jnp.pad(params["w4"], ((0, 0), (0, pad))),
        b4=jnp.pad(params["b4"], ((0, 0), (0, pad))),
    )


def _vmem_bytes_backbone(b, tk):
    m2 = 2 * b
    total = (2 * tk * REP_DIM * 2          # wbb tile, bf16, double-buffered
             + 2 * 2 * b * tk * 4          # x1 + x2 tiles, f32, double-buffered
             + m2 * REP_DIM * 4            # rep accumulator scratch (f32)
             + REP_DIM * HID_DIM * 2       # w1 (bf16, resident)
             + (REP_DIM + HID_DIM) * 4 * 2 # biases
             + 2 * m2 * HID_DIM * 4)       # h output, double-buffered
    return int(total * 1.5) + (2 << 20)


def _vmem_bytes_head(b):
    m2 = 2 * b
    elems = (m2 * HID_DIM
             + 3 * HID_DIM * OUT_PAD
             + 2 * OUT_PAD + HID_DIM + 1)
    return max(int(elems * 4 * 3) + (2 << 20), 4 << 20)


# --------------------------------------------------------------------------
# Forward wrapper
# --------------------------------------------------------------------------
def byol_forward(x1, x2, kparams):
    b = x1.shape[0]
    m2 = 2 * b
    in_dim = x1.shape[1] * x1.shape[2] * x1.shape[3]
    tk = _pick_tk(in_dim)
    kp = kparams["wbb"].shape[0]

    # Free-layout reshapes only; bf16 cast happens in-kernel.
    x1f = x1.reshape(b, -1)
    x2f = x2.reshape(b, -1)
    if kp != in_dim:
        # TODO(synk): replace with an in-kernel masked last K tile; zero rows of
        # the pre-padded wbb make any X pad value irrelevant to the result.
        x1f = jnp.pad(x1f, ((0, 0), (0, kp - in_dim)))
        x2f = jnp.pad(x2f, ((0, 0), (0, kp - in_dim)))

    h = pl.pallas_call(
        backbone_proj_kernel,
        out_shape=jax.ShapeDtypeStruct((m2, HID_DIM), jnp.float32),
        grid_spec=pltpu.PrefetchScalarGridSpec(
            num_scalar_prefetch=0,
            grid=(kp // tk,),
            in_specs=[
                pl.BlockSpec((b, tk), lambda k: (0, k)),            # x1 (view 1)
                pl.BlockSpec((b, tk), lambda k: (0, k)),            # x2 (view 2)
                pl.BlockSpec((tk, REP_DIM), lambda k: (k, 0)),      # wbb (streamed)
                pl.BlockSpec((1, REP_DIM), lambda k: (0, 0)),       # bbb
                pl.BlockSpec((REP_DIM, HID_DIM), lambda k: (0, 0)), # w1 (resident)
                pl.BlockSpec((1, HID_DIM), lambda k: (0, 0)),       # b1
            ],
            out_specs=pl.BlockSpec((m2, HID_DIM), lambda k: (0, 0)),
            scratch_shapes=[pltpu.VMEM((m2, REP_DIM), jnp.float32)],
        ),
        compiler_params=pltpu.CompilerParams(
            dimension_semantics=("arbitrary",),
            vmem_limit_bytes=_vmem_bytes_backbone(b, tk),
        ),
    )(x1f, x2f, kparams["wbb"], kparams["bbb"], kparams["w1"], kparams["b1"])

    head_args = (h, kparams["w2"], kparams["b2"], kparams["w3"], kparams["b3"],
                 kparams["w4"], kparams["b4"])
    vmem_spec = pl.BlockSpec(memory_space=pltpu.MemorySpace.VMEM)
    loss = pl.pallas_call(
        functools.partial(head_loss_kernel, bsz=b),
        out_shape=jax.ShapeDtypeStruct((1, 1), jnp.float32),
        in_specs=[vmem_spec] * len(head_args),
        out_specs=vmem_spec,
        compiler_params=pltpu.CompilerParams(
            vmem_limit_bytes=_vmem_bytes_head(b)),
    )(*head_args)
    return loss[0, 0]


# --------------------------------------------------------------------------
# Parameter init (PyTorch nn.Linear default init) + pure-JAX reference
# --------------------------------------------------------------------------
def init_params(key, in_dim):
    ks = jax.random.split(key, 10)

    def linear(kw, kb, fan_in, fan_out):
        bound = 1.0 / float(fan_in) ** 0.5
        w = jax.random.uniform(kw, (fan_in, fan_out), jnp.float32, -bound, bound)
        b = jax.random.uniform(kb, (1, fan_out), jnp.float32, -bound, bound)
        return w, b

    wbb, bbb = linear(ks[0], ks[1], in_dim, REP_DIM)   # synthetic backbone layer -2
    w1, b1 = linear(ks[2], ks[3], REP_DIM, HID_DIM)    # projector MLPHead(2048, OUT, HID)
    w2, b2 = linear(ks[4], ks[5], HID_DIM, OUT_DIM)
    w3, b3 = linear(ks[6], ks[7], OUT_DIM, HID_DIM)    # predictor MLPHead(OUT, OUT, HID)
    w4, b4 = linear(ks[8], ks[9], HID_DIM, OUT_DIM)
    return dict(wbb=wbb, bbb=bbb, w1=w1, b1=b1, w2=w2, b2=b2,
                w3=w3, b3=b3, w4=w4, b4=b4)


def _ref_mlp_head(z, w_a, b_a, w_b, b_b, cast_first=False):
    if cast_first:  # mirror the kernel's bf16 first-linear matmul (f32 acc)
        z = z.astype(jnp.bfloat16).astype(jnp.float32)
        w_a = w_a.astype(jnp.bfloat16).astype(jnp.float32)
    h = jnp.dot(z, w_a, precision=jax.lax.Precision.HIGHEST) + b_a
    mu = jnp.mean(h, axis=0, keepdims=True)
    var = jnp.mean((h - mu) * (h - mu), axis=0, keepdims=True)
    h = jnp.maximum((h - mu) * jax.lax.rsqrt(var + BN_EPS), 0.0)
    return jnp.dot(h, w_b, precision=jax.lax.Precision.HIGHEST) + b_b


def _ref_l2_normalize(v):
    n = jnp.sqrt(jnp.sum(v * v, axis=-1, keepdims=True))
    return v / jnp.maximum(n, NORM_EPS)


def byol_reference(x1, x2, params):
    b = x1.shape[0]
    # Mirror the kernel's bf16 feed of the backbone GEMM (f32 accumulation).
    x1f = x1.reshape(b, -1).astype(jnp.bfloat16).astype(jnp.float32)
    x2f = x2.reshape(b, -1).astype(jnp.bfloat16).astype(jnp.float32)
    wbb = params["wbb"].astype(jnp.bfloat16).astype(jnp.float32)
    rep1 = jnp.dot(x1f, wbb, precision=jax.lax.Precision.HIGHEST) + params["bbb"]
    rep2 = jnp.dot(x2f, wbb, precision=jax.lax.Precision.HIGHEST) + params["bbb"]
    proj1 = _ref_mlp_head(rep1, params["w1"], params["b1"],
                          params["w2"], params["b2"], cast_first=True)
    proj2 = _ref_mlp_head(rep2, params["w1"], params["b1"],
                          params["w2"], params["b2"], cast_first=True)
    pred1 = _ref_mlp_head(proj1, params["w3"], params["b3"], params["w4"], params["b4"])
    pred2 = _ref_mlp_head(proj2, params["w3"], params["b3"], params["w4"], params["b4"])
    l1 = 2.0 - 2.0 * jnp.sum(_ref_l2_normalize(pred1) * _ref_l2_normalize(proj2), axis=-1)
    l2 = 2.0 - 2.0 * jnp.sum(_ref_l2_normalize(pred2) * _ref_l2_normalize(proj1), axis=-1)
    return jnp.mean(l1 + l2)


if __name__ == "__main__":
    key = jax.random.PRNGKey(0)
    kx1, kx2, kprm = jax.random.split(key, 3)
    B, C, H, W = 2, 4, 16, 16
    x1 = jax.random.normal(kx1, (B, C, H, W), dtype=jnp.float32)
    x2 = jax.random.normal(kx2, (B, C, H, W), dtype=jnp.float32)
    in_dim = C * H * W

    params = init_params(kprm, in_dim)
    kparams = prepare_params(params, in_dim)   # one-time cast / pad (not per-forward)

    loss = byol_forward(x1, x2, kparams)
    jax.block_until_ready(loss)

    ref = byol_reference(x1, x2, params)
    assert jnp.allclose(loss, ref, rtol=2e-2, atol=2e-2), (loss, ref)
    print("KERNEL_OK")
</pallas_src>

<mosaic_0001>
module attributes {stable_mosaic.version = 11 : i64} {
  func.func @backbone_proj_kernel(%arg0: i32, %arg1: memref<2x1024xf32, #tpu.memory_space<vmem>>, %arg2: memref<2x1024xf32, #tpu.memory_space<vmem>>, %arg3: memref<1024x2048xbf16, #tpu.memory_space<vmem>>, %arg4: memref<1x2048xf32, #tpu.memory_space<vmem>>, %arg5: memref<2048x128xbf16, #tpu.memory_space<vmem>>, %arg6: memref<1x128xf32, #tpu.memory_space<vmem>>, %arg7: memref<4x128xf32, #tpu.memory_space<vmem>>, %arg8: memref<4x2048xf32, #tpu.memory_space<vmem>>) attributes {dimension_semantics = [#tpu.dimension_semantics<arbitrary>], iteration_bounds = array<i64: 1>, scalar_prefetch = 0 : i64, scratch_operands = 1 : i64, tpu.core_type = #tpu.core_type<tc>, window_params = [{transform_indices = @transform_0, window_bounds = array<i64: 2, 1024>}, {transform_indices = @transform_1, window_bounds = array<i64: 2, 1024>}, {transform_indices = @transform_2, window_bounds = array<i64: 1024, 2048>}, {pipeline_mode = #tpu.pipeline_mode<synchronous>, transform_indices = @transform_3, window_bounds = array<i64: 1, 2048>}, {pipeline_mode = #tpu.pipeline_mode<synchronous>, transform_indices = @transform_4, window_bounds = array<i64: 2048, 128>}, {pipeline_mode = #tpu.pipeline_mode<synchronous>, transform_indices = @transform_5, window_bounds = array<i64: 1, 128>}, {pipeline_mode = #tpu.pipeline_mode<synchronous>, transform_indices = @transform_6, window_bounds = array<i64: 4, 128>}]} {
    %c0_i32 = arith.constant 0 : i32
    %0 = arith.cmpi eq, %arg0, %c0_i32 : i32
    %1 = arith.extui %0 : i1 to i32
    %c0_i32_0 = arith.constant 0 : i32
    %2 = arith.cmpi ne, %1, %c0_i32_0 : i32
    scf.if %2 {
      %cst_12 = arith.constant 0.000000e+00 : f32
      %15 = vector.broadcast %cst_12 : f32 to vector<4x2048xf32>
      %c0_13 = arith.constant 0 : index
      %c0_14 = arith.constant 0 : index
      %16 = vector.load %arg8[%c0_13, %c0_14] : memref<4x2048xf32, #tpu.memory_space<vmem>>, vector<4x2048xf32>
      tpu.vector_store %arg8[%c0_13, %c0_14], %15 {strides = array<i32>} : memref<4x2048xf32, #tpu.memory_space<vmem>>, vector<4x2048xf32>,
    } else {
    }
    %c0 = arith.constant 0 : index
    %c0_1 = arith.constant 0 : index
    %3 = vector.load %arg1[%c0, %c0_1] : memref<2x1024xf32, #tpu.memory_space<vmem>>, vector<2x1024xf32>
    %c0_2 = arith.constant 0 : index
    %c0_3 = arith.constant 0 : index
    %4 = vector.load %arg2[%c0_2, %c0_3] : memref<2x1024xf32, #tpu.memory_space<vmem>>, vector<2x1024xf32>
    %5 = tpu.concatenate %3, %4 in 0 : vector<2x1024xf32>, vector<2x1024xf32> -> vector<4x1024xf32>
    %6 = arith.truncf %5 : vector<4x1024xf32> to vector<4x1024xbf16>
    %c0_4 = arith.constant 0 : index
    %c0_5 = arith.constant 0 : index
    %7 = vector.load %arg8[%c0_4, %c0_5] : memref<4x2048xf32, #tpu.memory_space<vmem>>, vector<4x2048xf32>
    %c0_6 = arith.constant 0 : index
    %c0_7 = arith.constant 0 : index
    %8 = vector.load %arg3[%c0_6, %c0_7] : memref<1024x2048xbf16, #tpu.memory_space<vmem>>, vector<1024x2048xbf16>
    %cst = arith.constant dense<0.000000e+00> : vector<4x2048xf32>
    %9 = tpu.matmul %6, %8, %cst {dimension_numbers = #tpu.dot_dimension_numbers<[1], [0], [0], [1], [0, 0, 1, 1], [], []>} : vector<4x1024xbf16>, vector<1024x2048xbf16>, vector<4x2048xf32> -> vector<4x2048xf32>
    %10 = arith.addf %7, %9 : vector<4x2048xf32>
    %c0_8 = arith.constant 0 : index
    %c0_9 = arith.constant 0 : index
    %11 = vector.load %arg8[%c0_8, %c0_9] : memref<4x2048xf32, #tpu.memory_space<vmem>>, vector<4x2048xf32>
    tpu.vector_store %arg8[%c0_8, %c0_9], %10 {strides = array<i32>} : memref<4x2048xf32, #tpu.memory_space<vmem>>, vector<4x2048xf32>,
    %c0_i32_10 = arith.constant 0 : i32
    %12 = arith.cmpi eq, %arg0, %c0_i32_10 : i32
    %13 = arith.extui %12 : i1 to i32
    %c0_i32_11 = arith.constant 0 : i32
    %14 = arith.cmpi ne, %13, %c0_i32_11 : i32
    scf.if %14 {
      %c0_12 = arith.constant 0 : index
      %c0_13 = arith.constant 0 : index
      %15 = vector.load %arg8[%c0_12, %c0_13] : memref<4x2048xf32, #tpu.memory_space<vmem>>, vector<4x2048xf32>
      %c0_14 = arith.constant 0 : index
      %c0_15 = arith.constant 0 : index
      %16 = vector.load %arg4[%c0_14, %c0_15] : memref<1x2048xf32, #tpu.memory_space<vmem>>, vector<1x2048xf32>
      %17 = vector.broadcast %16 : vector<1x2048xf32> to vector<4x2048xf32>
      %18 = arith.addf %15, %17 : vector<4x2048xf32>
      %19 = arith.truncf %18 : vector<4x2048xf32> to vector<4x2048xbf16>
      %c0_16 = arith.constant 0 : index
      %c0_17 = arith.constant 0 : index
      %20 = vector.load %arg5[%c0_16, %c0_17] : memref<2048x128xbf16, #tpu.memory_space<vmem>>, vector<2048x128xbf16>
      %cst_18 = arith.constant dense<0.000000e+00> : vector<4x128xf32>
      %21 = tpu.matmul %19, %20, %cst_18 {dimension_numbers = #tpu.dot_dimension_numbers<[1], [0], [0], [1], [0, 0, 1, 1], [], []>} : vector<4x2048xbf16>, vector<2048x128xbf16>, vector<4x128xf32> -> vector<4x128xf32>
      %c0_19 = arith.constant 0 : index
      %c0_20 = arith.constant 0 : index
      %22 = vector.load %arg6[%c0_19, %c0_20] : memref<1x128xf32, #tpu.memory_space<vmem>>, vector<1x128xf32>
      %23 = vector.broadcast %22 : vector<1x128xf32> to vector<4x128xf32>
      %24 = arith.addf %21, %23 : vector<4x128xf32>
      %c0_21 = arith.constant 0 : index
      %c0_22 = arith.constant 0 : index
      %25 = vector.load %arg7[%c0_21, %c0_22] : memref<4x128xf32, #tpu.memory_space<vmem>>, vector<4x128xf32>
      tpu.vector_store %arg7[%c0_21, %c0_22], %24 {strides = array<i32>} : memref<4x128xf32, #tpu.memory_space<vmem>>, vector<4x128xf32>,
    } else {
    }
    return
  }
  func.func @transform_0(%arg0: i32) -> (i32, i32) {
    %c0_i32 = arith.constant 0 : i32
    %c0_i32_0 = arith.constant 0 : i32
    return %c0_i32, %arg0 : i32, i32
  }
  func.func @transform_1(%arg0: i32) -> (i32, i32) {
    %c0_i32 = arith.constant 0 : i32
    %c0_i32_0 = arith.constant 0 : i32
    return %c0_i32, %arg0 : i32, i32
  }
  func.func @transform_2(%arg0: i32) -> (i32, i32) {
    %c0_i32 = arith.constant 0 : i32
    %c0_i32_0 = arith.constant 0 : i32
    return %arg0, %c0_i32 : i32, i32
  }
  func.func @transform_3(%arg0: i32) -> (i32, i32) {
    %c0_i32 = arith.constant 0 : i32
    %c0_i32_0 = arith.constant 0 : i32
    %c0_i32_1 = arith.constant 0 : i32
    return %c0_i32, %c0_i32_0 : i32, i32
  }
  func.func @transform_4(%arg0: i32) -> (i32, i32) {
    %c0_i32 = arith.constant 0 : i32
    %c0_i32_0 = arith.constant 0 : i32
    %c0_i32_1 = arith.constant 0 : i32
    return %c0_i32, %c0_i32_0 : i32, i32
  }
  func.func @transform_5(%arg0: i32) -> (i32, i32) {
    %c0_i32 = arith.constant 0 : i32
    %c0_i32_0 = arith.constant 0 : i32
    %c0_i32_1 = arith.constant 0 : i32
    return %c0_i32, %c0_i32_0 : i32, i32
  }
  func.func @transform_6(%arg0: i32) -> (i32, i32) {
    %c0_i32 = arith.constant 0 : i32
    %c0_i32_0 = arith.constant 0 : i32
    %c0_i32_1 = arith.constant 0 : i32
    return %c0_i32, %c0_i32_0 : i32, i32
  }
}

</mosaic_0001>

<llo_original>
// kernel: tpu_custom_call.1
$region0: #{tpu_custom_call.1}
  #allocation0 [shape = 'u32[]', space=smem, size = 0x4, offset = 0x4, fixed_abs, tag = 'smem constant byte address 0x4 - core index']
  #allocation1 [shape = 'u32[72,128]{1,0:T(1,128)}', space=vmem, size = 0x9000, scoped, tag = 'internal scratch']
  #allocation2 [shape = 'f32[4,2048]{1,0:T(4,128)}', space=vmem, size = 0x8000, scoped, tag = 'scratch operand']
  %s0 = inlined_call_operand.hbm [shape: f32[2,1024], index: 0, kind: input, shape index: {}]
  %s1 = inlined_call_operand.hbm [shape: f32[2,1024], index: 1, kind: input, shape index: {}]
  %s2 = inlined_call_operand.hbm [shape: bf16[1024,2048], index: 2, kind: input, shape index: {}]
  %s3 = inlined_call_operand.hbm [shape: f32[1,2048], index: 3, kind: input, shape index: {}]
  %s4 = inlined_call_operand.hbm [shape: bf16[2048,128], index: 4, kind: input, shape index: {}]
  %s5 = inlined_call_operand.hbm [shape: f32[1,128], index: 5, kind: input, shape index: {}]
  %s6 = inlined_call_operand.hbm [shape: f32[4,128], index: 6, kind: output, shape index: {}]
  %s7 = sld [smem:[#allocation0]]
  $region66: #{tpu_custom_call.1} parent=0
    _
  %s9 = ssub.s32 1, %s7
  %s10 = scalar_select 0, %s9, %s7
  $region1: #{tpu_custom_call.1} parent=0
    #allocation3 [shape = 'u8[8192]{0}', space=vmem, size = 0x2000, scoped, tag = 'input window, operand 0, single buffered']
    #allocation4 [shape = 's32[1]{0}', space=sflag, size = 0x4, scoped, tag = 'scoped memory for tpu_custom_call.1']
    #allocation5 [shape = 's32[1]{0}', space=sflag, size = 0x4, scoped, tag = 'scoped memory for tpu_custom_call.1']
    #allocation6 [shape = 'u8[8192]{0}', space=vmem, size = 0x2000, scoped, tag = 'input window, operand 1, single buffered']
    #allocation7 [shape = 's32[1]{0}', space=sflag, size = 0x4, scoped, tag = 'scoped memory for tpu_custom_call.1']
    #allocation8 [shape = 'u8[4194304]{0}', space=vmem, size = 0x400000, scoped, tag = 'input window, operand 2, single buffered']
    #allocation9 [shape = 'u8[8192]{0}', space=vmem, size = 0x2000, scoped, tag = 'input window, operand 3, single buffered']
    #allocation10 [shape = 's32[1]{0}', space=sflag, size = 0x4, scoped, tag = 'scoped memory for tpu_custom_call.1']
    #allocation11 [shape = 'u8[524288]{0}', space=vmem, size = 0x80000, scoped, tag = 'input window, operand 4, single buffered']
    #allocation12 [shape = 'u8[512]{0}', space=vmem, size = 0x400, scoped, tag = 'input window, operand 5, single buffered']
    #allocation13 [shape = 's32[1]{0}', space=sflag, size = 0x4, scoped, tag = 'scoped memory for tpu_custom_call.1']
    #allocation14 [shape = 'u8[2048]{0}', space=vmem, size = 0x800, scoped, tag = 'output window, operand 0, single buffered']
    %11 = vsyncpa [#allocation4], 0
    %12 = vsyncpa [#allocation7], 0
    %13 = vsyncpa [#allocation10], 0
    %14 = vsyncpa [#allocation13], 0
    %15 = vsyncpa [#allocation5], 0
    // Predicated region
    $region2: #{tpu_custom_call.1} parent=1 // pred_check
      _
    $region3: #{tpu_custom_call.1} parent=1 // pred_check_branch
      %17 = sbr.rel (0) target = $region5
    $region4: #{tpu_custom_call.1} parent=1 // pred_region
      %19 = vsyncadd [#allocation4], 0
      %s21 = sshll.u32 %s0, 4
      %s22 = int_to_ptr.hbm [resolvable:$true] %s21
      %s23 = sshll.u32 [#allocation3], 4
      %s24 = int_to_ptr.vmem [resolvable:$true] %s23
      %26 = dma.hbm_to_vmem [thread:$0]  %s22, 256, %s24, [#allocation4]
    $region5: #{tpu_custom_call.1} parent=1 // pred_fallthru
      _
    // Predicated region
    $region6: #{tpu_custom_call.1} parent=1 // pred_check
      _
    $region7: #{tpu_custom_call.1} parent=1 // pred_check_branch
      %28 = sbr.rel (0) target = $region9
    $region8: #{tpu_custom_call.1} parent=1 // pred_region
      %30 = vsyncadd [#allocation7], 0
      %s32 = sshll.u32 %s1, 4
      %s33 = int_to_ptr.hbm [resolvable:$true] %s32
      %s34 = sshll.u32 [#allocation6], 4
      %s35 = int_to_ptr.vmem [resolvable:$true] %s34
      %37 = dma.hbm_to_vmem [thread:$0]  %s33, 256, %s35, [#allocation7]
    $region9: #{tpu_custom_call.1} parent=1 // pred_fallthru
      _
    // Predicated region
    $region10: #{tpu_custom_call.1} parent=1 // pred_check
      _
    $region11: #{tpu_custom_call.1} parent=1 // pred_check_branch
      %39 = sbr.rel (0) target = $region13
    $region12: #{tpu_custom_call.1} parent=1 // pred_region
      %41 = vsyncadd [#allocation7], 0
      %s42 = sshll.u32 %s2, 4
      %s43 = int_to_ptr.hbm [resolvable:$true] %s42
      %s44 = sshll.u32 [#allocation8], 4
      %s45 = int_to_ptr.vmem [resolvable:$true] %s44
      %50 = dma.hbm_to_vmem [thread:$0]  %s43, 131072, %s45, [#allocation7], 1024, 1024, 64
    $region13: #{tpu_custom_call.1} parent=1 // pred_fallthru
      _
    // Predicated region
    $region14: #{tpu_custom_call.1} parent=1 // pred_check
      _
    $region15: #{tpu_custom_call.1} parent=1 // pred_check_branch
      %52 = sbr.rel (0) target = $region17
    $region16: #{tpu_custom_call.1} parent=1 // pred_region
      %54 = vsyncadd [#allocation10], 0
      %s56 = sshll.u32 %s3, 4
      %s57 = int_to_ptr.hbm [resolvable:$true] %s56
      %s58 = sshll.u32 [#allocation9], 4
      %s59 = int_to_ptr.vmem [resolvable:$true] %s58
      %61 = dma.hbm_to_vmem [thread:$0]  %s57, 256, %s59, [#allocation10]
    $region17: #{tpu_custom_call.1} parent=1 // pred_fallthru
      _
    // Predicated region
    $region18: #{tpu_custom_call.1} parent=1 // pred_check
      _
    $region19: #{tpu_custom_call.1} parent=1 // pred_check_branch
      %63 = sbr.rel (0) target = $region21
    $region20: #{tpu_custom_call.1} parent=1 // pred_region
      %65 = vsyncadd [#allocation10], 0
      %s66 = sshll.u32 %s4, 4
      %s67 = int_to_ptr.hbm [resolvable:$true] %s66
      %s68 = sshll.u32 [#allocation11], 4
      %s69 = int_to_ptr.vmem [resolvable:$true] %s68
      %74 = dma.hbm_to_vmem [thread:$0]  %s67, 16384, %s69, [#allocation10], 64, 64, 4
    $region21: #{tpu_custom_call.1} parent=1 // pred_fallthru
      _
    // Predicated region
    $region22: #{tpu_custom_call.1} parent=1 // pred_check
      _
    $region23: #{tpu_custom_call.1} parent=1 // pred_check_branch
      %76 = sbr.rel (0) target = $region25
    $region24: #{tpu_custom_call.1} parent=1 // pred_region
      %78 = vsyncadd [#allocation13], 0
      %s80 = sshll.u32 %s5, 4
      %s81 = int_to_ptr.hbm [resolvable:$true] %s80
      %s82 = sshll.u32 [#allocation12], 4
      %s83 = int_to_ptr.vmem [resolvable:$true] %s82
      %85 = dma.hbm_to_vmem [thread:$0]  %s81, 16, %s83, [#allocation13]
    $region25: #{tpu_custom_call.1} parent=1 // pred_fallthru
      _
    // Predicated region
    $region26: #{tpu_custom_call.1} parent=1 // pred_check
      _
    $region27: #{tpu_custom_call.1} parent=1 // pred_check_branch
      %87 = sbr.rel (0) target = $region29
    $region28: #{tpu_custom_call.1} parent=1 // pred_region
      %89 = dma.done [#allocation4], 256
    $region29: #{tpu_custom_call.1} parent=1 // pred_fallthru
      _
    // Predicated region
    $region30: #{tpu_custom_call.1} parent=1 // pred_check
      _
    $region31: #{tpu_custom_call.1} parent=1 // pred_check_branch
      %91 = sbr.rel (0) target = $region33
    $region32: #{tpu_custom_call.1} parent=1 // pred_region
      %93 = dma.done [#allocation7], 256
    $region33: #{tpu_custom_call.1} parent=1 // pred_fallthru
      _
    // Predicated region
    $region34: #{tpu_custom_call.1} parent=1 // pred_check
      _
    $region35: #{tpu_custom_call.1} parent=1 // pred_check_branch
      %95 = sbr.rel (0) target = $region37
    $region36: #{tpu_custom_call.1} parent=1 // pred_region
      %97 = dma.done [#allocation7], 131072
    $region37: #{tpu_custom_call.1} parent=1 // pred_fallthru
      _
    // Predicated region
    $region38: #{tpu_custom_call.1} parent=1 // pred_check
      _
    $region39: #{tpu_custom_call.1} parent=1 // pred_check_branch
      %99 = sbr.rel (0) target = $region41
    $region40: #{tpu_custom_call.1} parent=1 // pred_region
      %101 = dma.done [#allocation10], 256
    $region41: #{tpu_custom_call.1} parent=1 // pred_fallthru
      _
    // Predicated region
    $region42: #{tpu_custom_call.1} parent=1 // pred_check
      _
    $region43: #{tpu_custom_call.1} parent=1 // pred_check_branch
      %103 = sbr.rel (0) target = $region45
    $region44: #{tpu_custom_call.1} parent=1 // pred_region
      %105 = dma.done [#allocation10], 16384
    $region45: #{tpu_custom_call.1} parent=1 // pred_fallthru
      _
    // Predicated region
    $region46: #{tpu_custom_call.1} parent=1 // pred_check
      _
    $region47: #{tpu_custom_call.1} parent=1 // pred_check_branch
      %107 = sbr.rel (0) target = $region49
    $region48: #{tpu_custom_call.1} parent=1 // pred_region
      %109 = dma.done [#allocation13], 16
    $region49: #{tpu_custom_call.1} parent=1 // pred_fallthru
      _
    %p110 = scmp.eq.s32.totalorder 0, 0
    // Predicated region
    $region50: #{tpu_custom_call.1} parent=1 // pred_check
      %p111 = pneg %p110
    $region51: #{tpu_custom_call.1} parent=1 // pred_check_branch
      %113 = sbr.rel (%p111) target = $region53
    $region52: #{tpu_custom_call.1} parent=1 // pred_region
      %114 = vst [vmem:[#allocation2] sm:$0xff] 0.0
      %115 = vst [vmem:[#allocation2 + $0x8] sm:$0xff] 0.0
      %116 = vst [vmem:[#allocation2 + $0x10] sm:$0xff] 0.0
      %117 = vst [vmem:[#allocation2 + $0x18] sm:$0xff] 0.0
      %118 = vst [vmem:[#allocation2 + $0x20] sm:$0xff] 0.0
      %119 = vst [vmem:[#allocation2 + $0x28] sm:$0xff] 0.0
      %120 = vst [vmem:[#allocation2 + $0x30] sm:$0xff] 0.0
      %121 = vst [vmem:[#allocation2 + $0x38] sm:$0xff] 0.0
    $region53: #{tpu_custom_call.1} parent=1 // pred_fallthru
      _
    %v122 = vld [vmem:[#allocation3] sm:$0xff]
    %v123 = vld [vmem:[#allocation3 + $0x8] sm:$0xff]
    %v124 = vld [vmem:[#allocation6] sm:$0xff]
    %v125 = vld [vmem:[#allocation6 + $0x8] sm:$0xff]
    %128 = vst [vmem:[#allocation1] ss:$4 sm:$0xff] %v122
    %s129 = scalar_lea.vmem [#allocation1], 32
    %130 = vst [vmem:[%s129] ss:$4 sm:$0xff] %v123
    %v131 = vld.sshfl [vmem:[#allocation1] sm:$0xff pattern:$0x73625140]
    %v132 = vld.sshfl [vmem:[#allocation1 + $0x8] sm:$0xff pattern:$0x73625140]
    %v133 = vld.sshfl [vmem:[#allocation1 + $0x10] sm:$0xff pattern:$0x73625140]
    %v134 = vld.sshfl [vmem:[#allocation1 + $0x18] sm:$0xff pattern:$0x73625140]
    %v135 = vld.sshfl [vmem:[#allocation1 + $0x20] sm:$0xff pattern:$0x73625140]
    %v136 = vld.sshfl [vmem:[#allocation1 + $0x28] sm:$0xff pattern:$0x73625140]
    %v137 = vld.sshfl [vmem:[#allocation1 + $0x30] sm:$0xff pattern:$0x73625140]
    %v138 = vld.sshfl [vmem:[#allocation1 + $0x38] sm:$0xff pattern:$0x73625140]
    %s149 = scalar_lea.vmem [#allocation1], 1
    %150 = vst [vmem:[%s149] ss:$4 sm:$0xff] %v124
    %s151 = scalar_lea.vmem [#allocation1], 33
    %152 = vst [vmem:[%s151] ss:$4 sm:$0xff] %v125
    %v153 = vld.sshfl [vmem:[#allocation1] sm:$0xff pattern:$0x73625140]
    %v154 = vld.sshfl [vmem:[#allocation1 + $0x8] sm:$0xff pattern:$0x73625140]
    %v155 = vld.sshfl [vmem:[#allocation1 + $0x10] sm:$0xff pattern:$0x73625140]
    %v156 = vld.sshfl [vmem:[#allocation1 + $0x18] sm:$0xff pattern:$0x73625140]
    %v157 = vld.sshfl [vmem:[#allocation1 + $0x20] sm:$0xff pattern:$0x73625140]
    %v158 = vld.sshfl [vmem:[#allocation1 + $0x28] sm:$0xff pattern:$0x73625140]
    %v159 = vld.sshfl [vmem:[#allocation1 + $0x30] sm:$0xff pattern:$0x73625140]
    %v160 = vld.sshfl [vmem:[#allocation1 + $0x38] sm:$0xff pattern:$0x73625140]
    %vm169 = vcmask 1041408
    %v170 = vsel %vm169, %v131, %v153
    %v171 = vsel %vm169, %v132, %v154
    %v172 = vsel %vm169, %v133, %v155
    %v173 = vsel %vm169, %v134, %v156
    %v174 = vsel %vm169, %v135, %v157
    %v175 = vsel %vm169, %v136, %v158
    %v176 = vsel %vm169, %v137, %v159
    %v177 = vsel %vm169, %v138, %v160
    %v178 = vpack.c.bf16 %v170, %v170
    %v179 = vpack.c.bf16 %v171, %v171
    %v180 = vpack.c.bf16 %v172, %v172
    %v181 = vpack.c.bf16 %v173, %v173
    %v182 = vpack.c.bf16 %v174, %v174
    %v183 = vpack.c.bf16 %v175, %v175
    %v184 = vpack.c.bf16 %v176, %v176
    %v185 = vpack.c.bf16 %v177, %v177
    %v186 = vld [vmem:[#allocation2] sm:$0xff]
    %v187 = vld [vmem:[#allocation2 + $0x8] sm:$0xff]
    %v188 = vld [vmem:[#allocation2 + $0x10] sm:$0xff]
    %v189 = vld [vmem:[#allocation2 + $0x18] sm:$0xff]
    %v190 = vld [vmem:[#allocation2 + $0x20] sm:$0xff]
    %v191 = vld [vmem:[#allocation2 + $0x28] sm:$0xff]
    %v192 = vld [vmem:[#allocation2 + $0x30] sm:$0xff]
    %v193 = vld [vmem:[#allocation2 + $0x38] sm:$0xff]
    %v194 = vld [vmem:[#allocation8] sm:$0xff]
    %v195 = vld [vmem:[#allocation8 + $0x8] sm:$0xff]
    %v196 = vld [vmem:[#allocation8 + $0x10] sm:$0xff]
    %v197 = vld [vmem:[#allocation8 + $0x18] sm:$0xff]
    %v198 = vld [vmem:[#allocation8 + $0x20] sm:$0xff]
    %v199 = vld [vmem:[#allocation8 + $0x28] sm:$0xff]
    %v200 = vld [vmem:[#allocation8 + $0x30] sm:$0xff]
    %v201 = vld [vmem:[#allocation8 + $0x38] sm:$0xff]
    %v202 = vld [vmem:[#allocation8 + $0x40] sm:$0xff]
    %v203 = vld [vmem:[#allocation8 + $0x48] sm:$0xff]
    %v204 = vld [vmem:[#allocation8 + $0x50] sm:$0xff]
    %v205 = vld [vmem:[#allocation8 + $0x58] sm:$0xff]
    %v206 = vld [vmem:[#allocation8 + $0x60] sm:$0xff]
    %v207 = vld [vmem:[#allocation8 + $0x68] sm:$0xff]
    %v208 = vld [vmem:[#allocation8 + $0x70] sm:$0xff]
    %v209 = vld [vmem:[#allocation8 + $0x78] sm:$0xff]
    %v210 = vld [vmem:[#allocation8 + $0x80] sm:$0xff]
    %v211 = vld [vmem:[#allocation8 + $0x88] sm:$0xff]
    %v212 = vld [vmem:[#allocation8 + $0x90] sm:$0xff]
    %v213 = vld [vmem:[#allocation8 + $0x98] sm:$0xff]
    %v214 = vld [vmem:[#allocation8 + $0xa0] sm:$0xff]
    %v215 = vld [vmem:[#allocation8 + $0xa8] sm:$0xff]
    %v216 = vld [vmem:[#allocation8 + $0xb0] sm:$0xff]
    %v217 = vld [vmem:[#allocation8 + $0xb8] sm:$0xff]
    %v218 = vld [vmem:[#allocation8 + $0xc0] sm:$0xff]
    %v219 = vld [vmem:[#allocation8 + $0xc8] sm:$0xff]
    %v220 = vld [vmem:[#allocation8 + $0xd0] sm:$0xff]
    %v221 = vld [vmem:[#allocation8 + $0xd8] sm:$0xff]
    %v222 = vld [vmem:[#allocation8 + $0xe0] sm:$0xff]
    %v223 = vld [vmem:[#allocation8 + $0xe8] sm:$0xff]
    %v224 = vld [vmem:[#allocation8 + $0xf0] sm:$0xff]
    %v225 = vld [vmem:[#allocation8 + $0xf8] sm:$0xff]
    %v226 = vld [vmem:[#allocation8 + $0x100] sm:$0xff]
    %v227 = vld [vmem:[#allocation8 + $0x108] sm:$0xff]
    %v228 = vld [vmem:[#allocation8 + $0x110] sm:$0xff]
    %v229 = vld [vmem:[#allocation8 + $0x118] sm:$0xff]
    %v230 = vld [vmem:[#allocation8 + $0x120] sm:$0xff]
    %v231 = vld [vmem:[#allocation8 + $0x128] sm:$0xff]
    %v232 = vld [vmem:[#allocation8 + $0x130] sm:$0xff]
    %v233 = vld [vmem:[#allocation8 + $0x138] sm:$0xff]
    %v234 = vld [vmem:[#allocation8 + $0x140] sm:$0xff]
    %v235 = vld [vmem:[#allocation8 + $0x148] sm:$0xff]
    %v236 = vld [vmem:[#allocation8 + $0x150] sm:$0xff]
    %v237 = vld [vmem:[#allocation8 + $0x158] sm:$0xff]
    %v238 = vld [vmem:[#allocation8 + $0x160] sm:$0xff]
    %v239 = vld [vmem:[#allocation8 + $0x168] sm:$0xff]
    %v240 = vld [vmem:[#allocation8 + $0x170] sm:$0xff]
    %v241 = vld [vmem:[#allocation8 + $0x178] sm:$0xff]
    %v242 = vld [vmem:[#allocation8 + $0x180] sm:$0xff]
    %v243 = vld [vmem:[#allocation8 + $0x188] sm:$0xff]
    %v244 = vld [vmem:[#allocation8 + $0x190] sm:$0xff]
    %v245 = vld [vmem:[#allocation8 + $0x198] sm:$0xff]
    %v246 = vld [vmem:[#allocation8 + $0x1a0] sm:$0xff]
    %v247 = vld [vmem:[#allocation8 + $0x1a8] sm:$0xff]
    %v248 = vld [vmem:[#allocation8 + $0x1b0] sm:$0xff]
    %v249 = vld [vmem:[#allocation8 + $0x1b8] sm:$0xff]
    %v250 = vld [vmem:[#allocation8 + $0x1c0] sm:$0xff]
    %v251 = vld [vmem:[#allocation8 + $0x1c8] sm:$0xff]
    %v252 = vld [vmem:[#allocation8 + $0x1d0] sm:$0xff]
    %v253 = vld [vmem:[#allocation8 + $0x1d8] sm:$0xff]
    %v254 = vld [vmem:[#allocation8 + $0x1e0] sm:$0xff]
    %v255 = vld [vmem:[#allocation8 + $0x1e8] sm:$0xff]
    %v256 = vld [vmem:[#allocation8 + $0x1f0] sm:$0xff]
    %v257 = vld [vmem:[#allocation8 + $0x1f8] sm:$0xff]
    %v258 = vld [vmem:[#allocation8 + $0x200] sm:$0xff]
    %v259 = vld [vmem:[#allocation8 + $0x208] sm:$0xff]
    %v260 = vld [vmem:[#allocation8 + $0x210] sm:$0xff]
    %v261 = vld [vmem:[#allocation8 + $0x218] sm:$0xff]
    %v262 = vld [vmem:[#allocation8 + $0x220] sm:$0xff]
    %v263 = vld [vmem:[#allocation8 + $0x228] sm:$0xff]
    %v264 = vld [vmem:[#allocation8 + $0x230] sm:$0xff]
    %v265 = vld [vmem:[#allocation8 + $0x238] sm:$0xff]
    %v266 = vld [vmem:[#allocation8 + $0x240] sm:$0xff]
    %v267 = vld [vmem:[#allocation8 + $0x248] sm:$0xff]
    %v268 = vld [vmem:[#allocation8 + $0x250] sm:$0xff]
    %v269 = vld [vmem:[#allocation8 + $0x258] sm:$0xff]
    %v270 = vld [vmem:[#allocation8 + $0x260] sm:$0xff]
    %v271 = vld [vmem:[#allocation8 + $0x268] sm:$0xff]
    %v272 = vld [vmem:[#allocation8 + $0x270] sm:$0xff]
    %v273 = vld [vmem:[#allocation8 + $0x278] sm:$0xff]
    %v274 = vld [vmem:[#allocation8 + $0x280] sm:$0xff]
    %v275 = vld [vmem:[#allocation8 + $0x288] sm:$0xff]
    %v276 = vld [vmem:[#allocation8 + $0x290] sm:$0xff]
    %v277 = vld [vmem:[#allocation8 + $0x298] sm:$0xff]
    %v278 = vld [vmem:[#allocation8 + $0x2a0] sm:$0xff]
    %v279 = vld [vmem:[#allocation8 + $0x2a8] sm:$0xff]
    %v280 = vld [vmem:[#allocation8 + $0x2b0] sm:$0xff]
    %v281 = vld [vmem:[#allocation8 + $0x2b8] sm:$0xff]
    %v282 = vld [vmem:[#allocation8 + $0x2c0] sm:$0xff]
    %v283 = vld [vmem:[#allocation8 + $0x2c8] sm:$0xff]
    %v284 = vld [vmem:[#allocation8 + $0x2d0] sm:$0xff]
    %v285 = vld [vmem:[#allocation8 + $0x2d8] sm:$0xff]
    %v286 = vld [vmem:[#allocation8 + $0x2e0] sm:$0xff]
    %v287 = vld [vmem:[#allocation8 + $0x2e8] sm:$0xff]
    %v288 = vld [vmem:[#allocation8 + $0x2f0] sm:$0xff]
    %v289 = vld [vmem:[#allocation8 + $0x2f8] sm:$0xff]
    %v290 = vld [vmem:[#allocation8 + $0x300] sm:$0xff]
    %v291 = vld [vmem:[#allocation8 + $0x308] sm:$0xff]
    %v292 = vld [vmem:[#allocation8 + $0x310] sm:$0xff]
    %v293 = vld [vmem:[#allocation8 + $0x318] sm:$0xff]
    %v294 = vld [vmem:[#allocation8 + $0x320] sm:$0xff]
    %v295 = vld [vmem:[#allocation8 + $0x328] sm:$0xff]
    %v296 = vld [vmem:[#allocation8 + $0x330] sm:$0xff]
    %v297 = vld [vmem:[#allocation8 + $0x338] sm:$0xff]
    %v298 = vld [vmem:[#allocation8 + $0x340] sm:$0xff]
    %v299 = vld [vmem:[#allocation8 + $0x348] sm:$0xff]
    %v300 = vld [vmem:[#allocation8 + $0x350] sm:$0xff]
    %v301 = vld [vmem:[#allocation8 + $0x358] sm:$0xff]
    %v302 = vld [vmem:[#allocation8 + $0x360] sm:$0xff]
    %v303 = vld [vmem:[#allocation8 + $0x368] sm:$0xff]
    %v304 = vld [vmem:[#allocation8 + $0x370] sm:$0xff]
    %v305 = vld [vmem:[#allocation8 + $0x378] sm:$0xff]
    %v306 = vld [vmem:[#allocation8 + $0x380] sm:$0xff]
    %v307 = vld [vmem:[#allocation8 + $0x388] sm:$0xff]
    %v308 = vld [vmem:[#allocation8 + $0x390] sm:$0xff]
    %v309 = vld [vmem:[#allocation8 + $0x398] sm:$0xff]
    %v310 = vld [vmem:[#allocation8 + $0x3a0] sm:$0xff]
    %v311 = vld [vmem:[#allocation8 + $0x3a8] sm:$0xff]
    %v312 = vld [vmem:[#allocation8 + $0x3b0] sm:$0xff]
    %v313 = vld [vmem:[#allocation8 + $0x3b8] sm:$0xff]
    %v314 = vld [vmem:[#allocation8 + $0x3c0] sm:$0xff]
    %v315 = vld [vmem:[#allocation8 + $0x3c8] sm:$0xff]
    %v316 = vld [vmem:[#allocation8 + $0x3d0] sm:$0xff]
    %v317 = vld [vmem:[#allocation8 + $0x3d8] sm:$0xff]
    %v318 = vld [vmem:[#allocation8 + $0x3e0] sm:$0xff]
    %v319 = vld [vmem:[#allocation8 + $0x3e8] sm:$0xff]
    %v320 = vld [vmem:[#allocation8 + $0x3f0] sm:$0xff]
    %v321 = vld [vmem:[#allocation8 + $0x3f8] sm:$0xff]
    %v322 = vld [vmem:[#allocation8 + $0x400] sm:$0xff]
    %v323 = vld [vmem:[#allocation8 + $0x408] sm:$0xff]
    %v324 = vld [vmem:[#allocation8 + $0x410] sm:$0xff]
    %v325 = vld [vmem:[#allocation8 + $0x418] sm:$0xff]
    %v326 = vld [vmem:[#allocation8 + $0x420] sm:$0xff]
    %v327 = vld [vmem:[#allocation8 + $0x428] sm:$0xff]
    %v328 = vld [vmem:[#allocation8 + $0x430] sm:$0xff]
    %v329 = vld [vmem:[#allocation8 + $0x438] sm:$0xff]
    %v330 = vld [vmem:[#allocation8 + $0x440] sm:$0xff]
    %v331 = vld [vmem:[#allocation8 + $0x448] sm:$0xff]
    %v332 = vld [vmem:[#allocation8 + $0x450] sm:$0xff]
    %v333 = vld [vmem:[#allocation8 + $0x458] sm:$0xff]
    %v334 = vld [vmem:[#allocation8 + $0x460] sm:$0xff]
    %v335 = vld [vmem:[#allocation8 + $0x468] sm:$0xff]
    %v336 = vld [vmem:[#allocation8 + $0x470] sm:$0xff]
    %v337 = vld [vmem:[#allocation8 + $0x478] sm:$0xff]
    %v338 = vld [vmem:[#allocation8 + $0x480] sm:$0xff]
    %v339 = vld [vmem:[#allocation8 + $0x488] sm:$0xff]
    %v340 = vld [vmem:[#allocation8 + $0x490] sm:$0xff]
    %v341 = vld [vmem:[#allocation8 + $0x498] sm:$0xff]
    %v342 = vld [vmem:[#allocation8 + $0x4a0] sm:$0xff]
    %v343 = vld [vmem:[#allocation8 + $0x4a8] sm:$0xff]
    %v344 = vld [vmem:[#allocation8 + $0x4b0] sm:$0xff]
    %v345 = vld [vmem:[#allocation8 + $0x4b8] sm:$0xff]
    %v346 = vld [vmem:[#allocation8 + $0x4c0] sm:$0xff]
    %v347 = vld [vmem:[#allocation8 + $0x4c8] sm:$0xff]
    %v348 = vld [vmem:[#allocation8 + $0x4d0] sm:$0xff]
    %v349 = vld [vmem:[#allocation8 + $0x4d8] sm:$0xff]
    %v350 = vld [vmem:[#allocation8 + $0x4e0] sm:$0xff]
    %v351 = vld [vmem:[#allocation8 + $0x4e8] sm:$0xff]
    %v352 = vld [vmem:[#allocation8 + $0x4f0] sm:$0xff]
    %v353 = vld [vmem:[#allocation8 + $0x4f8] sm:$0xff]
    %v354 = vld [vmem:[#allocation8 + $0x500] sm:$0xff]
    %v355 = vld [vmem:[#allocation8 + $0x508] sm:$0xff]
    %v356 = vld [vmem:[#allocation8 + $0x510] sm:$0xff]
    %v357 = vld [vmem:[#allocation8 + $0x518] sm:$0xff]
    %v358 = vld [vmem:[#allocation8 + $0x520] sm:$0xff]
    %v359 = vld [vmem:[#allocation8 + $0x528] sm:$0xff]
    %v360 = vld [vmem:[#allocation8 + $0x530] sm:$0xff]
    %v361 = vld [vmem:[#allocation8 + $0x538] sm:$0xff]
    %v362 = vld [vmem:[#allocation8 + $0x540] sm:$0xff]
    %v363 = vld [vmem:[#allocation8 + $0x548] sm:$0xff]
    %v364 = vld [vmem:[#allocation8 + $0x550] sm:$0xff]
    %v365 = vld [vmem:[#allocation8 + $0x558] sm:$0xff]
    %v366 = vld [vmem:[#allocation8 + $0x560] sm:$0xff]
    %v367 = vld [vmem:[#allocation8 + $0x568] sm:$0xff]
    %v368 = vld [vmem:[#allocation8 + $0x570] sm:$0xff]
    %v369 = vld [vmem:[#allocation8 + $0x578] sm:$0xff]
    %v370 = vld [vmem:[#allocation8 + $0x580] sm:$0xff]
    %v371 = vld [vmem:[#allocation8 + $0x588] sm:$0xff]
    %v372 = vld [vmem:[#allocation8 + $0x590] sm:$0xff]
    %v373 = vld [vmem:[#allocation8 + $0x598] sm:$0xff]
    %v374 = vld [vmem:[#allocation8 + $0x5a0] sm:$0xff]
    %v375 = vld [vmem:[#allocation8 + $0x5a8] sm:$0xff]
    %v376 = vld [vmem:[#allocation8 + $0x5b0] sm:$0xff]
    %v377 = vld [vmem:[#allocation8 + $0x5b8] sm:$0xff]
    %v378 = vld [vmem:[#allocation8 + $0x5c0] sm:$0xff]
    %v379 = vld [vmem:[#allocation8 + $0x5c8] sm:$0xff]
    %v380 = vld [vmem:[#allocation8 + $0x5d0] sm:$0xff]
    %v381 = vld [vmem:[#allocation8 + $0x5d8] sm:$0xff]
    %v382 = vld [vmem:[#allocation8 + $0x5e0] sm:$0xff]
    %v383 = vld [vmem:[#allocation8 + $0x5e8] sm:$0xff]
    %v384 = vld [vmem:[#allocation8 + $0x5f0] sm:$0xff]
    %v385 = vld [vmem:[#allocation8 + $0x5f8] sm:$0xff]
    %v386 = vld [vmem:[#allocation8 + $0x600] sm:$0xff]
    %v387 = vld [vmem:[#allocation8 + $0x608] sm:$0xff]
    %v388 = vld [vmem:[#allocation8 + $0x610] sm:$0xff]
    %v389 = vld [vmem:[#allocation8 + $0x618] sm:$0xff]
    %v390 = vld [vmem:[#allocation8 + $0x620] sm:$0xff]
    %v391 = vld [vmem:[#allocation8 + $0x628] sm:$0xff]
    %v392 = vld [vmem:[#allocation8 + $0x630] sm:$0xff]
    %v393 = vld [vmem:[#allocation8 + $0x638] sm:$0xff]
    %v394 = vld [vmem:[#allocation8 + $0x640] sm:$0xff]
    %v395 = vld [vmem:[#allocation8 + $0x648] sm:$0xff]
    %v396 = vld [vmem:[#allocation8 + $0x650] sm:$0xff]
    %v397 = vld [vmem:[#allocation8 + $0x658] sm:$0xff]
    %v398 = vld [vmem:[#allocation8 + $0x660] sm:$0xff]
    %v399 = vld [vmem:[#allocation8 + $0x668] sm:$0xff]
    %v400 = vld [vmem:[#allocation8 + $0x670] sm:$0xff]
    %v401 = vld [vmem:[#allocation8 + $0x678] sm:$0xff]
    %v402 = vld [vmem:[#allocation8 + $0x680] sm:$0xff]
    %v403 = vld [vmem:[#allocation8 + $0x688] sm:$0xff]
    %v404 = vld [vmem:[#allocation8 + $0x690] sm:$0xff]
    %v405 = vld [vmem:[#allocation8 + $0x698] sm:$0xff]
    %v406 = vld [vmem:[#allocation8 + $0x6a0] sm:$0xff]
    %v407 = vld [vmem:[#allocation8 + $0x6a8] sm:$0xff]
    %v408 = vld [vmem:[#allocation8 + $0x6b0] sm:$0xff]
    %v409 = vld [vmem:[#allocation8 + $0x6b8] sm:$0xff]
    %v410 = vld [vmem:[#allocation8 + $0x6c0] sm:$0xff]
    %v411 = vld [vmem:[#allocation8 + $0x6c8] sm:$0xff]
    %v412 = vld [vmem:[#allocation8 + $0x6d0] sm:$0xff]
    %v413 = vld [vmem:[#allocation8 + $0x6d8] sm:$0xff]
    %v414 = vld [vmem:[#allocation8 + $0x6e0] sm:$0xff]
    %v415 = vld [vmem:[#allocation8 + $0x6e8] sm:$0xff]
    %v416 = vld [vmem:[#allocation8 + $0x6f0] sm:$0xff]
    %v417 = vld [vmem:[#allocation8 + $0x6f8] sm:$0xff]
    %v418 = vld [vmem:[#allocation8 + $0x700] sm:$0xff]
    %v419 = vld [vmem:[#allocation8 + $0x708] sm:$0xff]
    %v420 = vld [vmem:[#allocation8 + $0x710] sm:$0xff]
    %v421 = vld [vmem:[#allocation8 + $0x718] sm:$0xff]
    %v422 = vld [vmem:[#allocation8 + $0x720] sm:$0xff]
    %v423 = vld [vmem:[#allocation8 + $0x728] sm:$0xff]
    %v424 = vld [vmem:[#allocation8 + $0x730] sm:$0xff]
    %v425 = vld [vmem:[#allocation8 + $0x738] sm:$0xff]
    %v426 = vld [vmem:[#allocation8 + $0x740] sm:$0xff]
    %v427 = vld [vmem:[#allocation8 + $0x748] sm:$0xff]
    %v428 = vld [vmem:[#allocation8 + $0x750] sm:$0xff]
    %v429 = vld [vmem:[#allocation8 + $0x758] sm:$0xff]
    %v430 = vld [vmem:[#allocation8 + $0x760] sm:$0xff]
    %v431 = vld [vmem:[#allocation8 + $0x768] sm:$0xff]
    %v432 = vld [vmem:[#allocation8 + $0x770] sm:$0xff]
    %v433 = vld [vmem:[#allocation8 + $0x778] sm:$0xff]
    %v434 = vld [vmem:[#allocation8 + $0x780] sm:$0xff]
    %v435 = vld [vmem:[#allocation8 + $0x788] sm:$0xff]
    %v436 = vld [vmem:[#allocation8 + $0x790] sm:$0xff]
    %v437 = vld [vmem:[#allocation8 + $0x798] sm:$0xff]
    %v438 = vld [vmem:[#allocation8 + $0x7a0] sm:$0xff]
    %v439 = vld [vmem:[#allocation8 + $0x7a8] sm:$0xff]
    %v440 = vld [vmem:[#allocation8 + $0x7b0] sm:$0xff]
    %v441 = vld [vmem:[#allocation8 + $0x7b8] sm:$0xff]
    %v442 = vld [vmem:[#allocation8 + $0x7c0] sm:$0xff]
    %v443 = vld [vmem:[#allocation8 + $0x7c8] sm:$0xff]
    %v444 = vld [vmem:[#allocation8 + $0x7d0] sm:$0xff]
    %v445 = vld [vmem:[#allocation8 + $0x7d8] sm:$0xff]
    %v446 = vld [vmem:[#allocation8 + $0x7e0] sm:$0xff]
    %v447 = vld [vmem:[#allocation8 + $0x7e8] sm:$0xff]
    %v448 = vld [vmem:[#allocation8 + $0x7f0] sm:$0xff]
    %v449 = vld [vmem:[#allocation8 + $0x7f8] sm:$0xff]
    %v450 = vld [vmem:[#allocation8 + $0x800] sm:$0xff]
    %v451 = vld [vmem:[#allocation8 + $0x808] sm:$0xff]
    %v452 = vld [vmem:[#allocation8 + $0x810] sm:$0xff]
    %v453 = vld [vmem:[#allocation8 + $0x818] sm:$0xff]
    %v454 = vld [vmem:[#allocation8 + $0x820] sm:$0xff]
    %v455 = vld [vmem:[#allocation8 + $0x828] sm:$0xff]
    %v456 = vld [vmem:[#allocation8 + $0x830] sm:$0xff]
    %v457 = vld [vmem:[#allocation8 + $0x838] sm:$0xff]
    %v458 = vld [vmem:[#allocation8 + $0x840] sm:$0xff]
    %v459 = vld [vmem:[#allocation8 + $0x848] sm:$0xff]
    %v460 = vld [vmem:[#allocation8 + $0x850] sm:$0xff]
    %v461 = vld [vmem:[#allocation8 + $0x858] sm:$0xff]
    %v462 = vld [vmem:[#allocation8 + $0x860] sm:$0xff]
    %v463 = vld [vmem:[#allocation8 + $0x868] sm:$0xff]
    %v464 = vld [vmem:[#allocation8 + $0x870] sm:$0xff]
    %v465 = vld [vmem:[#allocation8 + $0x878] sm:$0xff]
    %v466 = vld [vmem:[#allocation8 + $0x880] sm:$0xff]
    %v467 = vld [vmem:[#allocation8 + $0x888] sm:$0xff]
    %v468 = vld [vmem:[#allocation8 + $0x890] sm:$0xff]
    %v469 = vld [vmem:[#allocation8 + $0x898] sm:$0xff]
    %v470 = vld [vmem:[#allocation8 + $0x8a0] sm:$0xff]
    %v471 = vld [vmem:[#allocation8 + $0x8a8] sm:$0xff]
    %v472 = vld [vmem:[#allocation8 + $0x8b0] sm:$0xff]
    %v473 = vld [vmem:[#allocation8 + $0x8b8] sm:$0xff]
    %v474 = vld [vmem:[#allocation8 + $0x8c0] sm:$0xff]
    %v475 = vld [vmem:[#allocation8 + $0x8c8] sm:$0xff]
    %v476 = vld [vmem:[#allocation8 + $0x8d0] sm:$0xff]
    %v477 = vld [vmem:[#allocation8 + $0x8d8] sm:$0xff]
    %v478 = vld [vmem:[#allocation8 + $0x8e0] sm:$0xff]
    %v479 = vld [vmem:[#allocation8 + $0x8e8] sm:$0xff]
    %v480 = vld [vmem:[#allocation8 + $0x8f0] sm:$0xff]
    %v481 = vld [vmem:[#allocation8 + $0x8f8] sm:$0xff]
    %v482 = vld [vmem:[#allocation8 + $0x900] sm:$0xff]
    %v483 = vld [vmem:[#allocation8 + $0x908] sm:$0xff]
    %v484 = vld [vmem:[#allocation8 + $0x910] sm:$0xff]
    %v485 = vld [vmem:[#allocation8 + $0x918] sm:$0xff]
    %v486 = vld [vmem:[#allocation8 + $0x920] sm:$0xff]
    %v487 = vld [vmem:[#allocation8 + $0x928] sm:$0xff]
    %v488 = vld [vmem:[#allocation8 + $0x930] sm:$0xff]
    %v489 = vld [vmem:[#allocation8 + $0x938] sm:$0xff]
    %v490 = vld [vmem:[#allocation8 + $0x940] sm:$0xff]
    %v491 = vld [vmem:[#allocation8 + $0x948] sm:$0xff]
    %v492 = vld [vmem:[#allocation8 + $0x950] sm:$0xff]
    %v493 = vld [vmem:[#allocation8 + $0x958] sm:$0xff]
    %v494 = vld [vmem:[#allocation8 + $0x960] sm:$0xff]
    %v495 = vld [vmem:[#allocation8 + $0x968] sm:$0xff]
    %v496 = vld [vmem:[#allocation8 + $0x970] sm:$0xff]
    %v497 = vld [vmem:[#allocation8 + $0x978] sm:$0xff]
    %v498 = vld [vmem:[#allocation8 + $0x980] sm:$0xff]
    %v499 = vld [vmem:[#allocation8 + $0x988] sm:$0xff]
    %v500 = vld [vmem:[#allocation8 + $0x990] sm:$0xff]
    %v501 = vld [vmem:[#allocation8 + $0x998] sm:$0xff]
    %v502 = vld [vmem:[#allocation8 + $0x9a0] sm:$0xff]
    %v503 = vld [vmem:[#allocation8 + $0x9a8] sm:$0xff]
    %v504 = vld [vmem:[#allocation8 + $0x9b0] sm:$0xff]
    %v505 = vld [vmem:[#allocation8 + $0x9b8] sm:$0xff]
    %v506 = vld [vmem:[#allocation8 + $0x9c0] sm:$0xff]
    %v507 = vld [vmem:[#allocation8 + $0x9c8] sm:$0xff]
    %v508 = vld [vmem:[#allocation8 + $0x9d0] sm:$0xff]
    %v509 = vld [vmem:[#allocation8 + $0x9d8] sm:$0xff]
    %v510 = vld [vmem:[#allocation8 + $0x9e0] sm:$0xff]
    %v511 = vld [vmem:[#allocation8 + $0x9e8] sm:$0xff]
    %v512 = vld [vmem:[#allocation8 + $0x9f0] sm:$0xff]
    %v513 = vld [vmem:[#allocation8 + $0x9f8] sm:$0xff]
    %v514 = vld [vmem:[#allocation8 + $0xa00] sm:$0xff]
    %v515 = vld [vmem:[#allocation8 + $0xa08] sm:$0xff]
    %v516 = vld [vmem:[#allocation8 + $0xa10] sm:$0xff]
    %v517 = vld [vmem:[#allocation8 + $0xa18] sm:$0xff]
    %v518 = vld [vmem:[#allocation8 + $0xa20] sm:$0xff]
    %v519 = vld [vmem:[#allocation8 + $0xa28] sm:$0xff]
    %v520 = vld [vmem:[#allocation8 + $0xa30] sm:$0xff]
    %v521 = vld [vmem:[#allocation8 + $0xa38] sm:$0xff]
    %v522 = vld [vmem:[#allocation8 + $0xa40] sm:$0xff]
    %v523 = vld [vmem:[#allocation8 + $0xa48] sm:$0xff]
    %v524 = vld [vmem:[#allocation8 + $0xa50] sm:$0xff]
    %v525 = vld [vmem:[#allocation8 + $0xa58] sm:$0xff]
    %v526 = vld [vmem:[#allocation8 + $0xa60] sm:$0xff]
    %v527 = vld [vmem:[#allocation8 + $0xa68] sm:$0xff]
    %v528 = vld [vmem:[#allocation8 + $0xa70] sm:$0xff]
    %v529 = vld [vmem:[#allocation8 + $0xa78] sm:$0xff]
    %v530 = vld [vmem:[#allocation8 + $0xa80] sm:$0xff]
    %v531 = vld [vmem:[#allocation8 + $0xa88] sm:$0xff]
    %v532 = vld [vmem:[#allocation8 + $0xa90] sm:$0xff]
    %v533 = vld [vmem:[#allocation8 + $0xa98] sm:$0xff]
    %v534 = vld [vmem:[#allocation8 + $0xaa0] sm:$0xff]
    %v535 = vld [vmem:[#allocation8 + $0xaa8] sm:$0xff]
    %v536 = vld [vmem:[#allocation8 + $0xab0] sm:$0xff]
    %v537 = vld [vmem:[#allocation8 + $0xab8] sm:$0xff]
    %v538 = vld [vmem:[#allocation8 + $0xac0] sm:$0xff]
    %v539 = vld [vmem:[#allocation8 + $0xac8] sm:$0xff]
    %v540 = vld [vmem:[#allocation8 + $0xad0] sm:$0xff]
    %v541 = vld [vmem:[#allocation8 + $0xad8] sm:$0xff]
    %v542 = vld [vmem:[#allocation8 + $0xae0] sm:$0xff]
    %v543 = vld [vmem:[#allocation8 + $0xae8] sm:$0xff]
    %v544 = vld [vmem:[#allocation8 + $0xaf0] sm:$0xff]
    %v545 = vld [vmem:[#allocation8 + $0xaf8] sm:$0xff]
    %v546 = vld [vmem:[#allocation8 + $0xb00] sm:$0xff]
    %v547 = vld [vmem:[#allocation8 + $0xb08] sm:$0xff]
    %v548 = vld [vmem:[#allocation8 + $0xb10] sm:$0xff]
    %v549 = vld [vmem:[#allocation8 + $0xb18] sm:$0xff]
    %v550 = vld [vmem:[#allocation8 + $0xb20] sm:$0xff]
    %v551 = vld [vmem:[#allocation8 + $0xb28] sm:$0xff]
    %v552 = vld [vmem:[#allocation8 + $0xb30] sm:$0xff]
    %v553 = vld [vmem:[#allocation8 + $0xb38] sm:$0xff]
    %v554 = vld [vmem:[#allocation8 + $0xb40] sm:$0xff]
    %v555 = vld [vmem:[#allocation8 + $0xb48] sm:$0xff]
    %v556 = vld [vmem:[#allocation8 + $0xb50] sm:$0xff]
    %v557 = vld [vmem:[#allocation8 + $0xb58] sm:$0xff]
    %v558 = vld [vmem:[#allocation8 + $0xb60] sm:$0xff]
    %v559 = vld [vmem:[#allocation8 + $0xb68] sm:$0xff]
    %v560 = vld [vmem:[#allocation8 + $0xb70] sm:$0xff]
    %v561 = vld [vmem:[#allocation8 + $0xb78] sm:$0xff]
    %v562 = vld [vmem:[#allocation8 + $0xb80] sm:$0xff]
    %v563 = vld [vmem:[#allocation8 + $0xb88] sm:$0xff]
    %v564 = vld [vmem:[#allocation8 + $0xb90] sm:$0xff]
    %v565 = vld [vmem:[#allocation8 + $0xb98] sm:$0xff]
    %v566 = vld [vmem:[#allocation8 + $0xba0] sm:$0xff]
    %v567 = vld [vmem:[#allocation8 + $0xba8] sm:$0xff]
    %v568 = vld [vmem:[#allocation8 + $0xbb0] sm:$0xff]
    %v569 = vld [vmem:[#allocation8 + $0xbb8] sm:$0xff]
    %v570 = vld [vmem:[#allocation8 + $0xbc0] sm:$0xff]
    %v571 = vld [vmem:[#allocation8 + $0xbc8] sm:$0xff]
    %v572 = vld [vmem:[#allocation8 + $0xbd0] sm:$0xff]
    %v573 = vld [vmem:[#allocation8 + $0xbd8] sm:$0xff]
    %v574 = vld [vmem:[#allocation8 + $0xbe0] sm:$0xff]
    %v575 = vld [vmem:[#allocation8 + $0xbe8] sm:$0xff]
    %v576 = vld [vmem:[#allocation8 + $0xbf0] sm:$0xff]
    %v577 = vld [vmem:[#allocation8 + $0xbf8] sm:$0xff]
    %v578 = vld [vmem:[#allocation8 + $0xc00] sm:$0xff]
    %v579 = vld [vmem:[#allocation8 + $0xc08] sm:$0xff]
    %v580 = vld [vmem:[#allocation8 + $0xc10] sm:$0xff]
    %v581 = vld [vmem:[#allocation8 + $0xc18] sm:$0xff]
    %v582 = vld [vmem:[#allocation8 + $0xc20] sm:$0xff]
    %v583 = vld [vmem:[#allocation8 + $0xc28] sm:$0xff]
    %v584 = vld [vmem:[#allocation8 + $0xc30] sm:$0xff]
    %v585 = vld [vmem:[#allocation8 + $0xc38] sm:$0xff]
    %v586 = vld [vmem:[#allocation8 + $0xc40] sm:$0xff]
    %v587 = vld [vmem:[#allocation8 + $0xc48] sm:$0xff]
    %v588 = vld [vmem:[#allocation8 + $0xc50] sm:$0xff]
    %v589 = vld [vmem:[#allocation8 + $0xc58] sm:$0xff]
    %v590 = vld [vmem:[#allocation8 + $0xc60] sm:$0xff]
    %v591 = vld [vmem:[#allocation8 + $0xc68] sm:$0xff]
    %v592 = vld [vmem:[#allocation8 + $0xc70] sm:$0xff]
    %v593 = vld [vmem:[#allocation8 + $0xc78] sm:$0xff]
    %v594 = vld [vmem:[#allocation8 + $0xc80] sm:$0xff]
    %v595 = vld [vmem:[#allocation8 + $0xc88] sm:$0xff]
    %v596 = vld [vmem:[#allocation8 + $0xc90] sm:$0xff]
    %v597 = vld [vmem:[#allocation8 + $0xc98] sm:$0xff]
    %v598 = vld [vmem:[#allocation8 + $0xca0] sm:$0xff]
    %v599 = vld [vmem:[#allocation8 + $0xca8] sm:$0xff]
    %v600 = vld [vmem:[#allocation8 + $0xcb0] sm:$0xff]
    %v601 = vld [vmem:[#allocation8 + $0xcb8] sm:$0xff]
    %v602 = vld [vmem:[#allocation8 + $0xcc0] sm:$0xff]
    %v603 = vld [vmem:[#allocation8 + $0xcc8] sm:$0xff]
    %v604 = vld [vmem:[#allocation8 + $0xcd0] sm:$0xff]
    %v605 = vld [vmem:[#allocation8 + $0xcd8] sm:$0xff]
    %v606 = vld [vmem:[#allocation8 + $0xce0] sm:$0xff]
    %v607 = vld [vmem:[#allocation8 + $0xce8] sm:$0xff]
    %v608 = vld [vmem:[#allocation8 + $0xcf0] sm:$0xff]
    %v609 = vld [vmem:[#allocation8 + $0xcf8] sm:$0xff]
    %v610 = vld [vmem:[#allocation8 + $0xd00] sm:$0xff]
    %v611 = vld [vmem:[#allocation8 + $0xd08] sm:$0xff]
    %v612 = vld [vmem:[#allocation8 + $0xd10] sm:$0xff]
    %v613 = vld [vmem:[#allocation8 + $0xd18] sm:$0xff]
    %v614 = vld [vmem:[#allocation8 + $0xd20] sm:$0xff]
    %v615 = vld [vmem:[#allocation8 + $0xd28] sm:$0xff]
    %v616 = vld [vmem:[#allocation8 + $0xd30] sm:$0xff]
    %v617 = vld [vmem:[#allocation8 + $0xd38] sm:$0xff]
    %v618 = vld [vmem:[#allocation8 + $0xd40] sm:$0xff]
    %v619 = vld [vmem:[#allocation8 + $0xd48] sm:$0xff]
    %v620 = vld [vmem:[#allocation8 + $0xd50] sm:$0xff]
    %v621 = vld [vmem:[#allocation8 + $0xd58] sm:$0xff]
    %v622 = vld [vmem:[#allocation8 + $0xd60] sm:$0xff]
    %v623 = vld [vmem:[#allocation8 + $0xd68] sm:$0xff]
    %v624 = vld [vmem:[#allocation8 + $0xd70] sm:$0xff]
    %v625 = vld [vmem:[#allocation8 + $0xd78] sm:$0xff]
    %v626 = vld [vmem:[#allocation8 + $0xd80] sm:$0xff]
    %v627 = vld [vmem:[#allocation8 + $0xd88] sm:$0xff]
    %v628 = vld [vmem:[#allocation8 + $0xd90] sm:$0xff]
    %v629 = vld [vmem:[#allocation8 + $0xd98] sm:$0xff]
    %v630 = vld [vmem:[#allocation8 + $0xda0] sm:$0xff]
    %v631 = vld [vmem:[#allocation8 + $0xda8] sm:$0xff]
    %v632 = vld [vmem:[#allocation8 + $0xdb0] sm:$0xff]
    %v633 = vld [vmem:[#allocation8 + $0xdb8] sm:$0xff]
    %v634 = vld [vmem:[#allocation8 + $0xdc0] sm:$0xff]
    %v635 = vld [vmem:[#allocation8 + $0xdc8] sm:$0xff]
    %v636 = vld [vmem:[#allocation8 + $0xdd0] sm:$0xff]
    %v637 = vld [vmem:[#allocation8 + $0xdd8] sm:$0xff]
    %v638 = vld [vmem:[#allocation8 + $0xde0] sm:$0xff]
    %v639 = vld [vmem:[#allocation8 + $0xde8] sm:$0xff]
    %v640 = vld [vmem:[#allocation8 + $0xdf0] sm:$0xff]
    %v641 = vld [vmem:[#allocation8 + $0xdf8] sm:$0xff]
    %v642 = vld [vmem:[#allocation8 + $0xe00] sm:$0xff]
    %v643 = vld [vmem:[#allocation8 + $0xe08] sm:$0xff]
    %v644 = vld [vmem:[#allocation8 + $0xe10] sm:$0xff]
    %v645 = vld [vmem:[#allocation8 + $0xe18] sm:$0xff]
    %v646 = vld [vmem:[#allocation8 + $0xe20] sm:$0xff]
    %v647 = vld [vmem:[#allocation8 + $0xe28] sm:$0xff]
    %v648 = vld [vmem:[#allocation8 + $0xe30] sm:$0xff]
    %v649 = vld [vmem:[#allocation8 + $0xe38] sm:$0xff]
    %v650 = vld [vmem:[#allocation8 + $0xe40] sm:$0xff]
    %v651 = vld [vmem:[#allocation8 + $0xe48] sm:$0xff]
    %v652 = vld [vmem:[#allocation8 + $0xe50] sm:$0xff]
    %v653 = vld [vmem:[#allocation8 + $0xe58] sm:$0xff]
    %v654 = vld [vmem:[#allocation8 + $0xe60] sm:$0xff]
    %v655 = vld [vmem:[#allocation8 + $0xe68] sm:$0xff]
    %v656 = vld [vmem:[#allocation8 + $0xe70] sm:$0xff]
    %v657 = vld [vmem:[#allocation8 + $0xe78] sm:$0xff]
    %v658 = vld [vmem:[#allocation8 + $0xe80] sm:$0xff]
    %v659 = vld [vmem:[#allocation8 + $0xe88] sm:$0xff]
    %v660 = vld [vmem:[#allocation8 + $0xe90] sm:$0xff]
    %v661 = vld [vmem:[#allocation8 + $0xe98] sm:$0xff]
    %v662 = vld [vmem:[#allocation8 + $0xea0] sm:$0xff]
    %v663 = vld [vmem:[#allocation8 + $0xea8] sm:$0xff]
    %v664 = vld [vmem:[#allocation8 + $0xeb0] sm:$0xff]
    %v665 = vld [vmem:[#allocation8 + $0xeb8] sm:$0xff]
    %v666 = vld [vmem:[#allocation8 + $0xec0] sm:$0xff]
    %v667 = vld [vmem:[#allocation8 + $0xec8] sm:$0xff]
    %v668 = vld [vmem:[#allocation8 + $0xed0] sm:$0xff]
    %v669 = vld [vmem:[#allocation8 + $0xed8] sm:$0xff]
    %v670 = vld [vmem:[#allocation8 + $0xee0] sm:$0xff]
    %v671 = vld [vmem:[#allocation8 + $0xee8] sm:$0xff]
    %v672 = vld [vmem:[#allocation8 + $0xef0] sm:$0xff]
    %v673 = vld [vmem:[#allocation8 + $0xef8] sm:$0xff]
    %v674 = vld [vmem:[#allocation8 + $0xf00] sm:$0xff]
    %v675 = vld [vmem:[#allocation8 + $0xf08] sm:$0xff]
    %v676 = vld [vmem:[#allocation8 + $0xf10] sm:$0xff]
    %v677 = vld [vmem:[#allocation8 + $0xf18] sm:$0xff]
    %v678 = vld [vmem:[#allocation8 + $0xf20] sm:$0xff]
    %v679 = vld [vmem:[#allocation8 + $0xf28] sm:$0xff]
    %v680 = vld [vmem:[#allocation8 + $0xf30] sm:$0xff]
    %v681 = vld [vmem:[#allocation8 + $0xf38] sm:$0xff]
    %v682 = vld [vmem:[#allocation8 + $0xf40] sm:$0xff]
    %v683 = vld [vmem:[#allocation8 + $0xf48] sm:$0xff]
    %v684 = vld [vmem:[#allocation8 + $0xf50] sm:$0xff]
    %v685 = vld [vmem:[#allocation8 + $0xf58] sm:$0xff]
    %v686 = vld [vmem:[#allocation8 + $0xf60] sm:$0xff]
    %v687 = vld [vmem:[#allocation8 + $0xf68] sm:$0xff]
    %v688 = vld [vmem:[#allocation8 + $0xf70] sm:$0xff]
    %v689 = vld [vmem:[#allocation8 + $0xf78] sm:$0xff]
    %v690 = vld [vmem:[#allocation8 + $0xf80] sm:$0xff]
    %v691 = vld [vmem:[#allocation8 + $0xf88] sm:$0xff]
    %v692 = vld [vmem:[#allocation8 + $0xf90] sm:$0xff]
    %v693 = vld [vmem:[#allocation8 + $0xf98] sm:$0xff]
    %v694 = vld [vmem:[#allocation8 + $0xfa0] sm:$0xff]
    %v695 = vld [vmem:[#allocation8 + $0xfa8] sm:$0xff]
    %v696 = vld [vmem:[#allocation8 + $0xfb0] sm:$0xff]
    %v697 = vld [vmem:[#allocation8 + $0xfb8] sm:$0xff]
    %v698 = vld [vmem:[#allocation8 + $0xfc0] sm:$0xff]
    %v699 = vld [vmem:[#allocation8 + $0xfc8] sm:$0xff]
    %v700 = vld [vmem:[#allocation8 + $0xfd0] sm:$0xff]
    %v701 = vld [vmem:[#allocation8 + $0xfd8] sm:$0xff]
    %v702 = vld [vmem:[#allocation8 + $0xfe0] sm:$0xff]
    %v703 = vld [vmem:[#allocation8 + $0xfe8] sm:$0xff]
    %v704 = vld [vmem:[#allocation8 + $0xff0] sm:$0xff]
    %v705 = vld [vmem:[#allocation8 + $0xff8] sm:$0xff]
    %v706 = vld [vmem:[#allocation8 + $0x1000] sm:$0xff]
    %v707 = vld [vmem:[#allocation8 + $0x1008] sm:$0xff]
    %v708 = vld [vmem:[#allocation8 + $0x1010] sm:$0xff]
    %v709 = vld [vmem:[#allocation8 + $0x1018] sm:$0xff]
    %v710 = vld [vmem:[#allocation8 + $0x1020] sm:$0xff]
    %v711 = vld [vmem:[#allocation8 + $0x1028] sm:$0xff]
    %v712 = vld [vmem:[#allocation8 + $0x1030] sm:$0xff]
    %v713 = vld [vmem:[#allocation8 + $0x1038] sm:$0xff]
    %v714 = vld [vmem:[#allocation8 + $0x1040] sm:$0xff]
    %v715 = vld [vmem:[#allocation8 + $0x1048] sm:$0xff]
    %v716 = vld [vmem:[#allocation8 + $0x1050] sm:$0xff]
    %v717 = vld [vmem:[#allocation8 + $0x1058] sm:$0xff]
    %v718 = vld [vmem:[#allocation8 + $0x1060] sm:$0xff]
    %v719 = vld [vmem:[#allocation8 + $0x1068] sm:$0xff]
    %v720 = vld [vmem:[#allocation8 + $0x1070] sm:$0xff]
    %v721 = vld [vmem:[#allocation8 + $0x1078] sm:$0xff]
    %v722 = vld [vmem:[#allocation8 + $0x1080] sm:$0xff]
    %v723 = vld [vmem:[#allocation8 + $0x1088] sm:$0xff]
    %v724 = vld [vmem:[#allocation8 + $0x1090] sm:$0xff]
    %v725 = vld [vmem:[#allocation8 + $0x1098] sm:$0xff]
    %v726 = vld [vmem:[#allocation8 + $0x10a0] sm:$0xff]
    %v727 = vld [vmem:[#allocation8 + $0x10a8] sm:$0xff]
    %v728 = vld [vmem:[#allocation8 + $0x10b0] sm:$0xff]
    %v729 = vld [vmem:[#allocation8 + $0x10b8] sm:$0xff]
    %v730 = vld [vmem:[#allocation8 + $0x10c0] sm:$0xff]
    %v731 = vld [vmem:[#allocation8 + $0x10c8] sm:$0xff]
    %v732 = vld [vmem:[#allocation8 + $0x10d0] sm:$0xff]
    %v733 = vld [vmem:[#allocation8 + $0x10d8] sm:$0xff]
    %v734 = vld [vmem:[#allocation8 + $0x10e0] sm:$0xff]
    %v735 = vld [vmem:[#allocation8 + $0x10e8] sm:$0xff]
    %v736 = vld [vmem:[#allocation8 + $0x10f0] sm:$0xff]
    %v737 = vld [vmem:[#allocation8 + $0x10f8] sm:$0xff]
    %v738 = vld [vmem:[#allocation8 + $0x1100] sm:$0xff]
    %v739 = vld [vmem:[#allocation8 + $0x1108] sm:$0xff]
    %v740 = vld [vmem:[#allocation8 + $0x1110] sm:$0xff]
    %v741 = vld [vmem:[#allocation8 + $0x1118] sm:$0xff]
    %v742 = vld [vmem:[#allocation8 + $0x1120] sm:$0xff]
    %v743 = vld [vmem:[#allocation8 + $0x1128] sm:$0xff]
    %v744 = vld [vmem:[#allocation8 + $0x1130] sm:$0xff]
    %v745 = vld [vmem:[#allocation8 + $0x1138] sm:$0xff]
    %v746 = vld [vmem:[#allocation8 + $0x1140] sm:$0xff]
    %v747 = vld [vmem:[#allocation8 + $0x1148] sm:$0xff]
    %v748 = vld [vmem:[#allocation8 + $0x1150] sm:$0xff]
    %v749 = vld [vmem:[#allocation8 + $0x1158] sm:$0xff]
    %v750 = vld [vmem:[#allocation8 + $0x1160] sm:$0xff]
    %v751 = vld [vmem:[#allocation8 + $0x1168] sm:$0xff]
    %v752 = vld [vmem:[#allocation8 + $0x1170] sm:$0xff]
    %v753 = vld [vmem:[#allocation8 + $0x1178] sm:$0xff]
    %v754 = vld [vmem:[#allocation8 + $0x1180] sm:$0xff]
    %v755 = vld [vmem:[#allocation8 + $0x1188] sm:$0xff]
    %v756 = vld [vmem:[#allocation8 + $0x1190] sm:$0xff]
    %v757 = vld [vmem:[#allocation8 + $0x1198] sm:$0xff]
    %v758 = vld [vmem:[#allocation8 + $0x11a0] sm:$0xff]
    %v759 = vld [vmem:[#allocation8 + $0x11a8] sm:$0xff]
    %v760 = vld [vmem:[#allocation8 + $0x11b0] sm:$0xff]
    %v761 = vld [vmem:[#allocation8 + $0x11b8] sm:$0xff]
    %v762 = vld [vmem:[#allocation8 + $0x11c0] sm:$0xff]
    %v763 = vld [vmem:[#allocation8 + $0x11c8] sm:$0xff]
    %v764 = vld [vmem:[#allocation8 + $0x11d0] sm:$0xff]
    %v765 = vld [vmem:[#allocation8 + $0x11d8] sm:$0xff]
    %v766 = vld [vmem:[#allocation8 + $0x11e0] sm:$0xff]
    %v767 = vld [vmem:[#allocation8 + $0x11e8] sm:$0xff]
    %v768 = vld [vmem:[#allocation8 + $0x11f0] sm:$0xff]
    %v769 = vld [vmem:[#allocation8 + $0x11f8] sm:$0xff]
    %v770 = vld [vmem:[#allocation8 + $0x1200] sm:$0xff]
    %v771 = vld [vmem:[#allocation8 + $0x1208] sm:$0xff]
    %v772 = vld [vmem:[#allocation8 + $0x1210] sm:$0xff]
    %v773 = vld [vmem:[#allocation8 + $0x1218] sm:$0xff]
    %v774 = vld [vmem:[#allocation8 + $0x1220] sm:$0xff]
    %v775 = vld [vmem:[#allocation8 + $0x1228] sm:$0xff]
    %v776 = vld [vmem:[#allocation8 + $0x1230] sm:$0xff]
    %v777 = vld [vmem:[#allocation8 + $0x1238] sm:$0xff]
    %v778 = vld [vmem:[#allocation8 + $0x1240] sm:$0xff]
    %v779 = vld [vmem:[#allocation8 + $0x1248] sm:$0xff]
    %v780 = vld [vmem:[#allocation8 + $0x1250] sm:$0xff]
    %v781 = vld [vmem:[#allocation8 + $0x1258] sm:$0xff]
    %v782 = vld [vmem:[#allocation8 + $0x1260] sm:$0xff]
    %v783 = vld [vmem:[#allocation8 + $0x1268] sm:$0xff]
    %v784 = vld [vmem:[#allocation8 + $0x1270] sm:$0xff]
    %v785 = vld [vmem:[#allocation8 + $0x1278] sm:$0xff]
    %v786 = vld [vmem:[#allocation8 + $0x1280] sm:$0xff]
    %v787 = vld [vmem:[#allocation8 + $0x1288] sm:$0xff]
    %v788 = vld [vmem:[#allocation8 + $0x1290] sm:$0xff]
    %v789 = vld [vmem:[#allocation8 + $0x1298] sm:$0xff]
    %v790 = vld [vmem:[#allocation8 + $0x12a0] sm:$0xff]
    %v791 = vld [vmem:[#allocation8 + $0x12a8] sm:$0xff]
    %v792 = vld [vmem:[#allocation8 + $0x12b0] sm:$0xff]
    %v793 = vld [vmem:[#allocation8 + $0x12b8] sm:$0xff]
    %v794 = vld [vmem:[#allocation8 + $0x12c0] sm:$0xff]
    %v795 = vld [vmem:[#allocation8 + $0x12c8] sm:$0xff]
    %v796 = vld [vmem:[#allocation8 + $0x12d0] sm:$0xff]
    %v797 = vld [vmem:[#allocation8 + $0x12d8] sm:$0xff]
    %v798 = vld [vmem:[#allocation8 + $0x12e0] sm:$0xff]
    %v799 = vld [vmem:[#allocation8 + $0x12e8] sm:$0xff]
    %v800 = vld [vmem:[#allocation8 + $0x12f0] sm:$0xff]
    %v801 = vld [vmem:[#allocation8 + $0x12f8] sm:$0xff]
    %v802 = vld [vmem:[#allocation8 + $0x1300] sm:$0xff]
    %v803 = vld [vmem:[#allocation8 + $0x1308] sm:$0xff]
    %v804 = vld [vmem:[#allocation8 + $0x1310] sm:$0xff]
    %v805 = vld [vmem:[#allocation8 + $0x1318] sm:$0xff]
    %v806 = vld [vmem:[#allocation8 + $0x1320] sm:$0xff]
    %v807 = vld [vmem:[#allocation8 + $0x1328] sm:$0xff]
    %v808 = vld [vmem:[#allocation8 + $0x1330] sm:$0xff]
    %v809 = vld [vmem:[#allocation8 + $0x1338] sm:$0xff]
    %v810 = vld [vmem:[#allocation8 + $0x1340] sm:$0xff]
    %v811 = vld [vmem:[#allocation8 + $0x1348] sm:$0xff]
    %v812 = vld [vmem:[#allocation8 + $0x1350] sm:$0xff]
    %v813 = vld [vmem:[#allocation8 + $0x1358] sm:$0xff]
    %v814 = vld [vmem:[#allocation8 + $0x1360] sm:$0xff]
    %v815 = vld [vmem:[#allocation8 + $0x1368] sm:$0xff]
    %v816 = vld [vmem:[#allocation8 + $0x1370] sm:$0xff]
    %v817 = vld [vmem:[#allocation8 + $0x1378] sm:$0xff]
    %v818 = vld [vmem:[#allocation8 + $0x1380] sm:$0xff]
    %v819 = vld [vmem:[#allocation8 + $0x1388] sm:$0xff]
    %v820 = vld [vmem:[#allocation8 + $0x1390] sm:$0xff]
    %v821 = vld [vmem:[#allocation8 + $0x1398] sm:$0xff]
    %v822 = vld [vmem:[#allocation8 + $0x13a0] sm:$0xff]
    %v823 = vld [vmem:[#allocation8 + $0x13a8] sm:$0xff]
    %v824 = vld [vmem:[#allocation8 + $0x13b0] sm:$0xff]
    %v825 = vld [vmem:[#allocation8 + $0x13b8] sm:$0xff]
    %v826 = vld [vmem:[#allocation8 + $0x13c0] sm:$0xff]
    %v827 = vld [vmem:[#allocation8 + $0x13c8] sm:$0xff]
    %v828 = vld [vmem:[#allocation8 + $0x13d0] sm:$0xff]
    %v829 = vld [vmem:[#allocation8 + $0x13d8] sm:$0xff]
    %v830 = vld [vmem:[#allocation8 + $0x13e0] sm:$0xff]
    %v831 = vld [vmem:[#allocation8 + $0x13e8] sm:$0xff]
    %v832 = vld [vmem:[#allocation8 + $0x13f0] sm:$0xff]
    %v833 = vld [vmem:[#allocation8 + $0x13f8] sm:$0xff]
    %v834 = vld [vmem:[#allocation8 + $0x1400] sm:$0xff]
    %v835 = vld [vmem:[#allocation8 + $0x1408] sm:$0xff]
    %v836 = vld [vmem:[#allocation8 + $0x1410] sm:$0xff]
    %v837 = vld [vmem:[#allocation8 + $0x1418] sm:$0xff]
    %v838 = vld [vmem:[#allocation8 + $0x1420] sm:$0xff]
    %v839 = vld [vmem:[#allocation8 + $0x1428] sm:$0xff]
    %v840 = vld [vmem:[#allocation8 + $0x1430] sm:$0xff]
    %v841 = vld [vmem:[#allocation8 + $0x1438] sm:$0xff]
    %v842 = vld [vmem:[#allocation8 + $0x1440] sm:$0xff]
    %v843 = vld [vmem:[#allocation8 + $0x1448] sm:$0xff]
    %v844 = vld [vmem:[#allocation8 + $0x1450] sm:$0xff]
    %v845 = vld [vmem:[#allocation8 + $0x1458] sm:$0xff]
    %v846 = vld [vmem:[#allocation8 + $0x1460] sm:$0xff]
    %v847 = vld [vmem:[#allocation8 + $0x1468] sm:$0xff]
    %v848 = vld [vmem:[#allocation8 + $0x1470] sm:$0xff]
    %v849 = vld [vmem:[#allocation8 + $0x1478] sm:$0xff]
    %v850 = vld [vmem:[#allocation8 + $0x1480] sm:$0xff]
    %v851 = vld [vmem:[#allocation8 + $0x1488] sm:$0xff]
    %v852 = vld [vmem:[#allocation8 + $0x1490] sm:$0xff]
    %v853 = vld [vmem:[#allocation8 + $0x1498] sm:$0xff]
    %v854 = vld [vmem:[#allocation8 + $0x14a0] sm:$0xff]
    %v855 = vld [vmem:[#allocation8 + $0x14a8] sm:$0xff]
    %v856 = vld [vmem:[#allocation8 + $0x14b0] sm:$0xff]
    %v857 = vld [vmem:[#allocation8 + $0x14b8] sm:$0xff]
    %v858 = vld [vmem:[#allocation8 + $0x14c0] sm:$0xff]
    %v859 = vld [vmem:[#allocation8 + $0x14c8] sm:$0xff]
    %v860 = vld [vmem:[#allocation8 + $0x14d0] sm:$0xff]
    %v861 = vld [vmem:[#allocation8 + $0x14d8] sm:$0xff]
    %v862 = vld [vmem:[#allocation8 + $0x14e0] sm:$0xff]
    %v863 = vld [vmem:[#allocation8 + $0x14e8] sm:$0xff]
    %v864 = vld [vmem:[#allocation8 + $0x14f0] sm:$0xff]
    %v865 = vld [vmem:[#allocation8 + $0x14f8] sm:$0xff]
    %v866 = vld [vmem:[#allocation8 + $0x1500] sm:$0xff]
    %v867 = vld [vmem:[#allocation8 + $0x1508] sm:$0xff]
    %v868 = vld [vmem:[#allocation8 + $0x1510] sm:$0xff]
    %v869 = vld [vmem:[#allocation8 + $0x1518] sm:$0xff]
    %v870 = vld [vmem:[#allocation8 + $0x1520] sm:$0xff]
    %v871 = vld [vmem:[#allocation8 + $0x1528] sm:$0xff]
    %v872 = vld [vmem:[#allocation8 + $0x1530] sm:$0xff]
    %v873 = vld [vmem:[#allocation8 + $0x1538] sm:$0xff]
    %v874 = vld [vmem:[#allocation8 + $0x1540] sm:$0xff]
    %v875 = vld [vmem:[#allocation8 + $0x1548] sm:$0xff]
    %v876 = vld [vmem:[#allocation8 + $0x1550] sm:$0xff]
    %v877 = vld [vmem:[#allocation8 + $0x1558] sm:$0xff]
    %v878 = vld [vmem:[#allocation8 + $0x1560] sm:$0xff]
    %v879 = vld [vmem:[#allocation8 + $0x1568] sm:$0xff]
    %v880 = vld [vmem:[#allocation8 + $0x1570] sm:$0xff]
    %v881 = vld [vmem:[#allocation8 + $0x1578] sm:$0xff]
    %v882 = vld [vmem:[#allocation8 + $0x1580] sm:$0xff]
    %v883 = vld [vmem:[#allocation8 + $0x1588] sm:$0xff]
    %v884 = vld [vmem:[#allocation8 + $0x1590] sm:$0xff]
    %v885 = vld [vmem:[#allocation8 + $0x1598] sm:$0xff]
    %v886 = vld [vmem:[#allocation8 + $0x15a0] sm:$0xff]
    %v887 = vld [vmem:[#allocation8 + $0x15a8] sm:$0xff]
    %v888 = vld [vmem:[#allocation8 + $0x15b0] sm:$0xff]
    %v889 = vld [vmem:[#allocation8 + $0x15b8] sm:$0xff]
    %v890 = vld [vmem:[#allocation8 + $0x15c0] sm:$0xff]
    %v891 = vld [vmem:[#allocation8 + $0x15c8] sm:$0xff]
    %v892 = vld [vmem:[#allocation8 + $0x15d0] sm:$0xff]
    %v893 = vld [vmem:[#allocation8 + $0x15d8] sm:$0xff]
    %v894 = vld [vmem:[#allocation8 + $0x15e0] sm:$0xff]
    %v895 = vld [vmem:[#allocation8 + $0x15e8] sm:$0xff]
    %v896 = vld [vmem:[#allocation8 + $0x15f0] sm:$0xff]
    %v897 = vld [vmem:[#allocation8 + $0x15f8] sm:$0xff]
    %v898 = vld [vmem:[#allocation8 + $0x1600] sm:$0xff]
    %v899 = vld [vmem:[#allocation8 + $0x1608] sm:$0xff]
    %v900 = vld [vmem:[#allocation8 + $0x1610] sm:$0xff]
    %v901 = vld [vmem:[#allocation8 + $0x1618] sm:$0xff]
    %v902 = vld [vmem:[#allocation8 + $0x1620] sm:$0xff]
    %v903 = vld [vmem:[#allocation8 + $0x1628] sm:$0xff]
    %v904 = vld [vmem:[#allocation8 + $0x1630] sm:$0xff]
    %v905 = vld [vmem:[#allocation8 + $0x1638] sm:$0xff]
    %v906 = vld [vmem:[#allocation8 + $0x1640] sm:$0xff]
    %v907 = vld [vmem:[#allocation8 + $0x1648] sm:$0xff]
    %v908 = vld [vmem:[#allocation8 + $0x1650] sm:$0xff]
    %v909 = vld [vmem:[#allocation8 + $0x1658] sm:$0xff]
    %v910 = vld [vmem:[#allocation8 + $0x1660] sm:$0xff]
    %v911 = vld [vmem:[#allocation8 + $0x1668] sm:$0xff]
    %v912 = vld [vmem:[#allocation8 + $0x1670] sm:$0xff]
    %v913 = vld [vmem:[#allocation8 + $0x1678] sm:$0xff]
    %v914 = vld [vmem:[#allocation8 + $0x1680] sm:$0xff]
    %v915 = vld [vmem:[#allocation8 + $0x1688] sm:$0xff]
    %v916 = vld [vmem:[#allocation8 + $0x1690] sm:$0xff]
    %v917 = vld [vmem:[#allocation8 + $0x1698] sm:$0xff]
    %v918 = vld [vmem:[#allocation8 + $0x16a0] sm:$0xff]
    %v919 = vld [vmem:[#allocation8 + $0x16a8] sm:$0xff]
    %v920 = vld [vmem:[#allocation8 + $0x16b0] sm:$0xff]
    %v921 = vld [vmem:[#allocation8 + $0x16b8] sm:$0xff]
    %v922 = vld [vmem:[#allocation8 + $0x16c0] sm:$0xff]
    %v923 = vld [vmem:[#allocation8 + $0x16c8] sm:$0xff]
    %v924 = vld [vmem:[#allocation8 + $0x16d0] sm:$0xff]
    %v925 = vld [vmem:[#allocation8 + $0x16d8] sm:$0xff]
    %v926 = vld [vmem:[#allocation8 + $0x16e0] sm:$0xff]
    %v927 = vld [vmem:[#allocation8 + $0x16e8] sm:$0xff]
    %v928 = vld [vmem:[#allocation8 + $0x16f0] sm:$0xff]
    %v929 = vld [vmem:[#allocation8 + $0x16f8] sm:$0xff]
    %v930 = vld [vmem:[#allocation8 + $0x1700] sm:$0xff]
    %v931 = vld [vmem:[#allocation8 + $0x1708] sm:$0xff]
    %v932 = vld [vmem:[#allocation8 + $0x1710] sm:$0xff]
    %v933 = vld [vmem:[#allocation8 + $0x1718] sm:$0xff]
    %v934 = vld [vmem:[#allocation8 + $0x1720] sm:$0xff]
    %v935 = vld [vmem:[#allocation8 + $0x1728] sm:$0xff]
    %v936 = vld [vmem:[#allocation8 + $0x1730] sm:$0xff]
    %v937 = vld [vmem:[#allocation8 + $0x1738] sm:$0xff]
    %v938 = vld [vmem:[#allocation8 + $0x1740] sm:$0xff]
    %v939 = vld [vmem:[#allocation8 + $0x1748] sm:$0xff]
    %v940 = vld [vmem:[#allocation8 + $0x1750] sm:$0xff]
    %v941 = vld [vmem:[#allocation8 + $0x1758] sm:$0xff]
    %v942 = vld [vmem:[#allocation8 + $0x1760] sm:$0xff]
    %v943 = vld [vmem:[#allocation8 + $0x1768] sm:$0xff]
    %v944 = vld [vmem:[#allocation8 + $0x1770] sm:$0xff]
    %v945 = vld [vmem:[#allocation8 + $0x1778] sm:$0xff]
    %v946 = vld [vmem:[#allocation8 + $0x1780] sm:$0xff]
    %v947 = vld [vmem:[#allocation8 + $0x1788] sm:$0xff]
    %v948 = vld [vmem:[#allocation8 + $0x1790] sm:$0xff]
    %v949 = vld [vmem:[#allocation8 + $0x1798] sm:$0xff]
    %v950 = vld [vmem:[#allocation8 + $0x17a0] sm:$0xff]
    %v951 = vld [vmem:[#allocation8 + $0x17a8] sm:$0xff]
    %v952 = vld [vmem:[#allocation8 + $0x17b0] sm:$0xff]
    %v953 = vld [vmem:[#allocation8 + $0x17b8] sm:$0xff]
    %v954 = vld [vmem:[#allocation8 + $0x17c0] sm:$0xff]
    %v955 = vld [vmem:[#allocation8 + $0x17c8] sm:$0xff]
    %v956 = vld [vmem:[#allocation8 + $0x17d0] sm:$0xff]
    %v957 = vld [vmem:[#allocation8 + $0x17d8] sm:$0xff]
    %v958 = vld [vmem:[#allocation8 + $0x17e0] sm:$0xff]
    %v959 = vld [vmem:[#allocation8 + $0x17e8] sm:$0xff]
    %v960 = vld [vmem:[#allocation8 + $0x17f0] sm:$0xff]
    %v961 = vld [vmem:[#allocation8 + $0x17f8] sm:$0xff]
    %v962 = vld [vmem:[#allocation8 + $0x1800] sm:$0xff]
    %v963 = vld [vmem:[#allocation8 + $0x1808] sm:$0xff]
    %v964 = vld [vmem:[#allocation8 + $0x1810] sm:$0xff]
    %v965 = vld [vmem:[#allocation8 + $0x1818] sm:$0xff]
    %v966 = vld [vmem:[#allocation8 + $0x1820] sm:$0xff]
    %v967 = vld [vmem:[#allocation8 + $0x1828] sm:$0xff]
    %v968 = vld [vmem:[#allocation8 + $0x1830] sm:$0xff]
    %v969 = vld [vmem:[#allocation8 + $0x1838] sm:$0xff]
    %v970 = vld [vmem:[#allocation8 + $0x1840] sm:$0xff]
    %v971 = vld [vmem:[#allocation8 + $0x1848] sm:$0xff]
    %v972 = vld [vmem:[#allocation8 + $0x1850] sm:$0xff]
    %v973 = vld [vmem:[#allocation8 + $0x1858] sm:$0xff]
    %v974 = vld [vmem:[#allocation8 + $0x1860] sm:$0xff]
    %v975 = vld [vmem:[#allocation8 + $0x1868] sm:$0xff]
    %v976 = vld [vmem:[#allocation8 + $0x1870] sm:$0xff]
    %v977 = vld [vmem:[#allocation8 + $0x1878] sm:$0xff]
    %v978 = vld [vmem:[#allocation8 + $0x1880] sm:$0xff]
    %v979 = vld [vmem:[#allocation8 + $0x1888] sm:$0xff]
    %v980 = vld [vmem:[#allocation8 + $0x1890] sm:$0xff]
    %v981 = vld [vmem:[#allocation8 + $0x1898] sm:$0xff]
    %v982 = vld [vmem:[#allocation8 + $0x18a0] sm:$0xff]
    %v983 = vld [vmem:[#allocation8 + $0x18a8] sm:$0xff]
    %v984 = vld [vmem:[#allocation8 + $0x18b0] sm:$0xff]
    %v985 = vld [vmem:[#allocation8 + $0x18b8] sm:$0xff]
    %v986 = vld [vmem:[#allocation8 + $0x18c0] sm:$0xff]
    %v987 = vld [vmem:[#allocation8 + $0x18c8] sm:$0xff]
    %v988 = vld [vmem:[#allocation8 + $0x18d0] sm:$0xff]
    %v989 = vld [vmem:[#allocation8 + $0x18d8] sm:$0xff]
    %v990 = vld [vmem:[#allocation8 + $0x18e0] sm:$0xff]
    %v991 = vld [vmem:[#allocation8 + $0x18e8] sm:$0xff]
    %v992 = vld [vmem:[#allocation8 + $0x18f0] sm:$0xff]
    %v993 = vld [vmem:[#allocation8 + $0x18f8] sm:$0xff]
    %v994 = vld [vmem:[#allocation8 + $0x1900] sm:$0xff]
    %v995 = vld [vmem:[#allocation8 + $0x1908] sm:$0xff]
    %v996 = vld [vmem:[#allocation8 + $0x1910] sm:$0xff]
    %v997 = vld [vmem:[#allocation8 + $0x1918] sm:$0xff]
    %v998 = vld [vmem:[#allocation8 + $0x1920] sm:$0xff]
    %v999 = vld [vmem:[#allocation8 + $0x1928] sm:$0xff]
    %v1000 = vld [vmem:[#allocation8 + $0x1930] sm:$0xff]
    %v1001 = vld [vmem:[#allocation8 + $0x1938] sm:$0xff]
    %v1002 = vld [vmem:[#allocation8 + $0x1940] sm:$0xff]
    %v1003 = vld [vmem:[#allocation8 + $0x1948] sm:$0xff]
    %v1004 = vld [vmem:[#allocation8 + $0x1950] sm:$0xff]
    %v1005 = vld [vmem:[#allocation8 + $0x1958] sm:$0xff]
    %v1006 = vld [vmem:[#allocation8 + $0x1960] sm:$0xff]
    %v1007 = vld [vmem:[#allocation8 + $0x1968] sm:$0xff]
    %v1008 = vld [vmem:[#allocation8 + $0x1970] sm:$0xff]
    %v1009 = vld [vmem:[#allocation8 + $0x1978] sm:$0xff]
    %v1010 = vld [vmem:[#allocation8 + $0x1980] sm:$0xff]
    %v1011 = vld [vmem:[#allocation8 + $0x1988] sm:$0xff]
    %v1012 = vld [vmem:[#allocation8 + $0x1990] sm:$0xff]
    %v1013 = vld [vmem:[#allocation8 + $0x1998] sm:$0xff]
    %v1014 = vld [vmem:[#allocation8 + $0x19a0] sm:$0xff]
    %v1015 = vld [vmem:[#allocation8 + $0x19a8] sm:$0xff]
    %v1016 = vld [vmem:[#allocation8 + $0x19b0] sm:$0xff]
    %v1017 = vld [vmem:[#allocation8 + $0x19b8] sm:$0xff]
    %v1018 = vld [vmem:[#allocation8 + $0x19c0] sm:$0xff]
    %v1019 = vld [vmem:[#allocation8 + $0x19c8] sm:$0xff]
    %v1020 = vld [vmem:[#allocation8 + $0x19d0] sm:$0xff]
    %v1021 = vld [vmem:[#allocation8 + $0x19d8] sm:$0xff]
    %v1022 = vld [vmem:[#allocation8 + $0x19e0] sm:$0xff]
    %v1023 = vld [vmem:[#allocation8 + $0x19e8] sm:$0xff]
    %v1024 = vld [vmem:[#allocation8 + $0x19f0] sm:$0xff]
    %v1025 = vld [vmem:[#allocation8 + $0x19f8] sm:$0xff]
    %v1026 = vld [vmem:[#allocation8 + $0x1a00] sm:$0xff]
    %v1027 = vld [vmem:[#allocation8 + $0x1a08] sm:$0xff]
    %v1028 = vld [vmem:[#allocation8 + $0x1a10] sm:$0xff]
    %v1029 = vld [vmem:[#allocation8 + $0x1a18] sm:$0xff]
    %v1030 = vld [vmem:[#allocation8 + $0x1a20] sm:$0xff]
    %v1031 = vld [vmem:[#allocation8 + $0x1a28] sm:$0xff]
    %v1032 = vld [vmem:[#allocation8 + $0x1a30] sm:$0xff]
    %v1033 = vld [vmem:[#allocation8 + $0x1a38] sm:$0xff]
    %v1034 = vld [vmem:[#allocation8 + $0x1a40] sm:$0xff]
    %v1035 = vld [vmem:[#allocation8 + $0x1a48] sm:$0xff]
    %v1036 = vld [vmem:[#allocation8 + $0x1a50] sm:$0xff]
    %v1037 = vld [vmem:[#allocation8 + $0x1a58] sm:$0xff]
    %v1038 = vld [vmem:[#allocation8 + $0x1a60] sm:$0xff]
    %v1039 = vld [vmem:[#allocation8 + $0x1a68] sm:$0xff]
    %v1040 = vld [vmem:[#allocation8 + $0x1a70] sm:$0xff]
    %v1041 = vld [vmem:[#allocation8 + $0x1a78] sm:$0xff]
    %v1042 = vld [vmem:[#allocation8 + $0x1a80] sm:$0xff]
    %v1043 = vld [vmem:[#allocation8 + $0x1a88] sm:$0xff]
    %v1044 = vld [vmem:[#allocation8 + $0x1a90] sm:$0xff]
    %v1045 = vld [vmem:[#allocation8 + $0x1a98] sm:$0xff]
    %v1046 = vld [vmem:[#allocation8 + $0x1aa0] sm:$0xff]
    %v1047 = vld [vmem:[#allocation8 + $0x1aa8] sm:$0xff]
    %v1048 = vld [vmem:[#allocation8 + $0x1ab0] sm:$0xff]
    %v1049 = vld [vmem:[#allocation8 + $0x1ab8] sm:$0xff]
    %v1050 = vld [vmem:[#allocation8 + $0x1ac0] sm:$0xff]
    %v1051 = vld [vmem:[#allocation8 + $0x1ac8] sm:$0xff]
    %v1052 = vld [vmem:[#allocation8 + $0x1ad0] sm:$0xff]
    %v1053 = vld [vmem:[#allocation8 + $0x1ad8] sm:$0xff]
    %v1054 = vld [vmem:[#allocation8 + $0x1ae0] sm:$0xff]
    %v1055 = vld [vmem:[#allocation8 + $0x1ae8] sm:$0xff]
    %v1056 = vld [vmem:[#allocation8 + $0x1af0] sm:$0xff]
    %v1057 = vld [vmem:[#allocation8 + $0x1af8] sm:$0xff]
    %v1058 = vld [vmem:[#allocation8 + $0x1b00] sm:$0xff]
    %v1059 = vld [vmem:[#allocation8 + $0x1b08] sm:$0xff]
    %v1060 = vld [vmem:[#allocation8 + $0x1b10] sm:$0xff]
    %v1061 = vld [vmem:[#allocation8 + $0x1b18] sm:$0xff]
    %v1062 = vld [vmem:[#allocation8 + $0x1b20] sm:$0xff]
    %v1063 = vld [vmem:[#allocation8 + $0x1b28] sm:$0xff]
    %v1064 = vld [vmem:[#allocation8 + $0x1b30] sm:$0xff]
    %v1065 = vld [vmem:[#allocation8 + $0x1b38] sm:$0xff]
    %v1066 = vld [vmem:[#allocation8 + $0x1b40] sm:$0xff]
    %v1067 = vld [vmem:[#allocation8 + $0x1b48] sm:$0xff]
    %v1068 = vld [vmem:[#allocation8 + $0x1b50] sm:$0xff]
    %v1069 = vld [vmem:[#allocation8 + $0x1b58] sm:$0xff]
    %v1070 = vld [vmem:[#allocation8 + $0x1b60] sm:$0xff]
    %v1071 = vld [vmem:[#allocation8 + $0x1b68] sm:$0xff]
    %v1072 = vld [vmem:[#allocation8 + $0x1b70] sm:$0xff]
    %v1073 = vld [vmem:[#allocation8 + $0x1b78] sm:$0xff]
    %v1074 = vld [vmem:[#allocation8 + $0x1b80] sm:$0xff]
    %v1075 = vld [vmem:[#allocation8 + $0x1b88] sm:$0xff]
    %v1076 = vld [vmem:[#allocation8 + $0x1b90] sm:$0xff]
    %v1077 = vld [vmem:[#allocation8 + $0x1b98] sm:$0xff]
    %v1078 = vld [vmem:[#allocation8 + $0x1ba0] sm:$0xff]
    %v1079 = vld [vmem:[#allocation8 + $0x1ba8] sm:$0xff]
    %v1080 = vld [vmem:[#allocation8 + $0x1bb0] sm:$0xff]
    %v1081 = vld [vmem:[#allocation8 + $0x1bb8] sm:$0xff]
    %v1082 = vld [vmem:[#allocation8 + $0x1bc0] sm:$0xff]
    %v1083 = vld [vmem:[#allocation8 + $0x1bc8] sm:$0xff]
    %v1084 = vld [vmem:[#allocation8 + $0x1bd0] sm:$0xff]
    %v1085 = vld [vmem:[#allocation8 + $0x1bd8] sm:$0xff]
    %v1086 = vld [vmem:[#allocation8 + $0x1be0] sm:$0xff]
    %v1087 = vld [vmem:[#allocation8 + $0x1be8] sm:$0xff]
    %v1088 = vld [vmem:[#allocation8 + $0x1bf0] sm:$0xff]
    %v1089 = vld [vmem:[#allocation8 + $0x1bf8] sm:$0xff]
    %v1090 = vld [vmem:[#allocation8 + $0x1c00] sm:$0xff]
    %v1091 = vld [vmem:[#allocation8 + $0x1c08] sm:$0xff]
    %v1092 = vld [vmem:[#allocation8 + $0x1c10] sm:$0xff]
    %v1093 = vld [vmem:[#allocation8 + $0x1c18] sm:$0xff]
    %v1094 = vld [vmem:[#allocation8 + $0x1c20] sm:$0xff]
    %v1095 = vld [vmem:[#allocation8 + $0x1c28] sm:$0xff]
    %v1096 = vld [vmem:[#allocation8 + $0x1c30] sm:$0xff]
    %v1097 = vld [vmem:[#allocation8 + $0x1c38] sm:$0xff]
    %v1098 = vld [vmem:[#allocation8 + $0x1c40] sm:$0xff]
    %v1099 = vld [vmem:[#allocation8 + $0x1c48] sm:$0xff]
    %v1100 = vld [vmem:[#allocation8 + $0x1c50] sm:$0xff]
    %v1101 = vld [vmem:[#allocation8 + $0x1c58] sm:$0xff]
    %v1102 = vld [vmem:[#allocation8 + $0x1c60] sm:$0xff]
    %v1103 = vld [vmem:[#allocation8 + $0x1c68] sm:$0xff]
    %v1104 = vld [vmem:[#allocation8 + $0x1c70] sm:$0xff]
    %v1105 = vld [vmem:[#allocation8 + $0x1c78] sm:$0xff]
    %v1106 = vld [vmem:[#allocation8 + $0x1c80] sm:$0xff]
    %v1107 = vld [vmem:[#allocation8 + $0x1c88] sm:$0xff]
    %v1108 = vld [vmem:[#allocation8 + $0x1c90] sm:$0xff]
    %v1109 = vld [vmem:[#allocation8 + $0x1c98] sm:$0xff]
    %v1110 = vld [vmem:[#allocation8 + $0x1ca0] sm:$0xff]
    %v1111 = vld [vmem:[#allocation8 + $0x1ca8] sm:$0xff]
    %v1112 = vld [vmem:[#allocation8 + $0x1cb0] sm:$0xff]
    %v1113 = vld [vmem:[#allocation8 + $0x1cb8] sm:$0xff]
    %v1114 = vld [vmem:[#allocation8 + $0x1cc0] sm:$0xff]
    %v1115 = vld [vmem:[#allocation8 + $0x1cc8] sm:$0xff]
    %v1116 = vld [vmem:[#allocation8 + $0x1cd0] sm:$0xff]
    %v1117 = vld [vmem:[#allocation8 + $0x1cd8] sm:$0xff]
    %v1118 = vld [vmem:[#allocation8 + $0x1ce0] sm:$0xff]
    %v1119 = vld [vmem:[#allocation8 + $0x1ce8] sm:$0xff]
    %v1120 = vld [vmem:[#allocation8 + $0x1cf0] sm:$0xff]
    %v1121 = vld [vmem:[#allocation8 + $0x1cf8] sm:$0xff]
    %v1122 = vld [vmem:[#allocation8 + $0x1d00] sm:$0xff]
    %v1123 = vld [vmem:[#allocation8 + $0x1d08] sm:$0xff]
    %v1124 = vld [vmem:[#allocation8 + $0x1d10] sm:$0xff]
    %v1125 = vld [vmem:[#allocation8 + $0x1d18] sm:$0xff]
    %v1126 = vld [vmem:[#allocation8 + $0x1d20] sm:$0xff]
    %v1127 = vld [vmem:[#allocation8 + $0x1d28] sm:$0xff]
    %v1128 = vld [vmem:[#allocation8 + $0x1d30] sm:$0xff]
    %v1129 = vld [vmem:[#allocation8 + $0x1d38] sm:$0xff]
    %v1130 = vld [vmem:[#allocation8 + $0x1d40] sm:$0xff]
    %v1131 = vld [vmem:[#allocation8 + $0x1d48] sm:$0xff]
    %v1132 = vld [vmem:[#allocation8 + $0x1d50] sm:$0xff]
    %v1133 = vld [vmem:[#allocation8 + $0x1d58] sm:$0xff]
    %v1134 = vld [vmem:[#allocation8 + $0x1d60] sm:$0xff]
    %v1135 = vld [vmem:[#allocation8 + $0x1d68] sm:$0xff]
    %v1136 = vld [vmem:[#allocation8 + $0x1d70] sm:$0xff]
    %v1137 = vld [vmem:[#allocation8 + $0x1d78] sm:$0xff]
    %v1138 = vld [vmem:[#allocation8 + $0x1d80] sm:$0xff]
    %v1139 = vld [vmem:[#allocation8 + $0x1d88] sm:$0xff]
    %v1140 = vld [vmem:[#allocation8 + $0x1d90] sm:$0xff]
    %v1141 = vld [vmem:[#allocation8 + $0x1d98] sm:$0xff]
    %v1142 = vld [vmem:[#allocation8 + $0x1da0] sm:$0xff]
    %v1143 = vld [vmem:[#allocation8 + $0x1da8] sm:$0xff]
    %v1144 = vld [vmem:[#allocation8 + $0x1db0] sm:$0xff]
    %v1145 = vld [vmem:[#allocation8 + $0x1db8] sm:$0xff]
    %v1146 = vld [vmem:[#allocation8 + $0x1dc0] sm:$0xff]
    %v1147 = vld [vmem:[#allocation8 + $0x1dc8] sm:$0xff]
    %v1148 = vld [vmem:[#allocation8 + $0x1dd0] sm:$0xff]
    %v1149 = vld [vmem:[#allocation8 + $0x1dd8] sm:$0xff]
    %v1150 = vld [vmem:[#allocation8 + $0x1de0] sm:$0xff]
    %v1151 = vld [vmem:[#allocation8 + $0x1de8] sm:$0xff]
    %v1152 = vld [vmem:[#allocation8 + $0x1df0] sm:$0xff]
    %v1153 = vld [vmem:[#allocation8 + $0x1df8] sm:$0xff]
    %v1154 = vld [vmem:[#allocation8 + $0x1e00] sm:$0xff]
    %v1155 = vld [vmem:[#allocation8 + $0x1e08] sm:$0xff]
    %v1156 = vld [vmem:[#allocation8 + $0x1e10] sm:$0xff]
    %v1157 = vld [vmem:[#allocation8 + $0x1e18] sm:$0xff]
    %v1158 = vld [vmem:[#allocation8 + $0x1e20] sm:$0xff]
    %v1159 = vld [vmem:[#allocation8 + $0x1e28] sm:$0xff]
    %v1160 = vld [vmem:[#allocation8 + $0x1e30] sm:$0xff]
    %v1161 = vld [vmem:[#allocation8 + $0x1e38] sm:$0xff]
    %v1162 = vld [vmem:[#allocation8 + $0x1e40] sm:$0xff]
    %v1163 = vld [vmem:[#allocation8 + $0x1e48] sm:$0xff]
    %v1164 = vld [vmem:[#allocation8 + $0x1e50] sm:$0xff]
    %v1165 = vld [vmem:[#allocation8 + $0x1e58] sm:$0xff]
    %v1166 = vld [vmem:[#allocation8 + $0x1e60] sm:$0xff]
    %v1167 = vld [vmem:[#allocation8 + $0x1e68] sm:$0xff]
    %v1168 = vld [vmem:[#allocation8 + $0x1e70] sm:$0xff]
    %v1169 = vld [vmem:[#allocation8 + $0x1e78] sm:$0xff]
    %v1170 = vld [vmem:[#allocation8 + $0x1e80] sm:$0xff]
    %v1171 = vld [vmem:[#allocation8 + $0x1e88] sm:$0xff]
    %v1172 = vld [vmem:[#allocation8 + $0x1e90] sm:$0xff]
    %v1173 = vld [vmem:[#allocation8 + $0x1e98] sm:$0xff]
    %v1174 = vld [vmem:[#allocation8 + $0x1ea0] sm:$0xff]
    %v1175 = vld [vmem:[#allocation8 + $0x1ea8] sm:$0xff]
    %v1176 = vld [vmem:[#allocation8 + $0x1eb0] sm:$0xff]
    %v1177 = vld [vmem:[#allocation8 + $0x1eb8] sm:$0xff]
    %v1178 = vld [vmem:[#allocation8 + $0x1ec0] sm:$0xff]
    %v1179 = vld [vmem:[#allocation8 + $0x1ec8] sm:$0xff]
    %v1180 = vld [vmem:[#allocation8 + $0x1ed0] sm:$0xff]
    %v1181 = vld [vmem:[#allocation8 + $0x1ed8] sm:$0xff]
    %v1182 = vld [vmem:[#allocation8 + $0x1ee0] sm:$0xff]
    %v1183 = vld [vmem:[#allocation8 + $0x1ee8] sm:$0xff]
    %v1184 = vld [vmem:[#allocation8 + $0x1ef0] sm:$0xff]
    %v1185 = vld [vmem:[#allocation8 + $0x1ef8] sm:$0xff]
    %v1186 = vld [vmem:[#allocation8 + $0x1f00] sm:$0xff]
    %v1187 = vld [vmem:[#allocation8 + $0x1f08] sm:$0xff]
    %v1188 = vld [vmem:[#allocation8 + $0x1f10] sm:$0xff]
    %v1189 = vld [vmem:[#allocation8 + $0x1f18] sm:$0xff]
    %v1190 = vld [vmem:[#allocation8 + $0x1f20] sm:$0xff]
    %v1191 = vld [vmem:[#allocation8 + $0x1f28] sm:$0xff]
    %v1192 = vld [vmem:[#allocation8 + $0x1f30] sm:$0xff]
    %v1193 = vld [vmem:[#allocation8 + $0x1f38] sm:$0xff]
    %v1194 = vld [vmem:[#allocation8 + $0x1f40] sm:$0xff]
    %v1195 = vld [vmem:[#allocation8 + $0x1f48] sm:$0xff]
    %v1196 = vld [vmem:[#allocation8 + $0x1f50] sm:$0xff]
    %v1197 = vld [vmem:[#allocation8 + $0x1f58] sm:$0xff]
    %v1198 = vld [vmem:[#allocation8 + $0x1f60] sm:$0xff]
    %v1199 = vld [vmem:[#allocation8 + $0x1f68] sm:$0xff]
    %v1200 = vld [vmem:[#allocation8 + $0x1f70] sm:$0xff]
    %v1201 = vld [vmem:[#allocation8 + $0x1f78] sm:$0xff]
    %v1202 = vld [vmem:[#allocation8 + $0x1f80] sm:$0xff]
    %v1203 = vld [vmem:[#allocation8 + $0x1f88] sm:$0xff]
    %v1204 = vld [vmem:[#allocation8 + $0x1f90] sm:$0xff]
    %v1205 = vld [vmem:[#allocation8 + $0x1f98] sm:$0xff]
    %v1206 = vld [vmem:[#allocation8 + $0x1fa0] sm:$0xff]
    %v1207 = vld [vmem:[#allocation8 + $0x1fa8] sm:$0xff]
    %v1208 = vld [vmem:[#allocation8 + $0x1fb0] sm:$0xff]
    %v1209 = vld [vmem:[#allocation8 + $0x1fb8] sm:$0xff]
    %v1210 = vld [vmem:[#allocation8 + $0x1fc0] sm:$0xff]
    %v1211 = vld [vmem:[#allocation8 + $0x1fc8] sm:$0xff]
    %v1212 = vld [vmem:[#allocation8 + $0x1fd0] sm:$0xff]
    %v1213 = vld [vmem:[#allocation8 + $0x1fd8] sm:$0xff]
    %v1214 = vld [vmem:[#allocation8 + $0x1fe0] sm:$0xff]
    %v1215 = vld [vmem:[#allocation8 + $0x1fe8] sm:$0xff]
    %v1216 = vld [vmem:[#allocation8 + $0x1ff0] sm:$0xff]
    %v1217 = vld [vmem:[#allocation8 + $0x1ff8] sm:$0xff]
    %v2242 = vunpack.c.l.b16 %v194
    %v2243 = vunpack.c.h.b16 %v194
    %v2244 = vunpack.c.l.b16 %v195
    %v2245 = vunpack.c.h.b16 %v195
    %v2246 = vunpack.c.l.b16 %v196
    %v2247 = vunpack.c.h.b16 %v196
    %v2248 = vunpack.c.l.b16 %v197
    %v2249 = vunpack.c.h.b16 %v197
    %v2250 = vunpack.c.l.b16 %v198
    %v2251 = vunpack.c.h.b16 %v198
    %v2252 = vunpack.c.l.b16 %v199
    %v2253 = vunpack.c.h.b16 %v199
    %v2254 = vunpack.c.l.b16 %v200
    %v2255 = vunpack.c.h.b16 %v200
    %v2256 = vunpack.c.l.b16 %v201
    %v2257 = vunpack.c.h.b16 %v201
    %v2258 = vunpack.c.l.b16 %v202
    %v2259 = vunpack.c.h.b16 %v202
    %v2260 = vunpack.c.l.b16 %v203
    %v2261 = vunpack.c.h.b16 %v203
    %v2262 = vunpack.c.l.b16 %v204
    %v2263 = vunpack.c.h.b16 %v204
    %v2264 = vunpack.c.l.b16 %v205
    %v2265 = vunpack.c.h.b16 %v205
    %v2266 = vunpack.c.l.b16 %v206
    %v2267 = vunpack.c.h.b16 %v206
    %v2268 = vunpack.c.l.b16 %v207
    %v2269 = vunpack.c.h.b16 %v207
    %v2270 = vunpack.c.l.b16 %v208
    %v2271 = vunpack.c.h.b16 %v208
    %v2272 = vunpack.c.l.b16 %v209
    %v2273 = vunpack.c.h.b16 %v209
    %v2274 = vunpack.c.l.b16 %v210
    %v2275 = vunpack.c.h.b16 %v210
    %v2276 = vunpack.c.l.b16 %v211
    %v2277 = vunpack.c.h.b16 %v211
    %v2278 = vunpack.c.l.b16 %v212
    %v2279 = vunpack.c.h.b16 %v212
    %v2280 = vunpack.c.l.b16 %v213
    %v2281 = vunpack.c.h.b16 %v213
    %v2282 = vunpack.c.l.b16 %v214
    %v2283 = vunpack.c.h.b16 %v214
    %v2284 = vunpack.c.l.b16 %v215
    %v2285 = vunpack.c.h.b16 %v215
    %v2286 = vunpack.c.l.b16 %v216
    %v2287 = vunpack.c.h.b16 %v216
    %v2288 = vunpack.c.l.b16 %v217
    %v2289 = vunpack.c.h.b16 %v217
    %v2290 = vunpack.c.l.b16 %v218
    %v2291 = vunpack.c.h.b16 %v218
    %v2292 = vunpack.c.l.b16 %v219
    %v2293 = vunpack.c.h.b16 %v219
    %v2294 = vunpack.c.l.b16 %v220
    %v2295 = vunpack.c.h.b16 %v220
    %v2296 = vunpack.c.l.b16 %v221
    %v2297 = vunpack.c.h.b16 %v221
    %v2298 = vunpack.c.l.b16 %v222
    %v2299 = vunpack.c.h.b16 %v222
    %v2300 = vunpack.c.l.b16 %v223
    %v2301 = vunpack.c.h.b16 %v223
    %v2302 = vunpack.c.l.b16 %v224
    %v2303 = vunpack.c.h.b16 %v224
    %v2304 = vunpack.c.l.b16 %v225
    %v2305 = vunpack.c.h.b16 %v225
    %v2306 = vunpack.c.l.b16 %v226
    %v2307 = vunpack.c.h.b16 %v226
    %v2308 = vunpack.c.l.b16 %v227
    %v2309 = vunpack.c.h.b16 %v227
    %v2310 = vunpack.c.l.b16 %v228
    %v2311 = vunpack.c.h.b16 %v228
    %v2312 = vunpack.c.l.b16 %v229
    %v2313 = vunpack.c.h.b16 %v229
    %v2314 = vunpack.c.l.b16 %v230
    %v2315 = vunpack.c.h.b16 %v230
    %v2316 = vunpack.c.l.b16 %v231
    %v2317 = vunpack.c.h.b16 %v231
    %v2318 = vunpack.c.l.b16 %v232
    %v2319 = vunpack.c.h.b16 %v232
    %v2320 = vunpack.c.l.b16 %v233
    %v2321 = vunpack.c.h.b16 %v233
    %v2322 = vunpack.c.l.b16 %v234
    %v2323 = vunpack.c.h.b16 %v234
    %v2324 = vunpack.c.l.b16 %v235
    %v2325 = vunpack.c.h.b16 %v235
    %v2326 = vunpack.c.l.b16 %v236
    %v2327 = vunpack.c.h.b16 %v236
    %v2328 = vunpack.c.l.b16 %v237
    %v2329 = vunpack.c.h.b16 %v237
    %v2330 = vunpack.c.l.b16 %v238
    %v2331 = vunpack.c.h.b16 %v238
    %v2332 = vunpack.c.l.b16 %v239
    %v2333 = vunpack.c.h.b16 %v239
    %v2334 = vunpack.c.l.b16 %v240
    %v2335 = vunpack.c.h.b16 %v240
    %v2336 = vunpack.c.l.b16 %v241
    %v2337 = vunpack.c.h.b16 %v241
    %v2338 = vunpack.c.l.b16 %v242
    %v2339 = vunpack.c.h.b16 %v242
    %v2340 = vunpack.c.l.b16 %v243
    %v2341 = vunpack.c.h.b16 %v243
    %v2342 = vunpack.c.l.b16 %v244
    %v2343 = vunpack.c.h.b16 %v244
    %v2344 = vunpack.c.l.b16 %v245
    %v2345 = vunpack.c.h.b16 %v245
    %v2346 = vunpack.c.l.b16 %v246
    %v2347 = vunpack.c.h.b16 %v246
    %v2348 = vunpack.c.l.b16 %v247
    %v2349 = vunpack.c.h.b16 %v247
    %v2350 = vunpack.c.l.b16 %v248
    %v2351 = vunpack.c.h.b16 %v248
    %v2352 = vunpack.c.l.b16 %v249
    %v2353 = vunpack.c.h.b16 %v249
    %v2354 = vunpack.c.l.b16 %v250
    %v2355 = vunpack.c.h.b16 %v250
    %v2356 = vunpack.c.l.b16 %v251
    %v2357 = vunpack.c.h.b16 %v251
    %v2358 = vunpack.c.l.b16 %v252
    %v2359 = vunpack.c.h.b16 %v252
    %v2360 = vunpack.c.l.b16 %v253
    %v2361 = vunpack.c.h.b16 %v253
    %v2362 = vunpack.c.l.b16 %v254
    %v2363 = vunpack.c.h.b16 %v254
    %v2364 = vunpack.c.l.b16 %v255
    %v2365 = vunpack.c.h.b16 %v255
    %v2366 = vunpack.c.l.b16 %v256
    %v2367 = vunpack.c.h.b16 %v256
    %v2368 = vunpack.c.l.b16 %v257
    %v2369 = vunpack.c.h.b16 %v257
    %v2370 = vunpack.c.l.b16 %v258
    %v2371 = vunpack.c.h.b16 %v258
    %v2372 = vunpack.c.l.b16 %v259
    %v2373 = vunpack.c.h.b16 %v259
    %v2374 = vunpack.c.l.b16 %v260
    %v2375 = vunpack.c.h.b16 %v260
    %v2376 = vunpack.c.l.b16 %v261
    %v2377 = vunpack.c.h.b16 %v261
    %v2378 = vunpack.c.l.b16 %v262
    %v2379 = vunpack.c.h.b16 %v262
    %v2380 = vunpack.c.l.b16 %v263
    %v2381 = vunpack.c.h.b16 %v263
    %v2382 = vunpack.c.l.b16 %v264
    %v2383 = vunpack.c.h.b16 %v264
    %v2384 = vunpack.c.l.b16 %v265
    %v2385 = vunpack.c.h.b16 %v265
    %v2386 = vunpack.c.l.b16 %v266
    %v2387 = vunpack.c.h.b16 %v266
    %v2388 = vunpack.c.l.b16 %v267
    %v2389 = vunpack.c.h.b16 %v267
    %v2390 = vunpack.c.l.b16 %v268
    %v2391 = vunpack.c.h.b16 %v268
    %v2392 = vunpack.c.l.b16 %v269
    %v2393 = vunpack.c.h.b16 %v269
    %v2394 = vunpack.c.l.b16 %v270
    %v2395 = vunpack.c.h.b16 %v270
    %v2396 = vunpack.c.l.b16 %v271
    %v2397 = vunpack.c.h.b16 %v271
    %v2398 = vunpack.c.l.b16 %v272
    %v2399 = vunpack.c.h.b16 %v272
    %v2400 = vunpack.c.l.b16 %v273
    %v2401 = vunpack.c.h.b16 %v273
    %v2402 = vunpack.c.l.b16 %v274
    %v2403 = vunpack.c.h.b16 %v274
    %v2404 = vunpack.c.l.b16 %v275
    %v2405 = vunpack.c.h.b16 %v275
    %v2406 = vunpack.c.l.b16 %v276
    %v2407 = vunpack.c.h.b16 %v276
    %v2408 = vunpack.c.l.b16 %v277
    %v2409 = vunpack.c.h.b16 %v277
    %v2410 = vunpack.c.l.b16 %v278
    %v2411 = vunpack.c.h.b16 %v278
    %v2412 = vunpack.c.l.b16 %v279
    %v2413 = vunpack.c.h.b16 %v279
    %v2414 = vunpack.c.l.b16 %v280
    %v2415 = vunpack.c.h.b16 %v280
    %v2416 = vunpack.c.l.b16 %v281
    %v2417 = vunpack.c.h.b16 %v281
    %v2418 = vunpack.c.l.b16 %v282
    %v2419 = vunpack.c.h.b16 %v282
    %v2420 = vunpack.c.l.b16 %v283
    %v2421 = vunpack.c.h.b16 %v283
    %v2422 = vunpack.c.l.b16 %v284
    %v2423 = vunpack.c.h.b16 %v284
    %v2424 = vunpack.c.l.b16 %v285
    %v2425 = vunpack.c.h.b16 %v285
    %v2426 = vunpack.c.l.b16 %v286
    %v2427 = vunpack.c.h.b16 %v286
    %v2428 = vunpack.c.l.b16 %v287
    %v2429 = vunpack.c.h.b16 %v287
    %v2430 = vunpack.c.l.b16 %v288
    %v2431 = vunpack.c.h.b16 %v288
    %v2432 = vunpack.c.l.b16 %v289
    %v2433 = vunpack.c.h.b16 %v289
    %v2434 = vunpack.c.l.b16 %v290
    %v2435 = vunpack.c.h.b16 %v290
    %v2436 = vunpack.c.l.b16 %v291
    %v2437 = vunpack.c.h.b16 %v291
    %v2438 = vunpack.c.l.b16 %v292
    %v2439 = vunpack.c.h.b16 %v292
    %v2440 = vunpack.c.l.b16 %v293
    %v2441 = vunpack.c.h.b16 %v293
    %v2442 = vunpack.c.l.b16 %v294
    %v2443 = vunpack.c.h.b16 %v294
    %v2444 = vunpack.c.l.b16 %v295
    %v2445 = vunpack.c.h.b16 %v295
    %v2446 = vunpack.c.l.b16 %v296
    %v2447 = vunpack.c.h.b16 %v296
    %v2448 = vunpack.c.l.b16 %v297
    %v2449 = vunpack.c.h.b16 %v297
    %v2450 = vunpack.c.l.b16 %v298
    %v2451 = vunpack.c.h.b16 %v298
    %v2452 = vunpack.c.l.b16 %v299
    %v2453 = vunpack.c.h.b16 %v299
    %v2454 = vunpack.c.l.b16 %v300
    %v2455 = vunpack.c.h.b16 %v300
    %v2456 = vunpack.c.l.b16 %v301
    %v2457 = vunpack.c.h.b16 %v301
    %v2458 = vunpack.c.l.b16 %v302
    %v2459 = vunpack.c.h.b16 %v302
    %v2460 = vunpack.c.l.b16 %v303
    %v2461 = vunpack.c.h.b16 %v303
    %v2462 = vunpack.c.l.b16 %v304
    %v2463 = vunpack.c.h.b16 %v304
    %v2464 = vunpack.c.l.b16 %v305
    %v2465 = vunpack.c.h.b16 %v305
    %v2466 = vunpack.c.l.b16 %v306
    %v2467 = vunpack.c.h.b16 %v306
    %v2468 = vunpack.c.l.b16 %v307
    %v2469 = vunpack.c.h.b16 %v307
    %v2470 = vunpack.c.l.b16 %v308
    %v2471 = vunpack.c.h.b16 %v308
    %v2472 = vunpack.c.l.b16 %v309
    %v2473 = vunpack.c.h.b16 %v309
    %v2474 = vunpack.c.l.b16 %v310
    %v2475 = vunpack.c.h.b16 %v310
    %v2476 = vunpack.c.l.b16 %v311
    %v2477 = vunpack.c.h.b16 %v311
    %v2478 = vunpack.c.l.b16 %v312
    %v2479 = vunpack.c.h.b16 %v312
    %v2480 = vunpack.c.l.b16 %v313
    %v2481 = vunpack.c.h.b16 %v313
    %v2482 = vunpack.c.l.b16 %v314
    %v2483 = vunpack.c.h.b16 %v314
    %v2484 = vunpack.c.l.b16 %v315
    %v2485 = vunpack.c.h.b16 %v315
    %v2486 = vunpack.c.l.b16 %v316
    %v2487 = vunpack.c.h.b16 %v316
    %v2488 = vunpack.c.l.b16 %v317
    %v2489 = vunpack.c.h.b16 %v317
    %v2490 = vunpack.c.l.b16 %v318
    %v2491 = vunpack.c.h.b16 %v318
    %v2492 = vunpack.c.l.b16 %v319
    %v2493 = vunpack.c.h.b16 %v319
    %v2494 = vunpack.c.l.b16 %v320
    %v2495 = vunpack.c.h.b16 %v320
    %v2496 = vunpack.c.l.b16 %v321
    %v2497 = vunpack.c.h.b16 %v321
    %v2498 = vunpack.c.l.b16 %v322
    %v2499 = vunpack.c.h.b16 %v322
    %v2500 = vunpack.c.l.b16 %v323
    %v2501 = vunpack.c.h.b16 %v323
    %v2502 = vunpack.c.l.b16 %v324
    %v2503 = vunpack.c.h.b16 %v324
    %v2504 = vunpack.c.l.b16 %v325
    %v2505 = vunpack.c.h.b16 %v325
    %v2506 = vunpack.c.l.b16 %v326
    %v2507 = vunpack.c.h.b16 %v326
    %v2508 = vunpack.c.l.b16 %v327
    %v2509 = vunpack.c.h.b16 %v327
    %v2510 = vunpack.c.l.b16 %v328
    %v2511 = vunpack.c.h.b16 %v328
    %v2512 = vunpack.c.l.b16 %v329
    %v2513 = vunpack.c.h.b16 %v329
    %v2514 = vunpack.c.l.b16 %v330
    %v2515 = vunpack.c.h.b16 %v330
    %v2516 = vunpack.c.l.b16 %v331
    %v2517 = vunpack.c.h.b16 %v331
    %v2518 = vunpack.c.l.b16 %v332
    %v2519 = vunpack.c.h.b16 %v332
    %v2520 = vunpack.c.l.b16 %v333
    %v2521 = vunpack.c.h.b16 %v333
    %v2522 = vunpack.c.l.b16 %v334
    %v2523 = vunpack.c.h.b16 %v334
    %v2524 = vunpack.c.l.b16 %v335
    %v2525 = vunpack.c.h.b16 %v335
    %v2526 = vunpack.c.l.b16 %v336
    %v2527 = vunpack.c.h.b16 %v336
    %v2528 = vunpack.c.l.b16 %v337
    %v2529 = vunpack.c.h.b16 %v337
    %v2530 = vunpack.c.l.b16 %v338
    %v2531 = vunpack.c.h.b16 %v338
    %v2532 = vunpack.c.l.b16 %v339
    %v2533 = vunpack.c.h.b16 %v339
    %v2534 = vunpack.c.l.b16 %v340
    %v2535 = vunpack.c.h.b16 %v340
    %v2536 = vunpack.c.l.b16 %v341
    %v2537 = vunpack.c.h.b16 %v341
    %v2538 = vunpack.c.l.b16 %v342
    %v2539 = vunpack.c.h.b16 %v342
    %v2540 = vunpack.c.l.b16 %v343
    %v2541 = vunpack.c.h.b16 %v343
    %v2542 = vunpack.c.l.b16 %v344
    %v2543 = vunpack.c.h.b16 %v344
    %v2544 = vunpack.c.l.b16 %v345
    %v2545 = vunpack.c.h.b16 %v345
    %v2546 = vunpack.c.l.b16 %v346
    %v2547 = vunpack.c.h.b16 %v346
    %v2548 = vunpack.c.l.b16 %v347
    %v2549 = vunpack.c.h.b16 %v347
    %v2550 = vunpack.c.l.b16 %v348
    %v2551 = vunpack.c.h.b16 %v348
    %v2552 = vunpack.c.l.b16 %v349
    %v2553 = vunpack.c.h.b16 %v349
    %v2554 = vunpack.c.l.b16 %v350
    %v2555 = vunpack.c.h.b16 %v350
    %v2556 = vunpack.c.l.b16 %v351
    %v2557 = vunpack.c.h.b16 %v351
    %v2558 = vunpack.c.l.b16 %v352
    %v2559 = vunpack.c.h.b16 %v352
    %v2560 = vunpack.c.l.b16 %v353
    %v2561 = vunpack.c.h.b16 %v353
    %v2562 = vunpack.c.l.b16 %v354
    %v2563 = vunpack.c.h.b16 %v354
    %v2564 = vunpack.c.l.b16 %v355
    %v2565 = vunpack.c.h.b16 %v355
    %v2566 = vunpack.c.l.b16 %v356
    %v2567 = vunpack.c.h.b16 %v356
    %v2568 = vunpack.c.l.b16 %v357
    %v2569 = vunpack.c.h.b16 %v357
    %v2570 = vunpack.c.l.b16 %v358
    %v2571 = vunpack.c.h.b16 %v358
    %v2572 = vunpack.c.l.b16 %v359
    %v2573 = vunpack.c.h.b16 %v359
    %v2574 = vunpack.c.l.b16 %v360
    %v2575 = vunpack.c.h.b16 %v360
    %v2576 = vunpack.c.l.b16 %v361
    %v2577 = vunpack.c.h.b16 %v361
    %v2578 = vunpack.c.l.b16 %v362
    %v2579 = vunpack.c.h.b16 %v362
    %v2580 = vunpack.c.l.b16 %v363
    %v2581 = vunpack.c.h.b16 %v363
    %v2582 = vunpack.c.l.b16 %v364
    %v2583 = vunpack.c.h.b16 %v364
    %v2584 = vunpack.c.l.b16 %v365
    %v2585 = vunpack.c.h.b16 %v365
    %v2586 = vunpack.c.l.b16 %v366
    %v2587 = vunpack.c.h.b16 %v366
    %v2588 = vunpack.c.l.b16 %v367
    %v2589 = vunpack.c.h.b16 %v367
    %v2590 = vunpack.c.l.b16 %v368
    %v2591 = vunpack.c.h.b16 %v368
    %v2592 = vunpack.c.l.b16 %v369
    %v2593 = vunpack.c.h.b16 %v369
    %v2594 = vunpack.c.l.b16 %v370
    %v2595 = vunpack.c.h.b16 %v370
    %v2596 = vunpack.c.l.b16 %v371
    %v2597 = vunpack.c.h.b16 %v371
    %v2598 = vunpack.c.l.b16 %v372
    %v2599 = vunpack.c.h.b16 %v372
    %v2600 = vunpack.c.l.b16 %v373
    %v2601 = vunpack.c.h.b16 %v373
    %v2602 = vunpack.c.l.b16 %v374
    %v2603 = vunpack.c.h.b16 %v374
    %v2604 = vunpack.c.l.b16 %v375
    %v2605 = vunpack.c.h.b16 %v375
    %v2606 = vunpack.c.l.b16 %v376
    %v2607 = vunpack.c.h.b16 %v376
    %v2608 = vunpack.c.l.b16 %v377
    %v2609 = vunpack.c.h.b16 %v377
    %v2610 = vunpack.c.l.b16 %v378
    %v2611 = vunpack.c.h.b16 %v378
    %v2612 = vunpack.c.l.b16 %v379
    %v2613 = vunpack.c.h.b16 %v379
    %v2614 = vunpack.c.l.b16 %v380
    %v2615 = vunpack.c.h.b16 %v380
    %v2616 = vunpack.c.l.b16 %v381
    %v2617 = vunpack.c.h.b16 %v381
    %v2618 = vunpack.c.l.b16 %v382
    %v2619 = vunpack.c.h.b16 %v382
    %v2620 = vunpack.c.l.b16 %v383
    %v2621 = vunpack.c.h.b16 %v383
    %v2622 = vunpack.c.l.b16 %v384
    %v2623 = vunpack.c.h.b16 %v384
    %v2624 = vunpack.c.l.b16 %v385
    %v2625 = vunpack.c.h.b16 %v385
    %v2626 = vunpack.c.l.b16 %v386
    %v2627 = vunpack.c.h.b16 %v386
    %v2628 = vunpack.c.l.b16 %v387
    %v2629 = vunpack.c.h.b16 %v387
    %v2630 = vunpack.c.l.b16 %v388
    %v2631 = vunpack.c.h.b16 %v388
    %v2632 = vunpack.c.l.b16 %v389
    %v2633 = vunpack.c.h.b16 %v389
    %v2634 = vunpack.c.l.b16 %v390
    %v2635 = vunpack.c.h.b16 %v390
    %v2636 = vunpack.c.l.b16 %v391
    %v2637 = vunpack.c.h.b16 %v391
    %v2638 = vunpack.c.l.b16 %v392
    %v2639 = vunpack.c.h.b16 %v392
    %v2640 = vunpack.c.l.b16 %v393
    %v2641 = vunpack.c.h.b16 %v393
    %v2642 = vunpack.c.l.b16 %v394
    %v2643 = vunpack.c.h.b16 %v394
    %v2644 = vunpack.c.l.b16 %v395
    %v2645 = vunpack.c.h.b16 %v395
    %v2646 = vunpack.c.l.b16 %v396
    %v2647 = vunpack.c.h.b16 %v396
    %v2648 = vunpack.c.l.b16 %v397
    %v2649 = vunpack.c.h.b16 %v397
    %v2650 = vunpack.c.l.b16 %v398
    %v2651 = vunpack.c.h.b16 %v398
    %v2652 = vunpack.c.l.b16 %v399
    %v2653 = vunpack.c.h.b16 %v399
    %v2654 = vunpack.c.l.b16 %v400
    %v2655 = vunpack.c.h.b16 %v400
    %v2656 = vunpack.c.l.b16 %v401
    %v2657 = vunpack.c.h.b16 %v401
    %v2658 = vunpack.c.l.b16 %v402
    %v2659 = vunpack.c.h.b16 %v402
    %v2660 = vunpack.c.l.b16 %v403
    %v2661 = vunpack.c.h.b16 %v403
    %v2662 = vunpack.c.l.b16 %v404
    %v2663 = vunpack.c.h.b16 %v404
    %v2664 = vunpack.c.l.b16 %v405
    %v2665 = vunpack.c.h.b16 %v405
    %v2666 = vunpack.c.l.b16 %v406
    %v2667 = vunpack.c.h.b16 %v406
    %v2668 = vunpack.c.l.b16 %v407
    %v2669 = vunpack.c.h.b16 %v407
    %v2670 = vunpack.c.l.b16 %v408
    %v2671 = vunpack.c.h.b16 %v408
    %v2672 = vunpack.c.l.b16 %v409
    %v2673 = vunpack.c.h.b16 %v409
    %v2674 = vunpack.c.l.b16 %v410
    %v2675 = vunpack.c.h.b16 %v410
    %v2676 = vunpack.c.l.b16 %v411
    %v2677 = vunpack.c.h.b16 %v411
    %v2678 = vunpack.c.l.b16 %v412
    %v2679 = vunpack.c.h.b16 %v412
    %v2680 = vunpack.c.l.b16 %v413
    %v2681 = vunpack.c.h.b16 %v413
    %v2682 = vunpack.c.l.b16 %v414
    %v2683 = vunpack.c.h.b16 %v414
    %v2684 = vunpack.c.l.b16 %v415
    %v2685 = vunpack.c.h.b16 %v415
    %v2686 = vunpack.c.l.b16 %v416
    %v2687 = vunpack.c.h.b16 %v416
    %v2688 = vunpack.c.l.b16 %v417
    %v2689 = vunpack.c.h.b16 %v417
    %v2690 = vunpack.c.l.b16 %v418
    %v2691 = vunpack.c.h.b16 %v418
    %v2692 = vunpack.c.l.b16 %v419
    %v2693 = vunpack.c.h.b16 %v419
    %v2694 = vunpack.c.l.b16 %v420
    %v2695 = vunpack.c.h.b16 %v420
    %v2696 = vunpack.c.l.b16 %v421
    %v2697 = vunpack.c.h.b16 %v421
    %v2698 = vunpack.c.l.b16 %v422
    %v2699 = vunpack.c.h.b16 %v422
    %v2700 = vunpack.c.l.b16 %v423
    %v2701 = vunpack.c.h.b16 %v423
    %v2702 = vunpack.c.l.b16 %v424
    %v2703 = vunpack.c.h.b16 %v424
    %v2704 = vunpack.c.l.b16 %v425
    %v2705 = vunpack.c.h.b16 %v425
    %v2706 = vunpack.c.l.b16 %v426
    %v2707 = vunpack.c.h.b16 %v426
    %v2708 = vunpack.c.l.b16 %v427
    %v2709 = vunpack.c.h.b16 %v427
    %v2710 = vunpack.c.l.b16 %v428
    %v2711 = vunpack.c.h.b16 %v428
    %v2712 = vunpack.c.l.b16 %v429
    %v2713 = vunpack.c.h.b16 %v429
    %v2714 = vunpack.c.l.b16 %v430
    %v2715 = vunpack.c.h.b16 %v430
    %v2716 = vunpack.c.l.b16 %v431
    %v2717 = vunpack.c.h.b16 %v431
    %v2718 = vunpack.c.l.b16 %v432
    %v2719 = vunpack.c.h.b16 %v432
    %v2720 = vunpack.c.l.b16 %v433
    %v2721 = vunpack.c.h.b16 %v433
    %v2722 = vunpack.c.l.b16 %v434
    %v2723 = vunpack.c.h.b16 %v434
    %v2724 = vunpack.c.l.b16 %v435
    %v2725 = vunpack.c.h.b16 %v435
    %v2726 = vunpack.c.l.b16 %v436
    %v2727 = vunpack.c.h.b16 %v436
    %v2728 = vunpack.c.l.b16 %v437
    %v2729 = vunpack.c.h.b16 %v437
    %v2730 = vunpack.c.l.b16 %v438
    %v2731 = vunpack.c.h.b16 %v438
    %v2732 = vunpack.c.l.b16 %v439
    %v2733 = vunpack.c.h.b16 %v439
    %v2734 = vunpack.c.l.b16 %v440
    %v2735 = vunpack.c.h.b16 %v440
    %v2736 = vunpack.c.l.b16 %v441
    %v2737 = vunpack.c.h.b16 %v441
    %v2738 = vunpack.c.l.b16 %v442
    %v2739 = vunpack.c.h.b16 %v442
    %v2740 = vunpack.c.l.b16 %v443
    %v2741 = vunpack.c.h.b16 %v443
    %v2742 = vunpack.c.l.b16 %v444
    %v2743 = vunpack.c.h.b16 %v444
    %v2744 = vunpack.c.l.b16 %v445
    %v2745 = vunpack.c.h.b16 %v445
    %v2746 = vunpack.c.l.b16 %v446
    %v2747 = vunpack.c.h.b16 %v446
    %v2748 = vunpack.c.l.b16 %v447
    %v2749 = vunpack.c.h.b16 %v447
    %v2750 = vunpack.c.l.b16 %v448
    %v2751 = vunpack.c.h.b16 %v448
    %v2752 = vunpack.c.l.b16 %v449
    %v2753 = vunpack.c.h.b16 %v449
    %v2754 = vunpack.c.l.b16 %v450
    %v2755 = vunpack.c.h.b16 %v450
    %v2756 = vunpack.c.l.b16 %v451
    %v2757 = vunpack.c.h.b16 %v451
    %v2758 = vunpack.c.l.b16 %v452
    %v2759 = vunpack.c.h.b16 %v452
    %v2760 = vunpack.c.l.b16 %v453
    %v2761 = vunpack.c.h.b16 %v453
    %v2762 = vunpack.c.l.b16 %v454
    %v2763 = vunpack.c.h.b16 %v454
    %v2764 = vunpack.c.l.b16 %v455
    %v2765 = vunpack.c.h.b16 %v455
    %v2766 = vunpack.c.l.b16 %v456
    %v2767 = vunpack.c.h.b16 %v456
    %v2768 = vunpack.c.l.b16 %v457
    %v2769 = vunpack.c.h.b16 %v457
    %v2770 = vunpack.c.l.b16 %v458
    %v2771 = vunpack.c.h.b16 %v458
    %v2772 = vunpack.c.l.b16 %v459
    %v2773 = vunpack.c.h.b16 %v459
    %v2774 = vunpack.c.l.b16 %v460
    %v2775 = vunpack.c.h.b16 %v460
    %v2776 = vunpack.c.l.b16 %v461
    %v2777 = vunpack.c.h.b16 %v461
    %v2778 = vunpack.c.l.b16 %v462
    %v2779 = vunpack.c.h.b16 %v462
    %v2780 = vunpack.c.l.b16 %v463
    %v2781 = vunpack.c.h.b16 %v463
    %v2782 = vunpack.c.l.b16 %v464
    %v2783 = vunpack.c.h.b16 %v464
    %v2784 = vunpack.c.l.b16 %v465
    %v2785 = vunpack.c.h.b16 %v465
    %v2786 = vunpack.c.l.b16 %v466
    %v2787 = vunpack.c.h.b16 %v466
    %v2788 = vunpack.c.l.b16 %v467
    %v2789 = vunpack.c.h.b16 %v467
    %v2790 = vunpack.c.l.b16 %v468
    %v2791 = vunpack.c.h.b16 %v468
    %v2792 = vunpack.c.l.b16 %v469
    %v2793 = vunpack.c.h.b16 %v469
    %v2794 = vunpack.c.l.b16 %v470
    %v2795 = vunpack.c.h.b16 %v470
    %v2796 = vunpack.c.l.b16 %v471
    %v2797 = vunpack.c.h.b16 %v471
    %v2798 = vunpack.c.l.b16 %v472
    %v2799 = vunpack.c.h.b16 %v472
    %v2800 = vunpack.c.l.b16 %v473
    %v2801 = vunpack.c.h.b16 %v473
    %v2802 = vunpack.c.l.b16 %v474
    %v2803 = vunpack.c.h.b16 %v474
    %v2804 = vunpack.c.l.b16 %v475
    %v2805 = vunpack.c.h.b16 %v475
    %v2806 = vunpack.c.l.b16 %v476
    %v2807 = vunpack.c.h.b16 %v476
    %v2808 = vunpack.c.l.b16 %v477
    %v2809 = vunpack.c.h.b16 %v477
    %v2810 = vunpack.c.l.b16 %v478
    %v2811 = vunpack.c.h.b16 %v478
    %v2812 = vunpack.c.l.b16 %v479
    %v2813 = vunpack.c.h.b16 %v479
    %v2814 = vunpack.c.l.b16 %v480
    %v2815 = vunpack.c.h.b16 %v480
    %v2816 = vunpack.c.l.b16 %v481
    %v2817 = vunpack.c.h.b16 %v481
    %v2818 = vunpack.c.l.b16 %v482
    %v2819 = vunpack.c.h.b16 %v482
    %v2820 = vunpack.c.l.b16 %v483
    %v2821 = vunpack.c.h.b16 %v483
    %v2822 = vunpack.c.l.b16 %v484
    %v2823 = vunpack.c.h.b16 %v484
    %v2824 = vunpack.c.l.b16 %v485
    %v2825 = vunpack.c.h.b16 %v485
    %v2826 = vunpack.c.l.b16 %v486
    %v2827 = vunpack.c.h.b16 %v486
    %v2828 = vunpack.c.l.b16 %v487
    %v2829 = vunpack.c.h.b16 %v487
    %v2830 = vunpack.c.l.b16 %v488
    %v2831 = vunpack.c.h.b16 %v488
    %v2832 = vunpack.c.l.b16 %v489
    %v2833 = vunpack.c.h.b16 %v489
    %v2834 = vunpack.c.l.b16 %v490
    %v2835 = vunpack.c.h.b16 %v490
    %v2836 = vunpack.c.l.b16 %v491
    %v2837 = vunpack.c.h.b16 %v491
    %v2838 = vunpack.c.l.b16 %v492
    %v2839 = vunpack.c.h.b16 %v492
    %v2840 = vunpack.c.l.b16 %v493
    %v2841 = vunpack.c.h.b16 %v493
    %v2842 = vunpack.c.l.b16 %v494
    %v2843 = vunpack.c.h.b16 %v494
    %v2844 = vunpack.c.l.b16 %v495
    %v2845 = vunpack.c.h.b16 %v495
    %v2846 = vunpack.c.l.b16 %v496
    %v2847 = vunpack.c.h.b16 %v496
    %v2848 = vunpack.c.l.b16 %v497
    %v2849 = vunpack.c.h.b16 %v497
    %v2850 = vunpack.c.l.b16 %v498
    %v2851 = vunpack.c.h.b16 %v498
    %v2852 = vunpack.c.l.b16 %v499
    %v2853 = vunpack.c.h.b16 %v499
    %v2854 = vunpack.c.l.b16 %v500
    %v2855 = vunpack.c.h.b16 %v500
    %v2856 = vunpack.c.l.b16 %v501
    %v2857 = vunpack.c.h.b16 %v501
    %v2858 = vunpack.c.l.b16 %v502
    %v2859 = vunpack.c.h.b16 %v502
    %v2860 = vunpack.c.l.b16 %v503
    %v2861 = vunpack.c.h.b16 %v503
    %v2862 = vunpack.c.l.b16 %v504
    %v2863 = vunpack.c.h.b16 %v504
    %v2864 = vunpack.c.l.b16 %v505
    %v2865 = vunpack.c.h.b16 %v505
    %v2866 = vunpack.c.l.b16 %v506
    %v2867 = vunpack.c.h.b16 %v506
    %v2868 = vunpack.c.l.b16 %v507
    %v2869 = vunpack.c.h.b16 %v507
    %v2870 = vunpack.c.l.b16 %v508
    %v2871 = vunpack.c.h.b16 %v508
    %v2872 = vunpack.c.l.b16 %v509
    %v2873 = vunpack.c.h.b16 %v509
    %v2874 = vunpack.c.l.b16 %v510
    %v2875 = vunpack.c.h.b16 %v510
    %v2876 = vunpack.c.l.b16 %v511
    %v2877 = vunpack.c.h.b16 %v511
    %v2878 = vunpack.c.l.b16 %v512
    %v2879 = vunpack.c.h.b16 %v512
    %v2880 = vunpack.c.l.b16 %v513
    %v2881 = vunpack.c.h.b16 %v513
    %v2882 = vunpack.c.l.b16 %v514
    %v2883 = vunpack.c.h.b16 %v514
    %v2884 = vunpack.c.l.b16 %v515
    %v2885 = vunpack.c.h.b16 %v515
    %v2886 = vunpack.c.l.b16 %v516
    %v2887 = vunpack.c.h.b16 %v516
    %v2888 = vunpack.c.l.b16 %v517
    %v2889 = vunpack.c.h.b16 %v517
    %v2890 = vunpack.c.l.b16 %v518
    %v2891 = vunpack.c.h.b16 %v518
    %v2892 = vunpack.c.l.b16 %v519
    %v2893 = vunpack.c.h.b16 %v519
    %v2894 = vunpack.c.l.b16 %v520
    %v2895 = vunpack.c.h.b16 %v520
    %v2896 = vunpack.c.l.b16 %v521
    %v2897 = vunpack.c.h.b16 %v521
    %v2898 = vunpack.c.l.b16 %v522
    %v2899 = vunpack.c.h.b16 %v522
    %v2900 = vunpack.c.l.b16 %v523
    %v2901 = vunpack.c.h.b16 %v523
    %v2902 = vunpack.c.l.b16 %v524
    %v2903 = vunpack.c.h.b16 %v524
    %v2904 = vunpack.c.l.b16 %v525
    %v2905 = vunpack.c.h.b16 %v525
    %v2906 = vunpack.c.l.b16 %v526
    %v2907 = vunpack.c.h.b16 %v526
    %v2908 = vunpack.c.l.b16 %v527
    %v2909 = vunpack.c.h.b16 %v527
    %v2910 = vunpack.c.l.b16 %v528
    %v2911 = vunpack.c.h.b16 %v528
    %v2912 = vunpack.c.l.b16 %v529
    %v2913 = vunpack.c.h.b16 %v529
    %v2914 = vunpack.c.l.b16 %v530
    %v2915 = vunpack.c.h.b16 %v530
    %v2916 = vunpack.c.l.b16 %v531
    %v2917 = vunpack.c.h.b16 %v531
    %v2918 = vunpack.c.l.b16 %v532
    %v2919 = vunpack.c.h.b16 %v532
    %v2920 = vunpack.c.l.b16 %v533
    %v2921 = vunpack.c.h.b16 %v533
    %v2922 = vunpack.c.l.b16 %v534
    %v2923 = vunpack.c.h.b16 %v534
    %v2924 = vunpack.c.l.b16 %v535
    %v2925 = vunpack.c.h.b16 %v535
    %v2926 = vunpack.c.l.b16 %v536
    %v2927 = vunpack.c.h.b16 %v536
    %v2928 = vunpack.c.l.b16 %v537
    %v2929 = vunpack.c.h.b16 %v537
    %v2930 = vunpack.c.l.b16 %v538
    %v2931 = vunpack.c.h.b16 %v538
    %v2932 = vunpack.c.l.b16 %v539
    %v2933 = vunpack.c.h.b16 %v539
    %v2934 = vunpack.c.l.b16 %v540
    %v2935 = vunpack.c.h.b16 %v540
    %v2936 = vunpack.c.l.b16 %v541
    %v2937 = vunpack.c.h.b16 %v541
    %v2938 = vunpack.c.l.b16 %v542
    %v2939 = vunpack.c.h.b16 %v542
    %v2940 = vunpack.c.l.b16 %v543
    %v2941 = vunpack.c.h.b16 %v543
    %v2942 = vunpack.c.l.b16 %v544
    %v2943 = vunpack.c.h.b16 %v544
    %v2944 = vunpack.c.l.b16 %v545
    %v2945 = vunpack.c.h.b16 %v545
    %v2946 = vunpack.c.l.b16 %v546
    %v2947 = vunpack.c.h.b16 %v546
    %v2948 = vunpack.c.l.b16 %v547
    %v2949 = vunpack.c.h.b16 %v547
    %v2950 = vunpack.c.l.b16 %v548
    %v2951 = vunpack.c.h.b16 %v548
    %v2952 = vunpack.c.l.b16 %v549
    %v2953 = vunpack.c.h.b16 %v549
    %v2954 = vunpack.c.l.b16 %v550
    %v2955 = vunpack.c.h.b16 %v550
    %v2956 = vunpack.c.l.b16 %v551
    %v2957 = vunpack.c.h.b16 %v551
    %v2958 = vunpack.c.l.b16 %v552
    %v2959 = vunpack.c.h.b16 %v552
    %v2960 = vunpack.c.l.b16 %v553
    %v2961 = vunpack.c.h.b16 %v553
    %v2962 = vunpack.c.l.b16 %v554
    %v2963 = vunpack.c.h.b16 %v554
    %v2964 = vunpack.c.l.b16 %v555
    %v2965 = vunpack.c.h.b16 %v555
    %v2966 = vunpack.c.l.b16 %v556
    %v2967 = vunpack.c.h.b16 %v556
    %v2968 = vunpack.c.l.b16 %v557
    %v2969 = vunpack.c.h.b16 %v557
    %v2970 = vunpack.c.l.b16 %v558
    %v2971 = vunpack.c.h.b16 %v558
    %v2972 = vunpack.c.l.b16 %v559
    %v2973 = vunpack.c.h.b16 %v559
    %v2974 = vunpack.c.l.b16 %v560
    %v2975 = vunpack.c.h.b16 %v560
    %v2976 = vunpack.c.l.b16 %v561
    %v2977 = vunpack.c.h.b16 %v561
    %v2978 = vunpack.c.l.b16 %v562
    %v2979 = vunpack.c.h.b16 %v562
    %v2980 = vunpack.c.l.b16 %v563
    %v2981 = vunpack.c.h.b16 %v563
    %v2982 = vunpack.c.l.b16 %v564
    %v2983 = vunpack.c.h.b16 %v564
    %v2984 = vunpack.c.l.b16 %v565
    %v2985 = vunpack.c.h.b16 %v565
    %v2986 = vunpack.c.l.b16 %v566
    %v2987 = vunpack.c.h.b16 %v566
    %v2988 = vunpack.c.l.b16 %v567
    %v2989 = vunpack.c.h.b16 %v567
    %v2990 = vunpack.c.l.b16 %v568
    %v2991 = vunpack.c.h.b16 %v568
    %v2992 = vunpack.c.l.b16 %v569
    %v2993 = vunpack.c.h.b16 %v569
    %v2994 = vunpack.c.l.b16 %v570
    %v2995 = vunpack.c.h.b16 %v570
    %v2996 = vunpack.c.l.b16 %v571
    %v2997 = vunpack.c.h.b16 %v571
    %v2998 = vunpack.c.l.b16 %v572
    %v2999 = vunpack.c.h.b16 %v572
    %v3000 = vunpack.c.l.b16 %v573
    %v3001 = vunpack.c.h.b16 %v573
    %v3002 = vunpack.c.l.b16 %v574
    %v3003 = vunpack.c.h.b16 %v574
    %v3004 = vunpack.c.l.b16 %v575
    %v3005 = vunpack.c.h.b16 %v575
    %v3006 = vunpack.c.l.b16 %v576
    %v3007 = vunpack.c.h.b16 %v576
    %v3008 = vunpack.c.l.b16 %v577
    %v3009 = vunpack.c.h.b16 %v577
    %v3010 = vunpack.c.l.b16 %v578
    %v3011 = vunpack.c.h.b16 %v578
    %v3012 = vunpack.c.l.b16 %v579
    %v3013 = vunpack.c.h.b16 %v579
    %v3014 = vunpack.c.l.b16 %v580
    %v3015 = vunpack.c.h.b16 %v580
    %v3016 = vunpack.c.l.b16 %v581
    %v3017 = vunpack.c.h.b16 %v581
    %v3018 = vunpack.c.l.b16 %v582
    %v3019 = vunpack.c.h.b16 %v582
    %v3020 = vunpack.c.l.b16 %v583
    %v3021 = vunpack.c.h.b16 %v583
    %v3022 = vunpack.c.l.b16 %v584
    %v3023 = vunpack.c.h.b16 %v584
    %v3024 = vunpack.c.l.b16 %v585
    %v3025 = vunpack.c.h.b16 %v585
    %v3026 = vunpack.c.l.b16 %v586
    %v3027 = vunpack.c.h.b16 %v586
    %v3028 = vunpack.c.l.b16 %v587
    %v3029 = vunpack.c.h.b16 %v587
    %v3030 = vunpack.c.l.b16 %v588
    %v3031 = vunpack.c.h.b16 %v588
    %v3032 = vunpack.c.l.b16 %v589
    %v3033 = vunpack.c.h.b16 %v589
    %v3034 = vunpack.c.l.b16 %v590
    %v3035 = vunpack.c.h.b16 %v590
    %v3036 = vunpack.c.l.b16 %v591
    %v3037 = vunpack.c.h.b16 %v591
    %v3038 = vunpack.c.l.b16 %v592
    %v3039 = vunpack.c.h.b16 %v592
    %v3040 = vunpack.c.l.b16 %v593
    %v3041 = vunpack.c.h.b16 %v593
    %v3042 = vunpack.c.l.b16 %v594
    %v3043 = vunpack.c.h.b16 %v594
    %v3044 = vunpack.c.l.b16 %v595
    %v3045 = vunpack.c.h.b16 %v595
    %v3046 = vunpack.c.l.b16 %v596
    %v3047 = vunpack.c.h.b16 %v596
    %v3048 = vunpack.c.l.b16 %v597
    %v3049 = vunpack.c.h.b16 %v597
    %v3050 = vunpack.c.l.b16 %v598
    %v3051 = vunpack.c.h.b16 %v598
    %v3052 = vunpack.c.l.b16 %v599
    %v3053 = vunpack.c.h.b16 %v599
    %v3054 = vunpack.c.l.b16 %v600
    %v3055 = vunpack.c.h.b16 %v600
    %v3056 = vunpack.c.l.b16 %v601
    %v3057 = vunpack.c.h.b16 %v601
    %v3058 = vunpack.c.l.b16 %v602
    %v3059 = vunpack.c.h.b16 %v602
    %v3060 = vunpack.c.l.b16 %v603
    %v3061 = vunpack.c.h.b16 %v603
    %v3062 = vunpack.c.l.b16 %v604
    %v3063 = vunpack.c.h.b16 %v604
    %v3064 = vunpack.c.l.b16 %v605
    %v3065 = vunpack.c.h.b16 %v605
    %v3066 = vunpack.c.l.b16 %v606
    %v3067 = vunpack.c.h.b16 %v606
    %v3068 = vunpack.c.l.b16 %v607
    %v3069 = vunpack.c.h.b16 %v607
    %v3070 = vunpack.c.l.b16 %v608
    %v3071 = vunpack.c.h.b16 %v608
    %v3072 = vunpack.c.l.b16 %v609
    %v3073 = vunpack.c.h.b16 %v609
    %v3074 = vunpack.c.l.b16 %v610
    %v3075 = vunpack.c.h.b16 %v610
    %v3076 = vunpack.c.l.b16 %v611
    %v3077 = vunpack.c.h.b16 %v611
    %v3078 = vunpack.c.l.b16 %v612
    %v3079 = vunpack.c.h.b16 %v612
    %v3080 = vunpack.c.l.b16 %v613
    %v3081 = vunpack.c.h.b16 %v613
    %v3082 = vunpack.c.l.b16 %v614
    %v3083 = vunpack.c.h.b16 %v614
    %v3084 = vunpack.c.l.b16 %v615
    %v3085 = vunpack.c.h.b16 %v615
    %v3086 = vunpack.c.l.b16 %v616
    %v3087 = vunpack.c.h.b16 %v616
    %v3088 = vunpack.c.l.b16 %v617
    %v3089 = vunpack.c.h.b16 %v617
    %v3090 = vunpack.c.l.b16 %v618
    %v3091 = vunpack.c.h.b16 %v618
    %v3092 = vunpack.c.l.b16 %v619
    %v3093 = vunpack.c.h.b16 %v619
    %v3094 = vunpack.c.l.b16 %v620
    %v3095 = vunpack.c.h.b16 %v620
    %v3096 = vunpack.c.l.b16 %v621
    %v3097 = vunpack.c.h.b16 %v621
    %v3098 = vunpack.c.l.b16 %v622
    %v3099 = vunpack.c.h.b16 %v622
    %v3100 = vunpack.c.l.b16 %v623
    %v3101 = vunpack.c.h.b16 %v623
    %v3102 = vunpack.c.l.b16 %v624
    %v3103 = vunpack.c.h.b16 %v624
    %v3104 = vunpack.c.l.b16 %v625
    %v3105 = vunpack.c.h.b16 %v625
    %v3106 = vunpack.c.l.b16 %v626
    %v3107 = vunpack.c.h.b16 %v626
    %v3108 = vunpack.c.l.b16 %v627
    %v3109 = vunpack.c.h.b16 %v627
    %v3110 = vunpack.c.l.b16 %v628
    %v3111 = vunpack.c.h.b16 %v628
    %v3112 = vunpack.c.l.b16 %v629
    %v3113 = vunpack.c.h.b16 %v629
    %v3114 = vunpack.c.l.b16 %v630
    %v3115 = vunpack.c.h.b16 %v630
    %v3116 = vunpack.c.l.b16 %v631
    %v3117 = vunpack.c.h.b16 %v631
    %v3118 = vunpack.c.l.b16 %v632
    %v3119 = vunpack.c.h.b16 %v632
    %v3120 = vunpack.c.l.b16 %v633
    %v3121 = vunpack.c.h.b16 %v633
    %v3122 = vunpack.c.l.b16 %v634
    %v3123 = vunpack.c.h.b16 %v634
    %v3124 = vunpack.c.l.b16 %v635
    %v3125 = vunpack.c.h.b16 %v635
    %v3126 = vunpack.c.l.b16 %v636
    %v3127 = vunpack.c.h.b16 %v636
    %v3128 = vunpack.c.l.b16 %v637
    %v3129 = vunpack.c.h.b16 %v637
    %v3130 = vunpack.c.l.b16 %v638
    %v3131 = vunpack.c.h.b16 %v638
    %v3132 = vunpack.c.l.b16 %v639
    %v3133 = vunpack.c.h.b16 %v639
    %v3134 = vunpack.c.l.b16 %v640
    %v3135 = vunpack.c.h.b16 %v640
    %v3136 = vunpack.c.l.b16 %v641
    %v3137 = vunpack.c.h.b16 %v641
    %v3138 = vunpack.c.l.b16 %v642
    %v3139 = vunpack.c.h.b16 %v642
    %v3140 = vunpack.c.l.b16 %v643
    %v3141 = vunpack.c.h.b16 %v643
    %v3142 = vunpack.c.l.b16 %v644
    %v3143 = vunpack.c.h.b16 %v644
    %v3144 = vunpack.c.l.b16 %v645
    %v3145 = vunpack.c.h.b16 %v645
    %v3146 = vunpack.c.l.b16 %v646
    %v3147 = vunpack.c.h.b16 %v646
    %v3148 = vunpack.c.l.b16 %v647
    %v3149 = vunpack.c.h.b16 %v647
    %v3150 = vunpack.c.l.b16 %v648
    %v3151 = vunpack.c.h.b16 %v648
    %v3152 = vunpack.c.l.b16 %v649
    %v3153 = vunpack.c.h.b16 %v649
    %v3154 = vunpack.c.l.b16 %v650
    %v3155 = vunpack.c.h.b16 %v650
    %v3156 = vunpack.c.l.b16 %v651
    %v3157 = vunpack.c.h.b16 %v651
    %v3158 = vunpack.c.l.b16 %v652
    %v3159 = vunpack.c.h.b16 %v652
    %v3160 = vunpack.c.l.b16 %v653
    %v3161 = vunpack.c.h.b16 %v653
    %v3162 = vunpack.c.l.b16 %v654
    %v3163 = vunpack.c.h.b16 %v654
    %v3164 = vunpack.c.l.b16 %v655
    %v3165 = vunpack.c.h.b16 %v655
    %v3166 = vunpack.c.l.b16 %v656
    %v3167 = vunpack.c.h.b16 %v656
    %v3168 = vunpack.c.l.b16 %v657
    %v3169 = vunpack.c.h.b16 %v657
    %v3170 = vunpack.c.l.b16 %v658
    %v3171 = vunpack.c.h.b16 %v658
    %v3172 = vunpack.c.l.b16 %v659
    %v3173 = vunpack.c.h.b16 %v659
    %v3174 = vunpack.c.l.b16 %v660
    %v3175 = vunpack.c.h.b16 %v660
    %v3176 = vunpack.c.l.b16 %v661
    %v3177 = vunpack.c.h.b16 %v661
    %v3178 = vunpack.c.l.b16 %v662
    %v3179 = vunpack.c.h.b16 %v662
    %v3180 = vunpack.c.l.b16 %v663
    %v3181 = vunpack.c.h.b16 %v663
    %v3182 = vunpack.c.l.b16 %v664
    %v3183 = vunpack.c.h.b16 %v664
    %v3184 = vunpack.c.l.b16 %v665
    %v3185 = vunpack.c.h.b16 %v665
    %v3186 = vunpack.c.l.b16 %v666
    %v3187 = vunpack.c.h.b16 %v666
    %v3188 = vunpack.c.l.b16 %v667
    %v3189 = vunpack.c.h.b16 %v667
    %v3190 = vunpack.c.l.b16 %v668
    %v3191 = vunpack.c.h.b16 %v668
    %v3192 = vunpack.c.l.b16 %v669
    %v3193 = vunpack.c.h.b16 %v669
    %v3194 = vunpack.c.l.b16 %v670
    %v3195 = vunpack.c.h.b16 %v670
    %v3196 = vunpack.c.l.b16 %v671
    %v3197 = vunpack.c.h.b16 %v671
    %v3198 = vunpack.c.l.b16 %v672
    %v3199 = vunpack.c.h.b16 %v672
    %v3200 = vunpack.c.l.b16 %v673
    %v3201 = vunpack.c.h.b16 %v673
    %v3202 = vunpack.c.l.b16 %v674
    %v3203 = vunpack.c.h.b16 %v674
    %v3204 = vunpack.c.l.b16 %v675
    %v3205 = vunpack.c.h.b16 %v675
    %v3206 = vunpack.c.l.b16 %v676
    %v3207 = vunpack.c.h.b16 %v676
    %v3208 = vunpack.c.l.b16 %v677
    %v3209 = vunpack.c.h.b16 %v677
    %v3210 = vunpack.c.l.b16 %v678
    %v3211 = vunpack.c.h.b16 %v678
    %v3212 = vunpack.c.l.b16 %v679
    %v3213 = vunpack.c.h.b16 %v679
    %v3214 = vunpack.c.l.b16 %v680
    %v3215 = vunpack.c.h.b16 %v680
    %v3216 = vunpack.c.l.b16 %v681
    %v3217 = vunpack.c.h.b16 %v681
    %v3218 = vunpack.c.l.b16 %v682
    %v3219 = vunpack.c.h.b16 %v682
    %v3220 = vunpack.c.l.b16 %v683
    %v3221 = vunpack.c.h.b16 %v683
    %v3222 = vunpack.c.l.b16 %v684
    %v3223 = vunpack.c.h.b16 %v684
    %v3224 = vunpack.c.l.b16 %v685
    %v3225 = vunpack.c.h.b16 %v685
    %v3226 = vunpack.c.l.b16 %v686
    %v3227 = vunpack.c.h.b16 %v686
    %v3228 = vunpack.c.l.b16 %v687
    %v3229 = vunpack.c.h.b16 %v687
    %v3230 = vunpack.c.l.b16 %v688
    %v3231 = vunpack.c.h.b16 %v688
    %v3232 = vunpack.c.l.b16 %v689
    %v3233 = vunpack.c.h.b16 %v689
    %v3234 = vunpack.c.l.b16 %v690
    %v3235 = vunpack.c.h.b16 %v690
    %v3236 = vunpack.c.l.b16 %v691
    %v3237 = vunpack.c.h.b16 %v691
    %v3238 = vunpack.c.l.b16 %v692
    %v3239 = vunpack.c.h.b16 %v692
    %v3240 = vunpack.c.l.b16 %v693
    %v3241 = vunpack.c.h.b16 %v693
    %v3242 = vunpack.c.l.b16 %v694
    %v3243 = vunpack.c.h.b16 %v694
    %v3244 = vunpack.c.l.b16 %v695
    %v3245 = vunpack.c.h.b16 %v695
    %v3246 = vunpack.c.l.b16 %v696
    %v3247 = vunpack.c.h.b16 %v696
    %v3248 = vunpack.c.l.b16 %v697
    %v3249 = vunpack.c.h.b16 %v697
    %v3250 = vunpack.c.l.b16 %v698
    %v3251 = vunpack.c.h.b16 %v698
    %v3252 = vunpack.c.l.b16 %v699
    %v3253 = vunpack.c.h.b16 %v699
    %v3254 = vunpack.c.l.b16 %v700
    %v3255 = vunpack.c.h.b16 %v700
    %v3256 = vunpack.c.l.b16 %v701
    %v3257 = vunpack.c.h.b16 %v701
    %v3258 = vunpack.c.l.b16 %v702
    %v3259 = vunpack.c.h.b16 %v702
    %v3260 = vunpack.c.l.b16 %v703
    %v3261 = vunpack.c.h.b16 %v703
    %v3262 = vunpack.c.l.b16 %v704
    %v3263 = vunpack.c.h.b16 %v704
    %v3264 = vunpack.c.l.b16 %v705
    %v3265 = vunpack.c.h.b16 %v705
    %v3266 = vunpack.c.l.b16 %v706
    %v3267 = vunpack.c.h.b16 %v706
    %v3268 = vunpack.c.l.b16 %v707
    %v3269 = vunpack.c.h.b16 %v707
    %v3270 = vunpack.c.l.b16 %v708
    %v3271 = vunpack.c.h.b16 %v708
    %v3272 = vunpack.c.l.b16 %v709
    %v3273 = vunpack.c.h.b16 %v709
    %v3274 = vunpack.c.l.b16 %v710
    %v3275 = vunpack.c.h.b16 %v710
    %v3276 = vunpack.c.l.b16 %v711
    %v3277 = vunpack.c.h.b16 %v711
    %v3278 = vunpack.c.l.b16 %v712
    %v3279 = vunpack.c.h.b16 %v712
    %v3280 = vunpack.c.l.b16 %v713
    %v3281 = vunpack.c.h.b16 %v713
    %v3282 = vunpack.c.l.b16 %v714
    %v3283 = vunpack.c.h.b16 %v714
    %v3284 = vunpack.c.l.b16 %v715
    %v3285 = vunpack.c.h.b16 %v715
    %v3286 = vunpack.c.l.b16 %v716
    %v3287 = vunpack.c.h.b16 %v716
    %v3288 = vunpack.c.l.b16 %v717
    %v3289 = vunpack.c.h.b16 %v717
    %v3290 = vunpack.c.l.b16 %v718
    %v3291 = vunpack.c.h.b16 %v718
    %v3292 = vunpack.c.l.b16 %v719
    %v3293 = vunpack.c.h.b16 %v719
    %v3294 = vunpack.c.l.b16 %v720
    %v3295 = vunpack.c.h.b16 %v720
    %v3296 = vunpack.c.l.b16 %v721
    %v3297 = vunpack.c.h.b16 %v721
    %v3298 = vunpack.c.l.b16 %v722
    %v3299 = vunpack.c.h.b16 %v722
    %v3300 = vunpack.c.l.b16 %v723
    %v3301 = vunpack.c.h.b16 %v723
    %v3302 = vunpack.c.l.b16 %v724
    %v3303 = vunpack.c.h.b16 %v724
    %v3304 = vunpack.c.l.b16 %v725
    %v3305 = vunpack.c.h.b16 %v725
    %v3306 = vunpack.c.l.b16 %v726
    %v3307 = vunpack.c.h.b16 %v726
    %v3308 = vunpack.c.l.b16 %v727
    %v3309 = vunpack.c.h.b16 %v727
    %v3310 = vunpack.c.l.b16 %v728
    %v3311 = vunpack.c.h.b16 %v728
    %v3312 = vunpack.c.l.b16 %v729
    %v3313 = vunpack.c.h.b16 %v729
    %v3314 = vunpack.c.l.b16 %v730
    %v3315 = vunpack.c.h.b16 %v730
    %v3316 = vunpack.c.l.b16 %v731
    %v3317 = vunpack.c.h.b16 %v731
    %v3318 = vunpack.c.l.b16 %v732
    %v3319 = vunpack.c.h.b16 %v732
    %v3320 = vunpack.c.l.b16 %v733
    %v3321 = vunpack.c.h.b16 %v733
    %v3322 = vunpack.c.l.b16 %v734
    %v3323 = vunpack.c.h.b16 %v734
    %v3324 = vunpack.c.l.b16 %v735
    %v3325 = vunpack.c.h.b16 %v735
    %v3326 = vunpack.c.l.b16 %v736
    %v3327 = vunpack.c.h.b16 %v736
    %v3328 = vunpack.c.l.b16 %v737
    %v3329 = vunpack.c.h.b16 %v737
    %v3330 = vunpack.c.l.b16 %v738
    %v3331 = vunpack.c.h.b16 %v738
    %v3332 = vunpack.c.l.b16 %v739
    %v3333 = vunpack.c.h.b16 %v739
    %v3334 = vunpack.c.l.b16 %v740
    %v3335 = vunpack.c.h.b16 %v740
    %v3336 = vunpack.c.l.b16 %v741
    %v3337 = vunpack.c.h.b16 %v741
    %v3338 = vunpack.c.l.b16 %v742
    %v3339 = vunpack.c.h.b16 %v742
    %v3340 = vunpack.c.l.b16 %v743
    %v3341 = vunpack.c.h.b16 %v743
    %v3342 = vunpack.c.l.b16 %v744
    %v3343 = vunpack.c.h.b16 %v744
    %v3344 = vunpack.c.l.b16 %v745
    %v3345 = vunpack.c.h.b16 %v745
    %v3346 = vunpack.c.l.b16 %v746
    %v3347 = vunpack.c.h.b16 %v746
    %v3348 = vunpack.c.l.b16 %v747
    %v3349 = vunpack.c.h.b16 %v747
    %v3350 = vunpack.c.l.b16 %v748
    %v3351 = vunpack.c.h.b16 %v748
    %v3352 = vunpack.c.l.b16 %v749
    %v3353 = vunpack.c.h.b16 %v749
    %v3354 = vunpack.c.l.b16 %v750
    %v3355 = vunpack.c.h.b16 %v750
    %v3356 = vunpack.c.l.b16 %v751
    %v3357 = vunpack.c.h.b16 %v751
    %v3358 = vunpack.c.l.b16 %v752
    %v3359 = vunpack.c.h.b16 %v752
    %v3360 = vunpack.c.l.b16 %v753
    %v3361 = vunpack.c.h.b16 %v753
    %v3362 = vunpack.c.l.b16 %v754
    %v3363 = vunpack.c.h.b16 %v754
    %v3364 = vunpack.c.l.b16 %v755
    %v3365 = vunpack.c.h.b16 %v755
    %v3366 = vunpack.c.l.b16 %v756
    %v3367 = vunpack.c.h.b16 %v756
    %v3368 = vunpack.c.l.b16 %v757
    %v3369 = vunpack.c.h.b16 %v757
    %v3370 = vunpack.c.l.b16 %v758
    %v3371 = vunpack.c.h.b16 %v758
    %v3372 = vunpack.c.l.b16 %v759
    %v3373 = vunpack.c.h.b16 %v759
    %v3374 = vunpack.c.l.b16 %v760
    %v3375 = vunpack.c.h.b16 %v760
    %v3376 = vunpack.c.l.b16 %v761
    %v3377 = vunpack.c.h.b16 %v761
    %v3378 = vunpack.c.l.b16 %v762
    %v3379 = vunpack.c.h.b16 %v762
    %v3380 = vunpack.c.l.b16 %v763
    %v3381 = vunpack.c.h.b16 %v763
    %v3382 = vunpack.c.l.b16 %v764
    %v3383 = vunpack.c.h.b16 %v764
    %v3384 = vunpack.c.l.b16 %v765
    %v3385 = vunpack.c.h.b16 %v765
    %v3386 = vunpack.c.l.b16 %v766
    %v3387 = vunpack.c.h.b16 %v766
    %v3388 = vunpack.c.l.b16 %v767
    %v3389 = vunpack.c.h.b16 %v767
    %v3390 = vunpack.c.l.b16 %v768
    %v3391 = vunpack.c.h.b16 %v768
    %v3392 = vunpack.c.l.b16 %v769
    %v3393 = vunpack.c.h.b16 %v769
    %v3394 = vunpack.c.l.b16 %v770
    %v3395 = vunpack.c.h.b16 %v770
    %v3396 = vunpack.c.l.b16 %v771
    %v3397 = vunpack.c.h.b16 %v771
    %v3398 = vunpack.c.l.b16 %v772
    %v3399 = vunpack.c.h.b16 %v772
    %v3400 = vunpack.c.l.b16 %v773
    %v3401 = vunpack.c.h.b16 %v773
    %v3402 = vunpack.c.l.b16 %v774
    %v3403 = vunpack.c.h.b16 %v774
    %v3404 = vunpack.c.l.b16 %v775
    %v3405 = vunpack.c.h.b16 %v775
    %v3406 = vunpack.c.l.b16 %v776
    %v3407 = vunpack.c.h.b16 %v776
    %v3408 = vunpack.c.l.b16 %v777
    %v3409 = vunpack.c.h.b16 %v777
    %v3410 = vunpack.c.l.b16 %v778
    %v3411 = vunpack.c.h.b16 %v778
    %v3412 = vunpack.c.l.b16 %v779
    %v3413 = vunpack.c.h.b16 %v779
    %v3414 = vunpack.c.l.b16 %v780
    %v3415 = vunpack.c.h.b16 %v780
    %v3416 = vunpack.c.l.b16 %v781
    %v3417 = vunpack.c.h.b16 %v781
    %v3418 = vunpack.c.l.b16 %v782
    %v3419 = vunpack.c.h.b16 %v782
    %v3420 = vunpack.c.l.b16 %v783
    %v3421 = vunpack.c.h.b16 %v783
    %v3422 = vunpack.c.l.b16 %v784
    %v3423 = vunpack.c.h.b16 %v784
    %v3424 = vunpack.c.l.b16 %v785
    %v3425 = vunpack.c.h.b16 %v785
    %v3426 = vunpack.c.l.b16 %v786
    %v3427 = vunpack.c.h.b16 %v786
    %v3428 = vunpack.c.l.b16 %v787
    %v3429 = vunpack.c.h.b16 %v787
    %v3430 = vunpack.c.l.b16 %v788
    %v3431 = vunpack.c.h.b16 %v788
    %v3432 = vunpack.c.l.b16 %v789
    %v3433 = vunpack.c.h.b16 %v789
    %v3434 = vunpack.c.l.b16 %v790
    %v3435 = vunpack.c.h.b16 %v790
    %v3436 = vunpack.c.l.b16 %v791
    %v3437 = vunpack.c.h.b16 %v791
    %v3438 = vunpack.c.l.b16 %v792
    %v3439 = vunpack.c.h.b16 %v792
    %v3440 = vunpack.c.l.b16 %v793
    %v3441 = vunpack.c.h.b16 %v793
    %v3442 = vunpack.c.l.b16 %v794
    %v3443 = vunpack.c.h.b16 %v794
    %v3444 = vunpack.c.l.b16 %v795
    %v3445 = vunpack.c.h.b16 %v795
    %v3446 = vunpack.c.l.b16 %v796
    %v3447 = vunpack.c.h.b16 %v796
    %v3448 = vunpack.c.l.b16 %v797
    %v3449 = vunpack.c.h.b16 %v797
    %v3450 = vunpack.c.l.b16 %v798
    %v3451 = vunpack.c.h.b16 %v798
    %v3452 = vunpack.c.l.b16 %v799
    %v3453 = vunpack.c.h.b16 %v799
    %v3454 = vunpack.c.l.b16 %v800
    %v3455 = vunpack.c.h.b16 %v800
    %v3456 = vunpack.c.l.b16 %v801
    %v3457 = vunpack.c.h.b16 %v801
    %v3458 = vunpack.c.l.b16 %v802
    %v3459 = vunpack.c.h.b16 %v802
    %v3460 = vunpack.c.l.b16 %v803
    %v3461 = vunpack.c.h.b16 %v803
    %v3462 = vunpack.c.l.b16 %v804
    %v3463 = vunpack.c.h.b16 %v804
    %v3464 = vunpack.c.l.b16 %v805
    %v3465 = vunpack.c.h.b16 %v805
    %v3466 = vunpack.c.l.b16 %v806
    %v3467 = vunpack.c.h.b16 %v806
    %v3468 = vunpack.c.l.b16 %v807
    %v3469 = vunpack.c.h.b16 %v807
    %v3470 = vunpack.c.l.b16 %v808
    %v3471 = vunpack.c.h.b16 %v808
    %v3472 = vunpack.c.l.b16 %v809
    %v3473 = vunpack.c.h.b16 %v809
    %v3474 = vunpack.c.l.b16 %v810
    %v3475 = vunpack.c.h.b16 %v810
    %v3476 = vunpack.c.l.b16 %v811
    %v3477 = vunpack.c.h.b16 %v811
    %v3478 = vunpack.c.l.b16 %v812
    %v3479 = vunpack.c.h.b16 %v812
    %v3480 = vunpack.c.l.b16 %v813
    %v3481 = vunpack.c.h.b16 %v813
    %v3482 = vunpack.c.l.b16 %v814
    %v3483 = vunpack.c.h.b16 %v814
    %v3484 = vunpack.c.l.b16 %v815
    %v3485 = vunpack.c.h.b16 %v815
    %v3486 = vunpack.c.l.b16 %v816
    %v3487 = vunpack.c.h.b16 %v816
    %v3488 = vunpack.c.l.b16 %v817
    %v3489 = vunpack.c.h.b16 %v817
    %v3490 = vunpack.c.l.b16 %v818
    %v3491 = vunpack.c.h.b16 %v818
    %v3492 = vunpack.c.l.b16 %v819
    %v3493 = vunpack.c.h.b16 %v819
    %v3494 = vunpack.c.l.b16 %v820
    %v3495 = vunpack.c.h.b16 %v820
    %v3496 = vunpack.c.l.b16 %v821
    %v3497 = vunpack.c.h.b16 %v821
    %v3498 = vunpack.c.l.b16 %v822
    %v3499 = vunpack.c.h.b16 %v822
    %v3500 = vunpack.c.l.b16 %v823
    %v3501 = vunpack.c.h.b16 %v823
    %v3502 = vunpack.c.l.b16 %v824
    %v3503 = vunpack.c.h.b16 %v824
    %v3504 = vunpack.c.l.b16 %v825
    %v3505 = vunpack.c.h.b16 %v825
    %v3506 = vunpack.c.l.b16 %v826
    %v3507 = vunpack.c.h.b16 %v826
    %v3508 = vunpack.c.l.b16 %v827
    %v3509 = vunpack.c.h.b16 %v827
    %v3510 = vunpack.c.l.b16 %v828
    %v3511 = vunpack.c.h.b16 %v828
    %v3512 = vunpack.c.l.b16 %v829
    %v3513 = vunpack.c.h.b16 %v829
    %v3514 = vunpack.c.l.b16 %v830
    %v3515 = vunpack.c.h.b16 %v830
    %v3516 = vunpack.c.l.b16 %v831
    %v3517 = vunpack.c.h.b16 %v831
    %v3518 = vunpack.c.l.b16 %v832
    %v3519 = vunpack.c.h.b16 %v832
    %v3520 = vunpack.c.l.b16 %v833
    %v3521 = vunpack.c.h.b16 %v833
    %v3522 = vunpack.c.l.b16 %v834
    %v3523 = vunpack.c.h.b16 %v834
    %v3524 = vunpack.c.l.b16 %v835
    %v3525 = vunpack.c.h.b16 %v835
    %v3526 = vunpack.c.l.b16 %v836
    %v3527 = vunpack.c.h.b16 %v836
    %v3528 = vunpack.c.l.b16 %v837
    %v3529 = vunpack.c.h.b16 %v837
    %v3530 = vunpack.c.l.b16 %v838
    %v3531 = vunpack.c.h.b16 %v838
    %v3532 = vunpack.c.l.b16 %v839
    %v3533 = vunpack.c.h.b16 %v839
    %v3534 = vunpack.c.l.b16 %v840
    %v3535 = vunpack.c.h.b16 %v840
    %v3536 = vunpack.c.l.b16 %v841
    %v3537 = vunpack.c.h.b16 %v841
    %v3538 = vunpack.c.l.b16 %v842
    %v3539 = vunpack.c.h.b16 %v842
    %v3540 = vunpack.c.l.b16 %v843
    %v3541 = vunpack.c.h.b16 %v843
    %v3542 = vunpack.c.l.b16 %v844
    %v3543 = vunpack.c.h.b16 %v844
    %v3544 = vunpack.c.l.b16 %v845
    %v3545 = vunpack.c.h.b16 %v845
    %v3546 = vunpack.c.l.b16 %v846
    %v3547 = vunpack.c.h.b16 %v846
    %v3548 = vunpack.c.l.b16 %v847
    %v3549 = vunpack.c.h.b16 %v847
    %v3550 = vunpack.c.l.b16 %v848
    %v3551 = vunpack.c.h.b16 %v848
    %v3552 = vunpack.c.l.b16 %v849
    %v3553 = vunpack.c.h.b16 %v849
    %v3554 = vunpack.c.l.b16 %v850
    %v3555 = vunpack.c.h.b16 %v850
    %v3556 = vunpack.c.l.b16 %v851
    %v3557 = vunpack.c.h.b16 %v851
    %v3558 = vunpack.c.l.b16 %v852
    %v3559 = vunpack.c.h.b16 %v852
    %v3560 = vunpack.c.l.b16 %v853
    %v3561 = vunpack.c.h.b16 %v853
    %v3562 = vunpack.c.l.b16 %v854
    %v3563 = vunpack.c.h.b16 %v854
    %v3564 = vunpack.c.l.b16 %v855
    %v3565 = vunpack.c.h.b16 %v855
    %v3566 = vunpack.c.l.b16 %v856
    %v3567 = vunpack.c.h.b16 %v856
    %v3568 = vunpack.c.l.b16 %v857
    %v3569 = vunpack.c.h.b16 %v857
    %v3570 = vunpack.c.l.b16 %v858
    %v3571 = vunpack.c.h.b16 %v858
    %v3572 = vunpack.c.l.b16 %v859
    %v3573 = vunpack.c.h.b16 %v859
    %v3574 = vunpack.c.l.b16 %v860
    %v3575 = vunpack.c.h.b16 %v860
    %v3576 = vunpack.c.l.b16 %v861
    %v3577 = vunpack.c.h.b16 %v861
    %v3578 = vunpack.c.l.b16 %v862
    %v3579 = vunpack.c.h.b16 %v862
    %v3580 = vunpack.c.l.b16 %v863
    %v3581 = vunpack.c.h.b16 %v863
    %v3582 = vunpack.c.l.b16 %v864
    %v3583 = vunpack.c.h.b16 %v864
    %v3584 = vunpack.c.l.b16 %v865
    %v3585 = vunpack.c.h.b16 %v865
    %v3586 = vunpack.c.l.b16 %v866
    %v3587 = vunpack.c.h.b16 %v866
    %v3588 = vunpack.c.l.b16 %v867
    %v3589 = vunpack.c.h.b16 %v867
    %v3590 = vunpack.c.l.b16 %v868
    %v3591 = vunpack.c.h.b16 %v868
    %v3592 = vunpack.c.l.b16 %v869
    %v3593 = vunpack.c.h.b16 %v869
    %v3594 = vunpack.c.l.b16 %v870
    %v3595 = vunpack.c.h.b16 %v870
    %v3596 = vunpack.c.l.b16 %v871
    %v3597 = vunpack.c.h.b16 %v871
    %v3598 = vunpack.c.l.b16 %v872
    %v3599 = vunpack.c.h.b16 %v872
    %v3600 = vunpack.c.l.b16 %v873
    %v3601 = vunpack.c.h.b16 %v873
    %v3602 = vunpack.c.l.b16 %v874
    %v3603 = vunpack.c.h.b16 %v874
    %v3604 = vunpack.c.l.b16 %v875
    %v3605 = vunpack.c.h.b16 %v875
    %v3606 = vunpack.c.l.b16 %v876
    %v3607 = vunpack.c.h.b16 %v876
    %v3608 = vunpack.c.l.b16 %v877
    %v3609 = vunpack.c.h.b16 %v877
    %v3610 = vunpack.c.l.b16 %v878
    %v3611 = vunpack.c.h.b16 %v878
    %v3612 = vunpack.c.l.b16 %v879
    %v3613 = vunpack.c.h.b16 %v879
    %v3614 = vunpack.c.l.b16 %v880
    %v3615 = vunpack.c.h.b16 %v880
    %v3616 = vunpack.c.l.b16 %v881
    %v3617 = vunpack.c.h.b16 %v881
    %v3618 = vunpack.c.l.b16 %v882
    %v3619 = vunpack.c.h.b16 %v882
    %v3620 = vunpack.c.l.b16 %v883
    %v3621 = vunpack.c.h.b16 %v883
    %v3622 = vunpack.c.l.b16 %v884
    %v3623 = vunpack.c.h.b16 %v884
    %v3624 = vunpack.c.l.b16 %v885
    %v3625 = vunpack.c.h.b16 %v885
    %v3626 = vunpack.c.l.b16 %v886
    %v3627 = vunpack.c.h.b16 %v886
    %v3628 = vunpack.c.l.b16 %v887
    %v3629 = vunpack.c.h.b16 %v887
    %v3630 = vunpack.c.l.b16 %v888
    %v3631 = vunpack.c.h.b16 %v888
    %v3632 = vunpack.c.l.b16 %v889
    %v3633 = vunpack.c.h.b16 %v889
    %v3634 = vunpack.c.l.b16 %v890
    %v3635 = vunpack.c.h.b16 %v890
    %v3636 = vunpack.c.l.b16 %v891
    %v3637 = vunpack.c.h.b16 %v891
    %v3638 = vunpack.c.l.b16 %v892
    %v3639 = vunpack.c.h.b16 %v892
    %v3640 = vunpack.c.l.b16 %v893
    %v3641 = vunpack.c.h.b16 %v893
    %v3642 = vunpack.c.l.b16 %v894
    %v3643 = vunpack.c.h.b16 %v894
    %v3644 = vunpack.c.l.b16 %v895
    %v3645 = vunpack.c.h.b16 %v895
    %v3646 = vunpack.c.l.b16 %v896
    %v3647 = vunpack.c.h.b16 %v896
    %v3648 = vunpack.c.l.b16 %v897
    %v3649 = vunpack.c.h.b16 %v897
    %v3650 = vunpack.c.l.b16 %v898
    %v3651 = vunpack.c.h.b16 %v898
    %v3652 = vunpack.c.l.b16 %v899
    %v3653 = vunpack.c.h.b16 %v899
    %v3654 = vunpack.c.l.b16 %v900
    %v3655 = vunpack.c.h.b16 %v900
    %v3656 = vunpack.c.l.b16 %v901
    %v3657 = vunpack.c.h.b16 %v901
    %v3658 = vunpack.c.l.b16 %v902
    %v3659 = vunpack.c.h.b16 %v902
    %v3660 = vunpack.c.l.b16 %v903
    %v3661 = vunpack.c.h.b16 %v903
    %v3662 = vunpack.c.l.b16 %v904
    %v3663 = vunpack.c.h.b16 %v904
    %v3664 = vunpack.c.l.b16 %v905
    %v3665 = vunpack.c.h.b16 %v905
    %v3666 = vunpack.c.l.b16 %v906
    %v3667 = vunpack.c.h.b16 %v906
    %v3668 = vunpack.c.l.b16 %v907
    %v3669 = vunpack.c.h.b16 %v907
    %v3670 = vunpack.c.l.b16 %v908
    %v3671 = vunpack.c.h.b16 %v908
    %v3672 = vunpack.c.l.b16 %v909
    %v3673 = vunpack.c.h.b16 %v909
    %v3674 = vunpack.c.l.b16 %v910
    %v3675 = vunpack.c.h.b16 %v910
    %v3676 = vunpack.c.l.b16 %v911
    %v3677 = vunpack.c.h.b16 %v911
    %v3678 = vunpack.c.l.b16 %v912
    %v3679 = vunpack.c.h.b16 %v912
    %v3680 = vunpack.c.l.b16 %v913
    %v3681 = vunpack.c.h.b16 %v913
    %v3682 = vunpack.c.l.b16 %v914
    %v3683 = vunpack.c.h.b16 %v914
    %v3684 = vunpack.c.l.b16 %v915
    %v3685 = vunpack.c.h.b16 %v915
    %v3686 = vunpack.c.l.b16 %v916
    %v3687 = vunpack.c.h.b16 %v916
    %v3688 = vunpack.c.l.b16 %v917
    %v3689 = vunpack.c.h.b16 %v917
    %v3690 = vunpack.c.l.b16 %v918
    %v3691 = vunpack.c.h.b16 %v918
    %v3692 = vunpack.c.l.b16 %v919
    %v3693 = vunpack.c.h.b16 %v919
    %v3694 = vunpack.c.l.b16 %v920
    %v3695 = vunpack.c.h.b16 %v920
    %v3696 = vunpack.c.l.b16 %v921
    %v3697 = vunpack.c.h.b16 %v921
    %v3698 = vunpack.c.l.b16 %v922
    %v3699 = vunpack.c.h.b16 %v922
    %v3700 = vunpack.c.l.b16 %v923
    %v3701 = vunpack.c.h.b16 %v923
    %v3702 = vunpack.c.l.b16 %v924
    %v3703 = vunpack.c.h.b16 %v924
    %v3704 = vunpack.c.l.b16 %v925
    %v3705 = vunpack.c.h.b16 %v925
    %v3706 = vunpack.c.l.b16 %v926
    %v3707 = vunpack.c.h.b16 %v926
    %v3708 = vunpack.c.l.b16 %v927
    %v3709 = vunpack.c.h.b16 %v927
    %v3710 = vunpack.c.l.b16 %v928
    %v3711 = vunpack.c.h.b16 %v928
    %v3712 = vunpack.c.l.b16 %v929
    %v3713 = vunpack.c.h.b16 %v929
    %v3714 = vunpack.c.l.b16 %v930
    %v3715 = vunpack.c.h.b16 %v930
    %v3716 = vunpack.c.l.b16 %v931
    %v3717 = vunpack.c.h.b16 %v931
    %v3718 = vunpack.c.l.b16 %v932
    %v3719 = vunpack.c.h.b16 %v932
    %v3720 = vunpack.c.l.b16 %v933
    %v3721 = vunpack.c.h.b16 %v933
    %v3722 = vunpack.c.l.b16 %v934
    %v3723 = vunpack.c.h.b16 %v934
    %v3724 = vunpack.c.l.b16 %v935
    %v3725 = vunpack.c.h.b16 %v935
    %v3726 = vunpack.c.l.b16 %v936
    %v3727 = vunpack.c.h.b16 %v936
    %v3728 = vunpack.c.l.b16 %v937
    %v3729 = vunpack.c.h.b16 %v937
    %v3730 = vunpack.c.l.b16 %v938
    %v3731 = vunpack.c.h.b16 %v938
    %v3732 = vunpack.c.l.b16 %v939
    %v3733 = vunpack.c.h.b16 %v939
    %v3734 = vunpack.c.l.b16 %v940
    %v3735 = vunpack.c.h.b16 %v940
    %v3736 = vunpack.c.l.b16 %v941
    %v3737 = vunpack.c.h.b16 %v941
    %v3738 = vunpack.c.l.b16 %v942
    %v3739 = vunpack.c.h.b16 %v942
    %v3740 = vunpack.c.l.b16 %v943
    %v3741 = vunpack.c.h.b16 %v943
    %v3742 = vunpack.c.l.b16 %v944
    %v3743 = vunpack.c.h.b16 %v944
    %v3744 = vunpack.c.l.b16 %v945
    %v3745 = vunpack.c.h.b16 %v945
    %v3746 = vunpack.c.l.b16 %v946
    %v3747 = vunpack.c.h.b16 %v946
    %v3748 = vunpack.c.l.b16 %v947
    %v3749 = vunpack.c.h.b16 %v947
    %v3750 = vunpack.c.l.b16 %v948
    %v3751 = vunpack.c.h.b16 %v948
    %v3752 = vunpack.c.l.b16 %v949
    %v3753 = vunpack.c.h.b16 %v949
    %v3754 = vunpack.c.l.b16 %v950
    %v3755 = vunpack.c.h.b16 %v950
    %v3756 = vunpack.c.l.b16 %v951
    %v3757 = vunpack.c.h.b16 %v951
    %v3758 = vunpack.c.l.b16 %v952
    %v3759 = vunpack.c.h.b16 %v952
    %v3760 = vunpack.c.l.b16 %v953
    %v3761 = vunpack.c.h.b16 %v953
    %v3762 = vunpack.c.l.b16 %v954
    %v3763 = vunpack.c.h.b16 %v954
    %v3764 = vunpack.c.l.b16 %v955
    %v3765 = vunpack.c.h.b16 %v955
    %v3766 = vunpack.c.l.b16 %v956
    %v3767 = vunpack.c.h.b16 %v956
    %v3768 = vunpack.c.l.b16 %v957
    %v3769 = vunpack.c.h.b16 %v957
    %v3770 = vunpack.c.l.b16 %v958
    %v3771 = vunpack.c.h.b16 %v958
    %v3772 = vunpack.c.l.b16 %v959
    %v3773 = vunpack.c.h.b16 %v959
    %v3774 = vunpack.c.l.b16 %v960
    %v3775 = vunpack.c.h.b16 %v960
    %v3776 = vunpack.c.l.b16 %v961
    %v3777 = vunpack.c.h.b16 %v961
    %v3778 = vunpack.c.l.b16 %v962
    %v3779 = vunpack.c.h.b16 %v962
    %v3780 = vunpack.c.l.b16 %v963
    %v3781 = vunpack.c.h.b16 %v963
    %v3782 = vunpack.c.l.b16 %v964
    %v3783 = vunpack.c.h.b16 %v964
    %v3784 = vunpack.c.l.b16 %v965
    %v3785 = vunpack.c.h.b16 %v965
    %v3786 = vunpack.c.l.b16 %v966
    %v3787 = vunpack.c.h.b16 %v966
    %v3788 = vunpack.c.l.b16 %v967
    %v3789 = vunpack.c.h.b16 %v967
    %v3790 = vunpack.c.l.b16 %v968
    %v3791 = vunpack.c.h.b16 %v968
    %v3792 = vunpack.c.l.b16 %v969
    %v3793 = vunpack.c.h.b16 %v969
    %v3794 = vunpack.c.l.b16 %v970
    %v3795 = vunpack.c.h.b16 %v970
    %v3796 = vunpack.c.l.b16 %v971
    %v3797 = vunpack.c.h.b16 %v971
    %v3798 = vunpack.c.l.b16 %v972
    %v3799 = vunpack.c.h.b16 %v972
    %v3800 = vunpack.c.l.b16 %v973
    %v3801 = vunpack.c.h.b16 %v973
    %v3802 = vunpack.c.l.b16 %v974
    %v3803 = vunpack.c.h.b16 %v974
    %v3804 = vunpack.c.l.b16 %v975
    %v3805 = vunpack.c.h.b16 %v975
    %v3806 = vunpack.c.l.b16 %v976
    %v3807 = vunpack.c.h.b16 %v976
    %v3808 = vunpack.c.l.b16 %v977
    %v3809 = vunpack.c.h.b16 %v977
    %v3810 = vunpack.c.l.b16 %v978
    %v3811 = vunpack.c.h.b16 %v978
    %v3812 = vunpack.c.l.b16 %v979
    %v3813 = vunpack.c.h.b16 %v979
    %v3814 = vunpack.c.l.b16 %v980
    %v3815 = vunpack.c.h.b16 %v980
    %v3816 = vunpack.c.l.b16 %v981
    %v3817 = vunpack.c.h.b16 %v981
    %v3818 = vunpack.c.l.b16 %v982
    %v3819 = vunpack.c.h.b16 %v982
    %v3820 = vunpack.c.l.b16 %v983
    %v3821 = vunpack.c.h.b16 %v983
    %v3822 = vunpack.c.l.b16 %v984
    %v3823 = vunpack.c.h.b16 %v984
    %v3824 = vunpack.c.l.b16 %v985
    %v3825 = vunpack.c.h.b16 %v985
    %v3826 = vunpack.c.l.b16 %v986
    %v3827 = vunpack.c.h.b16 %v986
    %v3828 = vunpack.c.l.b16 %v987
    %v3829 = vunpack.c.h.b16 %v987
    %v3830 = vunpack.c.l.b16 %v988
    %v3831 = vunpack.c.h.b16 %v988
    %v3832 = vunpack.c.l.b16 %v989
    %v3833 = vunpack.c.h.b16 %v989
    %v3834 = vunpack.c.l.b16 %v990
    %v3835 = vunpack.c.h.b16 %v990
    %v3836 = vunpack.c.l.b16 %v991
    %v3837 = vunpack.c.h.b16 %v991
    %v3838 = vunpack.c.l.b16 %v992
    %v3839 = vunpack.c.h.b16 %v992
    %v3840 = vunpack.c.l.b16 %v993
    %v3841 = vunpack.c.h.b16 %v993
    %v3842 = vunpack.c.l.b16 %v994
    %v3843 = vunpack.c.h.b16 %v994
    %v3844 = vunpack.c.l.b16 %v995
    %v3845 = vunpack.c.h.b16 %v995
    %v3846 = vunpack.c.l.b16 %v996
    %v3847 = vunpack.c.h.b16 %v996
    %v3848 = vunpack.c.l.b16 %v997
    %v3849 = vunpack.c.h.b16 %v997
    %v3850 = vunpack.c.l.b16 %v998
    %v3851 = vunpack.c.h.b16 %v998
    %v3852 = vunpack.c.l.b16 %v999
    %v3853 = vunpack.c.h.b16 %v999
    %v3854 = vunpack.c.l.b16 %v1000
    %v3855 = vunpack.c.h.b16 %v1000
    %v3856 = vunpack.c.l.b16 %v1001
    %v3857 = vunpack.c.h.b16 %v1001
    %v3858 = vunpack.c.l.b16 %v1002
    %v3859 = vunpack.c.h.b16 %v1002
    %v3860 = vunpack.c.l.b16 %v1003
    %v3861 = vunpack.c.h.b16 %v1003
    %v3862 = vunpack.c.l.b16 %v1004
    %v3863 = vunpack.c.h.b16 %v1004
    %v3864 = vunpack.c.l.b16 %v1005
    %v3865 = vunpack.c.h.b16 %v1005
    %v3866 = vunpack.c.l.b16 %v1006
    %v3867 = vunpack.c.h.b16 %v1006
    %v3868 = vunpack.c.l.b16 %v1007
    %v3869 = vunpack.c.h.b16 %v1007
    %v3870 = vunpack.c.l.b16 %v1008
    %v3871 = vunpack.c.h.b16 %v1008
    %v3872 = vunpack.c.l.b16 %v1009
    %v3873 = vunpack.c.h.b16 %v1009
    %v3874 = vunpack.c.l.b16 %v1010
    %v3875 = vunpack.c.h.b16 %v1010
    %v3876 = vunpack.c.l.b16 %v1011
    %v3877 = vunpack.c.h.b16 %v1011
    %v3878 = vunpack.c.l.b16 %v1012
    %v3879 = vunpack.c.h.b16 %v1012
    %v3880 = vunpack.c.l.b16 %v1013
    %v3881 = vunpack.c.h.b16 %v1013
    %v3882 = vunpack.c.l.b16 %v1014
    %v3883 = vunpack.c.h.b16 %v1014
    %v3884 = vunpack.c.l.b16 %v1015
    %v3885 = vunpack.c.h.b16 %v1015
    %v3886 = vunpack.c.l.b16 %v1016
    %v3887 = vunpack.c.h.b16 %v1016
    %v3888 = vunpack.c.l.b16 %v1017
    %v3889 = vunpack.c.h.b16 %v1017
    %v3890 = vunpack.c.l.b16 %v1018
    %v3891 = vunpack.c.h.b16 %v1018
    %v3892 = vunpack.c.l.b16 %v1019
    %v3893 = vunpack.c.h.b16 %v1019
    %v3894 = vunpack.c.l.b16 %v1020
    %v3895 = vunpack.c.h.b16 %v1020
    %v3896 = vunpack.c.l.b16 %v1021
    %v3897 = vunpack.c.h.b16 %v1021
    %v3898 = vunpack.c.l.b16 %v1022
    %v3899 = vunpack.c.h.b16 %v1022
    %v3900 = vunpack.c.l.b16 %v1023
    %v3901 = vunpack.c.h.b16 %v1023
    %v3902 = vunpack.c.l.b16 %v1024
    %v3903 = vunpack.c.h.b16 %v1024
    %v3904 = vunpack.c.l.b16 %v1025
    %v3905 = vunpack.c.h.b16 %v1025
    %v3906 = vunpack.c.l.b16 %v1026
    %v3907 = vunpack.c.h.b16 %v1026
    %v3908 = vunpack.c.l.b16 %v1027
    %v3909 = vunpack.c.h.b16 %v1027
    %v3910 = vunpack.c.l.b16 %v1028
    %v3911 = vunpack.c.h.b16 %v1028
    %v3912 = vunpack.c.l.b16 %v1029
    %v3913 = vunpack.c.h.b16 %v1029
    %v3914 = vunpack.c.l.b16 %v1030
    %v3915 = vunpack.c.h.b16 %v1030
    %v3916 = vunpack.c.l.b16 %v1031
    %v3917 = vunpack.c.h.b16 %v1031
    %v3918 = vunpack.c.l.b16 %v1032
    %v3919 = vunpack.c.h.b16 %v1032
    %v3920 = vunpack.c.l.b16 %v1033
    %v3921 = vunpack.c.h.b16 %v1033
    %v3922 = vunpack.c.l.b16 %v1034
    %v3923 = vunpack.c.h.b16 %v1034
    %v3924 = vunpack.c.l.b16 %v1035
    %v3925 = vunpack.c.h.b16 %v1035
    %v3926 = vunpack.c.l.b16 %v1036
    %v3927 = vunpack.c.h.b16 %v1036
    %v3928 = vunpack.c.l.b16 %v1037
    %v3929 = vunpack.c.h.b16 %v1037
    %v3930 = vunpack.c.l.b16 %v1038
    %v3931 = vunpack.c.h.b16 %v1038
    %v3932 = vunpack.c.l.b16 %v1039
    %v3933 = vunpack.c.h.b16 %v1039
    %v3934 = vunpack.c.l.b16 %v1040
    %v3935 = vunpack.c.h.b16 %v1040
    %v3936 = vunpack.c.l.b16 %v1041
    %v3937 = vunpack.c.h.b16 %v1041
    %v3938 = vunpack.c.l.b16 %v1042
    %v3939 = vunpack.c.h.b16 %v1042
    %v3940 = vunpack.c.l.b16 %v1043
    %v3941 = vunpack.c.h.b16 %v1043
    %v3942 = vunpack.c.l.b16 %v1044
    %v3943 = vunpack.c.h.b16 %v1044
    %v3944 = vunpack.c.l.b16 %v1045
    %v3945 = vunpack.c.h.b16 %v1045
    %v3946 = vunpack.c.l.b16 %v1046
    %v3947 = vunpack.c.h.b16 %v1046
    %v3948 = vunpack.c.l.b16 %v1047
    %v3949 = vunpack.c.h.b16 %v1047
    %v3950 = vunpack.c.l.b16 %v1048
    %v3951 = vunpack.c.h.b16 %v1048
    %v3952 = vunpack.c.l.b16 %v1049
    %v3953 = vunpack.c.h.b16 %v1049
    %v3954 = vunpack.c.l.b16 %v1050
    %v3955 = vunpack.c.h.b16 %v1050
    %v3956 = vunpack.c.l.b16 %v1051
    %v3957 = vunpack.c.h.b16 %v1051
    %v3958 = vunpack.c.l.b16 %v1052
    %v3959 = vunpack.c.h.b16 %v1052
    %v3960 = vunpack.c.l.b16 %v1053
    %v3961 = vunpack.c.h.b16 %v1053
    %v3962 = vunpack.c.l.b16 %v1054
    %v3963 = vunpack.c.h.b16 %v1054
    %v3964 = vunpack.c.l.b16 %v1055
    %v3965 = vunpack.c.h.b16 %v1055
    %v3966 = vunpack.c.l.b16 %v1056
    %v3967 = vunpack.c.h.b16 %v1056
    %v3968 = vunpack.c.l.b16 %v1057
    %v3969 = vunpack.c.h.b16 %v1057
    %v3970 = vunpack.c.l.b16 %v1058
    %v3971 = vunpack.c.h.b16 %v1058
    %v3972 = vunpack.c.l.b16 %v1059
    %v3973 = vunpack.c.h.b16 %v1059
    %v3974 = vunpack.c.l.b16 %v1060
    %v3975 = vunpack.c.h.b16 %v1060
    %v3976 = vunpack.c.l.b16 %v1061
    %v3977 = vunpack.c.h.b16 %v1061
    %v3978 = vunpack.c.l.b16 %v1062
    %v3979 = vunpack.c.h.b16 %v1062
    %v3980 = vunpack.c.l.b16 %v1063
    %v3981 = vunpack.c.h.b16 %v1063
    %v3982 = vunpack.c.l.b16 %v1064
    %v3983 = vunpack.c.h.b16 %v1064
    %v3984 = vunpack.c.l.b16 %v1065
    %v3985 = vunpack.c.h.b16 %v1065
    %v3986 = vunpack.c.l.b16 %v1066
    %v3987 = vunpack.c.h.b16 %v1066
    %v3988 = vunpack.c.l.b16 %v1067
    %v3989 = vunpack.c.h.b16 %v1067
    %v3990 = vunpack.c.l.b16 %v1068
    %v3991 = vunpack.c.h.b16 %v1068
    %v3992 = vunpack.c.l.b16 %v1069
    %v3993 = vunpack.c.h.b16 %v1069
    %v3994 = vunpack.c.l.b16 %v1070
    %v3995 = vunpack.c.h.b16 %v1070
    %v3996 = vunpack.c.l.b16 %v1071
    %v3997 = vunpack.c.h.b16 %v1071
    %v3998 = vunpack.c.l.b16 %v1072
    %v3999 = vunpack.c.h.b16 %v1072
    %v4000 = vunpack.c.l.b16 %v1073
    %v4001 = vunpack.c.h.b16 %v1073
    %v4002 = vunpack.c.l.b16 %v1074
    %v4003 = vunpack.c.h.b16 %v1074
    %v4004 = vunpack.c.l.b16 %v1075
    %v4005 = vunpack.c.h.b16 %v1075
    %v4006 = vunpack.c.l.b16 %v1076
    %v4007 = vunpack.c.h.b16 %v1076
    %v4008 = vunpack.c.l.b16 %v1077
    %v4009 = vunpack.c.h.b16 %v1077
    %v4010 = vunpack.c.l.b16 %v1078
    %v4011 = vunpack.c.h.b16 %v1078
    %v4012 = vunpack.c.l.b16 %v1079
    %v4013 = vunpack.c.h.b16 %v1079
    %v4014 = vunpack.c.l.b16 %v1080
    %v4015 = vunpack.c.h.b16 %v1080
    %v4016 = vunpack.c.l.b16 %v1081
    %v4017 = vunpack.c.h.b16 %v1081
    %v4018 = vunpack.c.l.b16 %v1082
    %v4019 = vunpack.c.h.b16 %v1082
    %v4020 = vunpack.c.l.b16 %v1083
    %v4021 = vunpack.c.h.b16 %v1083
    %v4022 = vunpack.c.l.b16 %v1084
    %v4023 = vunpack.c.h.b16 %v1084
    %v4024 = vunpack.c.l.b16 %v1085
    %v4025 = vunpack.c.h.b16 %v1085
    %v4026 = vunpack.c.l.b16 %v1086
    %v4027 = vunpack.c.h.b16 %v1086
    %v4028 = vunpack.c.l.b16 %v1087
    %v4029 = vunpack.c.h.b16 %v1087
    %v4030 = vunpack.c.l.b16 %v1088
    %v4031 = vunpack.c.h.b16 %v1088
    %v4032 = vunpack.c.l.b16 %v1089
    %v4033 = vunpack.c.h.b16 %v1089
    %v4034 = vunpack.c.l.b16 %v1090
    %v4035 = vunpack.c.h.b16 %v1090
    %v4036 = vunpack.c.l.b16 %v1091
    %v4037 = vunpack.c.h.b16 %v1091
    %v4038 = vunpack.c.l.b16 %v1092
    %v4039 = vunpack.c.h.b16 %v1092
    %v4040 = vunpack.c.l.b16 %v1093
    %v4041 = vunpack.c.h.b16 %v1093
    %v4042 = vunpack.c.l.b16 %v1094
    %v4043 = vunpack.c.h.b16 %v1094
    %v4044 = vunpack.c.l.b16 %v1095
    %v4045 = vunpack.c.h.b16 %v1095
    %v4046 = vunpack.c.l.b16 %v1096
    %v4047 = vunpack.c.h.b16 %v1096
    %v4048 = vunpack.c.l.b16 %v1097
    %v4049 = vunpack.c.h.b16 %v1097
    %v4050 = vunpack.c.l.b16 %v1098
    %v4051 = vunpack.c.h.b16 %v1098
    %v4052 = vunpack.c.l.b16 %v1099
    %v4053 = vunpack.c.h.b16 %v1099
    %v4054 = vunpack.c.l.b16 %v1100
    %v4055 = vunpack.c.h.b16 %v1100
    %v4056 = vunpack.c.l.b16 %v1101
    %v4057 = vunpack.c.h.b16 %v1101
    %v4058 = vunpack.c.l.b16 %v1102
    %v4059 = vunpack.c.h.b16 %v1102
    %v4060 = vunpack.c.l.b16 %v1103
    %v4061 = vunpack.c.h.b16 %v1103
    %v4062 = vunpack.c.l.b16 %v1104
    %v4063 = vunpack.c.h.b16 %v1104
    %v4064 = vunpack.c.l.b16 %v1105
    %v4065 = vunpack.c.h.b16 %v1105
    %v4066 = vunpack.c.l.b16 %v1106
    %v4067 = vunpack.c.h.b16 %v1106
    %v4068 = vunpack.c.l.b16 %v1107
    %v4069 = vunpack.c.h.b16 %v1107
    %v4070 = vunpack.c.l.b16 %v1108
    %v4071 = vunpack.c.h.b16 %v1108
    %v4072 = vunpack.c.l.b16 %v1109
    %v4073 = vunpack.c.h.b16 %v1109
    %v4074 = vunpack.c.l.b16 %v1110
    %v4075 = vunpack.c.h.b16 %v1110
    %v4076 = vunpack.c.l.b16 %v1111
    %v4077 = vunpack.c.h.b16 %v1111
    %v4078 = vunpack.c.l.b16 %v1112
    %v4079 = vunpack.c.h.b16 %v1112
    %v4080 = vunpack.c.l.b16 %v1113
    %v4081 = vunpack.c.h.b16 %v1113
    %v4082 = vunpack.c.l.b16 %v1114
    %v4083 = vunpack.c.h.b16 %v1114
    %v4084 = vunpack.c.l.b16 %v1115
    %v4085 = vunpack.c.h.b16 %v1115
    %v4086 = vunpack.c.l.b16 %v1116
    %v4087 = vunpack.c.h.b16 %v1116
    %v4088 = vunpack.c.l.b16 %v1117
    %v4089 = vunpack.c.h.b16 %v1117
    %v4090 = vunpack.c.l.b16 %v1118
    %v4091 = vunpack.c.h.b16 %v1118
    %v4092 = vunpack.c.l.b16 %v1119
    %v4093 = vunpack.c.h.b16 %v1119
    %v4094 = vunpack.c.l.b16 %v1120
    %v4095 = vunpack.c.h.b16 %v1120
    %v4096 = vunpack.c.l.b16 %v1121
    %v4097 = vunpack.c.h.b16 %v1121
    %v4098 = vunpack.c.l.b16 %v1122
    %v4099 = vunpack.c.h.b16 %v1122
    %v4100 = vunpack.c.l.b16 %v1123
    %v4101 = vunpack.c.h.b16 %v1123
    %v4102 = vunpack.c.l.b16 %v1124
    %v4103 = vunpack.c.h.b16 %v1124
    %v4104 = vunpack.c.l.b16 %v1125
    %v4105 = vunpack.c.h.b16 %v1125
    %v4106 = vunpack.c.l.b16 %v1126
    %v4107 = vunpack.c.h.b16 %v1126
    %v4108 = vunpack.c.l.b16 %v1127
    %v4109 = vunpack.c.h.b16 %v1127
    %v4110 = vunpack.c.l.b16 %v1128
    %v4111 = vunpack.c.h.b16 %v1128
    %v4112 = vunpack.c.l.b16 %v1129
    %v4113 = vunpack.c.h.b16 %v1129
    %v4114 = vunpack.c.l.b16 %v1130
    %v4115 = vunpack.c.h.b16 %v1130
    %v4116 = vunpack.c.l.b16 %v1131
    %v4117 = vunpack.c.h.b16 %v1131
    %v4118 = vunpack.c.l.b16 %v1132
    %v4119 = vunpack.c.h.b16 %v1132
    %v4120 = vunpack.c.l.b16 %v1133
    %v4121 = vunpack.c.h.b16 %v1133
    %v4122 = vunpack.c.l.b16 %v1134
    %v4123 = vunpack.c.h.b16 %v1134
    %v4124 = vunpack.c.l.b16 %v1135
    %v4125 = vunpack.c.h.b16 %v1135
    %v4126 = vunpack.c.l.b16 %v1136
    %v4127 = vunpack.c.h.b16 %v1136
    %v4128 = vunpack.c.l.b16 %v1137
    %v4129 = vunpack.c.h.b16 %v1137
    %v4130 = vunpack.c.l.b16 %v1138
    %v4131 = vunpack.c.h.b16 %v1138
    %v4132 = vunpack.c.l.b16 %v1139
    %v4133 = vunpack.c.h.b16 %v1139
    %v4134 = vunpack.c.l.b16 %v1140
    %v4135 = vunpack.c.h.b16 %v1140
    %v4136 = vunpack.c.l.b16 %v1141
    %v4137 = vunpack.c.h.b16 %v1141
    %v4138 = vunpack.c.l.b16 %v1142
    %v4139 = vunpack.c.h.b16 %v1142
    %v4140 = vunpack.c.l.b16 %v1143
    %v4141 = vunpack.c.h.b16 %v1143
    %v4142 = vunpack.c.l.b16 %v1144
    %v4143 = vunpack.c.h.b16 %v1144
    %v4144 = vunpack.c.l.b16 %v1145
    %v4145 = vunpack.c.h.b16 %v1145
    %v4146 = vunpack.c.l.b16 %v1146
    %v4147 = vunpack.c.h.b16 %v1146
    %v4148 = vunpack.c.l.b16 %v1147
    %v4149 = vunpack.c.h.b16 %v1147
    %v4150 = vunpack.c.l.b16 %v1148
    %v4151 = vunpack.c.h.b16 %v1148
    %v4152 = vunpack.c.l.b16 %v1149
    %v4153 = vunpack.c.h.b16 %v1149
    %v4154 = vunpack.c.l.b16 %v1150
    %v4155 = vunpack.c.h.b16 %v1150
    %v4156 = vunpack.c.l.b16 %v1151
    %v4157 = vunpack.c.h.b16 %v1151
    %v4158 = vunpack.c.l.b16 %v1152
    %v4159 = vunpack.c.h.b16 %v1152
    %v4160 = vunpack.c.l.b16 %v1153
    %v4161 = vunpack.c.h.b16 %v1153
    %v4162 = vunpack.c.l.b16 %v1154
    %v4163 = vunpack.c.h.b16 %v1154
    %v4164 = vunpack.c.l.b16 %v1155
    %v4165 = vunpack.c.h.b16 %v1155
    %v4166 = vunpack.c.l.b16 %v1156
    %v4167 = vunpack.c.h.b16 %v1156
    %v4168 = vunpack.c.l.b16 %v1157
    %v4169 = vunpack.c.h.b16 %v1157
    %v4170 = vunpack.c.l.b16 %v1158
    %v4171 = vunpack.c.h.b16 %v1158
    %v4172 = vunpack.c.l.b16 %v1159
    %v4173 = vunpack.c.h.b16 %v1159
    %v4174 = vunpack.c.l.b16 %v1160
    %v4175 = vunpack.c.h.b16 %v1160
    %v4176 = vunpack.c.l.b16 %v1161
    %v4177 = vunpack.c.h.b16 %v1161
    %v4178 = vunpack.c.l.b16 %v1162
    %v4179 = vunpack.c.h.b16 %v1162
    %v4180 = vunpack.c.l.b16 %v1163
    %v4181 = vunpack.c.h.b16 %v1163
    %v4182 = vunpack.c.l.b16 %v1164
    %v4183 = vunpack.c.h.b16 %v1164
    %v4184 = vunpack.c.l.b16 %v1165
    %v4185 = vunpack.c.h.b16 %v1165
    %v4186 = vunpack.c.l.b16 %v1166
    %v4187 = vunpack.c.h.b16 %v1166
    %v4188 = vunpack.c.l.b16 %v1167
    %v4189 = vunpack.c.h.b16 %v1167
    %v4190 = vunpack.c.l.b16 %v1168
    %v4191 = vunpack.c.h.b16 %v1168
    %v4192 = vunpack.c.l.b16 %v1169
    %v4193 = vunpack.c.h.b16 %v1169
    %v4194 = vunpack.c.l.b16 %v1170
    %v4195 = vunpack.c.h.b16 %v1170
    %v4196 = vunpack.c.l.b16 %v1171
    %v4197 = vunpack.c.h.b16 %v1171
    %v4198 = vunpack.c.l.b16 %v1172
    %v4199 = vunpack.c.h.b16 %v1172
    %v4200 = vunpack.c.l.b16 %v1173
    %v4201 = vunpack.c.h.b16 %v1173
    %v4202 = vunpack.c.l.b16 %v1174
    %v4203 = vunpack.c.h.b16 %v1174
    %v4204 = vunpack.c.l.b16 %v1175
    %v4205 = vunpack.c.h.b16 %v1175
    %v4206 = vunpack.c.l.b16 %v1176
    %v4207 = vunpack.c.h.b16 %v1176
    %v4208 = vunpack.c.l.b16 %v1177
    %v4209 = vunpack.c.h.b16 %v1177
    %v4210 = vunpack.c.l.b16 %v1178
    %v4211 = vunpack.c.h.b16 %v1178
    %v4212 = vunpack.c.l.b16 %v1179
    %v4213 = vunpack.c.h.b16 %v1179
    %v4214 = vunpack.c.l.b16 %v1180
    %v4215 = vunpack.c.h.b16 %v1180
    %v4216 = vunpack.c.l.b16 %v1181
    %v4217 = vunpack.c.h.b16 %v1181
    %v4218 = vunpack.c.l.b16 %v1182
    %v4219 = vunpack.c.h.b16 %v1182
    %v4220 = vunpack.c.l.b16 %v1183
    %v4221 = vunpack.c.h.b16 %v1183
    %v4222 = vunpack.c.l.b16 %v1184
    %v4223 = vunpack.c.h.b16 %v1184
    %v4224 = vunpack.c.l.b16 %v1185
    %v4225 = vunpack.c.h.b16 %v1185
    %v4226 = vunpack.c.l.b16 %v1186
    %v4227 = vunpack.c.h.b16 %v1186
    %v4228 = vunpack.c.l.b16 %v1187
    %v4229 = vunpack.c.h.b16 %v1187
    %v4230 = vunpack.c.l.b16 %v1188
    %v4231 = vunpack.c.h.b16 %v1188
    %v4232 = vunpack.c.l.b16 %v1189
    %v4233 = vunpack.c.h.b16 %v1189
    %v4234 = vunpack.c.l.b16 %v1190
    %v4235 = vunpack.c.h.b16 %v1190
    %v4236 = vunpack.c.l.b16 %v1191
    %v4237 = vunpack.c.h.b16 %v1191
    %v4238 = vunpack.c.l.b16 %v1192
    %v4239 = vunpack.c.h.b16 %v1192
    %v4240 = vunpack.c.l.b16 %v1193
    %v4241 = vunpack.c.h.b16 %v1193
    %v4242 = vunpack.c.l.b16 %v1194
    %v4243 = vunpack.c.h.b16 %v1194
    %v4244 = vunpack.c.l.b16 %v1195
    %v4245 = vunpack.c.h.b16 %v1195
    %v4246 = vunpack.c.l.b16 %v1196
    %v4247 = vunpack.c.h.b16 %v1196
    %v4248 = vunpack.c.l.b16 %v1197
    %v4249 = vunpack.c.h.b16 %v1197
    %v4250 = vunpack.c.l.b16 %v1198
    %v4251 = vunpack.c.h.b16 %v1198
    %v4252 = vunpack.c.l.b16 %v1199
    %v4253 = vunpack.c.h.b16 %v1199
    %v4254 = vunpack.c.l.b16 %v1200
    %v4255 = vunpack.c.h.b16 %v1200
    %v4256 = vunpack.c.l.b16 %v1201
    %v4257 = vunpack.c.h.b16 %v1201
    %v4258 = vunpack.c.l.b16 %v1202
    %v4259 = vunpack.c.h.b16 %v1202
    %v4260 = vunpack.c.l.b16 %v1203
    %v4261 = vunpack.c.h.b16 %v1203
    %v4262 = vunpack.c.l.b16 %v1204
    %v4263 = vunpack.c.h.b16 %v1204
    %v4264 = vunpack.c.l.b16 %v1205
    %v4265 = vunpack.c.h.b16 %v1205
    %v4266 = vunpack.c.l.b16 %v1206
    %v4267 = vunpack.c.h.b16 %v1206
    %v4268 = vunpack.c.l.b16 %v1207
    %v4269 = vunpack.c.h.b16 %v1207
    %v4270 = vunpack.c.l.b16 %v1208
    %v4271 = vunpack.c.h.b16 %v1208
    %v4272 = vunpack.c.l.b16 %v1209
    %v4273 = vunpack.c.h.b16 %v1209
    %v4274 = vunpack.c.l.b16 %v1210
    %v4275 = vunpack.c.h.b16 %v1210
    %v4276 = vunpack.c.l.b16 %v1211
    %v4277 = vunpack.c.h.b16 %v1211
    %v4278 = vunpack.c.l.b16 %v1212
    %v4279 = vunpack.c.h.b16 %v1212
    %v4280 = vunpack.c.l.b16 %v1213
    %v4281 = vunpack.c.h.b16 %v1213
    %v4282 = vunpack.c.l.b16 %v1214
    %v4283 = vunpack.c.h.b16 %v1214
    %v4284 = vunpack.c.l.b16 %v1215
    %v4285 = vunpack.c.h.b16 %v1215
    %v4286 = vunpack.c.l.b16 %v1216
    %v4287 = vunpack.c.h.b16 %v1216
    %v4288 = vunpack.c.l.b16 %v1217
    %v4289 = vunpack.c.h.b16 %v1217
    %v4290 = vpack.c.b16 %v2258, %v2242
    %v4291 = vpack.c.b16 %v2259, %v2243
    %v4292 = vpack.c.b16 %v2260, %v2244
    %v4293 = vpack.c.b16 %v2261, %v2245
    %v4294 = vpack.c.b16 %v2262, %v2246
    %v4295 = vpack.c.b16 %v2263, %v2247
    %v4296 = vpack.c.b16 %v2264, %v2248
    %v4297 = vpack.c.b16 %v2265, %v2249
    %v4298 = vpack.c.b16 %v2266, %v2250
    %v4299 = vpack.c.b16 %v2267, %v2251
    %v4300 = vpack.c.b16 %v2268, %v2252
    %v4301 = vpack.c.b16 %v2269, %v2253
    %v4302 = vpack.c.b16 %v2270, %v2254
    %v4303 = vpack.c.b16 %v2271, %v2255
    %v4304 = vpack.c.b16 %v2272, %v2256
    %v4305 = vpack.c.b16 %v2273, %v2257
    %v4306 = vpack.c.b16 %v2290, %v2274
    %v4307 = vpack.c.b16 %v2291, %v2275
    %v4308 = vpack.c.b16 %v2292, %v2276
    %v4309 = vpack.c.b16 %v2293, %v2277
    %v4310 = vpack.c.b16 %v2294, %v2278
    %v4311 = vpack.c.b16 %v2295, %v2279
    %v4312 = vpack.c.b16 %v2296, %v2280
    %v4313 = vpack.c.b16 %v2297, %v2281
    %v4314 = vpack.c.b16 %v2298, %v2282
    %v4315 = vpack.c.b16 %v2299, %v2283
    %v4316 = vpack.c.b16 %v2300, %v2284
    %v4317 = vpack.c.b16 %v2301, %v2285
    %v4318 = vpack.c.b16 %v2302, %v2286
    %v4319 = vpack.c.b16 %v2303, %v2287
    %v4320 = vpack.c.b16 %v2304, %v2288
    %v4321 = vpack.c.b16 %v2305, %v2289
    %v4322 = vpack.c.b16 %v2322, %v2306
    %v4323 = vpack.c.b16 %v2323, %v2307
    %v4324 = vpack.c.b16 %v2324, %v2308
    %v4325 = vpack.c.b16 %v2325, %v2309
    %v4326 = vpack.c.b16 %v2326, %v2310
    %v4327 = vpack.c.b16 %v2327, %v2311
    %v4328 = vpack.c.b16 %v2328, %v2312
    %v4329 = vpack.c.b16 %v2329, %v2313
    %v4330 = vpack.c.b16 %v2330, %v2314
    %v4331 = vpack.c.b16 %v2331, %v2315
    %v4332 = vpack.c.b16 %v2332, %v2316
    %v4333 = vpack.c.b16 %v2333, %v2317
    %v4334 = vpack.c.b16 %v2334, %v2318
    %v4335 = vpack.c.b16 %v2335, %v2319
    %v4336 = vpack.c.b16 %v2336, %v2320
    %v4337 = vpack.c.b16 %v2337, %v2321
    %v4338 = vpack.c.b16 %v2354, %v2338
    %v4339 = vpack.c.b16 %v2355, %v2339
    %v4340 = vpack.c.b16 %v2356, %v2340
    %v4341 = vpack.c.b16 %v2357, %v2341
    %v4342 = vpack.c.b16 %v2358, %v2342
    %v4343 = vpack.c.b16 %v2359, %v2343
    %v4344 = vpack.c.b16 %v2360, %v2344
    %v4345 = vpack.c.b16 %v2361, %v2345
    %v4346 = vpack.c.b16 %v2362, %v2346
    %v4347 = vpack.c.b16 %v2363, %v2347
    %v4348 = vpack.c.b16 %v2364, %v2348
    %v4349 = vpack.c.b16 %v2365, %v2349
    %v4350 = vpack.c.b16 %v2366, %v2350
    %v4351 = vpack.c.b16 %v2367, %v2351
    %v4352 = vpack.c.b16 %v2368, %v2352
    %v4353 = vpack.c.b16 %v2369, %v2353
    %v4354 = vpack.c.b16 %v2386, %v2370
    %v4355 = vpack.c.b16 %v2387, %v2371
    %v4356 = vpack.c.b16 %v2388, %v2372
    %v4357 = vpack.c.b16 %v2389, %v2373
    %v4358 = vpack.c.b16 %v2390, %v2374
    %v4359 = vpack.c.b16 %v2391, %v2375
    %v4360 = vpack.c.b16 %v2392, %v2376
    %v4361 = vpack.c.b16 %v2393, %v2377
    %v4362 = vpack.c.b16 %v2394, %v2378
    %v4363 = vpack.c.b16 %v2395, %v2379
    %v4364 = vpack.c.b16 %v2396, %v2380
    %v4365 = vpack.c.b16 %v2397, %v2381
    %v4366 = vpack.c.b16 %v2398, %v2382
    %v4367 = vpack.c.b16 %v2399, %v2383
    %v4368 = vpack.c.b16 %v2400, %v2384
    %v4369 = vpack.c.b16 %v2401, %v2385
    %v4370 = vpack.c.b16 %v2418, %v2402
    %v4371 = vpack.c.b16 %v2419, %v2403
    %v4372 = vpack.c.b16 %v2420, %v2404
    %v4373 = vpack.c.b16 %v2421, %v2405
    %v4374 = vpack.c.b16 %v2422, %v2406
    %v4375 = vpack.c.b16 %v2423, %v2407
    %v4376 = vpack.c.b16 %v2424, %v2408
    %v4377 = vpack.c.b16 %v2425, %v2409
    %v4378 = vpack.c.b16 %v2426, %v2410
    %v4379 = vpack.c.b16 %v2427, %v2411
    %v4380 = vpack.c.b16 %v2428, %v2412
    %v4381 = vpack.c.b16 %v2429, %v2413
    %v4382 = vpack.c.b16 %v2430, %v2414
    %v4383 = vpack.c.b16 %v2431, %v2415
    %v4384 = vpack.c.b16 %v2432, %v2416
    %v4385 = vpack.c.b16 %v2433, %v2417
    %v4386 = vpack.c.b16 %v2450, %v2434
    %v4387 = vpack.c.b16 %v2451, %v2435
    %v4388 = vpack.c.b16 %v2452, %v2436
    %v4389 = vpack.c.b16 %v2453, %v2437
    %v4390 = vpack.c.b16 %v2454, %v2438
    %v4391 = vpack.c.b16 %v2455, %v2439
    %v4392 = vpack.c.b16 %v2456, %v2440
    %v4393 = vpack.c.b16 %v2457, %v2441
    %v4394 = vpack.c.b16 %v2458, %v2442
    %v4395 = vpack.c.b16 %v2459, %v2443
    %v4396 = vpack.c.b16 %v2460, %v2444
    %v4397 = vpack.c.b16 %v2461, %v2445
    %v4398 = vpack.c.b16 %v2462, %v2446
    %v4399 = vpack.c.b16 %v2463, %v2447
    %v4400 = vpack.c.b16 %v2464, %v2448
    %v4401 = vpack.c.b16 %v2465, %v2449
    %v4402 = vpack.c.b16 %v2482, %v2466
    %v4403 = vpack.c.b16 %v2483, %v2467
    %v4404 = vpack.c.b16 %v2484, %v2468
    %v4405 = vpack.c.b16 %v2485, %v2469
    %v4406 = vpack.c.b16 %v2486, %v2470
    %v4407 = vpack.c.b16 %v2487, %v2471
    %v4408 = vpack.c.b16 %v2488, %v2472
    %v4409 = vpack.c.b16 %v2489, %v2473
    %v4410 = vpack.c.b16 %v2490, %v2474
    %v4411 = vpack.c.b16 %v2491, %v2475
    %v4412 = vpack.c.b16 %v2492, %v2476
    %v4413 = vpack.c.b16 %v2493, %v2477
    %v4414 = vpack.c.b16 %v2494, %v2478
    %v4415 = vpack.c.b16 %v2495, %v2479
    %v4416 = vpack.c.b16 %v2496, %v2480
    %v4417 = vpack.c.b16 %v2497, %v2481
    %v4418 = vpack.c.b16 %v2514, %v2498
    %v4419 = vpack.c.b16 %v2515, %v2499
    %v4420 = vpack.c.b16 %v2516, %v2500
    %v4421 = vpack.c.b16 %v2517, %v2501
    %v4422 = vpack.c.b16 %v2518, %v2502
    %v4423 = vpack.c.b16 %v2519, %v2503
    %v4424 = vpack.c.b16 %v2520, %v2504
    %v4425 = vpack.c.b16 %v2521, %v2505
    %v4426 = vpack.c.b16 %v2522, %v2506
    %v4427 = vpack.c.b16 %v2523, %v2507
    %v4428 = vpack.c.b16 %v2524, %v2508
    %v4429 = vpack.c.b16 %v2525, %v2509
    %v4430 = vpack.c.b16 %v2526, %v2510
    %v4431 = vpack.c.b16 %v2527, %v2511
    %v4432 = vpack.c.b16 %v2528, %v2512
    %v4433 = vpack.c.b16 %v2529, %v2513
    %v4434 = vpack.c.b16 %v2546, %v2530
    %v4435 = vpack.c.b16 %v2547, %v2531
    %v4436 = vpack.c.b16 %v2548, %v2532
    %v4437 = vpack.c.b16 %v2549, %v2533
    %v4438 = vpack.c.b16 %v2550, %v2534
    %v4439 = vpack.c.b16 %v2551, %v2535
    %v4440 = vpack.c.b16 %v2552, %v2536
    %v4441 = vpack.c.b16 %v2553, %v2537
    %v4442 = vpack.c.b16 %v2554, %v2538
    %v4443 = vpack.c.b16 %v2555, %v2539
    %v4444 = vpack.c.b16 %v2556, %v2540
    %v4445 = vpack.c.b16 %v2557, %v2541
    %v4446 = vpack.c.b16 %v2558, %v2542
    %v4447 = vpack.c.b16 %v2559, %v2543
    %v4448 = vpack.c.b16 %v2560, %v2544
    %v4449 = vpack.c.b16 %v2561, %v2545
    %v4450 = vpack.c.b16 %v2578, %v2562
    %v4451 = vpack.c.b16 %v2579, %v2563
    %v4452 = vpack.c.b16 %v2580, %v2564
    %v4453 = vpack.c.b16 %v2581, %v2565
    %v4454 = vpack.c.b16 %v2582, %v2566
    %v4455 = vpack.c.b16 %v2583, %v2567
    %v4456 = vpack.c.b16 %v2584, %v2568
    %v4457 = vpack.c.b16 %v2585, %v2569
    %v4458 = vpack.c.b16 %v2586, %v2570
    %v4459 = vpack.c.b16 %v2587, %v2571
    %v4460 = vpack.c.b16 %v2588, %v2572
    %v4461 = vpack.c.b16 %v2589, %v2573
    %v4462 = vpack.c.b16 %v2590, %v2574
    %v4463 = vpack.c.b16 %v2591, %v2575
    %v4464 = vpack.c.b16 %v2592, %v2576
    %v4465 = vpack.c.b16 %v2593, %v2577
    %v4466 = vpack.c.b16 %v2610, %v2594
    %v4467 = vpack.c.b16 %v2611, %v2595
    %v4468 = vpack.c.b16 %v2612, %v2596
    %v4469 = vpack.c.b16 %v2613, %v2597
    %v4470 = vpack.c.b16 %v2614, %v2598
    %v4471 = vpack.c.b16 %v2615, %v2599
    %v4472 = vpack.c.b16 %v2616, %v2600
    %v4473 = vpack.c.b16 %v2617, %v2601
    %v4474 = vpack.c.b16 %v2618, %v2602
    %v4475 = vpack.c.b16 %v2619, %v2603
    %v4476 = vpack.c.b16 %v2620, %v2604
    %v4477 = vpack.c.b16 %v2621, %v2605
    %v4478 = vpack.c.b16 %v2622, %v2606
    %v4479 = vpack.c.b16 %v2623, %v2607
    %v4480 = vpack.c.b16 %v2624, %v2608
    %v4481 = vpack.c.b16 %v2625, %v2609
    %v4482 = vpack.c.b16 %v2642, %v2626
    %v4483 = vpack.c.b16 %v2643, %v2627
    %v4484 = vpack.c.b16 %v2644, %v2628
    %v4485 = vpack.c.b16 %v2645, %v2629
    %v4486 = vpack.c.b16 %v2646, %v2630
    %v4487 = vpack.c.b16 %v2647, %v2631
    %v4488 = vpack.c.b16 %v2648, %v2632
    %v4489 = vpack.c.b16 %v2649, %v2633
    %v4490 = vpack.c.b16 %v2650, %v2634
    %v4491 = vpack.c.b16 %v2651, %v2635
    %v4492 = vpack.c.b16 %v2652, %v2636
    %v4493 = vpack.c.b16 %v2653, %v2637
    %v4494 = vpack.c.b16 %v2654, %v2638
    %v4495 = vpack.c.b16 %v2655, %v2639
    %v4496 = vpack.c.b16 %v2656, %v2640
    %v4497 = vpack.c.b16 %v2657, %v2641
    %v4498 = vpack.c.b16 %v2674, %v2658
    %v4499 = vpack.c.b16 %v2675, %v2659
    %v4500 = vpack.c.b16 %v2676, %v2660
    %v4501 = vpack.c.b16 %v2677, %v2661
    %v4502 = vpack.c.b16 %v2678, %v2662
    %v4503 = vpack.c.b16 %v2679, %v2663
    %v4504 = vpack.c.b16 %v2680, %v2664
    %v4505 = vpack.c.b16 %v2681, %v2665
    %v4506 = vpack.c.b16 %v2682, %v2666
    %v4507 = vpack.c.b16 %v2683, %v2667
    %v4508 = vpack.c.b16 %v2684, %v2668
    %v4509 = vpack.c.b16 %v2685, %v2669
    %v4510 = vpack.c.b16 %v2686, %v2670
    %v4511 = vpack.c.b16 %v2687, %v2671
    %v4512 = vpack.c.b16 %v2688, %v2672
    %v4513 = vpack.c.b16 %v2689, %v2673
    %v4514 = vpack.c.b16 %v2706, %v2690
    %v4515 = vpack.c.b16 %v2707, %v2691
    %v4516 = vpack.c.b16 %v2708, %v2692
    %v4517 = vpack.c.b16 %v2709, %v2693
    %v4518 = vpack.c.b16 %v2710, %v2694
    %v4519 = vpack.c.b16 %v2711, %v2695
    %v4520 = vpack.c.b16 %v2712, %v2696
    %v4521 = vpack.c.b16 %v2713, %v2697
    %v4522 = vpack.c.b16 %v2714, %v2698
    %v4523 = vpack.c.b16 %v2715, %v2699
    %v4524 = vpack.c.b16 %v2716, %v2700
    %v4525 = vpack.c.b16 %v2717, %v2701
    %v4526 = vpack.c.b16 %v2718, %v2702
    %v4527 = vpack.c.b16 %v2719, %v2703
    %v4528 = vpack.c.b16 %v2720, %v2704
    %v4529 = vpack.c.b16 %v2721, %v2705
    %v4530 = vpack.c.b16 %v2738, %v2722
    %v4531 = vpack.c.b16 %v2739, %v2723
    %v4532 = vpack.c.b16 %v2740, %v2724
    %v4533 = vpack.c.b16 %v2741, %v2725
    %v4534 = vpack.c.b16 %v2742, %v2726
    %v4535 = vpack.c.b16 %v2743, %v2727
    %v4536 = vpack.c.b16 %v2744, %v2728
    %v4537 = vpack.c.b16 %v2745, %v2729
    %v4538 = vpack.c.b16 %v2746, %v2730
    %v4539 = vpack.c.b16 %v2747, %v2731
    %v4540 = vpack.c.b16 %v2748, %v2732
    %v4541 = vpack.c.b16 %v2749, %v2733
    %v4542 = vpack.c.b16 %v2750, %v2734
    %v4543 = vpack.c.b16 %v2751, %v2735
    %v4544 = vpack.c.b16 %v2752, %v2736
    %v4545 = vpack.c.b16 %v2753, %v2737
    %v4546 = vpack.c.b16 %v2770, %v2754
    %v4547 = vpack.c.b16 %v2771, %v2755
    %v4548 = vpack.c.b16 %v2772, %v2756
    %v4549 = vpack.c.b16 %v2773, %v2757
    %v4550 = vpack.c.b16 %v2774, %v2758
    %v4551 = vpack.c.b16 %v2775, %v2759
    %v4552 = vpack.c.b16 %v2776, %v2760
    %v4553 = vpack.c.b16 %v2777, %v2761
    %v4554 = vpack.c.b16 %v2778, %v2762
    %v4555 = vpack.c.b16 %v2779, %v2763
    %v4556 = vpack.c.b16 %v2780, %v2764
    %v4557 = vpack.c.b16 %v2781, %v2765
    %v4558 = vpack.c.b16 %v2782, %v2766
    %v4559 = vpack.c.b16 %v2783, %v2767
    %v4560 = vpack.c.b16 %v2784, %v2768
    %v4561 = vpack.c.b16 %v2785, %v2769
    %v4562 = vpack.c.b16 %v2802, %v2786
    %v4563 = vpack.c.b16 %v2803, %v2787
    %v4564 = vpack.c.b16 %v2804, %v2788
    %v4565 = vpack.c.b16 %v2805, %v2789
    %v4566 = vpack.c.b16 %v2806, %v2790
    %v4567 = vpack.c.b16 %v2807, %v2791
    %v4568 = vpack.c.b16 %v2808, %v2792
    %v4569 = vpack.c.b16 %v2809, %v2793
    %v4570 = vpack.c.b16 %v2810, %v2794
    %v4571 = vpack.c.b16 %v2811, %v2795
    %v4572 = vpack.c.b16 %v2812, %v2796
    %v4573 = vpack.c.b16 %v2813, %v2797
    %v4574 = vpack.c.b16 %v2814, %v2798
    %v4575 = vpack.c.b16 %v2815, %v2799
    %v4576 = vpack.c.b16 %v2816, %v2800
    %v4577 = vpack.c.b16 %v2817, %v2801
    %v4578 = vpack.c.b16 %v2834, %v2818
    %v4579 = vpack.c.b16 %v2835, %v2819
    %v4580 = vpack.c.b16 %v2836, %v2820
    %v4581 = vpack.c.b16 %v2837, %v2821
    %v4582 = vpack.c.b16 %v2838, %v2822
    %v4583 = vpack.c.b16 %v2839, %v2823
    %v4584 = vpack.c.b16 %v2840, %v2824
    %v4585 = vpack.c.b16 %v2841, %v2825
    %v4586 = vpack.c.b16 %v2842, %v2826
    %v4587 = vpack.c.b16 %v2843, %v2827
    %v4588 = vpack.c.b16 %v2844, %v2828
    %v4589 = vpack.c.b16 %v2845, %v2829
    %v4590 = vpack.c.b16 %v2846, %v2830
    %v4591 = vpack.c.b16 %v2847, %v2831
    %v4592 = vpack.c.b16 %v2848, %v2832
    %v4593 = vpack.c.b16 %v2849, %v2833
    %v4594 = vpack.c.b16 %v2866, %v2850
    %v4595 = vpack.c.b16 %v2867, %v2851
    %v4596 = vpack.c.b16 %v2868, %v2852
    %v4597 = vpack.c.b16 %v2869, %v2853
    %v4598 = vpack.c.b16 %v2870, %v2854
    %v4599 = vpack.c.b16 %v2871, %v2855
    %v4600 = vpack.c.b16 %v2872, %v2856
    %v4601 = vpack.c.b16 %v2873, %v2857
    %v4602 = vpack.c.b16 %v2874, %v2858
    %v4603 = vpack.c.b16 %v2875, %v2859
    %v4604 = vpack.c.b16 %v2876, %v2860
    %v4605 = vpack.c.b16 %v2877, %v2861
    %v4606 = vpack.c.b16 %v2878, %v2862
    %v4607 = vpack.c.b16 %v2879, %v2863
    %v4608 = vpack.c.b16 %v2880, %v2864
    %v4609 = vpack.c.b16 %v2881, %v2865
    %v4610 = vpack.c.b16 %v2898, %v2882
    %v4611 = vpack.c.b16 %v2899, %v2883
    %v4612 = vpack.c.b16 %v2900, %v2884
    %v4613 = vpack.c.b16 %v2901, %v2885
    %v4614 = vpack.c.b16 %v2902, %v2886
    %v4615 = vpack.c.b16 %v2903, %v2887
    %v4616 = vpack.c.b16 %v2904, %v2888
    %v4617 = vpack.c.b16 %v2905, %v2889
    %v4618 = vpack.c.b16 %v2906, %v2890
    %v4619 = vpack.c.b16 %v2907, %v2891
    %v4620 = vpack.c.b16 %v2908, %v2892
    %v4621 = vpack.c.b16 %v2909, %v2893
    %v4622 = vpack.c.b16 %v2910, %v2894
    %v4623 = vpack.c.b16 %v2911, %v2895
    %v4624 = vpack.c.b16 %v2912, %v2896
    %v4625 = vpack.c.b16 %v2913, %v2897
    %v4626 = vpack.c.b16 %v2930, %v2914
    %v4627 = vpack.c.b16 %v2931, %v2915
    %v4628 = vpack.c.b16 %v2932, %v2916
    %v4629 = vpack.c.b16 %v2933, %v2917
    %v4630 = vpack.c.b16 %v2934, %v2918
    %v4631 = vpack.c.b16 %v2935, %v2919
    %v4632 = vpack.c.b16 %v2936, %v2920
    %v4633 = vpack.c.b16 %v2937, %v2921
    %v4634 = vpack.c.b16 %v2938, %v2922
    %v4635 = vpack.c.b16 %v2939, %v2923
    %v4636 = vpack.c.b16 %v2940, %v2924
    %v4637 = vpack.c.b16 %v2941, %v2925
    %v4638 = vpack.c.b16 %v2942, %v2926
    %v4639 = vpack.c.b16 %v2943, %v2927
    %v4640 = vpack.c.b16 %v2944, %v2928
    %v4641 = vpack.c.b16 %v2945, %v2929
    %v4642 = vpack.c.b16 %v2962, %v2946
    %v4643 = vpack.c.b16 %v2963, %v2947
    %v4644 = vpack.c.b16 %v2964, %v2948
    %v4645 = vpack.c.b16 %v2965, %v2949
    %v4646 = vpack.c.b16 %v2966, %v2950
    %v4647 = vpack.c.b16 %v2967, %v2951
    %v4648 = vpack.c.b16 %v2968, %v2952
    %v4649 = vpack.c.b16 %v2969, %v2953
    %v4650 = vpack.c.b16 %v2970, %v2954
    %v4651 = vpack.c.b16 %v2971, %v2955
    %v4652 = vpack.c.b16 %v2972, %v2956
    %v4653 = vpack.c.b16 %v2973, %v2957
    %v4654 = vpack.c.b16 %v2974, %v2958
    %v4655 = vpack.c.b16 %v2975, %v2959
    %v4656 = vpack.c.b16 %v2976, %v2960
    %v4657 = vpack.c.b16 %v2977, %v2961
    %v4658 = vpack.c.b16 %v2994, %v2978
    %v4659 = vpack.c.b16 %v2995, %v2979
    %v4660 = vpack.c.b16 %v2996, %v2980
    %v4661 = vpack.c.b16 %v2997, %v2981
    %v4662 = vpack.c.b16 %v2998, %v2982
    %v4663 = vpack.c.b16 %v2999, %v2983
    %v4664 = vpack.c.b16 %v3000, %v2984
    %v4665 = vpack.c.b16 %v3001, %v2985
    %v4666 = vpack.c.b16 %v3002, %v2986
    %v4667 = vpack.c.b16 %v3003, %v2987
    %v4668 = vpack.c.b16 %v3004, %v2988
    %v4669 = vpack.c.b16 %v3005, %v2989
    %v4670 = vpack.c.b16 %v3006, %v2990
    %v4671 = vpack.c.b16 %v3007, %v2991
    %v4672 = vpack.c.b16 %v3008, %v2992
    %v4673 = vpack.c.b16 %v3009, %v2993
    %v4674 = vpack.c.b16 %v3026, %v3010
    %v4675 = vpack.c.b16 %v3027, %v3011
    %v4676 = vpack.c.b16 %v3028, %v3012
    %v4677 = vpack.c.b16 %v3029, %v3013
    %v4678 = vpack.c.b16 %v3030, %v3014
    %v4679 = vpack.c.b16 %v3031, %v3015
    %v4680 = vpack.c.b16 %v3032, %v3016
    %v4681 = vpack.c.b16 %v3033, %v3017
    %v4682 = vpack.c.b16 %v3034, %v3018
    %v4683 = vpack.c.b16 %v3035, %v3019
    %v4684 = vpack.c.b16 %v3036, %v3020
    %v4685 = vpack.c.b16 %v3037, %v3021
    %v4686 = vpack.c.b16 %v3038, %v3022
    %v4687 = vpack.c.b16 %v3039, %v3023
    %v4688 = vpack.c.b16 %v3040, %v3024
    %v4689 = vpack.c.b16 %v3041, %v3025
    %v4690 = vpack.c.b16 %v3058, %v3042
    %v4691 = vpack.c.b16 %v3059, %v3043
    %v4692 = vpack.c.b16 %v3060, %v3044
    %v4693 = vpack.c.b16 %v3061, %v3045
    %v4694 = vpack.c.b16 %v3062, %v3046
    %v4695 = vpack.c.b16 %v3063, %v3047
    %v4696 = vpack.c.b16 %v3064, %v3048
    %v4697 = vpack.c.b16 %v3065, %v3049
    %v4698 = vpack.c.b16 %v3066, %v3050
    %v4699 = vpack.c.b16 %v3067, %v3051
    %v4700 = vpack.c.b16 %v3068, %v3052
    %v4701 = vpack.c.b16 %v3069, %v3053
    %v4702 = vpack.c.b16 %v3070, %v3054
    %v4703 = vpack.c.b16 %v3071, %v3055
    %v4704 = vpack.c.b16 %v3072, %v3056
    %v4705 = vpack.c.b16 %v3073, %v3057
    %v4706 = vpack.c.b16 %v3090, %v3074
    %v4707 = vpack.c.b16 %v3091, %v3075
    %v4708 = vpack.c.b16 %v3092, %v3076
    %v4709 = vpack.c.b16 %v3093, %v3077
    %v4710 = vpack.c.b16 %v3094, %v3078
    %v4711 = vpack.c.b16 %v3095, %v3079
    %v4712 = vpack.c.b16 %v3096, %v3080
    %v4713 = vpack.c.b16 %v3097, %v3081
    %v4714 = vpack.c.b16 %v3098, %v3082
    %v4715 = vpack.c.b16 %v3099, %v3083
    %v4716 = vpack.c.b16 %v3100, %v3084
    %v4717 = vpack.c.b16 %v3101, %v3085
    %v4718 = vpack.c.b16 %v3102, %v3086
    %v4719 = vpack.c.b16 %v3103, %v3087
    %v4720 = vpack.c.b16 %v3104, %v3088
    %v4721 = vpack.c.b16 %v3105, %v3089
    %v4722 = vpack.c.b16 %v3122, %v3106
    %v4723 = vpack.c.b16 %v3123, %v3107
    %v4724 = vpack.c.b16 %v3124, %v3108
    %v4725 = vpack.c.b16 %v3125, %v3109
    %v4726 = vpack.c.b16 %v3126, %v3110
    %v4727 = vpack.c.b16 %v3127, %v3111
    %v4728 = vpack.c.b16 %v3128, %v3112
    %v4729 = vpack.c.b16 %v3129, %v3113
    %v4730 = vpack.c.b16 %v3130, %v3114
    %v4731 = vpack.c.b16 %v3131, %v3115
    %v4732 = vpack.c.b16 %v3132, %v3116
    %v4733 = vpack.c.b16 %v3133, %v3117
    %v4734 = vpack.c.b16 %v3134, %v3118
    %v4735 = vpack.c.b16 %v3135, %v3119
    %v4736 = vpack.c.b16 %v3136, %v3120
    %v4737 = vpack.c.b16 %v3137, %v3121
    %v4738 = vpack.c.b16 %v3154, %v3138
    %v4739 = vpack.c.b16 %v3155, %v3139
    %v4740 = vpack.c.b16 %v3156, %v3140
    %v4741 = vpack.c.b16 %v3157, %v3141
    %v4742 = vpack.c.b16 %v3158, %v3142
    %v4743 = vpack.c.b16 %v3159, %v3143
    %v4744 = vpack.c.b16 %v3160, %v3144
    %v4745 = vpack.c.b16 %v3161, %v3145
    %v4746 = vpack.c.b16 %v3162, %v3146
    %v4747 = vpack.c.b16 %v3163, %v3147
    %v4748 = vpack.c.b16 %v3164, %v3148
    %v4749 = vpack.c.b16 %v3165, %v3149
    %v4750 = vpack.c.b16 %v3166, %v3150
    %v4751 = vpack.c.b16 %v3167, %v3151
    %v4752 = vpack.c.b16 %v3168, %v3152
    %v4753 = vpack.c.b16 %v3169, %v3153
    %v4754 = vpack.c.b16 %v3186, %v3170
    %v4755 = vpack.c.b16 %v3187, %v3171
    %v4756 = vpack.c.b16 %v3188, %v3172
    %v4757 = vpack.c.b16 %v3189, %v3173
    %v4758 = vpack.c.b16 %v3190, %v3174
    %v4759 = vpack.c.b16 %v3191, %v3175
    %v4760 = vpack.c.b16 %v3192, %v3176
    %v4761 = vpack.c.b16 %v3193, %v3177
    %v4762 = vpack.c.b16 %v3194, %v3178
    %v4763 = vpack.c.b16 %v3195, %v3179
    %v4764 = vpack.c.b16 %v3196, %v3180
    %v4765 = vpack.c.b16 %v3197, %v3181
    %v4766 = vpack.c.b16 %v3198, %v3182
    %v4767 = vpack.c.b16 %v3199, %v3183
    %v4768 = vpack.c.b16 %v3200, %v3184
    %v4769 = vpack.c.b16 %v3201, %v3185
    %v4770 = vpack.c.b16 %v3218, %v3202
    %v4771 = vpack.c.b16 %v3219, %v3203
    %v4772 = vpack.c.b16 %v3220, %v3204
    %v4773 = vpack.c.b16 %v3221, %v3205
    %v4774 = vpack.c.b16 %v3222, %v3206
    %v4775 = vpack.c.b16 %v3223, %v3207
    %v4776 = vpack.c.b16 %v3224, %v3208
    %v4777 = vpack.c.b16 %v3225, %v3209
    %v4778 = vpack.c.b16 %v3226, %v3210
    %v4779 = vpack.c.b16 %v3227, %v3211
    %v4780 = vpack.c.b16 %v3228, %v3212
    %v4781 = vpack.c.b16 %v3229, %v3213
    %v4782 = vpack.c.b16 %v3230, %v3214
    %v4783 = vpack.c.b16 %v3231, %v3215
    %v4784 = vpack.c.b16 %v3232, %v3216
    %v4785 = vpack.c.b16 %v3233, %v3217
    %v4786 = vpack.c.b16 %v3250, %v3234
    %v4787 = vpack.c.b16 %v3251, %v3235
    %v4788 = vpack.c.b16 %v3252, %v3236
    %v4789 = vpack.c.b16 %v3253, %v3237
    %v4790 = vpack.c.b16 %v3254, %v3238
    %v4791 = vpack.c.b16 %v3255, %v3239
    %v4792 = vpack.c.b16 %v3256, %v3240
    %v4793 = vpack.c.b16 %v3257, %v3241
    %v4794 = vpack.c.b16 %v3258, %v3242
    %v4795 = vpack.c.b16 %v3259, %v3243
    %v4796 = vpack.c.b16 %v3260, %v3244
    %v4797 = vpack.c.b16 %v3261, %v3245
    %v4798 = vpack.c.b16 %v3262, %v3246
    %v4799 = vpack.c.b16 %v3263, %v3247
    %v4800 = vpack.c.b16 %v3264, %v3248
    %v4801 = vpack.c.b16 %v3265, %v3249
    %v4802 = vpack.c.b16 %v3282, %v3266
    %v4803 = vpack.c.b16 %v3283, %v3267
    %v4804 = vpack.c.b16 %v3284, %v3268
    %v4805 = vpack.c.b16 %v3285, %v3269
    %v4806 = vpack.c.b16 %v3286, %v3270
    %v4807 = vpack.c.b16 %v3287, %v3271
    %v4808 = vpack.c.b16 %v3288, %v3272
    %v4809 = vpack.c.b16 %v3289, %v3273
    %v4810 = vpack.c.b16 %v3290, %v3274
    %v4811 = vpack.c.b16 %v3291, %v3275
    %v4812 = vpack.c.b16 %v3292, %v3276
    %v4813 = vpack.c.b16 %v3293, %v3277
    %v4814 = vpack.c.b16 %v3294, %v3278
    %v4815 = vpack.c.b16 %v3295, %v3279
    %v4816 = vpack.c.b16 %v3296, %v3280
    %v4817 = vpack.c.b16 %v3297, %v3281
    %v4818 = vpack.c.b16 %v3314, %v3298
    %v4819 = vpack.c.b16 %v3315, %v3299
    %v4820 = vpack.c.b16 %v3316, %v3300
    %v4821 = vpack.c.b16 %v3317, %v3301
    %v4822 = vpack.c.b16 %v3318, %v3302
    %v4823 = vpack.c.b16 %v3319, %v3303
    %v4824 = vpack.c.b16 %v3320, %v3304
    %v4825 = vpack.c.b16 %v3321, %v3305
    %v4826 = vpack.c.b16 %v3322, %v3306
    %v4827 = vpack.c.b16 %v3323, %v3307
    %v4828 = vpack.c.b16 %v3324, %v3308
    %v4829 = vpack.c.b16 %v3325, %v3309
    %v4830 = vpack.c.b16 %v3326, %v3310
    %v4831 = vpack.c.b16 %v3327, %v3311
    %v4832 = vpack.c.b16 %v3328, %v3312
    %v4833 = vpack.c.b16 %v3329, %v3313
    %v4834 = vpack.c.b16 %v3346, %v3330
    %v4835 = vpack.c.b16 %v3347, %v3331
    %v4836 = vpack.c.b16 %v3348, %v3332
    %v4837 = vpack.c.b16 %v3349, %v3333
    %v4838 = vpack.c.b16 %v3350, %v3334
    %v4839 = vpack.c.b16 %v3351, %v3335
    %v4840 = vpack.c.b16 %v3352, %v3336
    %v4841 = vpack.c.b16 %v3353, %v3337
    %v4842 = vpack.c.b16 %v3354, %v3338
    %v4843 = vpack.c.b16 %v3355, %v3339
    %v4844 = vpack.c.b16 %v3356, %v3340
    %v4845 = vpack.c.b16 %v3357, %v3341
    %v4846 = vpack.c.b16 %v3358, %v3342
    %v4847 = vpack.c.b16 %v3359, %v3343
    %v4848 = vpack.c.b16 %v3360, %v3344
    %v4849 = vpack.c.b16 %v3361, %v3345
    %v4850 = vpack.c.b16 %v3378, %v3362
    %v4851 = vpack.c.b16 %v3379, %v3363
    %v4852 = vpack.c.b16 %v3380, %v3364
    %v4853 = vpack.c.b16 %v3381, %v3365
    %v4854 = vpack.c.b16 %v3382, %v3366
    %v4855 = vpack.c.b16 %v3383, %v3367
    %v4856 = vpack.c.b16 %v3384, %v3368
    %v4857 = vpack.c.b16 %v3385, %v3369
    %v4858 = vpack.c.b16 %v3386, %v3370
    %v4859 = vpack.c.b16 %v3387, %v3371
    %v4860 = vpack.c.b16 %v3388, %v3372
    %v4861 = vpack.c.b16 %v3389, %v3373
    %v4862 = vpack.c.b16 %v3390, %v3374
    %v4863 = vpack.c.b16 %v3391, %v3375
    %v4864 = vpack.c.b16 %v3392, %v3376
    %v4865 = vpack.c.b16 %v3393, %v3377
    %v4866 = vpack.c.b16 %v3410, %v3394
    %v4867 = vpack.c.b16 %v3411, %v3395
    %v4868 = vpack.c.b16 %v3412, %v3396
    %v4869 = vpack.c.b16 %v3413, %v3397
    %v4870 = vpack.c.b16 %v3414, %v3398
    %v4871 = vpack.c.b16 %v3415, %v3399
    %v4872 = vpack.c.b16 %v3416, %v3400
    %v4873 = vpack.c.b16 %v3417, %v3401
    %v4874 = vpack.c.b16 %v3418, %v3402
    %v4875 = vpack.c.b16 %v3419, %v3403
    %v4876 = vpack.c.b16 %v3420, %v3404
    %v4877 = vpack.c.b16 %v3421, %v3405
    %v4878 = vpack.c.b16 %v3422, %v3406
    %v4879 = vpack.c.b16 %v3423, %v3407
    %v4880 = vpack.c.b16 %v3424, %v3408
    %v4881 = vpack.c.b16 %v3425, %v3409
    %v4882 = vpack.c.b16 %v3442, %v3426
    %v4883 = vpack.c.b16 %v3443, %v3427
    %v4884 = vpack.c.b16 %v3444, %v3428
    %v4885 = vpack.c.b16 %v3445, %v3429
    %v4886 = vpack.c.b16 %v3446, %v3430
    %v4887 = vpack.c.b16 %v3447, %v3431
    %v4888 = vpack.c.b16 %v3448, %v3432
    %v4889 = vpack.c.b16 %v3449, %v3433
    %v4890 = vpack.c.b16 %v3450, %v3434
    %v4891 = vpack.c.b16 %v3451, %v3435
    %v4892 = vpack.c.b16 %v3452, %v3436
    %v4893 = vpack.c.b16 %v3453, %v3437
    %v4894 = vpack.c.b16 %v3454, %v3438
    %v4895 = vpack.c.b16 %v3455, %v3439
    %v4896 = vpack.c.b16 %v3456, %v3440
    %v4897 = vpack.c.b16 %v3457, %v3441
    %v4898 = vpack.c.b16 %v3474, %v3458
    %v4899 = vpack.c.b16 %v3475, %v3459
    %v4900 = vpack.c.b16 %v3476, %v3460
    %v4901 = vpack.c.b16 %v3477, %v3461
    %v4902 = vpack.c.b16 %v3478, %v3462
    %v4903 = vpack.c.b16 %v3479, %v3463
    %v4904 = vpack.c.b16 %v3480, %v3464
    %v4905 = vpack.c.b16 %v3481, %v3465
    %v4906 = vpack.c.b16 %v3482, %v3466
    %v4907 = vpack.c.b16 %v3483, %v3467
    %v4908 = vpack.c.b16 %v3484, %v3468
    %v4909 = vpack.c.b16 %v3485, %v3469
    %v4910 = vpack.c.b16 %v3486, %v3470
    %v4911 = vpack.c.b16 %v3487, %v3471
    %v4912 = vpack.c.b16 %v3488, %v3472
    %v4913 = vpack.c.b16 %v3489, %v3473
    %v4914 = vpack.c.b16 %v3506, %v3490
    %v4915 = vpack.c.b16 %v3507, %v3491
    %v4916 = vpack.c.b16 %v3508, %v3492
    %v4917 = vpack.c.b16 %v3509, %v3493
    %v4918 = vpack.c.b16 %v3510, %v3494
    %v4919 = vpack.c.b16 %v3511, %v3495
    %v4920 = vpack.c.b16 %v3512, %v3496
    %v4921 = vpack.c.b16 %v3513, %v3497
    %v4922 = vpack.c.b16 %v3514, %v3498
    %v4923 = vpack.c.b16 %v3515, %v3499
    %v4924 = vpack.c.b16 %v3516, %v3500
    %v4925 = vpack.c.b16 %v3517, %v3501
    %v4926 = vpack.c.b16 %v3518, %v3502
    %v4927 = vpack.c.b16 %v3519, %v3503
    %v4928 = vpack.c.b16 %v3520, %v3504
    %v4929 = vpack.c.b16 %v3521, %v3505
    %v4930 = vpack.c.b16 %v3538, %v3522
    %v4931 = vpack.c.b16 %v3539, %v3523
    %v4932 = vpack.c.b16 %v3540, %v3524
    %v4933 = vpack.c.b16 %v3541, %v3525
    %v4934 = vpack.c.b16 %v3542, %v3526
    %v4935 = vpack.c.b16 %v3543, %v3527
    %v4936 = vpack.c.b16 %v3544, %v3528
    %v4937 = vpack.c.b16 %v3545, %v3529
    %v4938 = vpack.c.b16 %v3546, %v3530
    %v4939 = vpack.c.b16 %v3547, %v3531
    %v4940 = vpack.c.b16 %v3548, %v3532
    %v4941 = vpack.c.b16 %v3549, %v3533
    %v4942 = vpack.c.b16 %v3550, %v3534
    %v4943 = vpack.c.b16 %v3551, %v3535
    %v4944 = vpack.c.b16 %v3552, %v3536
    %v4945 = vpack.c.b16 %v3553, %v3537
    %v4946 = vpack.c.b16 %v3570, %v3554
    %v4947 = vpack.c.b16 %v3571, %v3555
    %v4948 = vpack.c.b16 %v3572, %v3556
    %v4949 = vpack.c.b16 %v3573, %v3557
    %v4950 = vpack.c.b16 %v3574, %v3558
    %v4951 = vpack.c.b16 %v3575, %v3559
    %v4952 = vpack.c.b16 %v3576, %v3560
    %v4953 = vpack.c.b16 %v3577, %v3561
    %v4954 = vpack.c.b16 %v3578, %v3562
    %v4955 = vpack.c.b16 %v3579, %v3563
    %v4956 = vpack.c.b16 %v3580, %v3564
    %v4957 = vpack.c.b16 %v3581, %v3565
    %v4958 = vpack.c.b16 %v3582, %v3566
    %v4959 = vpack.c.b16 %v3583, %v3567
    %v4960 = vpack.c.b16 %v3584, %v3568
    %v4961 = vpack.c.b16 %v3585, %v3569
    %v4962 = vpack.c.b16 %v3602, %v3586
    %v4963 = vpack.c.b16 %v3603, %v3587
    %v4964 = vpack.c.b16 %v3604, %v3588
    %v4965 = vpack.c.b16 %v3605, %v3589
    %v4966 = vpack.c.b16 %v3606, %v3590
    %v4967 = vpack.c.b16 %v3607, %v3591
    %v4968 = vpack.c.b16 %v3608, %v3592
    %v4969 = vpack.c.b16 %v3609, %v3593
    %v4970 = vpack.c.b16 %v3610, %v3594
    %v4971 = vpack.c.b16 %v3611, %v3595
    %v4972 = vpack.c.b16 %v3612, %v3596
    %v4973 = vpack.c.b16 %v3613, %v3597
    %v4974 = vpack.c.b16 %v3614, %v3598
    %v4975 = vpack.c.b16 %v3615, %v3599
    %v4976 = vpack.c.b16 %v3616, %v3600
    %v4977 = vpack.c.b16 %v3617, %v3601
    %v4978 = vpack.c.b16 %v3634, %v3618
    %v4979 = vpack.c.b16 %v3635, %v3619
    %v4980 = vpack.c.b16 %v3636, %v3620
    %v4981 = vpack.c.b16 %v3637, %v3621
    %v4982 = vpack.c.b16 %v3638, %v3622
    %v4983 = vpack.c.b16 %v3639, %v3623
    %v4984 = vpack.c.b16 %v3640, %v3624
    %v4985 = vpack.c.b16 %v3641, %v3625
    %v4986 = vpack.c.b16 %v3642, %v3626
    %v4987 = vpack.c.b16 %v3643, %v3627
    %v4988 = vpack.c.b16 %v3644, %v3628
    %v4989 = vpack.c.b16 %v3645, %v3629
    %v4990 = vpack.c.b16 %v3646, %v3630
    %v4991 = vpack.c.b16 %v3647, %v3631
    %v4992 = vpack.c.b16 %v3648, %v3632
    %v4993 = vpack.c.b16 %v3649, %v3633
    %v4994 = vpack.c.b16 %v3666, %v3650
    %v4995 = vpack.c.b16 %v3667, %v3651
    %v4996 = vpack.c.b16 %v3668, %v3652
    %v4997 = vpack.c.b16 %v3669, %v3653
    %v4998 = vpack.c.b16 %v3670, %v3654
    %v4999 = vpack.c.b16 %v3671, %v3655
    %v5000 = vpack.c.b16 %v3672, %v3656
    %v5001 = vpack.c.b16 %v3673, %v3657
    %v5002 = vpack.c.b16 %v3674, %v3658
    %v5003 = vpack.c.b16 %v3675, %v3659
    %v5004 = vpack.c.b16 %v3676, %v3660
    %v5005 = vpack.c.b16 %v3677, %v3661
    %v5006 = vpack.c.b16 %v3678, %v3662
    %v5007 = vpack.c.b16 %v3679, %v3663
    %v5008 = vpack.c.b16 %v3680, %v3664
    %v5009 = vpack.c.b16 %v3681, %v3665
    %v5010 = vpack.c.b16 %v3698, %v3682
    %v5011 = vpack.c.b16 %v3699, %v3683
    %v5012 = vpack.c.b16 %v3700, %v3684
    %v5013 = vpack.c.b16 %v3701, %v3685
    %v5014 = vpack.c.b16 %v3702, %v3686
    %v5015 = vpack.c.b16 %v3703, %v3687
    %v5016 = vpack.c.b16 %v3704, %v3688
    %v5017 = vpack.c.b16 %v3705, %v3689
    %v5018 = vpack.c.b16 %v3706, %v3690
    %v5019 = vpack.c.b16 %v3707, %v3691
    %v5020 = vpack.c.b16 %v3708, %v3692
    %v5021 = vpack.c.b16 %v3709, %v3693
    %v5022 = vpack.c.b16 %v3710, %v3694
    %v5023 = vpack.c.b16 %v3711, %v3695
    %v5024 = vpack.c.b16 %v3712, %v3696
    %v5025 = vpack.c.b16 %v3713, %v3697
    %v5026 = vpack.c.b16 %v3730, %v3714
    %v5027 = vpack.c.b16 %v3731, %v3715
    %v5028 = vpack.c.b16 %v3732, %v3716
    %v5029 = vpack.c.b16 %v3733, %v3717
    %v5030 = vpack.c.b16 %v3734, %v3718
    %v5031 = vpack.c.b16 %v3735, %v3719
    %v5032 = vpack.c.b16 %v3736, %v3720
    %v5033 = vpack.c.b16 %v3737, %v3721
    %v5034 = vpack.c.b16 %v3738, %v3722
    %v5035 = vpack.c.b16 %v3739, %v3723
    %v5036 = vpack.c.b16 %v3740, %v3724
    %v5037 = vpack.c.b16 %v3741, %v3725
    %v5038 = vpack.c.b16 %v3742, %v3726
    %v5039 = vpack.c.b16 %v3743, %v3727
    %v5040 = vpack.c.b16 %v3744, %v3728
    %v5041 = vpack.c.b16 %v3745, %v3729
    %v5042 = vpack.c.b16 %v3762, %v3746
    %v5043 = vpack.c.b16 %v3763, %v3747
    %v5044 = vpack.c.b16 %v3764, %v3748
    %v5045 = vpack.c.b16 %v3765, %v3749
    %v5046 = vpack.c.b16 %v3766, %v3750
    %v5047 = vpack.c.b16 %v3767, %v3751
    %v5048 = vpack.c.b16 %v3768, %v3752
    %v5049 = vpack.c.b16 %v3769, %v3753
    %v5050 = vpack.c.b16 %v3770, %v3754
    %v5051 = vpack.c.b16 %v3771, %v3755
    %v5052 = vpack.c.b16 %v3772, %v3756
    %v5053 = vpack.c.b16 %v3773, %v3757
    %v5054 = vpack.c.b16 %v3774, %v3758
    %v5055 = vpack.c.b16 %v3775, %v3759
    %v5056 = vpack.c.b16 %v3776, %v3760
    %v5057 = vpack.c.b16 %v3777, %v3761
    %v5058 = vpack.c.b16 %v3794, %v3778
    %v5059 = vpack.c.b16 %v3795, %v3779
    %v5060 = vpack.c.b16 %v3796, %v3780
    %v5061 = vpack.c.b16 %v3797, %v3781
    %v5062 = vpack.c.b16 %v3798, %v3782
    %v5063 = vpack.c.b16 %v3799, %v3783
    %v5064 = vpack.c.b16 %v3800, %v3784
    %v5065 = vpack.c.b16 %v3801, %v3785
    %v5066 = vpack.c.b16 %v3802, %v3786
    %v5067 = vpack.c.b16 %v3803, %v3787
    %v5068 = vpack.c.b16 %v3804, %v3788
    %v5069 = vpack.c.b16 %v3805, %v3789
    %v5070 = vpack.c.b16 %v3806, %v3790
    %v5071 = vpack.c.b16 %v3807, %v3791
    %v5072 = vpack.c.b16 %v3808, %v3792
    %v5073 = vpack.c.b16 %v3809, %v3793
    %v5074 = vpack.c.b16 %v3826, %v3810
    %v5075 = vpack.c.b16 %v3827, %v3811
    %v5076 = vpack.c.b16 %v3828, %v3812
    %v5077 = vpack.c.b16 %v3829, %v3813
    %v5078 = vpack.c.b16 %v3830, %v3814
    %v5079 = vpack.c.b16 %v3831, %v3815
    %v5080 = vpack.c.b16 %v3832, %v3816
    %v5081 = vpack.c.b16 %v3833, %v3817
    %v5082 = vpack.c.b16 %v3834, %v3818
    %v5083 = vpack.c.b16 %v3835, %v3819
    %v5084 = vpack.c.b16 %v3836, %v3820
    %v5085 = vpack.c.b16 %v3837, %v3821
    %v5086 = vpack.c.b16 %v3838, %v3822
    %v5087 = vpack.c.b16 %v3839, %v3823
    %v5088 = vpack.c.b16 %v3840, %v3824
    %v5089 = vpack.c.b16 %v3841, %v3825
    %v5090 = vpack.c.b16 %v3858, %v3842
    %v5091 = vpack.c.b16 %v3859, %v3843
    %v5092 = vpack.c.b16 %v3860, %v3844
    %v5093 = vpack.c.b16 %v3861, %v3845
    %v5094 = vpack.c.b16 %v3862, %v3846
    %v5095 = vpack.c.b16 %v3863, %v3847
    %v5096 = vpack.c.b16 %v3864, %v3848
    %v5097 = vpack.c.b16 %v3865, %v3849
    %v5098 = vpack.c.b16 %v3866, %v3850
    %v5099 = vpack.c.b16 %v3867, %v3851
    %v5100 = vpack.c.b16 %v3868, %v3852
    %v5101 = vpack.c.b16 %v3869, %v3853
    %v5102 = vpack.c.b16 %v3870, %v3854
    %v5103 = vpack.c.b16 %v3871, %v3855
    %v5104 = vpack.c.b16 %v3872, %v3856
    %v5105 = vpack.c.b16 %v3873, %v3857
    %v5106 = vpack.c.b16 %v3890, %v3874
    %v5107 = vpack.c.b16 %v3891, %v3875
    %v5108 = vpack.c.b16 %v3892, %v3876
    %v5109 = vpack.c.b16 %v3893, %v3877
    %v5110 = vpack.c.b16 %v3894, %v3878
    %v5111 = vpack.c.b16 %v3895, %v3879
    %v5112 = vpack.c.b16 %v3896, %v3880
    %v5113 = vpack.c.b16 %v3897, %v3881
    %v5114 = vpack.c.b16 %v3898, %v3882
    %v5115 = vpack.c.b16 %v3899, %v3883
    %v5116 = vpack.c.b16 %v3900, %v3884
    %v5117 = vpack.c.b16 %v3901, %v3885
    %v5118 = vpack.c.b16 %v3902, %v3886
    %v5119 = vpack.c.b16 %v3903, %v3887
    %v5120 = vpack.c.b16 %v3904, %v3888
    %v5121 = vpack.c.b16 %v3905, %v3889
    %v5122 = vpack.c.b16 %v3922, %v3906
    %v5123 = vpack.c.b16 %v3923, %v3907
    %v5124 = vpack.c.b16 %v3924, %v3908
    %v5125 = vpack.c.b16 %v3925, %v3909
    %v5126 = vpack.c.b16 %v3926, %v3910
    %v5127 = vpack.c.b16 %v3927, %v3911
    %v5128 = vpack.c.b16 %v3928, %v3912
    %v5129 = vpack.c.b16 %v3929, %v3913
    %v5130 = vpack.c.b16 %v3930, %v3914
    %v5131 = vpack.c.b16 %v3931, %v3915
    %v5132 = vpack.c.b16 %v3932, %v3916
    %v5133 = vpack.c.b16 %v3933, %v3917
    %v5134 = vpack.c.b16 %v3934, %v3918
    %v5135 = vpack.c.b16 %v3935, %v3919
    %v5136 = vpack.c.b16 %v3936, %v3920
    %v5137 = vpack.c.b16 %v3937, %v3921
    %v5138 = vpack.c.b16 %v3954, %v3938
    %v5139 = vpack.c.b16 %v3955, %v3939
    %v5140 = vpack.c.b16 %v3956, %v3940
    %v5141 = vpack.c.b16 %v3957, %v3941
    %v5142 = vpack.c.b16 %v3958, %v3942
    %v5143 = vpack.c.b16 %v3959, %v3943
    %v5144 = vpack.c.b16 %v3960, %v3944
    %v5145 = vpack.c.b16 %v3961, %v3945
    %v5146 = vpack.c.b16 %v3962, %v3946
    %v5147 = vpack.c.b16 %v3963, %v3947
    %v5148 = vpack.c.b16 %v3964, %v3948
    %v5149 = vpack.c.b16 %v3965, %v3949
    %v5150 = vpack.c.b16 %v3966, %v3950
    %v5151 = vpack.c.b16 %v3967, %v3951
    %v5152 = vpack.c.b16 %v3968, %v3952
    %v5153 = vpack.c.b16 %v3969, %v3953
    %v5154 = vpack.c.b16 %v3986, %v3970
    %v5155 = vpack.c.b16 %v3987, %v3971
    %v5156 = vpack.c.b16 %v3988, %v3972
    %v5157 = vpack.c.b16 %v3989, %v3973
    %v5158 = vpack.c.b16 %v3990, %v3974
    %v5159 = vpack.c.b16 %v3991, %v3975
    %v5160 = vpack.c.b16 %v3992, %v3976
    %v5161 = vpack.c.b16 %v3993, %v3977
    %v5162 = vpack.c.b16 %v3994, %v3978
    %v5163 = vpack.c.b16 %v3995, %v3979
    %v5164 = vpack.c.b16 %v3996, %v3980
    %v5165 = vpack.c.b16 %v3997, %v3981
    %v5166 = vpack.c.b16 %v3998, %v3982
    %v5167 = vpack.c.b16 %v3999, %v3983
    %v5168 = vpack.c.b16 %v4000, %v3984
    %v5169 = vpack.c.b16 %v4001, %v3985
    %v5170 = vpack.c.b16 %v4018, %v4002
    %v5171 = vpack.c.b16 %v4019, %v4003
    %v5172 = vpack.c.b16 %v4020, %v4004
    %v5173 = vpack.c.b16 %v4021, %v4005
    %v5174 = vpack.c.b16 %v4022, %v4006
    %v5175 = vpack.c.b16 %v4023, %v4007
    %v5176 = vpack.c.b16 %v4024, %v4008
    %v5177 = vpack.c.b16 %v4025, %v4009
    %v5178 = vpack.c.b16 %v4026, %v4010
    %v5179 = vpack.c.b16 %v4027, %v4011
    %v5180 = vpack.c.b16 %v4028, %v4012
    %v5181 = vpack.c.b16 %v4029, %v4013
    %v5182 = vpack.c.b16 %v4030, %v4014
    %v5183 = vpack.c.b16 %v4031, %v4015
    %v5184 = vpack.c.b16 %v4032, %v4016
    %v5185 = vpack.c.b16 %v4033, %v4017
    %v5186 = vpack.c.b16 %v4050, %v4034
    %v5187 = vpack.c.b16 %v4051, %v4035
    %v5188 = vpack.c.b16 %v4052, %v4036
    %v5189 = vpack.c.b16 %v4053, %v4037
    %v5190 = vpack.c.b16 %v4054, %v4038
    %v5191 = vpack.c.b16 %v4055, %v4039
    %v5192 = vpack.c.b16 %v4056, %v4040
    %v5193 = vpack.c.b16 %v4057, %v4041
    %v5194 = vpack.c.b16 %v4058, %v4042
    %v5195 = vpack.c.b16 %v4059, %v4043
    %v5196 = vpack.c.b16 %v4060, %v4044
    %v5197 = vpack.c.b16 %v4061, %v4045
    %v5198 = vpack.c.b16 %v4062, %v4046
    %v5199 = vpack.c.b16 %v4063, %v4047
    %v5200 = vpack.c.b16 %v4064, %v4048
    %v5201 = vpack.c.b16 %v4065, %v4049
    %v5202 = vpack.c.b16 %v4082, %v4066
    %v5203 = vpack.c.b16 %v4083, %v4067
    %v5204 = vpack.c.b16 %v4084, %v4068
    %v5205 = vpack.c.b16 %v4085, %v4069
    %v5206 = vpack.c.b16 %v4086, %v4070
    %v5207 = vpack.c.b16 %v4087, %v4071
    %v5208 = vpack.c.b16 %v4088, %v4072
    %v5209 = vpack.c.b16 %v4089, %v4073
    %v5210 = vpack.c.b16 %v4090, %v4074
    %v5211 = vpack.c.b16 %v4091, %v4075
    %v5212 = vpack.c.b16 %v4092, %v4076
    %v5213 = vpack.c.b16 %v4093, %v4077
    %v5214 = vpack.c.b16 %v4094, %v4078
    %v5215 = vpack.c.b16 %v4095, %v4079
    %v5216 = vpack.c.b16 %v4096, %v4080
    %v5217 = vpack.c.b16 %v4097, %v4081
    %v5218 = vpack.c.b16 %v4114, %v4098
    %v5219 = vpack.c.b16 %v4115, %v4099
    %v5220 = vpack.c.b16 %v4116, %v4100
    %v5221 = vpack.c.b16 %v4117, %v4101
    %v5222 = vpack.c.b16 %v4118, %v4102
    %v5223 = vpack.c.b16 %v4119, %v4103
    %v5224 = vpack.c.b16 %v4120, %v4104
    %v5225 = vpack.c.b16 %v4121, %v4105
    %v5226 = vpack.c.b16 %v4122, %v4106
    %v5227 = vpack.c.b16 %v4123, %v4107
    %v5228 = vpack.c.b16 %v4124, %v4108
    %v5229 = vpack.c.b16 %v4125, %v4109
    %v5230 = vpack.c.b16 %v4126, %v4110
    %v5231 = vpack.c.b16 %v4127, %v4111
    %v5232 = vpack.c.b16 %v4128, %v4112
    %v5233 = vpack.c.b16 %v4129, %v4113
    %v5234 = vpack.c.b16 %v4146, %v4130
    %v5235 = vpack.c.b16 %v4147, %v4131
    %v5236 = vpack.c.b16 %v4148, %v4132
    %v5237 = vpack.c.b16 %v4149, %v4133
    %v5238 = vpack.c.b16 %v4150, %v4134
    %v5239 = vpack.c.b16 %v4151, %v4135
    %v5240 = vpack.c.b16 %v4152, %v4136
    %v5241 = vpack.c.b16 %v4153, %v4137
    %v5242 = vpack.c.b16 %v4154, %v4138
    %v5243 = vpack.c.b16 %v4155, %v4139
    %v5244 = vpack.c.b16 %v4156, %v4140
    %v5245 = vpack.c.b16 %v4157, %v4141
    %v5246 = vpack.c.b16 %v4158, %v4142
    %v5247 = vpack.c.b16 %v4159, %v4143
    %v5248 = vpack.c.b16 %v4160, %v4144
    %v5249 = vpack.c.b16 %v4161, %v4145
    %v5250 = vpack.c.b16 %v4178, %v4162
    %v5251 = vpack.c.b16 %v4179, %v4163
    %v5252 = vpack.c.b16 %v4180, %v4164
    %v5253 = vpack.c.b16 %v4181, %v4165
    %v5254 = vpack.c.b16 %v4182, %v4166
    %v5255 = vpack.c.b16 %v4183, %v4167
    %v5256 = vpack.c.b16 %v4184, %v4168
    %v5257 = vpack.c.b16 %v4185, %v4169
    %v5258 = vpack.c.b16 %v4186, %v4170
    %v5259 = vpack.c.b16 %v4187, %v4171
    %v5260 = vpack.c.b16 %v4188, %v4172
    %v5261 = vpack.c.b16 %v4189, %v4173
    %v5262 = vpack.c.b16 %v4190, %v4174
    %v5263 = vpack.c.b16 %v4191, %v4175
    %v5264 = vpack.c.b16 %v4192, %v4176
    %v5265 = vpack.c.b16 %v4193, %v4177
    %v5266 = vpack.c.b16 %v4210, %v4194
    %v5267 = vpack.c.b16 %v4211, %v4195
    %v5268 = vpack.c.b16 %v4212, %v4196
    %v5269 = vpack.c.b16 %v4213, %v4197
    %v5270 = vpack.c.b16 %v4214, %v4198
    %v5271 = vpack.c.b16 %v4215, %v4199
    %v5272 = vpack.c.b16 %v4216, %v4200
    %v5273 = vpack.c.b16 %v4217, %v4201
    %v5274 = vpack.c.b16 %v4218, %v4202
    %v5275 = vpack.c.b16 %v4219, %v4203
    %v5276 = vpack.c.b16 %v4220, %v4204
    %v5277 = vpack.c.b16 %v4221, %v4205
    %v5278 = vpack.c.b16 %v4222, %v4206
    %v5279 = vpack.c.b16 %v4223, %v4207
    %v5280 = vpack.c.b16 %v4224, %v4208
    %v5281 = vpack.c.b16 %v4225, %v4209
    %v5282 = vpack.c.b16 %v4242, %v4226
    %v5283 = vpack.c.b16 %v4243, %v4227
    %v5284 = vpack.c.b16 %v4244, %v4228
    %v5285 = vpack.c.b16 %v4245, %v4229
    %v5286 = vpack.c.b16 %v4246, %v4230
    %v5287 = vpack.c.b16 %v4247, %v4231
    %v5288 = vpack.c.b16 %v4248, %v4232
    %v5289 = vpack.c.b16 %v4249, %v4233
    %v5290 = vpack.c.b16 %v4250, %v4234
    %v5291 = vpack.c.b16 %v4251, %v4235
    %v5292 = vpack.c.b16 %v4252, %v4236
    %v5293 = vpack.c.b16 %v4253, %v4237
    %v5294 = vpack.c.b16 %v4254, %v4238
    %v5295 = vpack.c.b16 %v4255, %v4239
    %v5296 = vpack.c.b16 %v4256, %v4240
    %v5297 = vpack.c.b16 %v4257, %v4241
    %v5298 = vpack.c.b16 %v4274, %v4258
    %v5299 = vpack.c.b16 %v4275, %v4259
    %v5300 = vpack.c.b16 %v4276, %v4260
    %v5301 = vpack.c.b16 %v4277, %v4261
    %v5302 = vpack.c.b16 %v4278, %v4262
    %v5303 = vpack.c.b16 %v4279, %v4263
    %v5304 = vpack.c.b16 %v4280, %v4264
    %v5305 = vpack.c.b16 %v4281, %v4265
    %v5306 = vpack.c.b16 %v4282, %v4266
    %v5307 = vpack.c.b16 %v4283, %v4267
    %v5308 = vpack.c.b16 %v4284, %v4268
    %v5309 = vpack.c.b16 %v4285, %v4269
    %v5310 = vpack.c.b16 %v4286, %v4270
    %v5311 = vpack.c.b16 %v4287, %v4271
    %v5312 = vpack.c.b16 %v4288, %v4272
    %v5313 = vpack.c.b16 %v4289, %v4273
    %6338 = vmatpush.bf16.msra.mxu0 %v4402
    %6339 = vmatpush.bf16.msra.mxu0 %v4386
    %6340 = vmatpush.bf16.msra.mxu0 %v4370
    %6341 = vmatpush.bf16.msra.mxu0 %v4354
    %6342 = vmatpush.bf16.msra.mxu0 %v4338
    %6343 = vmatpush.bf16.msra.mxu0 %v4322
    %6344 = vmatpush.bf16.msra.mxu0 %v4306
    %6345 = vmatpush.bf16.msra.mxu0 %v4290
    %6346 = vmatmul.bf16.gmra.mxu0 %v178
    %v6347 = vpop.f32.mrf.mxu0
    %v6348 = vadd.f32 0.0, %v6347
    %v6349 = vpop.f32.mrf.mxu0
    %6350 = vdwg.mxu0
    %6351 = vmatpush.bf16.msra.mxu0 %v4530
    %6352 = vmatpush.bf16.msra.mxu0 %v4514
    %6353 = vmatpush.bf16.msra.mxu0 %v4498
    %6354 = vmatpush.bf16.msra.mxu0 %v4482
    %6355 = vmatpush.bf16.msra.mxu0 %v4466
    %6356 = vmatpush.bf16.msra.mxu0 %v4450
    %6357 = vmatpush.bf16.msra.mxu0 %v4434
    %6358 = vmatpush.bf16.msra.mxu0 %v4418
    %6359 = vmatmul.bf16.gmra.mxu0 %v179
    %v6360 = vpop.f32.mrf.mxu0
    %v6361 = vadd.f32 %v6348, %v6360
    %v6362 = vpop.f32.mrf.mxu0
    %6363 = vdwg.mxu0
    %6364 = vmatpush.bf16.msra.mxu0 %v4658
    %6365 = vmatpush.bf16.msra.mxu0 %v4642
    %6366 = vmatpush.bf16.msra.mxu0 %v4626
    %6367 = vmatpush.bf16.msra.mxu0 %v4610
    %6368 = vmatpush.bf16.msra.mxu0 %v4594
    %6369 = vmatpush.bf16.msra.mxu0 %v4578
    %6370 = vmatpush.bf16.msra.mxu0 %v4562
    %6371 = vmatpush.bf16.msra.mxu0 %v4546
    %6372 = vmatmul.bf16.gmra.mxu0 %v180
    %v6373 = vpop.f32.mrf.mxu0
    %v6374 = vadd.f32 %v6361, %v6373
    %v6375 = vpop.f32.mrf.mxu0
    %6376 = vdwg.mxu0
    %6377 = vmatpush.bf16.msra.mxu0 %v4786
    %6378 = vmatpush.bf16.msra.mxu0 %v4770
    %6379 = vmatpush.bf16.msra.mxu0 %v4754
    %6380 = vmatpush.bf16.msra.mxu0 %v4738
    %6381 = vmatpush.bf16.msra.mxu0 %v4722
    %6382 = vmatpush.bf16.msra.mxu0 %v4706
    %6383 = vmatpush.bf16.msra.mxu0 %v4690
    %6384 = vmatpush.bf16.msra.mxu0 %v4674
    %6385 = vmatmul.bf16.gmra.mxu0 %v181
    %v6386 = vpop.f32.mrf.mxu0
    %v6387 = vadd.f32 %v6374, %v6386
    %v6388 = vpop.f32.mrf.mxu0
    %6389 = vdwg.mxu0
    %6390 = vmatpush.bf16.msra.mxu0 %v4914
    %6391 = vmatpush.bf16.msra.mxu0 %v4898
    %6392 = vmatpush.bf16.msra.mxu0 %v4882
    %6393 = vmatpush.bf16.msra.mxu0 %v4866
    %6394 = vmatpush.bf16.msra.mxu0 %v4850
    %6395 = vmatpush.bf16.msra.mxu0 %v4834
    %6396 = vmatpush.bf16.msra.mxu0 %v4818
    %6397 = vmatpush.bf16.msra.mxu0 %v4802
    %6398 = vmatmul.bf16.gmra.mxu0 %v182
    %v6399 = vpop.f32.mrf.mxu0
    %v6400 = vadd.f32 %v6387, %v6399
    %v6401 = vpop.f32.mrf.mxu0
    %6402 = vdwg.mxu0
    %6403 = vmatpush.bf16.msra.mxu0 %v5042
    %6404 = vmatpush.bf16.msra.mxu0 %v5026
    %6405 = vmatpush.bf16.msra.mxu0 %v5010
    %6406 = vmatpush.bf16.msra.mxu0 %v4994
    %6407 = vmatpush.bf16.msra.mxu0 %v4978
    %6408 = vmatpush.bf16.msra.mxu0 %v4962
    %6409 = vmatpush.bf16.msra.mxu0 %v4946
    %6410 = vmatpush.bf16.msra.mxu0 %v4930
    %6411 = vmatmul.bf16.gmra.mxu0 %v183
    %v6412 = vpop.f32.mrf.mxu0
    %v6413 = vadd.f32 %v6400, %v6412
    %v6414 = vpop.f32.mrf.mxu0
    %6415 = vdwg.mxu0
    %6416 = vmatpush.bf16.msra.mxu0 %v5170
    %6417 = vmatpush.bf16.msra.mxu0 %v5154
    %6418 = vmatpush.bf16.msra.mxu0 %v5138
    %6419 = vmatpush.bf16.msra.mxu0 %v5122
    %6420 = vmatpush.bf16.msra.mxu0 %v5106
    %6421 = vmatpush.bf16.msra.mxu0 %v5090
    %6422 = vmatpush.bf16.msra.mxu0 %v5074
    %6423 = vmatpush.bf16.msra.mxu0 %v5058
    %6424 = vmatmul.bf16.gmra.mxu0 %v184
    %v6425 = vpop.f32.mrf.mxu0
    %v6426 = vadd.f32 %v6413, %v6425
    %v6427 = vpop.f32.mrf.mxu0
    %6428 = vdwg.mxu0
    %6429 = vmatpush.bf16.msra.mxu0 %v5298
    %6430 = vmatpush.bf16.msra.mxu0 %v5282
    %6431 = vmatpush.bf16.msra.mxu0 %v5266
    %6432 = vmatpush.bf16.msra.mxu0 %v5250
    %6433 = vmatpush.bf16.msra.mxu0 %v5234
    %6434 = vmatpush.bf16.msra.mxu0 %v5218
    %6435 = vmatpush.bf16.msra.mxu0 %v5202
    %6436 = vmatpush.bf16.msra.mxu0 %v5186
    %6437 = vmatmul.bf16.gmra.mxu0 %v185
    %v6438 = vpop.f32.mrf.mxu0
    %v6439 = vadd.f32 %v6426, %v6438
    %v6440 = vpop.f32.mrf.mxu0
    %6441 = vdwg.mxu0
    %6442 = vmatpush.bf16.msra.mxu0 %v4403
    %6443 = vmatpush.bf16.msra.mxu0 %v4387
    %6444 = vmatpush.bf16.msra.mxu0 %v4371
    %6445 = vmatpush.bf16.msra.mxu0 %v4355
    %6446 = vmatpush.bf16.msra.mxu0 %v4339
    %6447 = vmatpush.bf16.msra.mxu0 %v4323
    %6448 = vmatpush.bf16.msra.mxu0 %v4307
    %6449 = vmatpush.bf16.msra.mxu0 %v4291
    %6450 = vmatmul.bf16.gmra.mxu0 %v178
    %v6451 = vpop.f32.mrf.mxu0
    %v6452 = vadd.f32 0.0, %v6451
    %v6453 = vpop.f32.mrf.mxu0
    %6454 = vdwg.mxu0
    %6455 = vmatpush.bf16.msra.mxu0 %v4531
    %6456 = vmatpush.bf16.msra.mxu0 %v4515
    %6457 = vmatpush.bf16.msra.mxu0 %v4499
    %6458 = vmatpush.bf16.msra.mxu0 %v4483
    %6459 = vmatpush.bf16.msra.mxu0 %v4467
    %6460 = vmatpush.bf16.msra.mxu0 %v4451
    %6461 = vmatpush.bf16.msra.mxu0 %v4435
    %6462 = vmatpush.bf16.msra.mxu0 %v4419
    %6463 = vmatmul.bf16.gmra.mxu0 %v179
    %v6464 = vpop.f32.mrf.mxu0
    %v6465 = vadd.f32 %v6452, %v6464
    %v6466 = vpop.f32.mrf.mxu0
    %6467 = vdwg.mxu0
    %6468 = vmatpush.bf16.msra.mxu0 %v4659
    %6469 = vmatpush.bf16.msra.mxu0 %v4643
    %6470 = vmatpush.bf16.msra.mxu0 %v4627
    %6471 = vmatpush.bf16.msra.mxu0 %v4611
    %6472 = vmatpush.bf16.msra.mxu0 %v4595
    %6473 = vmatpush.bf16.msra.mxu0 %v4579
    %6474 = vmatpush.bf16.msra.mxu0 %v4563
    %6475 = vmatpush.bf16.msra.mxu0 %v4547
    %6476 = vmatmul.bf16.gmra.mxu0 %v180
    %v6477 = vpop.f32.mrf.mxu0
    %v6478 = vadd.f32 %v6465, %v6477
    %v6479 = vpop.f32.mrf.mxu0
    %6480 = vdwg.mxu0
    %6481 = vmatpush.bf16.msra.mxu0 %v4787
    %6482 = vmatpush.bf16.msra.mxu0 %v4771
    %6483 = vmatpush.bf16.msra.mxu0 %v4755
    %6484 = vmatpush.bf16.msra.mxu0 %v4739
    %6485 = vmatpush.bf16.msra.mxu0 %v4723
    %6486 = vmatpush.bf16.msra.mxu0 %v4707
    %6487 = vmatpush.bf16.msra.mxu0 %v4691
    %6488 = vmatpush.bf16.msra.mxu0 %v4675
    %6489 = vmatmul.bf16.gmra.mxu0 %v181
    %v6490 = vpop.f32.mrf.mxu0
    %v6491 = vadd.f32 %v6478, %v6490
    %v6492 = vpop.f32.mrf.mxu0
    %6493 = vdwg.mxu0
    %6494 = vmatpush.bf16.msra.mxu0 %v4915
    %6495 = vmatpush.bf16.msra.mxu0 %v4899
    %6496 = vmatpush.bf16.msra.mxu0 %v4883
    %6497 = vmatpush.bf16.msra.mxu0 %v4867
    %6498 = vmatpush.bf16.msra.mxu0 %v4851
    %6499 = vmatpush.bf16.msra.mxu0 %v4835
    %6500 = vmatpush.bf16.msra.mxu0 %v4819
    %6501 = vmatpush.bf16.msra.mxu0 %v4803
    %6502 = vmatmul.bf16.gmra.mxu0 %v182
    %v6503 = vpop.f32.mrf.mxu0
    %v6504 = vadd.f32 %v6491, %v6503
    %v6505 = vpop.f32.mrf.mxu0
    %6506 = vdwg.mxu0
    %6507 = vmatpush.bf16.msra.mxu0 %v5043
    %6508 = vmatpush.bf16.msra.mxu0 %v5027
    %6509 = vmatpush.bf16.msra.mxu0 %v5011
    %6510 = vmatpush.bf16.msra.mxu0 %v4995
    %6511 = vmatpush.bf16.msra.mxu0 %v4979
    %6512 = vmatpush.bf16.msra.mxu0 %v4963
    %6513 = vmatpush.bf16.msra.mxu0 %v4947
    %6514 = vmatpush.bf16.msra.mxu0 %v4931
    %6515 = vmatmul.bf16.gmra.mxu0 %v183
    %v6516 = vpop.f32.mrf.mxu0
    %v6517 = vadd.f32 %v6504, %v6516
    %v6518 = vpop.f32.mrf.mxu0
    %6519 = vdwg.mxu0
    %6520 = vmatpush.bf16.msra.mxu0 %v5171
    %6521 = vmatpush.bf16.msra.mxu0 %v5155
    %6522 = vmatpush.bf16.msra.mxu0 %v5139
    %6523 = vmatpush.bf16.msra.mxu0 %v5123
    %6524 = vmatpush.bf16.msra.mxu0 %v5107
    %6525 = vmatpush.bf16.msra.mxu0 %v5091
    %6526 = vmatpush.bf16.msra.mxu0 %v5075
    %6527 = vmatpush.bf16.msra.mxu0 %v5059
    %6528 = vmatmul.bf16.gmra.mxu0 %v184
    %v6529 = vpop.f32.mrf.mxu0
    %v6530 = vadd.f32 %v6517, %v6529
    %v6531 = vpop.f32.mrf.mxu0
    %6532 = vdwg.mxu0
    %6533 = vmatpush.bf16.msra.mxu0 %v5299
    %6534 = vmatpush.bf16.msra.mxu0 %v5283
    %6535 = vmatpush.bf16.msra.mxu0 %v5267
    %6536 = vmatpush.bf16.msra.mxu0 %v5251
    %6537 = vmatpush.bf16.msra.mxu0 %v5235
    %6538 = vmatpush.bf16.msra.mxu0 %v5219
    %6539 = vmatpush.bf16.msra.mxu0 %v5203
    %6540 = vmatpush.bf16.msra.mxu0 %v5187
    %6541 = vmatmul.bf16.gmra.mxu0 %v185
    %v6542 = vpop.f32.mrf.mxu0
    %v6543 = vadd.f32 %v6530, %v6542
    %v6544 = vpop.f32.mrf.mxu0
    %6545 = vdwg.mxu0
    %6546 = vmatpush.bf16.msra.mxu0 %v4404
    %6547 = vmatpush.bf16.msra.mxu0 %v4388
    %6548 = vmatpush.bf16.msra.mxu0 %v4372
    %6549 = vmatpush.bf16.msra.mxu0 %v4356
    %6550 = vmatpush.bf16.msra.mxu0 %v4340
    %6551 = vmatpush.bf16.msra.mxu0 %v4324
    %6552 = vmatpush.bf16.msra.mxu0 %v4308
    %6553 = vmatpush.bf16.msra.mxu0 %v4292
    %6554 = vmatmul.bf16.gmra.mxu0 %v178
    %v6555 = vpop.f32.mrf.mxu0
    %v6556 = vadd.f32 0.0, %v6555
    %v6557 = vpop.f32.mrf.mxu0
    %6558 = vdwg.mxu0
    %6559 = vmatpush.bf16.msra.mxu0 %v4532
    %6560 = vmatpush.bf16.msra.mxu0 %v4516
    %6561 = vmatpush.bf16.msra.mxu0 %v4500
    %6562 = vmatpush.bf16.msra.mxu0 %v4484
    %6563 = vmatpush.bf16.msra.mxu0 %v4468
    %6564 = vmatpush.bf16.msra.mxu0 %v4452
    %6565 = vmatpush.bf16.msra.mxu0 %v4436
    %6566 = vmatpush.bf16.msra.mxu0 %v4420
    %6567 = vmatmul.bf16.gmra.mxu0 %v179
    %v6568 = vpop.f32.mrf.mxu0
    %v6569 = vadd.f32 %v6556, %v6568
    %v6570 = vpop.f32.mrf.mxu0
    %6571 = vdwg.mxu0
    %6572 = vmatpush.bf16.msra.mxu0 %v4660
    %6573 = vmatpush.bf16.msra.mxu0 %v4644
    %6574 = vmatpush.bf16.msra.mxu0 %v4628
    %6575 = vmatpush.bf16.msra.mxu0 %v4612
    %6576 = vmatpush.bf16.msra.mxu0 %v4596
    %6577 = vmatpush.bf16.msra.mxu0 %v4580
    %6578 = vmatpush.bf16.msra.mxu0 %v4564
    %6579 = vmatpush.bf16.msra.mxu0 %v4548
    %6580 = vmatmul.bf16.gmra.mxu0 %v180
    %v6581 = vpop.f32.mrf.mxu0
    %v6582 = vadd.f32 %v6569, %v6581
    %v6583 = vpop.f32.mrf.mxu0
    %6584 = vdwg.mxu0
    %6585 = vmatpush.bf16.msra.mxu0 %v4788
    %6586 = vmatpush.bf16.msra.mxu0 %v4772
    %6587 = vmatpush.bf16.msra.mxu0 %v4756
    %6588 = vmatpush.bf16.msra.mxu0 %v4740
    %6589 = vmatpush.bf16.msra.mxu0 %v4724
    %6590 = vmatpush.bf16.msra.mxu0 %v4708
    %6591 = vmatpush.bf16.msra.mxu0 %v4692
    %6592 = vmatpush.bf16.msra.mxu0 %v4676
    %6593 = vmatmul.bf16.gmra.mxu0 %v181
    %v6594 = vpop.f32.mrf.mxu0
    %v6595 = vadd.f32 %v6582, %v6594
    %v6596 = vpop.f32.mrf.mxu0
    %6597 = vdwg.mxu0
    %6598 = vmatpush.bf16.msra.mxu0 %v4916
    %6599 = vmatpush.bf16.msra.mxu0 %v4900
    %6600 = vmatpush.bf16.msra.mxu0 %v4884
    %6601 = vmatpush.bf16.msra.mxu0 %v4868
    %6602 = vmatpush.bf16.msra.mxu0 %v4852
    %6603 = vmatpush.bf16.msra.mxu0 %v4836
    %6604 = vmatpush.bf16.msra.mxu0 %v4820
    %6605 = vmatpush.bf16.msra.mxu0 %v4804
    %6606 = vmatmul.bf16.gmra.mxu0 %v182
    %v6607 = vpop.f32.mrf.mxu0
    %v6608 = vadd.f32 %v6595, %v6607
    %v6609 = vpop.f32.mrf.mxu0
    %6610 = vdwg.mxu0
    %6611 = vmatpush.bf16.msra.mxu0 %v5044
    %6612 = vmatpush.bf16.msra.mxu0 %v5028
    %6613 = vmatpush.bf16.msra.mxu0 %v5012
    %6614 = vmatpush.bf16.msra.mxu0 %v4996
    %6615 = vmatpush.bf16.msra.mxu0 %v4980
    %6616 = vmatpush.bf16.msra.mxu0 %v4964
    %6617 = vmatpush.bf16.msra.mxu0 %v4948
    %6618 = vmatpush.bf16.msra.mxu0 %v4932
    %6619 = vmatmul.bf16.gmra.mxu0 %v183
    %v6620 = vpop.f32.mrf.mxu0
    %v6621 = vadd.f32 %v6608, %v6620
    %v6622 = vpop.f32.mrf.mxu0
    %6623 = vdwg.mxu0
    %6624 = vmatpush.bf16.msra.mxu0 %v5172
    %6625 = vmatpush.bf16.msra.mxu0 %v5156
    %6626 = vmatpush.bf16.msra.mxu0 %v5140
    %6627 = vmatpush.bf16.msra.mxu0 %v5124
    %6628 = vmatpush.bf16.msra.mxu0 %v5108
    %6629 = vmatpush.bf16.msra.mxu0 %v5092
    %6630 = vmatpush.bf16.msra.mxu0 %v5076
    %6631 = vmatpush.bf16.msra.mxu0 %v5060
    %6632 = vmatmul.bf16.gmra.mxu0 %v184
    %v6633 = vpop.f32.mrf.mxu0
    %v6634 = vadd.f32 %v6621, %v6633
    %v6635 = vpop.f32.mrf.mxu0
    %6636 = vdwg.mxu0
    %6637 = vmatpush.bf16.msra.mxu0 %v5300
    %6638 = vmatpush.bf16.msra.mxu0 %v5284
    %6639 = vmatpush.bf16.msra.mxu0 %v5268
    %6640 = vmatpush.bf16.msra.mxu0 %v5252
    %6641 = vmatpush.bf16.msra.mxu0 %v5236
    %6642 = vmatpush.bf16.msra.mxu0 %v5220
    %6643 = vmatpush.bf16.msra.mxu0 %v5204
    %6644 = vmatpush.bf16.msra.mxu0 %v5188
    %6645 = vmatmul.bf16.gmra.mxu0 %v185
    %v6646 = vpop.f32.mrf.mxu0
    %v6647 = vadd.f32 %v6634, %v6646
    %v6648 = vpop.f32.mrf.mxu0
    %6649 = vdwg.mxu0
    %6650 = vmatpush.bf16.msra.mxu0 %v4405
    %6651 = vmatpush.bf16.msra.mxu0 %v4389
    %6652 = vmatpush.bf16.msra.mxu0 %v4373
    %6653 = vmatpush.bf16.msra.mxu0 %v4357
    %6654 = vmatpush.bf16.msra.mxu0 %v4341
    %6655 = vmatpush.bf16.msra.mxu0 %v4325
    %6656 = vmatpush.bf16.msra.mxu0 %v4309
    %6657 = vmatpush.bf16.msra.mxu0 %v4293
    %6658 = vmatmul.bf16.gmra.mxu0 %v178
    %v6659 = vpop.f32.mrf.mxu0
    %v6660 = vadd.f32 0.0, %v6659
    %v6661 = vpop.f32.mrf.mxu0
    %6662 = vdwg.mxu0
    %6663 = vmatpush.bf16.msra.mxu0 %v4533
    %6664 = vmatpush.bf16.msra.mxu0 %v4517
    %6665 = vmatpush.bf16.msra.mxu0 %v4501
    %6666 = vmatpush.bf16.msra.mxu0 %v4485
    %6667 = vmatpush.bf16.msra.mxu0 %v4469
    %6668 = vmatpush.bf16.msra.mxu0 %v4453
    %6669 = vmatpush.bf16.msra.mxu0 %v4437
    %6670 = vmatpush.bf16.msra.mxu0 %v4421
    %6671 = vmatmul.bf16.gmra.mxu0 %v179
    %v6672 = vpop.f32.mrf.mxu0
    %v6673 = vadd.f32 %v6660, %v6672
    %v6674 = vpop.f32.mrf.mxu0
    %6675 = vdwg.mxu0
    %6676 = vmatpush.bf16.msra.mxu0 %v4661
    %6677 = vmatpush.bf16.msra.mxu0 %v4645
    %6678 = vmatpush.bf16.msra.mxu0 %v4629
    %6679 = vmatpush.bf16.msra.mxu0 %v4613
    %6680 = vmatpush.bf16.msra.mxu0 %v4597
    %6681 = vmatpush.bf16.msra.mxu0 %v4581
    %6682 = vmatpush.bf16.msra.mxu0 %v4565
    %6683 = vmatpush.bf16.msra.mxu0 %v4549
    %6684 = vmatmul.bf16.gmra.mxu0 %v180
    %v6685 = vpop.f32.mrf.mxu0
    %v6686 = vadd.f32 %v6673, %v6685
    %v6687 = vpop.f32.mrf.mxu0
    %6688 = vdwg.mxu0
    %6689 = vmatpush.bf16.msra.mxu0 %v4789
    %6690 = vmatpush.bf16.msra.mxu0 %v4773
    %6691 = vmatpush.bf16.msra.mxu0 %v4757
    %6692 = vmatpush.bf16.msra.mxu0 %v4741
    %6693 = vmatpush.bf16.msra.mxu0 %v4725
    %6694 = vmatpush.bf16.msra.mxu0 %v4709
    %6695 = vmatpush.bf16.msra.mxu0 %v4693
    %6696 = vmatpush.bf16.msra.mxu0 %v4677
    %6697 = vmatmul.bf16.gmra.mxu0 %v181
    %v6698 = vpop.f32.mrf.mxu0
    %v6699 = vadd.f32 %v6686, %v6698
    %v6700 = vpop.f32.mrf.mxu0
    %6701 = vdwg.mxu0
    %6702 = vmatpush.bf16.msra.mxu0 %v4917
    %6703 = vmatpush.bf16.msra.mxu0 %v4901
    %6704 = vmatpush.bf16.msra.mxu0 %v4885
    %6705 = vmatpush.bf16.msra.mxu0 %v4869
    %6706 = vmatpush.bf16.msra.mxu0 %v4853
    %6707 = vmatpush.bf16.msra.mxu0 %v4837
    %6708 = vmatpush.bf16.msra.mxu0 %v4821
    %6709 = vmatpush.bf16.msra.mxu0 %v4805
    %6710 = vmatmul.bf16.gmra.mxu0 %v182
    %v6711 = vpop.f32.mrf.mxu0
    %v6712 = vadd.f32 %v6699, %v6711
    %v6713 = vpop.f32.mrf.mxu0
    %6714 = vdwg.mxu0
    %6715 = vmatpush.bf16.msra.mxu0 %v5045
    %6716 = vmatpush.bf16.msra.mxu0 %v5029
    %6717 = vmatpush.bf16.msra.mxu0 %v5013
    %6718 = vmatpush.bf16.msra.mxu0 %v4997
    %6719 = vmatpush.bf16.msra.mxu0 %v4981
    %6720 = vmatpush.bf16.msra.mxu0 %v4965
    %6721 = vmatpush.bf16.msra.mxu0 %v4949
    %6722 = vmatpush.bf16.msra.mxu0 %v4933
    %6723 = vmatmul.bf16.gmra.mxu0 %v183
    %v6724 = vpop.f32.mrf.mxu0
    %v6725 = vadd.f32 %v6712, %v6724
    %v6726 = vpop.f32.mrf.mxu0
    %6727 = vdwg.mxu0
    %6728 = vmatpush.bf16.msra.mxu0 %v5173
    %6729 = vmatpush.bf16.msra.mxu0 %v5157
    %6730 = vmatpush.bf16.msra.mxu0 %v5141
    %6731 = vmatpush.bf16.msra.mxu0 %v5125
    %6732 = vmatpush.bf16.msra.mxu0 %v5109
    %6733 = vmatpush.bf16.msra.mxu0 %v5093
    %6734 = vmatpush.bf16.msra.mxu0 %v5077
    %6735 = vmatpush.bf16.msra.mxu0 %v5061
    %6736 = vmatmul.bf16.gmra.mxu0 %v184
    %v6737 = vpop.f32.mrf.mxu0
    %v6738 = vadd.f32 %v6725, %v6737
    %v6739 = vpop.f32.mrf.mxu0
    %6740 = vdwg.mxu0
    %6741 = vmatpush.bf16.msra.mxu0 %v5301
    %6742 = vmatpush.bf16.msra.mxu0 %v5285
    %6743 = vmatpush.bf16.msra.mxu0 %v5269
    %6744 = vmatpush.bf16.msra.mxu0 %v5253
    %6745 = vmatpush.bf16.msra.mxu0 %v5237
    %6746 = vmatpush.bf16.msra.mxu0 %v5221
    %6747 = vmatpush.bf16.msra.mxu0 %v5205
    %6748 = vmatpush.bf16.msra.mxu0 %v5189
    %6749 = vmatmul.bf16.gmra.mxu0 %v185
    %v6750 = vpop.f32.mrf.mxu0
    %v6751 = vadd.f32 %v6738, %v6750
    %v6752 = vpop.f32.mrf.mxu0
    %6753 = vdwg.mxu0
    %6754 = vmatpush.bf16.msra.mxu0 %v4406
    %6755 = vmatpush.bf16.msra.mxu0 %v4390
    %6756 = vmatpush.bf16.msra.mxu0 %v4374
    %6757 = vmatpush.bf16.msra.mxu0 %v4358
    %6758 = vmatpush.bf16.msra.mxu0 %v4342
    %6759 = vmatpush.bf16.msra.mxu0 %v4326
    %6760 = vmatpush.bf16.msra.mxu0 %v4310
    %6761 = vmatpush.bf16.msra.mxu0 %v4294
    %6762 = vmatmul.bf16.gmra.mxu0 %v178
    %v6763 = vpop.f32.mrf.mxu0
    %v6764 = vadd.f32 0.0, %v6763
    %v6765 = vpop.f32.mrf.mxu0
    %6766 = vdwg.mxu0
    %6767 = vmatpush.bf16.msra.mxu0 %v4534
    %6768 = vmatpush.bf16.msra.mxu0 %v4518
    %6769 = vmatpush.bf16.msra.mxu0 %v4502
    %6770 = vmatpush.bf16.msra.mxu0 %v4486
    %6771 = vmatpush.bf16.msra.mxu0 %v4470
    %6772 = vmatpush.bf16.msra.mxu0 %v4454
    %6773 = vmatpush.bf16.msra.mxu0 %v4438
    %6774 = vmatpush.bf16.msra.mxu0 %v4422
    %6775 = vmatmul.bf16.gmra.mxu0 %v179
    %v6776 = vpop.f32.mrf.mxu0
    %v6777 = vadd.f32 %v6764, %v6776
    %v6778 = vpop.f32.mrf.mxu0
    %6779 = vdwg.mxu0
    %6780 = vmatpush.bf16.msra.mxu0 %v4662
    %6781 = vmatpush.bf16.msra.mxu0 %v4646
    %6782 = vmatpush.bf16.msra.mxu0 %v4630
    %6783 = vmatpush.bf16.msra.mxu0 %v4614
    %6784 = vmatpush.bf16.msra.mxu0 %v4598
    %6785 = vmatpush.bf16.msra.mxu0 %v4582
    %6786 = vmatpush.bf16.msra.mxu0 %v4566
    %6787 = vmatpush.bf16.msra.mxu0 %v4550
    %6788 = vmatmul.bf16.gmra.mxu0 %v180
    %v6789 = vpop.f32.mrf.mxu0
    %v6790 = vadd.f32 %v6777, %v6789
    %v6791 = vpop.f32.mrf.mxu0
    %6792 = vdwg.mxu0
    %6793 = vmatpush.bf16.msra.mxu0 %v4790
    %6794 = vmatpush.bf16.msra.mxu0 %v4774
    %6795 = vmatpush.bf16.msra.mxu0 %v4758
    %6796 = vmatpush.bf16.msra.mxu0 %v4742
    %6797 = vmatpush.bf16.msra.mxu0 %v4726
    %6798 = vmatpush.bf16.msra.mxu0 %v4710
    %6799 = vmatpush.bf16.msra.mxu0 %v4694
    %6800 = vmatpush.bf16.msra.mxu0 %v4678
    %6801 = vmatmul.bf16.gmra.mxu0 %v181
    %v6802 = vpop.f32.mrf.mxu0
    %v6803 = vadd.f32 %v6790, %v6802
    %v6804 = vpop.f32.mrf.mxu0
    %6805 = vdwg.mxu0
    %6806 = vmatpush.bf16.msra.mxu0 %v4918
    %6807 = vmatpush.bf16.msra.mxu0 %v4902
    %6808 = vmatpush.bf16.msra.mxu0 %v4886
    %6809 = vmatpush.bf16.msra.mxu0 %v4870
    %6810 = vmatpush.bf16.msra.mxu0 %v4854
    %6811 = vmatpush.bf16.msra.mxu0 %v4838
    %6812 = vmatpush.bf16.msra.mxu0 %v4822
    %6813 = vmatpush.bf16.msra.mxu0 %v4806
    %6814 = vmatmul.bf16.gmra.mxu0 %v182
    %v6815 = vpop.f32.mrf.mxu0
    %v6816 = vadd.f32 %v6803, %v6815
    %v6817 = vpop.f32.mrf.mxu0
    %6818 = vdwg.mxu0
    %6819 = vmatpush.bf16.msra.mxu0 %v5046
    %6820 = vmatpush.bf16.msra.mxu0 %v5030
    %6821 = vmatpush.bf16.msra.mxu0 %v5014
    %6822 = vmatpush.bf16.msra.mxu0 %v4998
    %6823 = vmatpush.bf16.msra.mxu0 %v4982
    %6824 = vmatpush.bf16.msra.mxu0 %v4966
    %6825 = vmatpush.bf16.msra.mxu0 %v4950
    %6826 = vmatpush.bf16.msra.mxu0 %v4934
    %6827 = vmatmul.bf16.gmra.mxu0 %v183
    %v6828 = vpop.f32.mrf.mxu0
    %v6829 = vadd.f32 %v6816, %v6828
    %v6830 = vpop.f32.mrf.mxu0
    %6831 = vdwg.mxu0
    %6832 = vmatpush.bf16.msra.mxu0 %v5174
    %6833 = vmatpush.bf16.msra.mxu0 %v5158
    %6834 = vmatpush.bf16.msra.mxu0 %v5142
    %6835 = vmatpush.bf16.msra.mxu0 %v5126
    %6836 = vmatpush.bf16.msra.mxu0 %v5110
    %6837 = vmatpush.bf16.msra.mxu0 %v5094
    %6838 = vmatpush.bf16.msra.mxu0 %v5078
    %6839 = vmatpush.bf16.msra.mxu0 %v5062
    %6840 = vmatmul.bf16.gmra.mxu0 %v184
    %v6841 = vpop.f32.mrf.mxu0
    %v6842 = vadd.f32 %v6829, %v6841
    %v6843 = vpop.f32.mrf.mxu0
    %6844 = vdwg.mxu0
    %6845 = vmatpush.bf16.msra.mxu0 %v5302
    %6846 = vmatpush.bf16.msra.mxu0 %v5286
    %6847 = vmatpush.bf16.msra.mxu0 %v5270
    %6848 = vmatpush.bf16.msra.mxu0 %v5254
    %6849 = vmatpush.bf16.msra.mxu0 %v5238
    %6850 = vmatpush.bf16.msra.mxu0 %v5222
    %6851 = vmatpush.bf16.msra.mxu0 %v5206
    %6852 = vmatpush.bf16.msra.mxu0 %v5190
    %6853 = vmatmul.bf16.gmra.mxu0 %v185
    %v6854 = vpop.f32.mrf.mxu0
    %v6855 = vadd.f32 %v6842, %v6854
    %v6856 = vpop.f32.mrf.mxu0
    %6857 = vdwg.mxu0
    %6858 = vmatpush.bf16.msra.mxu0 %v4407
    %6859 = vmatpush.bf16.msra.mxu0 %v4391
    %6860 = vmatpush.bf16.msra.mxu0 %v4375
    %6861 = vmatpush.bf16.msra.mxu0 %v4359
    %6862 = vmatpush.bf16.msra.mxu0 %v4343
    %6863 = vmatpush.bf16.msra.mxu0 %v4327
    %6864 = vmatpush.bf16.msra.mxu0 %v4311
    %6865 = vmatpush.bf16.msra.mxu0 %v4295
    %6866 = vmatmul.bf16.gmra.mxu0 %v178
    %v6867 = vpop.f32.mrf.mxu0
    %v6868 = vadd.f32 0.0, %v6867
    %v6869 = vpop.f32.mrf.mxu0
    %6870 = vdwg.mxu0
    %6871 = vmatpush.bf16.msra.mxu0 %v4535
    %6872 = vmatpush.bf16.msra.mxu0 %v4519
    %6873 = vmatpush.bf16.msra.mxu0 %v4503
    %6874 = vmatpush.bf16.msra.mxu0 %v4487
    %6875 = vmatpush.bf16.msra.mxu0 %v4471
    %6876 = vmatpush.bf16.msra.mxu0 %v4455
    %6877 = vmatpush.bf16.msra.mxu0 %v4439
    %6878 = vmatpush.bf16.msra.mxu0 %v4423
    %6879 = vmatmul.bf16.gmra.mxu0 %v179
    %v6880 = vpop.f32.mrf.mxu0
    %v6881 = vadd.f32 %v6868, %v6880
    %v6882 = vpop.f32.mrf.mxu0
    %6883 = vdwg.mxu0
    %6884 = vmatpush.bf16.msra.mxu0 %v4663
    %6885 = vmatpush.bf16.msra.mxu0 %v4647
    %6886 = vmatpush.bf16.msra.mxu0 %v4631
    %6887 = vmatpush.bf16.msra.mxu0 %v4615
    %6888 = vmatpush.bf16.msra.mxu0 %v4599
    %6889 = vmatpush.bf16.msra.mxu0 %v4583
    %6890 = vmatpush.bf16.msra.mxu0 %v4567
    %6891 = vmatpush.bf16.msra.mxu0 %v4551
    %6892 = vmatmul.bf16.gmra.mxu0 %v180
    %v6893 = vpop.f32.mrf.mxu0
    %v6894 = vadd.f32 %v6881, %v6893
    %v6895 = vpop.f32.mrf.mxu0
    %6896 = vdwg.mxu0
    %6897 = vmatpush.bf16.msra.mxu0 %v4791
    %6898 = vmatpush.bf16.msra.mxu0 %v4775
    %6899 = vmatpush.bf16.msra.mxu0 %v4759
    %6900 = vmatpush.bf16.msra.mxu0 %v4743
    %6901 = vmatpush.bf16.msra.mxu0 %v4727
    %6902 = vmatpush.bf16.msra.mxu0 %v4711
    %6903 = vmatpush.bf16.msra.mxu0 %v4695
    %6904 = vmatpush.bf16.msra.mxu0 %v4679
    %6905 = vmatmul.bf16.gmra.mxu0 %v181
    %v6906 = vpop.f32.mrf.mxu0
    %v6907 = vadd.f32 %v6894, %v6906
    %v6908 = vpop.f32.mrf.mxu0
    %6909 = vdwg.mxu0
    %6910 = vmatpush.bf16.msra.mxu0 %v4919
    %6911 = vmatpush.bf16.msra.mxu0 %v4903
    %6912 = vmatpush.bf16.msra.mxu0 %v4887
    %6913 = vmatpush.bf16.msra.mxu0 %v4871
    %6914 = vmatpush.bf16.msra.mxu0 %v4855
    %6915 = vmatpush.bf16.msra.mxu0 %v4839
    %6916 = vmatpush.bf16.msra.mxu0 %v4823
    %6917 = vmatpush.bf16.msra.mxu0 %v4807
    %6918 = vmatmul.bf16.gmra.mxu0 %v182
    %v6919 = vpop.f32.mrf.mxu0
    %v6920 = vadd.f32 %v6907, %v6919
    %v6921 = vpop.f32.mrf.mxu0
    %6922 = vdwg.mxu0
    %6923 = vmatpush.bf16.msra.mxu0 %v5047
    %6924 = vmatpush.bf16.msra.mxu0 %v5031
    %6925 = vmatpush.bf16.msra.mxu0 %v5015
    %6926 = vmatpush.bf16.msra.mxu0 %v4999
    %6927 = vmatpush.bf16.msra.mxu0 %v4983
    %6928 = vmatpush.bf16.msra.mxu0 %v4967
    %6929 = vmatpush.bf16.msra.mxu0 %v4951
    %6930 = vmatpush.bf16.msra.mxu0 %v4935
    %6931 = vmatmul.bf16.gmra.mxu0 %v183
    %v6932 = vpop.f32.mrf.mxu0
    %v6933 = vadd.f32 %v6920, %v6932
    %v6934 = vpop.f32.mrf.mxu0
    %6935 = vdwg.mxu0
    %6936 = vmatpush.bf16.msra.mxu0 %v5175
    %6937 = vmatpush.bf16.msra.mxu0 %v5159
    %6938 = vmatpush.bf16.msra.mxu0 %v5143
    %6939 = vmatpush.bf16.msra.mxu0 %v5127
    %6940 = vmatpush.bf16.msra.mxu0 %v5111
    %6941 = vmatpush.bf16.msra.mxu0 %v5095
    %6942 = vmatpush.bf16.msra.mxu0 %v5079
    %6943 = vmatpush.bf16.msra.mxu0 %v5063
    %6944 = vmatmul.bf16.gmra.mxu0 %v184
    %v6945 = vpop.f32.mrf.mxu0
    %v6946 = vadd.f32 %v6933, %v6945
    %v6947 = vpop.f32.mrf.mxu0
    %6948 = vdwg.mxu0
    %6949 = vmatpush.bf16.msra.mxu0 %v5303
    %6950 = vmatpush.bf16.msra.mxu0 %v5287
    %6951 = vmatpush.bf16.msra.mxu0 %v5271
    %6952 = vmatpush.bf16.msra.mxu0 %v5255
    %6953 = vmatpush.bf16.msra.mxu0 %v5239
    %6954 = vmatpush.bf16.msra.mxu0 %v5223
    %6955 = vmatpush.bf16.msra.mxu0 %v5207
    %6956 = vmatpush.bf16.msra.mxu0 %v5191
    %6957 = vmatmul.bf16.gmra.mxu0 %v185
    %v6958 = vpop.f32.mrf.mxu0
    %v6959 = vadd.f32 %v6946, %v6958
    %v6960 = vpop.f32.mrf.mxu0
    %6961 = vdwg.mxu0
    %6962 = vmatpush.bf16.msra.mxu0 %v4408
    %6963 = vmatpush.bf16.msra.mxu0 %v4392
    %6964 = vmatpush.bf16.msra.mxu0 %v4376
    %6965 = vmatpush.bf16.msra.mxu0 %v4360
    %6966 = vmatpush.bf16.msra.mxu0 %v4344
    %6967 = vmatpush.bf16.msra.mxu0 %v4328
    %6968 = vmatpush.bf16.msra.mxu0 %v4312
    %6969 = vmatpush.bf16.msra.mxu0 %v4296
    %6970 = vmatmul.bf16.gmra.mxu0 %v178
    %v6971 = vpop.f32.mrf.mxu0
    %v6972 = vadd.f32 0.0, %v6971
    %v6973 = vpop.f32.mrf.mxu0
    %6974 = vdwg.mxu0
    %6975 = vmatpush.bf16.msra.mxu0 %v4536
    %6976 = vmatpush.bf16.msra.mxu0 %v4520
    %6977 = vmatpush.bf16.msra.mxu0 %v4504
    %6978 = vmatpush.bf16.msra.mxu0 %v4488
    %6979 = vmatpush.bf16.msra.mxu0 %v4472
    %6980 = vmatpush.bf16.msra.mxu0 %v4456
    %6981 = vmatpush.bf16.msra.mxu0 %v4440
    %6982 = vmatpush.bf16.msra.mxu0 %v4424
    %6983 = vmatmul.bf16.gmra.mxu0 %v179
    %v6984 = vpop.f32.mrf.mxu0
    %v6985 = vadd.f32 %v6972, %v6984
    %v6986 = vpop.f32.mrf.mxu0
    %6987 = vdwg.mxu0
    %6988 = vmatpush.bf16.msra.mxu0 %v4664
    %6989 = vmatpush.bf16.msra.mxu0 %v4648
    %6990 = vmatpush.bf16.msra.mxu0 %v4632
    %6991 = vmatpush.bf16.msra.mxu0 %v4616
    %6992 = vmatpush.bf16.msra.mxu0 %v4600
    %6993 = vmatpush.bf16.msra.mxu0 %v4584
    %6994 = vmatpush.bf16.msra.mxu0 %v4568
    %6995 = vmatpush.bf16.msra.mxu0 %v4552
    %6996 = vmatmul.bf16.gmra.mxu0 %v180
    %v6997 = vpop.f32.mrf.mxu0
    %v6998 = vadd.f32 %v6985, %v6997
    %v6999 = vpop.f32.mrf.mxu0
    %7000 = vdwg.mxu0
    %7001 = vmatpush.bf16.msra.mxu0 %v4792
    %7002 = vmatpush.bf16.msra.mxu0 %v4776
    %7003 = vmatpush.bf16.msra.mxu0 %v4760
    %7004 = vmatpush.bf16.msra.mxu0 %v4744
    %7005 = vmatpush.bf16.msra.mxu0 %v4728
    %7006 = vmatpush.bf16.msra.mxu0 %v4712
    %7007 = vmatpush.bf16.msra.mxu0 %v4696
    %7008 = vmatpush.bf16.msra.mxu0 %v4680
    %7009 = vmatmul.bf16.gmra.mxu0 %v181
    %v7010 = vpop.f32.mrf.mxu0
    %v7011 = vadd.f32 %v6998, %v7010
    %v7012 = vpop.f32.mrf.mxu0
    %7013 = vdwg.mxu0
    %7014 = vmatpush.bf16.msra.mxu0 %v4920
    %7015 = vmatpush.bf16.msra.mxu0 %v4904
    %7016 = vmatpush.bf16.msra.mxu0 %v4888
    %7017 = vmatpush.bf16.msra.mxu0 %v4872
    %7018 = vmatpush.bf16.msra.mxu0 %v4856
    %7019 = vmatpush.bf16.msra.mxu0 %v4840
    %7020 = vmatpush.bf16.msra.mxu0 %v4824
    %7021 = vmatpush.bf16.msra.mxu0 %v4808
    %7022 = vmatmul.bf16.gmra.mxu0 %v182
    %v7023 = vpop.f32.mrf.mxu0
    %v7024 = vadd.f32 %v7011, %v7023
    %v7025 = vpop.f32.mrf.mxu0
    %7026 = vdwg.mxu0
    %7027 = vmatpush.bf16.msra.mxu0 %v5048
    %7028 = vmatpush.bf16.msra.mxu0 %v5032
    %7029 = vmatpush.bf16.msra.mxu0 %v5016
    %7030 = vmatpush.bf16.msra.mxu0 %v5000
    %7031 = vmatpush.bf16.msra.mxu0 %v4984
    %7032 = vmatpush.bf16.msra.mxu0 %v4968
    %7033 = vmatpush.bf16.msra.mxu0 %v4952
    %7034 = vmatpush.bf16.msra.mxu0 %v4936
    %7035 = vmatmul.bf16.gmra.mxu0 %v183
    %v7036 = vpop.f32.mrf.mxu0
    %v7037 = vadd.f32 %v7024, %v7036
    %v7038 = vpop.f32.mrf.mxu0
    %7039 = vdwg.mxu0
    %7040 = vmatpush.bf16.msra.mxu0 %v5176
    %7041 = vmatpush.bf16.msra.mxu0 %v5160
    %7042 = vmatpush.bf16.msra.mxu0 %v5144
    %7043 = vmatpush.bf16.msra.mxu0 %v5128
    %7044 = vmatpush.bf16.msra.mxu0 %v5112
    %7045 = vmatpush.bf16.msra.mxu0 %v5096
    %7046 = vmatpush.bf16.msra.mxu0 %v5080
    %7047 = vmatpush.bf16.msra.mxu0 %v5064
    %7048 = vmatmul.bf16.gmra.mxu0 %v184
    %v7049 = vpop.f32.mrf.mxu0
    %v7050 = vadd.f32 %v7037, %v7049
    %v7051 = vpop.f32.mrf.mxu0
    %7052 = vdwg.mxu0
    %7053 = vmatpush.bf16.msra.mxu0 %v5304
    %7054 = vmatpush.bf16.msra.mxu0 %v5288
    %7055 = vmatpush.bf16.msra.mxu0 %v5272
    %7056 = vmatpush.bf16.msra.mxu0 %v5256
    %7057 = vmatpush.bf16.msra.mxu0 %v5240
    %7058 = vmatpush.bf16.msra.mxu0 %v5224
    %7059 = vmatpush.bf16.msra.mxu0 %v5208
    %7060 = vmatpush.bf16.msra.mxu0 %v5192
    %7061 = vmatmul.bf16.gmra.mxu0 %v185
    %v7062 = vpop.f32.mrf.mxu0
    %v7063 = vadd.f32 %v7050, %v7062
    %v7064 = vpop.f32.mrf.mxu0
    %7065 = vdwg.mxu0
    %7066 = vmatpush.bf16.msra.mxu0 %v4409
    %7067 = vmatpush.bf16.msra.mxu0 %v4393
    %7068 = vmatpush.bf16.msra.mxu0 %v4377
    %7069 = vmatpush.bf16.msra.mxu0 %v4361
    %7070 = vmatpush.bf16.msra.mxu0 %v4345
    %7071 = vmatpush.bf16.msra.mxu0 %v4329
    %7072 = vmatpush.bf16.msra.mxu0 %v4313
    %7073 = vmatpush.bf16.msra.mxu0 %v4297
    %7074 = vmatmul.bf16.gmra.mxu0 %v178
    %v7075 = vpop.f32.mrf.mxu0
    %v7076 = vadd.f32 0.0, %v7075
    %v7077 = vpop.f32.mrf.mxu0
    %7078 = vdwg.mxu0
    %7079 = vmatpush.bf16.msra.mxu0 %v4537
    %7080 = vmatpush.bf16.msra.mxu0 %v4521
    %7081 = vmatpush.bf16.msra.mxu0 %v4505
    %7082 = vmatpush.bf16.msra.mxu0 %v4489
    %7083 = vmatpush.bf16.msra.mxu0 %v4473
    %7084 = vmatpush.bf16.msra.mxu0 %v4457
    %7085 = vmatpush.bf16.msra.mxu0 %v4441
    %7086 = vmatpush.bf16.msra.mxu0 %v4425
    %7087 = vmatmul.bf16.gmra.mxu0 %v179
    %v7088 = vpop.f32.mrf.mxu0
    %v7089 = vadd.f32 %v7076, %v7088
    %v7090 = vpop.f32.mrf.mxu0
    %7091 = vdwg.mxu0
    %7092 = vmatpush.bf16.msra.mxu0 %v4665
    %7093 = vmatpush.bf16.msra.mxu0 %v4649
    %7094 = vmatpush.bf16.msra.mxu0 %v4633
    %7095 = vmatpush.bf16.msra.mxu0 %v4617
    %7096 = vmatpush.bf16.msra.mxu0 %v4601
    %7097 = vmatpush.bf16.msra.mxu0 %v4585
    %7098 = vmatpush.bf16.msra.mxu0 %v4569
    %7099 = vmatpush.bf16.msra.mxu0 %v4553
    %7100 = vmatmul.bf16.gmra.mxu0 %v180
    %v7101 = vpop.f32.mrf.mxu0
    %v7102 = vadd.f32 %v7089, %v7101
    %v7103 = vpop.f32.mrf.mxu0
    %7104 = vdwg.mxu0
    %7105 = vmatpush.bf16.msra.mxu0 %v4793
    %7106 = vmatpush.bf16.msra.mxu0 %v4777
    %7107 = vmatpush.bf16.msra.mxu0 %v4761
    %7108 = vmatpush.bf16.msra.mxu0 %v4745
    %7109 = vmatpush.bf16.msra.mxu0 %v4729
    %7110 = vmatpush.bf16.msra.mxu0 %v4713
    %7111 = vmatpush.bf16.msra.mxu0 %v4697
    %7112 = vmatpush.bf16.msra.mxu0 %v4681
    %7113 = vmatmul.bf16.gmra.mxu0 %v181
    %v7114 = vpop.f32.mrf.mxu0
    %v7115 = vadd.f32 %v7102, %v7114
    %v7116 = vpop.f32.mrf.mxu0
    %7117 = vdwg.mxu0
    %7118 = vmatpush.bf16.msra.mxu0 %v4921
    %7119 = vmatpush.bf16.msra.mxu0 %v4905
    %7120 = vmatpush.bf16.msra.mxu0 %v4889
    %7121 = vmatpush.bf16.msra.mxu0 %v4873
    %7122 = vmatpush.bf16.msra.mxu0 %v4857
    %7123 = vmatpush.bf16.msra.mxu0 %v4841
    %7124 = vmatpush.bf16.msra.mxu0 %v4825
    %7125 = vmatpush.bf16.msra.mxu0 %v4809
    %7126 = vmatmul.bf16.gmra.mxu0 %v182
    %v7127 = vpop.f32.mrf.mxu0
    %v7128 = vadd.f32 %v7115, %v7127
    %v7129 = vpop.f32.mrf.mxu0
    %7130 = vdwg.mxu0
    %7131 = vmatpush.bf16.msra.mxu0 %v5049
    %7132 = vmatpush.bf16.msra.mxu0 %v5033
    %7133 = vmatpush.bf16.msra.mxu0 %v5017
    %7134 = vmatpush.bf16.msra.mxu0 %v5001
    %7135 = vmatpush.bf16.msra.mxu0 %v4985
    %7136 = vmatpush.bf16.msra.mxu0 %v4969
    %7137 = vmatpush.bf16.msra.mxu0 %v4953
    %7138 = vmatpush.bf16.msra.mxu0 %v4937
    %7139 = vmatmul.bf16.gmra.mxu0 %v183
    %v7140 = vpop.f32.mrf.mxu0
    %v7141 = vadd.f32 %v7128, %v7140
    %v7142 = vpop.f32.mrf.mxu0
    %7143 = vdwg.mxu0
    %7144 = vmatpush.bf16.msra.mxu0 %v5177
    %7145 = vmatpush.bf16.msra.mxu0 %v5161
    %7146 = vmatpush.bf16.msra.mxu0 %v5145
    %7147 = vmatpush.bf16.msra.mxu0 %v5129
    %7148 = vmatpush.bf16.msra.mxu0 %v5113
    %7149 = vmatpush.bf16.msra.mxu0 %v5097
    %7150 = vmatpush.bf16.msra.mxu0 %v5081
    %7151 = vmatpush.bf16.msra.mxu0 %v5065
    %7152 = vmatmul.bf16.gmra.mxu0 %v184
    %v7153 = vpop.f32.mrf.mxu0
    %v7154 = vadd.f32 %v7141, %v7153
    %v7155 = vpop.f32.mrf.mxu0
    %7156 = vdwg.mxu0
    %7157 = vmatpush.bf16.msra.mxu0 %v5305
    %7158 = vmatpush.bf16.msra.mxu0 %v5289
    %7159 = vmatpush.bf16.msra.mxu0 %v5273
    %7160 = vmatpush.bf16.msra.mxu0 %v5257
    %7161 = vmatpush.bf16.msra.mxu0 %v5241
    %7162 = vmatpush.bf16.msra.mxu0 %v5225
    %7163 = vmatpush.bf16.msra.mxu0 %v5209
    %7164 = vmatpush.bf16.msra.mxu0 %v5193
    %7165 = vmatmul.bf16.gmra.mxu0 %v185
    %v7166 = vpop.f32.mrf.mxu0
    %v7167 = vadd.f32 %v7154, %v7166
    %v7168 = vpop.f32.mrf.mxu0
    %7169 = vdwg.mxu0
    %7170 = vmatpush.bf16.msra.mxu0 %v4410
    %7171 = vmatpush.bf16.msra.mxu0 %v4394
    %7172 = vmatpush.bf16.msra.mxu0 %v4378
    %7173 = vmatpush.bf16.msra.mxu0 %v4362
    %7174 = vmatpush.bf16.msra.mxu0 %v4346
    %7175 = vmatpush.bf16.msra.mxu0 %v4330
    %7176 = vmatpush.bf16.msra.mxu0 %v4314
    %7177 = vmatpush.bf16.msra.mxu0 %v4298
    %7178 = vmatmul.bf16.gmra.mxu0 %v178
    %v7179 = vpop.f32.mrf.mxu0
    %v7180 = vadd.f32 0.0, %v7179
    %v7181 = vpop.f32.mrf.mxu0
    %7182 = vdwg.mxu0
    %7183 = vmatpush.bf16.msra.mxu0 %v4538
    %7184 = vmatpush.bf16.msra.mxu0 %v4522
    %7185 = vmatpush.bf16.msra.mxu0 %v4506
    %7186 = vmatpush.bf16.msra.mxu0 %v4490
    %7187 = vmatpush.bf16.msra.mxu0 %v4474
    %7188 = vmatpush.bf16.msra.mxu0 %v4458
    %7189 = vmatpush.bf16.msra.mxu0 %v4442
    %7190 = vmatpush.bf16.msra.mxu0 %v4426
    %7191 = vmatmul.bf16.gmra.mxu0 %v179
    %v7192 = vpop.f32.mrf.mxu0
    %v7193 = vadd.f32 %v7180, %v7192
    %v7194 = vpop.f32.mrf.mxu0
    %7195 = vdwg.mxu0
    %7196 = vmatpush.bf16.msra.mxu0 %v4666
    %7197 = vmatpush.bf16.msra.mxu0 %v4650
    %7198 = vmatpush.bf16.msra.mxu0 %v4634
    %7199 = vmatpush.bf16.msra.mxu0 %v4618
    %7200 = vmatpush.bf16.msra.mxu0 %v4602
    %7201 = vmatpush.bf16.msra.mxu0 %v4586
    %7202 = vmatpush.bf16.msra.mxu0 %v4570
    %7203 = vmatpush.bf16.msra.mxu0 %v4554
    %7204 = vmatmul.bf16.gmra.mxu0 %v180
    %v7205 = vpop.f32.mrf.mxu0
    %v7206 = vadd.f32 %v7193, %v7205
    %v7207 = vpop.f32.mrf.mxu0
    %7208 = vdwg.mxu0
    %7209 = vmatpush.bf16.msra.mxu0 %v4794
    %7210 = vmatpush.bf16.msra.mxu0 %v4778
    %7211 = vmatpush.bf16.msra.mxu0 %v4762
    %7212 = vmatpush.bf16.msra.mxu0 %v4746
    %7213 = vmatpush.bf16.msra.mxu0 %v4730
    %7214 = vmatpush.bf16.msra.mxu0 %v4714
    %7215 = vmatpush.bf16.msra.mxu0 %v4698
    %7216 = vmatpush.bf16.msra.mxu0 %v4682
    %7217 = vmatmul.bf16.gmra.mxu0 %v181
    %v7218 = vpop.f32.mrf.mxu0
    %v7219 = vadd.f32 %v7206, %v7218
    %v7220 = vpop.f32.mrf.mxu0
    %7221 = vdwg.mxu0
    %7222 = vmatpush.bf16.msra.mxu0 %v4922
    %7223 = vmatpush.bf16.msra.mxu0 %v4906
    %7224 = vmatpush.bf16.msra.mxu0 %v4890
    %7225 = vmatpush.bf16.msra.mxu0 %v4874
    %7226 = vmatpush.bf16.msra.mxu0 %v4858
    %7227 = vmatpush.bf16.msra.mxu0 %v4842
    %7228 = vmatpush.bf16.msra.mxu0 %v4826
    %7229 = vmatpush.bf16.msra.mxu0 %v4810
    %7230 = vmatmul.bf16.gmra.mxu0 %v182
    %v7231 = vpop.f32.mrf.mxu0
    %v7232 = vadd.f32 %v7219, %v7231
    %v7233 = vpop.f32.mrf.mxu0
    %7234 = vdwg.mxu0
    %7235 = vmatpush.bf16.msra.mxu0 %v5050
    %7236 = vmatpush.bf16.msra.mxu0 %v5034
    %7237 = vmatpush.bf16.msra.mxu0 %v5018
    %7238 = vmatpush.bf16.msra.mxu0 %v5002
    %7239 = vmatpush.bf16.msra.mxu0 %v4986
    %7240 = vmatpush.bf16.msra.mxu0 %v4970
    %7241 = vmatpush.bf16.msra.mxu0 %v4954
    %7242 = vmatpush.bf16.msra.mxu0 %v4938
    %7243 = vmatmul.bf16.gmra.mxu0 %v183
    %v7244 = vpop.f32.mrf.mxu0
    %v7245 = vadd.f32 %v7232, %v7244
    %v7246 = vpop.f32.mrf.mxu0
    %7247 = vdwg.mxu0
    %7248 = vmatpush.bf16.msra.mxu0 %v5178
    %7249 = vmatpush.bf16.msra.mxu0 %v5162
    %7250 = vmatpush.bf16.msra.mxu0 %v5146
    %7251 = vmatpush.bf16.msra.mxu0 %v5130
    %7252 = vmatpush.bf16.msra.mxu0 %v5114
    %7253 = vmatpush.bf16.msra.mxu0 %v5098
    %7254 = vmatpush.bf16.msra.mxu0 %v5082
    %7255 = vmatpush.bf16.msra.mxu0 %v5066
    %7256 = vmatmul.bf16.gmra.mxu0 %v184
    %v7257 = vpop.f32.mrf.mxu0
    %v7258 = vadd.f32 %v7245, %v7257
    %v7259 = vpop.f32.mrf.mxu0
    %7260 = vdwg.mxu0
    %7261 = vmatpush.bf16.msra.mxu0 %v5306
    %7262 = vmatpush.bf16.msra.mxu0 %v5290
    %7263 = vmatpush.bf16.msra.mxu0 %v5274
    %7264 = vmatpush.bf16.msra.mxu0 %v5258
    %7265 = vmatpush.bf16.msra.mxu0 %v5242
    %7266 = vmatpush.bf16.msra.mxu0 %v5226
    %7267 = vmatpush.bf16.msra.mxu0 %v5210
    %7268 = vmatpush.bf16.msra.mxu0 %v5194
    %7269 = vmatmul.bf16.gmra.mxu0 %v185
    %v7270 = vpop.f32.mrf.mxu0
    %v7271 = vadd.f32 %v7258, %v7270
    %v7272 = vpop.f32.mrf.mxu0
    %7273 = vdwg.mxu0
    %7274 = vmatpush.bf16.msra.mxu0 %v4411
    %7275 = vmatpush.bf16.msra.mxu0 %v4395
    %7276 = vmatpush.bf16.msra.mxu0 %v4379
    %7277 = vmatpush.bf16.msra.mxu0 %v4363
    %7278 = vmatpush.bf16.msra.mxu0 %v4347
    %7279 = vmatpush.bf16.msra.mxu0 %v4331
    %7280 = vmatpush.bf16.msra.mxu0 %v4315
    %7281 = vmatpush.bf16.msra.mxu0 %v4299
    %7282 = vmatmul.bf16.gmra.mxu0 %v178
    %v7283 = vpop.f32.mrf.mxu0
    %v7284 = vadd.f32 0.0, %v7283
    %v7285 = vpop.f32.mrf.mxu0
    %7286 = vdwg.mxu0
    %7287 = vmatpush.bf16.msra.mxu0 %v4539
    %7288 = vmatpush.bf16.msra.mxu0 %v4523
    %7289 = vmatpush.bf16.msra.mxu0 %v4507
    %7290 = vmatpush.bf16.msra.mxu0 %v4491
    %7291 = vmatpush.bf16.msra.mxu0 %v4475
    %7292 = vmatpush.bf16.msra.mxu0 %v4459
    %7293 = vmatpush.bf16.msra.mxu0 %v4443
    %7294 = vmatpush.bf16.msra.mxu0 %v4427
    %7295 = vmatmul.bf16.gmra.mxu0 %v179
    %v7296 = vpop.f32.mrf.mxu0
    %v7297 = vadd.f32 %v7284, %v7296
    %v7298 = vpop.f32.mrf.mxu0
    %7299 = vdwg.mxu0
    %7300 = vmatpush.bf16.msra.mxu0 %v4667
    %7301 = vmatpush.bf16.msra.mxu0 %v4651
    %7302 = vmatpush.bf16.msra.mxu0 %v4635
    %7303 = vmatpush.bf16.msra.mxu0 %v4619
    %7304 = vmatpush.bf16.msra.mxu0 %v4603
    %7305 = vmatpush.bf16.msra.mxu0 %v4587
    %7306 = vmatpush.bf16.msra.mxu0 %v4571
    %7307 = vmatpush.bf16.msra.mxu0 %v4555
    %7308 = vmatmul.bf16.gmra.mxu0 %v180
    %v7309 = vpop.f32.mrf.mxu0
    %v7310 = vadd.f32 %v7297, %v7309
    %v7311 = vpop.f32.mrf.mxu0
    %7312 = vdwg.mxu0
    %7313 = vmatpush.bf16.msra.mxu0 %v4795
    %7314 = vmatpush.bf16.msra.mxu0 %v4779
    %7315 = vmatpush.bf16.msra.mxu0 %v4763
    %7316 = vmatpush.bf16.msra.mxu0 %v4747
    %7317 = vmatpush.bf16.msra.mxu0 %v4731
    %7318 = vmatpush.bf16.msra.mxu0 %v4715
    %7319 = vmatpush.bf16.msra.mxu0 %v4699
    %7320 = vmatpush.bf16.msra.mxu0 %v4683
    %7321 = vmatmul.bf16.gmra.mxu0 %v181
    %v7322 = vpop.f32.mrf.mxu0
    %v7323 = vadd.f32 %v7310, %v7322
    %v7324 = vpop.f32.mrf.mxu0
    %7325 = vdwg.mxu0
    %7326 = vmatpush.bf16.msra.mxu0 %v4923
    %7327 = vmatpush.bf16.msra.mxu0 %v4907
    %7328 = vmatpush.bf16.msra.mxu0 %v4891
    %7329 = vmatpush.bf16.msra.mxu0 %v4875
    %7330 = vmatpush.bf16.msra.mxu0 %v4859
    %7331 = vmatpush.bf16.msra.mxu0 %v4843
    %7332 = vmatpush.bf16.msra.mxu0 %v4827
    %7333 = vmatpush.bf16.msra.mxu0 %v4811
    %7334 = vmatmul.bf16.gmra.mxu0 %v182
    %v7335 = vpop.f32.mrf.mxu0
    %v7336 = vadd.f32 %v7323, %v7335
    %v7337 = vpop.f32.mrf.mxu0
    %7338 = vdwg.mxu0
    %7339 = vmatpush.bf16.msra.mxu0 %v5051
    %7340 = vmatpush.bf16.msra.mxu0 %v5035
    %7341 = vmatpush.bf16.msra.mxu0 %v5019
    %7342 = vmatpush.bf16.msra.mxu0 %v5003
    %7343 = vmatpush.bf16.msra.mxu0 %v4987
    %7344 = vmatpush.bf16.msra.mxu0 %v4971
    %7345 = vmatpush.bf16.msra.mxu0 %v4955
    %7346 = vmatpush.bf16.msra.mxu0 %v4939
    %7347 = vmatmul.bf16.gmra.mxu0 %v183
    %v7348 = vpop.f32.mrf.mxu0
    %v7349 = vadd.f32 %v7336, %v7348
    %v7350 = vpop.f32.mrf.mxu0
    %7351 = vdwg.mxu0
    %7352 = vmatpush.bf16.msra.mxu0 %v5179
    %7353 = vmatpush.bf16.msra.mxu0 %v5163
    %7354 = vmatpush.bf16.msra.mxu0 %v5147
    %7355 = vmatpush.bf16.msra.mxu0 %v5131
    %7356 = vmatpush.bf16.msra.mxu0 %v5115
    %7357 = vmatpush.bf16.msra.mxu0 %v5099
    %7358 = vmatpush.bf16.msra.mxu0 %v5083
    %7359 = vmatpush.bf16.msra.mxu0 %v5067
    %7360 = vmatmul.bf16.gmra.mxu0 %v184
    %v7361 = vpop.f32.mrf.mxu0
    %v7362 = vadd.f32 %v7349, %v7361
    %v7363 = vpop.f32.mrf.mxu0
    %7364 = vdwg.mxu0
    %7365 = vmatpush.bf16.msra.mxu0 %v5307
    %7366 = vmatpush.bf16.msra.mxu0 %v5291
    %7367 = vmatpush.bf16.msra.mxu0 %v5275
    %7368 = vmatpush.bf16.msra.mxu0 %v5259
    %7369 = vmatpush.bf16.msra.mxu0 %v5243
    %7370 = vmatpush.bf16.msra.mxu0 %v5227
    %7371 = vmatpush.bf16.msra.mxu0 %v5211
    %7372 = vmatpush.bf16.msra.mxu0 %v5195
    %7373 = vmatmul.bf16.gmra.mxu0 %v185
    %v7374 = vpop.f32.mrf.mxu0
    %v7375 = vadd.f32 %v7362, %v7374
    %v7376 = vpop.f32.mrf.mxu0
    %7377 = vdwg.mxu0
    %7378 = vmatpush.bf16.msra.mxu0 %v4412
    %7379 = vmatpush.bf16.msra.mxu0 %v4396
    %7380 = vmatpush.bf16.msra.mxu0 %v4380
    %7381 = vmatpush.bf16.msra.mxu0 %v4364
    %7382 = vmatpush.bf16.msra.mxu0 %v4348
    %7383 = vmatpush.bf16.msra.mxu0 %v4332
    %7384 = vmatpush.bf16.msra.mxu0 %v4316
    %7385 = vmatpush.bf16.msra.mxu0 %v4300
    %7386 = vmatmul.bf16.gmra.mxu0 %v178
    %v7387 = vpop.f32.mrf.mxu0
    %v7388 = vadd.f32 0.0, %v7387
    %v7389 = vpop.f32.mrf.mxu0
    %7390 = vdwg.mxu0
    %7391 = vmatpush.bf16.msra.mxu0 %v4540
    %7392 = vmatpush.bf16.msra.mxu0 %v4524
    %7393 = vmatpush.bf16.msra.mxu0 %v4508
    %7394 = vmatpush.bf16.msra.mxu0 %v4492
    %7395 = vmatpush.bf16.msra.mxu0 %v4476
    %7396 = vmatpush.bf16.msra.mxu0 %v4460
    %7397 = vmatpush.bf16.msra.mxu0 %v4444
    %7398 = vmatpush.bf16.msra.mxu0 %v4428
    %7399 = vmatmul.bf16.gmra.mxu0 %v179
    %v7400 = vpop.f32.mrf.mxu0
    %v7401 = vadd.f32 %v7388, %v7400
    %v7402 = vpop.f32.mrf.mxu0
    %7403 = vdwg.mxu0
    %7404 = vmatpush.bf16.msra.mxu0 %v4668
    %7405 = vmatpush.bf16.msra.mxu0 %v4652
    %7406 = vmatpush.bf16.msra.mxu0 %v4636
    %7407 = vmatpush.bf16.msra.mxu0 %v4620
    %7408 = vmatpush.bf16.msra.mxu0 %v4604
    %7409 = vmatpush.bf16.msra.mxu0 %v4588
    %7410 = vmatpush.bf16.msra.mxu0 %v4572
    %7411 = vmatpush.bf16.msra.mxu0 %v4556
    %7412 = vmatmul.bf16.gmra.mxu0 %v180
    %v7413 = vpop.f32.mrf.mxu0
    %v7414 = vadd.f32 %v7401, %v7413
    %v7415 = vpop.f32.mrf.mxu0
    %7416 = vdwg.mxu0
    %7417 = vmatpush.bf16.msra.mxu0 %v4796
    %7418 = vmatpush.bf16.msra.mxu0 %v4780
    %7419 = vmatpush.bf16.msra.mxu0 %v4764
    %7420 = vmatpush.bf16.msra.mxu0 %v4748
    %7421 = vmatpush.bf16.msra.mxu0 %v4732
    %7422 = vmatpush.bf16.msra.mxu0 %v4716
    %7423 = vmatpush.bf16.msra.mxu0 %v4700
    %7424 = vmatpush.bf16.msra.mxu0 %v4684
    %7425 = vmatmul.bf16.gmra.mxu0 %v181
    %v7426 = vpop.f32.mrf.mxu0
    %v7427 = vadd.f32 %v7414, %v7426
    %v7428 = vpop.f32.mrf.mxu0
    %7429 = vdwg.mxu0
    %7430 = vmatpush.bf16.msra.mxu0 %v4924
    %7431 = vmatpush.bf16.msra.mxu0 %v4908
    %7432 = vmatpush.bf16.msra.mxu0 %v4892
    %7433 = vmatpush.bf16.msra.mxu0 %v4876
    %7434 = vmatpush.bf16.msra.mxu0 %v4860
    %7435 = vmatpush.bf16.msra.mxu0 %v4844
    %7436 = vmatpush.bf16.msra.mxu0 %v4828
    %7437 = vmatpush.bf16.msra.mxu0 %v4812
    %7438 = vmatmul.bf16.gmra.mxu0 %v182
    %v7439 = vpop.f32.mrf.mxu0
    %v7440 = vadd.f32 %v7427, %v7439
    %v7441 = vpop.f32.mrf.mxu0
    %7442 = vdwg.mxu0
    %7443 = vmatpush.bf16.msra.mxu0 %v5052
    %7444 = vmatpush.bf16.msra.mxu0 %v5036
    %7445 = vmatpush.bf16.msra.mxu0 %v5020
    %7446 = vmatpush.bf16.msra.mxu0 %v5004
    %7447 = vmatpush.bf16.msra.mxu0 %v4988
    %7448 = vmatpush.bf16.msra.mxu0 %v4972
    %7449 = vmatpush.bf16.msra.mxu0 %v4956
    %7450 = vmatpush.bf16.msra.mxu0 %v4940
    %7451 = vmatmul.bf16.gmra.mxu0 %v183
    %v7452 = vpop.f32.mrf.mxu0
    %v7453 = vadd.f32 %v7440, %v7452
    %v7454 = vpop.f32.mrf.mxu0
    %7455 = vdwg.mxu0
    %7456 = vmatpush.bf16.msra.mxu0 %v5180
    %7457 = vmatpush.bf16.msra.mxu0 %v5164
    %7458 = vmatpush.bf16.msra.mxu0 %v5148
    %7459 = vmatpush.bf16.msra.mxu0 %v5132
    %7460 = vmatpush.bf16.msra.mxu0 %v5116
    %7461 = vmatpush.bf16.msra.mxu0 %v5100
    %7462 = vmatpush.bf16.msra.mxu0 %v5084
    %7463 = vmatpush.bf16.msra.mxu0 %v5068
    %7464 = vmatmul.bf16.gmra.mxu0 %v184
    %v7465 = vpop.f32.mrf.mxu0
    %v7466 = vadd.f32 %v7453, %v7465
    %v7467 = vpop.f32.mrf.mxu0
    %7468 = vdwg.mxu0
    %7469 = vmatpush.bf16.msra.mxu0 %v5308
    %7470 = vmatpush.bf16.msra.mxu0 %v5292
    %7471 = vmatpush.bf16.msra.mxu0 %v5276
    %7472 = vmatpush.bf16.msra.mxu0 %v5260
    %7473 = vmatpush.bf16.msra.mxu0 %v5244
    %7474 = vmatpush.bf16.msra.mxu0 %v5228
    %7475 = vmatpush.bf16.msra.mxu0 %v5212
    %7476 = vmatpush.bf16.msra.mxu0 %v5196
    %7477 = vmatmul.bf16.gmra.mxu0 %v185
    %v7478 = vpop.f32.mrf.mxu0
    %v7479 = vadd.f32 %v7466, %v7478
    %v7480 = vpop.f32.mrf.mxu0
    %7481 = vdwg.mxu0
    %7482 = vmatpush.bf16.msra.mxu0 %v4413
    %7483 = vmatpush.bf16.msra.mxu0 %v4397
    %7484 = vmatpush.bf16.msra.mxu0 %v4381
    %7485 = vmatpush.bf16.msra.mxu0 %v4365
    %7486 = vmatpush.bf16.msra.mxu0 %v4349
    %7487 = vmatpush.bf16.msra.mxu0 %v4333
    %7488 = vmatpush.bf16.msra.mxu0 %v4317
    %7489 = vmatpush.bf16.msra.mxu0 %v4301
    %7490 = vmatmul.bf16.gmra.mxu0 %v178
    %v7491 = vpop.f32.mrf.mxu0
    %v7492 = vadd.f32 0.0, %v7491
    %v7493 = vpop.f32.mrf.mxu0
    %7494 = vdwg.mxu0
    %7495 = vmatpush.bf16.msra.mxu0 %v4541
    %7496 = vmatpush.bf16.msra.mxu0 %v4525
    %7497 = vmatpush.bf16.msra.mxu0 %v4509
    %7498 = vmatpush.bf16.msra.mxu0 %v4493
    %7499 = vmatpush.bf16.msra.mxu0 %v4477
    %7500 = vmatpush.bf16.msra.mxu0 %v4461
    %7501 = vmatpush.bf16.msra.mxu0 %v4445
    %7502 = vmatpush.bf16.msra.mxu0 %v4429
    %7503 = vmatmul.bf16.gmra.mxu0 %v179
    %v7504 = vpop.f32.mrf.mxu0
    %v7505 = vadd.f32 %v7492, %v7504
    %v7506 = vpop.f32.mrf.mxu0
    %7507 = vdwg.mxu0
    %7508 = vmatpush.bf16.msra.mxu0 %v4669
    %7509 = vmatpush.bf16.msra.mxu0 %v4653
    %7510 = vmatpush.bf16.msra.mxu0 %v4637
    %7511 = vmatpush.bf16.msra.mxu0 %v4621
    %7512 = vmatpush.bf16.msra.mxu0 %v4605
    %7513 = vmatpush.bf16.msra.mxu0 %v4589
    %7514 = vmatpush.bf16.msra.mxu0 %v4573
    %7515 = vmatpush.bf16.msra.mxu0 %v4557
    %7516 = vmatmul.bf16.gmra.mxu0 %v180
    %v7517 = vpop.f32.mrf.mxu0
    %v7518 = vadd.f32 %v7505, %v7517
    %v7519 = vpop.f32.mrf.mxu0
    %7520 = vdwg.mxu0
    %7521 = vmatpush.bf16.msra.mxu0 %v4797
    %7522 = vmatpush.bf16.msra.mxu0 %v4781
    %7523 = vmatpush.bf16.msra.mxu0 %v4765
    %7524 = vmatpush.bf16.msra.mxu0 %v4749
    %7525 = vmatpush.bf16.msra.mxu0 %v4733
    %7526 = vmatpush.bf16.msra.mxu0 %v4717
    %7527 = vmatpush.bf16.msra.mxu0 %v4701
    %7528 = vmatpush.bf16.msra.mxu0 %v4685
    %7529 = vmatmul.bf16.gmra.mxu0 %v181
    %v7530 = vpop.f32.mrf.mxu0
    %v7531 = vadd.f32 %v7518, %v7530
    %v7532 = vpop.f32.mrf.mxu0
    %7533 = vdwg.mxu0
    %7534 = vmatpush.bf16.msra.mxu0 %v4925
    %7535 = vmatpush.bf16.msra.mxu0 %v4909
    %7536 = vmatpush.bf16.msra.mxu0 %v4893
    %7537 = vmatpush.bf16.msra.mxu0 %v4877
    %7538 = vmatpush.bf16.msra.mxu0 %v4861
    %7539 = vmatpush.bf16.msra.mxu0 %v4845
    %7540 = vmatpush.bf16.msra.mxu0 %v4829
    %7541 = vmatpush.bf16.msra.mxu0 %v4813
    %7542 = vmatmul.bf16.gmra.mxu0 %v182
    %v7543 = vpop.f32.mrf.mxu0
    %v7544 = vadd.f32 %v7531, %v7543
    %v7545 = vpop.f32.mrf.mxu0
    %7546 = vdwg.mxu0
    %7547 = vmatpush.bf16.msra.mxu0 %v5053
    %7548 = vmatpush.bf16.msra.mxu0 %v5037
    %7549 = vmatpush.bf16.msra.mxu0 %v5021
    %7550 = vmatpush.bf16.msra.mxu0 %v5005
    %7551 = vmatpush.bf16.msra.mxu0 %v4989
    %7552 = vmatpush.bf16.msra.mxu0 %v4973
    %7553 = vmatpush.bf16.msra.mxu0 %v4957
    %7554 = vmatpush.bf16.msra.mxu0 %v4941
    %7555 = vmatmul.bf16.gmra.mxu0 %v183
    %v7556 = vpop.f32.mrf.mxu0
    %v7557 = vadd.f32 %v7544, %v7556
    %v7558 = vpop.f32.mrf.mxu0
    %7559 = vdwg.mxu0
    %7560 = vmatpush.bf16.msra.mxu0 %v5181
    %7561 = vmatpush.bf16.msra.mxu0 %v5165
    %7562 = vmatpush.bf16.msra.mxu0 %v5149
    %7563 = vmatpush.bf16.msra.mxu0 %v5133
    %7564 = vmatpush.bf16.msra.mxu0 %v5117
    %7565 = vmatpush.bf16.msra.mxu0 %v5101
    %7566 = vmatpush.bf16.msra.mxu0 %v5085
    %7567 = vmatpush.bf16.msra.mxu0 %v5069
    %7568 = vmatmul.bf16.gmra.mxu0 %v184
    %v7569 = vpop.f32.mrf.mxu0
    %v7570 = vadd.f32 %v7557, %v7569
    %v7571 = vpop.f32.mrf.mxu0
    %7572 = vdwg.mxu0
    %7573 = vmatpush.bf16.msra.mxu0 %v5309
    %7574 = vmatpush.bf16.msra.mxu0 %v5293
    %7575 = vmatpush.bf16.msra.mxu0 %v5277
    %7576 = vmatpush.bf16.msra.mxu0 %v5261
    %7577 = vmatpush.bf16.msra.mxu0 %v5245
    %7578 = vmatpush.bf16.msra.mxu0 %v5229
    %7579 = vmatpush.bf16.msra.mxu0 %v5213
    %7580 = vmatpush.bf16.msra.mxu0 %v5197
    %7581 = vmatmul.bf16.gmra.mxu0 %v185
    %v7582 = vpop.f32.mrf.mxu0
    %v7583 = vadd.f32 %v7570, %v7582
    %v7584 = vpop.f32.mrf.mxu0
    %7585 = vdwg.mxu0
    %7586 = vmatpush.bf16.msra.mxu0 %v4414
    %7587 = vmatpush.bf16.msra.mxu0 %v4398
    %7588 = vmatpush.bf16.msra.mxu0 %v4382
    %7589 = vmatpush.bf16.msra.mxu0 %v4366
    %7590 = vmatpush.bf16.msra.mxu0 %v4350
    %7591 = vmatpush.bf16.msra.mxu0 %v4334
    %7592 = vmatpush.bf16.msra.mxu0 %v4318
    %7593 = vmatpush.bf16.msra.mxu0 %v4302
    %7594 = vmatmul.bf16.gmra.mxu0 %v178
    %v7595 = vpop.f32.mrf.mxu0
    %v7596 = vadd.f32 0.0, %v7595
    %v7597 = vpop.f32.mrf.mxu0
    %7598 = vdwg.mxu0
    %7599 = vmatpush.bf16.msra.mxu0 %v4542
    %7600 = vmatpush.bf16.msra.mxu0 %v4526
    %7601 = vmatpush.bf16.msra.mxu0 %v4510
    %7602 = vmatpush.bf16.msra.mxu0 %v4494
    %7603 = vmatpush.bf16.msra.mxu0 %v4478
    %7604 = vmatpush.bf16.msra.mxu0 %v4462
    %7605 = vmatpush.bf16.msra.mxu0 %v4446
    %7606 = vmatpush.bf16.msra.mxu0 %v4430
    %7607 = vmatmul.bf16.gmra.mxu0 %v179
    %v7608 = vpop.f32.mrf.mxu0
    %v7609 = vadd.f32 %v7596, %v7608
    %v7610 = vpop.f32.mrf.mxu0
    %7611 = vdwg.mxu0
    %7612 = vmatpush.bf16.msra.mxu0 %v4670
    %7613 = vmatpush.bf16.msra.mxu0 %v4654
    %7614 = vmatpush.bf16.msra.mxu0 %v4638
    %7615 = vmatpush.bf16.msra.mxu0 %v4622
    %7616 = vmatpush.bf16.msra.mxu0 %v4606
    %7617 = vmatpush.bf16.msra.mxu0 %v4590
    %7618 = vmatpush.bf16.msra.mxu0 %v4574
    %7619 = vmatpush.bf16.msra.mxu0 %v4558
    %7620 = vmatmul.bf16.gmra.mxu0 %v180
    %v7621 = vpop.f32.mrf.mxu0
    %v7622 = vadd.f32 %v7609, %v7621
    %v7623 = vpop.f32.mrf.mxu0
    %7624 = vdwg.mxu0
    %7625 = vmatpush.bf16.msra.mxu0 %v4798
    %7626 = vmatpush.bf16.msra.mxu0 %v4782
    %7627 = vmatpush.bf16.msra.mxu0 %v4766
    %7628 = vmatpush.bf16.msra.mxu0 %v4750
    %7629 = vmatpush.bf16.msra.mxu0 %v4734
    %7630 = vmatpush.bf16.msra.mxu0 %v4718
    %7631 = vmatpush.bf16.msra.mxu0 %v4702
    %7632 = vmatpush.bf16.msra.mxu0 %v4686
    %7633 = vmatmul.bf16.gmra.mxu0 %v181
    %v7634 = vpop.f32.mrf.mxu0
    %v7635 = vadd.f32 %v7622, %v7634
    %v7636 = vpop.f32.mrf.mxu0
    %7637 = vdwg.mxu0
    %7638 = vmatpush.bf16.msra.mxu0 %v4926
    %7639 = vmatpush.bf16.msra.mxu0 %v4910
    %7640 = vmatpush.bf16.msra.mxu0 %v4894
    %7641 = vmatpush.bf16.msra.mxu0 %v4878
    %7642 = vmatpush.bf16.msra.mxu0 %v4862
    %7643 = vmatpush.bf16.msra.mxu0 %v4846
    %7644 = vmatpush.bf16.msra.mxu0 %v4830
    %7645 = vmatpush.bf16.msra.mxu0 %v4814
    %7646 = vmatmul.bf16.gmra.mxu0 %v182
    %v7647 = vpop.f32.mrf.mxu0
    %v7648 = vadd.f32 %v7635, %v7647
    %v7649 = vpop.f32.mrf.mxu0
    %7650 = vdwg.mxu0
    %7651 = vmatpush.bf16.msra.mxu0 %v5054
    %7652 = vmatpush.bf16.msra.mxu0 %v5038
    %7653 = vmatpush.bf16.msra.mxu0 %v5022
    %7654 = vmatpush.bf16.msra.mxu0 %v5006
    %7655 = vmatpush.bf16.msra.mxu0 %v4990
    %7656 = vmatpush.bf16.msra.mxu0 %v4974
    %7657 = vmatpush.bf16.msra.mxu0 %v4958
    %7658 = vmatpush.bf16.msra.mxu0 %v4942
    %7659 = vmatmul.bf16.gmra.mxu0 %v183
    %v7660 = vpop.f32.mrf.mxu0
    %v7661 = vadd.f32 %v7648, %v7660
    %v7662 = vpop.f32.mrf.mxu0
    %7663 = vdwg.mxu0
    %7664 = vmatpush.bf16.msra.mxu0 %v5182
    %7665 = vmatpush.bf16.msra.mxu0 %v5166
    %7666 = vmatpush.bf16.msra.mxu0 %v5150
    %7667 = vmatpush.bf16.msra.mxu0 %v5134
    %7668 = vmatpush.bf16.msra.mxu0 %v5118
    %7669 = vmatpush.bf16.msra.mxu0 %v5102
    %7670 = vmatpush.bf16.msra.mxu0 %v5086
    %7671 = vmatpush.bf16.msra.mxu0 %v5070
    %7672 = vmatmul.bf16.gmra.mxu0 %v184
    %v7673 = vpop.f32.mrf.mxu0
    %v7674 = vadd.f32 %v7661, %v7673
    %v7675 = vpop.f32.mrf.mxu0
    %7676 = vdwg.mxu0
    %7677 = vmatpush.bf16.msra.mxu0 %v5310
    %7678 = vmatpush.bf16.msra.mxu0 %v5294
    %7679 = vmatpush.bf16.msra.mxu0 %v5278
    %7680 = vmatpush.bf16.msra.mxu0 %v5262
    %7681 = vmatpush.bf16.msra.mxu0 %v5246
    %7682 = vmatpush.bf16.msra.mxu0 %v5230
    %7683 = vmatpush.bf16.msra.mxu0 %v5214
    %7684 = vmatpush.bf16.msra.mxu0 %v5198
    %7685 = vmatmul.bf16.gmra.mxu0 %v185
    %v7686 = vpop.f32.mrf.mxu0
    %v7687 = vadd.f32 %v7674, %v7686
    %v7688 = vpop.f32.mrf.mxu0
    %7689 = vdwg.mxu0
    %7690 = vmatpush.bf16.msra.mxu0 %v4415
    %7691 = vmatpush.bf16.msra.mxu0 %v4399
    %7692 = vmatpush.bf16.msra.mxu0 %v4383
    %7693 = vmatpush.bf16.msra.mxu0 %v4367
    %7694 = vmatpush.bf16.msra.mxu0 %v4351
    %7695 = vmatpush.bf16.msra.mxu0 %v4335
    %7696 = vmatpush.bf16.msra.mxu0 %v4319
    %7697 = vmatpush.bf16.msra.mxu0 %v4303
    %7698 = vmatmul.bf16.gmra.mxu0 %v178
    %v7699 = vpop.f32.mrf.mxu0
    %v7700 = vadd.f32 0.0, %v7699
    %v7701 = vpop.f32.mrf.mxu0
    %7702 = vdwg.mxu0
    %7703 = vmatpush.bf16.msra.mxu0 %v4543
    %7704 = vmatpush.bf16.msra.mxu0 %v4527
    %7705 = vmatpush.bf16.msra.mxu0 %v4511
    %7706 = vmatpush.bf16.msra.mxu0 %v4495
    %7707 = vmatpush.bf16.msra.mxu0 %v4479
    %7708 = vmatpush.bf16.msra.mxu0 %v4463
    %7709 = vmatpush.bf16.msra.mxu0 %v4447
    %7710 = vmatpush.bf16.msra.mxu0 %v4431
    %7711 = vmatmul.bf16.gmra.mxu0 %v179
    %v7712 = vpop.f32.mrf.mxu0
    %v7713 = vadd.f32 %v7700, %v7712
    %v7714 = vpop.f32.mrf.mxu0
    %7715 = vdwg.mxu0
    %7716 = vmatpush.bf16.msra.mxu0 %v4671
    %7717 = vmatpush.bf16.msra.mxu0 %v4655
    %7718 = vmatpush.bf16.msra.mxu0 %v4639
    %7719 = vmatpush.bf16.msra.mxu0 %v4623
    %7720 = vmatpush.bf16.msra.mxu0 %v4607
    %7721 = vmatpush.bf16.msra.mxu0 %v4591
    %7722 = vmatpush.bf16.msra.mxu0 %v4575
    %7723 = vmatpush.bf16.msra.mxu0 %v4559
    %7724 = vmatmul.bf16.gmra.mxu0 %v180
    %v7725 = vpop.f32.mrf.mxu0
    %v7726 = vadd.f32 %v7713, %v7725
    %v7727 = vpop.f32.mrf.mxu0
    %7728 = vdwg.mxu0
    %7729 = vmatpush.bf16.msra.mxu0 %v4799
    %7730 = vmatpush.bf16.msra.mxu0 %v4783
    %7731 = vmatpush.bf16.msra.mxu0 %v4767
    %7732 = vmatpush.bf16.msra.mxu0 %v4751
    %7733 = vmatpush.bf16.msra.mxu0 %v4735
    %7734 = vmatpush.bf16.msra.mxu0 %v4719
    %7735 = vmatpush.bf16.msra.mxu0 %v4703
    %7736 = vmatpush.bf16.msra.mxu0 %v4687
    %7737 = vmatmul.bf16.gmra.mxu0 %v181
    %v7738 = vpop.f32.mrf.mxu0
    %v7739 = vadd.f32 %v7726, %v7738
    %v7740 = vpop.f32.mrf.mxu0
    %7741 = vdwg.mxu0
    %7742 = vmatpush.bf16.msra.mxu0 %v4927
    %7743 = vmatpush.bf16.msra.mxu0 %v4911
    %7744 = vmatpush.bf16.msra.mxu0 %v4895
    %7745 = vmatpush.bf16.msra.mxu0 %v4879
    %7746 = vmatpush.bf16.msra.mxu0 %v4863
    %7747 = vmatpush.bf16.msra.mxu0 %v4847
    %7748 = vmatpush.bf16.msra.mxu0 %v4831
    %7749 = vmatpush.bf16.msra.mxu0 %v4815
    %7750 = vmatmul.bf16.gmra.mxu0 %v182
    %v7751 = vpop.f32.mrf.mxu0
    %v7752 = vadd.f32 %v7739, %v7751
    %v7753 = vpop.f32.mrf.mxu0
    %7754 = vdwg.mxu0
    %7755 = vmatpush.bf16.msra.mxu0 %v5055
    %7756 = vmatpush.bf16.msra.mxu0 %v5039
    %7757 = vmatpush.bf16.msra.mxu0 %v5023
    %7758 = vmatpush.bf16.msra.mxu0 %v5007
    %7759 = vmatpush.bf16.msra.mxu0 %v4991
    %7760 = vmatpush.bf16.msra.mxu0 %v4975
    %7761 = vmatpush.bf16.msra.mxu0 %v4959
    %7762 = vmatpush.bf16.msra.mxu0 %v4943
    %7763 = vmatmul.bf16.gmra.mxu0 %v183
    %v7764 = vpop.f32.mrf.mxu0
    %v7765 = vadd.f32 %v7752, %v7764
    %v7766 = vpop.f32.mrf.mxu0
    %7767 = vdwg.mxu0
    %7768 = vmatpush.bf16.msra.mxu0 %v5183
    %7769 = vmatpush.bf16.msra.mxu0 %v5167
    %7770 = vmatpush.bf16.msra.mxu0 %v5151
    %7771 = vmatpush.bf16.msra.mxu0 %v5135
    %7772 = vmatpush.bf16.msra.mxu0 %v5119
    %7773 = vmatpush.bf16.msra.mxu0 %v5103
    %7774 = vmatpush.bf16.msra.mxu0 %v5087
    %7775 = vmatpush.bf16.msra.mxu0 %v5071
    %7776 = vmatmul.bf16.gmra.mxu0 %v184
    %v7777 = vpop.f32.mrf.mxu0
    %v7778 = vadd.f32 %v7765, %v7777
    %v7779 = vpop.f32.mrf.mxu0
    %7780 = vdwg.mxu0
    %7781 = vmatpush.bf16.msra.mxu0 %v5311
    %7782 = vmatpush.bf16.msra.mxu0 %v5295
    %7783 = vmatpush.bf16.msra.mxu0 %v5279
    %7784 = vmatpush.bf16.msra.mxu0 %v5263
    %7785 = vmatpush.bf16.msra.mxu0 %v5247
    %7786 = vmatpush.bf16.msra.mxu0 %v5231
    %7787 = vmatpush.bf16.msra.mxu0 %v5215
    %7788 = vmatpush.bf16.msra.mxu0 %v5199
    %7789 = vmatmul.bf16.gmra.mxu0 %v185
    %v7790 = vpop.f32.mrf.mxu0
    %v7791 = vadd.f32 %v7778, %v7790
    %v7792 = vpop.f32.mrf.mxu0
    %7793 = vdwg.mxu0
    %7794 = vmatpush.bf16.msra.mxu0 %v4416
    %7795 = vmatpush.bf16.msra.mxu0 %v4400
    %7796 = vmatpush.bf16.msra.mxu0 %v4384
    %7797 = vmatpush.bf16.msra.mxu0 %v4368
    %7798 = vmatpush.bf16.msra.mxu0 %v4352
    %7799 = vmatpush.bf16.msra.mxu0 %v4336
    %7800 = vmatpush.bf16.msra.mxu0 %v4320
    %7801 = vmatpush.bf16.msra.mxu0 %v4304
    %7802 = vmatmul.bf16.gmra.mxu0 %v178
    %v7803 = vpop.f32.mrf.mxu0
    %v7804 = vadd.f32 0.0, %v7803
    %v7805 = vpop.f32.mrf.mxu0
    %7806 = vdwg.mxu0
    %7807 = vmatpush.bf16.msra.mxu0 %v4544
    %7808 = vmatpush.bf16.msra.mxu0 %v4528
    %7809 = vmatpush.bf16.msra.mxu0 %v4512
    %7810 = vmatpush.bf16.msra.mxu0 %v4496
    %7811 = vmatpush.bf16.msra.mxu0 %v4480
    %7812 = vmatpush.bf16.msra.mxu0 %v4464
    %7813 = vmatpush.bf16.msra.mxu0 %v4448
    %7814 = vmatpush.bf16.msra.mxu0 %v4432
    %7815 = vmatmul.bf16.gmra.mxu0 %v179
    %v7816 = vpop.f32.mrf.mxu0
    %v7817 = vadd.f32 %v7804, %v7816
    %v7818 = vpop.f32.mrf.mxu0
    %7819 = vdwg.mxu0
    %7820 = vmatpush.bf16.msra.mxu0 %v4672
    %7821 = vmatpush.bf16.msra.mxu0 %v4656
    %7822 = vmatpush.bf16.msra.mxu0 %v4640
    %7823 = vmatpush.bf16.msra.mxu0 %v4624
    %7824 = vmatpush.bf16.msra.mxu0 %v4608
    %7825 = vmatpush.bf16.msra.mxu0 %v4592
    %7826 = vmatpush.bf16.msra.mxu0 %v4576
    %7827 = vmatpush.bf16.msra.mxu0 %v4560
    %7828 = vmatmul.bf16.gmra.mxu0 %v180
    %v7829 = vpop.f32.mrf.mxu0
    %v7830 = vadd.f32 %v7817, %v7829
    %v7831 = vpop.f32.mrf.mxu0
    %7832 = vdwg.mxu0
    %7833 = vmatpush.bf16.msra.mxu0 %v4800
    %7834 = vmatpush.bf16.msra.mxu0 %v4784
    %7835 = vmatpush.bf16.msra.mxu0 %v4768
    %7836 = vmatpush.bf16.msra.mxu0 %v4752
    %7837 = vmatpush.bf16.msra.mxu0 %v4736
    %7838 = vmatpush.bf16.msra.mxu0 %v4720
    %7839 = vmatpush.bf16.msra.mxu0 %v4704
    %7840 = vmatpush.bf16.msra.mxu0 %v4688
    %7841 = vmatmul.bf16.gmra.mxu0 %v181
    %v7842 = vpop.f32.mrf.mxu0
    %v7843 = vadd.f32 %v7830, %v7842
    %v7844 = vpop.f32.mrf.mxu0
    %7845 = vdwg.mxu0
    %7846 = vmatpush.bf16.msra.mxu0 %v4928
    %7847 = vmatpush.bf16.msra.mxu0 %v4912
    %7848 = vmatpush.bf16.msra.mxu0 %v4896
    %7849 = vmatpush.bf16.msra.mxu0 %v4880
    %7850 = vmatpush.bf16.msra.mxu0 %v4864
    %7851 = vmatpush.bf16.msra.mxu0 %v4848
    %7852 = vmatpush.bf16.msra.mxu0 %v4832
    %7853 = vmatpush.bf16.msra.mxu0 %v4816
    %7854 = vmatmul.bf16.gmra.mxu0 %v182
    %v7855 = vpop.f32.mrf.mxu0
    %v7856 = vadd.f32 %v7843, %v7855
    %v7857 = vpop.f32.mrf.mxu0
    %7858 = vdwg.mxu0
    %7859 = vmatpush.bf16.msra.mxu0 %v5056
    %7860 = vmatpush.bf16.msra.mxu0 %v5040
    %7861 = vmatpush.bf16.msra.mxu0 %v5024
    %7862 = vmatpush.bf16.msra.mxu0 %v5008
    %7863 = vmatpush.bf16.msra.mxu0 %v4992
    %7864 = vmatpush.bf16.msra.mxu0 %v4976
    %7865 = vmatpush.bf16.msra.mxu0 %v4960
    %7866 = vmatpush.bf16.msra.mxu0 %v4944
    %7867 = vmatmul.bf16.gmra.mxu0 %v183
    %v7868 = vpop.f32.mrf.mxu0
    %v7869 = vadd.f32 %v7856, %v7868
    %v7870 = vpop.f32.mrf.mxu0
    %7871 = vdwg.mxu0
    %7872 = vmatpush.bf16.msra.mxu0 %v5184
    %7873 = vmatpush.bf16.msra.mxu0 %v5168
    %7874 = vmatpush.bf16.msra.mxu0 %v5152
    %7875 = vmatpush.bf16.msra.mxu0 %v5136
    %7876 = vmatpush.bf16.msra.mxu0 %v5120
    %7877 = vmatpush.bf16.msra.mxu0 %v5104
    %7878 = vmatpush.bf16.msra.mxu0 %v5088
    %7879 = vmatpush.bf16.msra.mxu0 %v5072
    %7880 = vmatmul.bf16.gmra.mxu0 %v184
    %v7881 = vpop.f32.mrf.mxu0
    %v7882 = vadd.f32 %v7869, %v7881
    %v7883 = vpop.f32.mrf.mxu0
    %7884 = vdwg.mxu0
    %7885 = vmatpush.bf16.msra.mxu0 %v5312
    %7886 = vmatpush.bf16.msra.mxu0 %v5296
    %7887 = vmatpush.bf16.msra.mxu0 %v5280
    %7888 = vmatpush.bf16.msra.mxu0 %v5264
    %7889 = vmatpush.bf16.msra.mxu0 %v5248
    %7890 = vmatpush.bf16.msra.mxu0 %v5232
    %7891 = vmatpush.bf16.msra.mxu0 %v5216
    %7892 = vmatpush.bf16.msra.mxu0 %v5200
    %7893 = vmatmul.bf16.gmra.mxu0 %v185
    %v7894 = vpop.f32.mrf.mxu0
    %v7895 = vadd.f32 %v7882, %v7894
    %v7896 = vpop.f32.mrf.mxu0
    %7897 = vdwg.mxu0
    %7898 = vmatpush.bf16.msra.mxu0 %v4417
    %7899 = vmatpush.bf16.msra.mxu0 %v4401
    %7900 = vmatpush.bf16.msra.mxu0 %v4385
    %7901 = vmatpush.bf16.msra.mxu0 %v4369
    %7902 = vmatpush.bf16.msra.mxu0 %v4353
    %7903 = vmatpush.bf16.msra.mxu0 %v4337
    %7904 = vmatpush.bf16.msra.mxu0 %v4321
    %7905 = vmatpush.bf16.msra.mxu0 %v4305
    %7906 = vmatmul.bf16.gmra.mxu0 %v178
    %v7907 = vpop.f32.mrf.mxu0
    %v7908 = vadd.f32 0.0, %v7907
    %v7909 = vpop.f32.mrf.mxu0
    %7910 = vdwg.mxu0
    %7911 = vmatpush.bf16.msra.mxu0 %v4545
    %7912 = vmatpush.bf16.msra.mxu0 %v4529
    %7913 = vmatpush.bf16.msra.mxu0 %v4513
    %7914 = vmatpush.bf16.msra.mxu0 %v4497
    %7915 = vmatpush.bf16.msra.mxu0 %v4481
    %7916 = vmatpush.bf16.msra.mxu0 %v4465
    %7917 = vmatpush.bf16.msra.mxu0 %v4449
    %7918 = vmatpush.bf16.msra.mxu0 %v4433
    %7919 = vmatmul.bf16.gmra.mxu0 %v179
    %v7920 = vpop.f32.mrf.mxu0
    %v7921 = vadd.f32 %v7908, %v7920
    %v7922 = vpop.f32.mrf.mxu0
    %7923 = vdwg.mxu0
    %7924 = vmatpush.bf16.msra.mxu0 %v4673
    %7925 = vmatpush.bf16.msra.mxu0 %v4657
    %7926 = vmatpush.bf16.msra.mxu0 %v4641
    %7927 = vmatpush.bf16.msra.mxu0 %v4625
    %7928 = vmatpush.bf16.msra.mxu0 %v4609
    %7929 = vmatpush.bf16.msra.mxu0 %v4593
    %7930 = vmatpush.bf16.msra.mxu0 %v4577
    %7931 = vmatpush.bf16.msra.mxu0 %v4561
    %7932 = vmatmul.bf16.gmra.mxu0 %v180
    %v7933 = vpop.f32.mrf.mxu0
    %v7934 = vadd.f32 %v7921, %v7933
    %v7935 = vpop.f32.mrf.mxu0
    %7936 = vdwg.mxu0
    %7937 = vmatpush.bf16.msra.mxu0 %v4801
    %7938 = vmatpush.bf16.msra.mxu0 %v4785
    %7939 = vmatpush.bf16.msra.mxu0 %v4769
    %7940 = vmatpush.bf16.msra.mxu0 %v4753
    %7941 = vmatpush.bf16.msra.mxu0 %v4737
    %7942 = vmatpush.bf16.msra.mxu0 %v4721
    %7943 = vmatpush.bf16.msra.mxu0 %v4705
    %7944 = vmatpush.bf16.msra.mxu0 %v4689
    %7945 = vmatmul.bf16.gmra.mxu0 %v181
    %v7946 = vpop.f32.mrf.mxu0
    %v7947 = vadd.f32 %v7934, %v7946
    %v7948 = vpop.f32.mrf.mxu0
    %7949 = vdwg.mxu0
    %7950 = vmatpush.bf16.msra.mxu0 %v4929
    %7951 = vmatpush.bf16.msra.mxu0 %v4913
    %7952 = vmatpush.bf16.msra.mxu0 %v4897
    %7953 = vmatpush.bf16.msra.mxu0 %v4881
    %7954 = vmatpush.bf16.msra.mxu0 %v4865
    %7955 = vmatpush.bf16.msra.mxu0 %v4849
    %7956 = vmatpush.bf16.msra.mxu0 %v4833
    %7957 = vmatpush.bf16.msra.mxu0 %v4817
    %7958 = vmatmul.bf16.gmra.mxu0 %v182
    %v7959 = vpop.f32.mrf.mxu0
    %v7960 = vadd.f32 %v7947, %v7959
    %v7961 = vpop.f32.mrf.mxu0
    %7962 = vdwg.mxu0
    %7963 = vmatpush.bf16.msra.mxu0 %v5057
    %7964 = vmatpush.bf16.msra.mxu0 %v5041
    %7965 = vmatpush.bf16.msra.mxu0 %v5025
    %7966 = vmatpush.bf16.msra.mxu0 %v5009
    %7967 = vmatpush.bf16.msra.mxu0 %v4993
    %7968 = vmatpush.bf16.msra.mxu0 %v4977
    %7969 = vmatpush.bf16.msra.mxu0 %v4961
    %7970 = vmatpush.bf16.msra.mxu0 %v4945
    %7971 = vmatmul.bf16.gmra.mxu0 %v183
    %v7972 = vpop.f32.mrf.mxu0
    %v7973 = vadd.f32 %v7960, %v7972
    %v7974 = vpop.f32.mrf.mxu0
    %7975 = vdwg.mxu0
    %7976 = vmatpush.bf16.msra.mxu0 %v5185
    %7977 = vmatpush.bf16.msra.mxu0 %v5169
    %7978 = vmatpush.bf16.msra.mxu0 %v5153
    %7979 = vmatpush.bf16.msra.mxu0 %v5137
    %7980 = vmatpush.bf16.msra.mxu0 %v5121
    %7981 = vmatpush.bf16.msra.mxu0 %v5105
    %7982 = vmatpush.bf16.msra.mxu0 %v5089
    %7983 = vmatpush.bf16.msra.mxu0 %v5073
    %7984 = vmatmul.bf16.gmra.mxu0 %v184
    %v7985 = vpop.f32.mrf.mxu0
    %v7986 = vadd.f32 %v7973, %v7985
    %v7987 = vpop.f32.mrf.mxu0
    %7988 = vdwg.mxu0
    %7989 = vmatpush.bf16.msra.mxu0 %v5313
    %7990 = vmatpush.bf16.msra.mxu0 %v5297
    %7991 = vmatpush.bf16.msra.mxu0 %v5281
    %7992 = vmatpush.bf16.msra.mxu0 %v5265
    %7993 = vmatpush.bf16.msra.mxu0 %v5249
    %7994 = vmatpush.bf16.msra.mxu0 %v5233
    %7995 = vmatpush.bf16.msra.mxu0 %v5217
    %7996 = vmatpush.bf16.msra.mxu0 %v5201
    %7997 = vmatmul.bf16.gmra.mxu0 %v185
    %v7998 = vpop.f32.mrf.mxu0
    %v7999 = vadd.f32 %v7986, %v7998
    %v8000 = vpop.f32.mrf.mxu0
    %8001 = vdwg.mxu0
    %v8018 = vrot.slane %v6543, 4
    %v8019 = vrot.slane %v6751, 4
    %v8020 = vrot.slane %v6959, 4
    %v8021 = vrot.slane %v7167, 4
    %v8022 = vrot.slane %v7375, 4
    %v8023 = vrot.slane %v7583, 4
    %v8024 = vrot.slane %v7791, 4
    %v8025 = vrot.slane %v7999, 4
    %vm8026 = vcmask 1043456
    %v8027 = vsel %vm8026, %v6439, %v8018
    %v8028 = vsel %vm8026, %v6647, %v8019
    %v8029 = vsel %vm8026, %v6855, %v8020
    %v8030 = vsel %vm8026, %v7063, %v8021
    %v8031 = vsel %vm8026, %v7271, %v8022
    %v8032 = vsel %vm8026, %v7479, %v8023
    %v8033 = vsel %vm8026, %v7687, %v8024
    %v8034 = vsel %vm8026, %v7895, %v8025
    %v8043 = vadd.f32 %v186, %v8027
    %v8044 = vadd.f32 %v187, %v8028
    %v8045 = vadd.f32 %v188, %v8029
    %v8046 = vadd.f32 %v189, %v8030
    %v8047 = vadd.f32 %v190, %v8031
    %v8048 = vadd.f32 %v191, %v8032
    %v8049 = vadd.f32 %v192, %v8033
    %v8050 = vadd.f32 %v193, %v8034
    %8051 = vst [vmem:[#allocation2] sm:$0xff] %v8043
    %8052 = vst [vmem:[#allocation2 + $0x8] sm:$0xff] %v8044
    %8053 = vst [vmem:[#allocation2 + $0x10] sm:$0xff] %v8045
    %8054 = vst [vmem:[#allocation2 + $0x18] sm:$0xff] %v8046
    %8055 = vst [vmem:[#allocation2 + $0x20] sm:$0xff] %v8047
    %8056 = vst [vmem:[#allocation2 + $0x28] sm:$0xff] %v8048
    %8057 = vst [vmem:[#allocation2 + $0x30] sm:$0xff] %v8049
    %8058 = vst [vmem:[#allocation2 + $0x38] sm:$0xff] %v8050
    // Predicated region
    $region54: #{tpu_custom_call.1} parent=1 // pred_check
      %p8059 = pneg %p110
    $region55: #{tpu_custom_call.1} parent=1 // pred_check_branch
      %8061 = sbr.rel (%p8059) target = $region57
    $region56: #{tpu_custom_call.1} parent=1 // pred_region
      %v8062 = vld [vmem:[#allocation2] sm:$0xff]
      %v8063 = vld [vmem:[#allocation2 + $0x8] sm:$0xff]
      %v8064 = vld [vmem:[#allocation2 + $0x10] sm:$0xff]
      %v8065 = vld [vmem:[#allocation2 + $0x18] sm:$0xff]
      %v8066 = vld [vmem:[#allocation2 + $0x20] sm:$0xff]
      %v8067 = vld [vmem:[#allocation2 + $0x28] sm:$0xff]
      %v8068 = vld [vmem:[#allocation2 + $0x30] sm:$0xff]
      %v8069 = vld [vmem:[#allocation2 + $0x38] sm:$0xff]
      %v8070 = vld [vmem:[#allocation9] sm:$0xff]
      %v8071 = vld [vmem:[#allocation9 + $0x8] sm:$0xff]
      %v8074 = vperm.slane %v8070, 0
      %v8075 = vperm.slane %v8070, 1
      %v8076 = vperm.slane %v8070, 2
      %v8077 = vperm.slane %v8070, 3
      %v8078 = vperm.slane %v8070, 4
      %v8079 = vperm.slane %v8070, 5
      %v8080 = vperm.slane %v8070, 6
      %v8081 = vperm.slane %v8070, 7
      %v8082 = vperm.slane %v8071, 0
      %v8083 = vperm.slane %v8071, 1
      %v8084 = vperm.slane %v8071, 2
      %v8085 = vperm.slane %v8071, 3
      %v8086 = vperm.slane %v8071, 4
      %v8087 = vperm.slane %v8071, 5
      %v8088 = vperm.slane %v8071, 6
      %v8089 = vperm.slane %v8071, 7
      %v8090 = vrot.slane %v8075, 4
      %v8091 = vrot.slane %v8077, 4
      %v8092 = vrot.slane %v8079, 4
      %v8093 = vrot.slane %v8081, 4
      %v8094 = vrot.slane %v8083, 4
      %v8095 = vrot.slane %v8085, 4
      %v8096 = vrot.slane %v8087, 4
      %v8097 = vrot.slane %v8089, 4
      %v8098 = vsel %vm8026, %v8074, %v8090
      %v8099 = vsel %vm8026, %v8076, %v8091
      %v8100 = vsel %vm8026, %v8078, %v8092
      %v8101 = vsel %vm8026, %v8080, %v8093
      %v8102 = vsel %vm8026, %v8082, %v8094
      %v8103 = vsel %vm8026, %v8084, %v8095
      %v8104 = vsel %vm8026, %v8086, %v8096
      %v8105 = vsel %vm8026, %v8088, %v8097
      %v8114 = vadd.f32 %v8062, %v8098
      %v8115 = vadd.f32 %v8063, %v8099
      %v8116 = vadd.f32 %v8064, %v8100
      %v8117 = vadd.f32 %v8065, %v8101
      %v8118 = vadd.f32 %v8066, %v8102
      %v8119 = vadd.f32 %v8067, %v8103
      %v8120 = vadd.f32 %v8068, %v8104
      %v8121 = vadd.f32 %v8069, %v8105
      %8130 = vst [vmem:[#allocation1] ss:$2 sm:$0xff] %v8114
      %s8131 = scalar_lea.vmem [#allocation1], 16
      %8132 = vst [vmem:[%s8131] ss:$2 sm:$0xff] %v8115
      %s8133 = scalar_lea.vmem [#allocation1], 32
      %8134 = vst [vmem:[%s8133] ss:$2 sm:$0xff] %v8116
      %s8135 = scalar_lea.vmem [#allocation1], 48
      %8136 = vst [vmem:[%s8135] ss:$2 sm:$0xff] %v8117
      %v8137 = vld.sshfl [vmem:[#allocation1] sm:$0xff pattern:$0x75316420]
      %v8138 = vld.sshfl [vmem:[#allocation1 + $0x8] sm:$0xff pattern:$0x75316420]
      %v8139 = vld.sshfl [vmem:[#allocation1 + $0x10] sm:$0xff pattern:$0x75316420]
      %v8140 = vld.sshfl [vmem:[#allocation1 + $0x18] sm:$0xff pattern:$0x75316420]
      %v8141 = vld.sshfl [vmem:[#allocation1 + $0x20] sm:$0xff pattern:$0x75316420]
      %v8142 = vld.sshfl [vmem:[#allocation1 + $0x28] sm:$0xff pattern:$0x75316420]
      %v8143 = vld.sshfl [vmem:[#allocation1 + $0x30] sm:$0xff pattern:$0x75316420]
      %v8144 = vld.sshfl [vmem:[#allocation1 + $0x38] sm:$0xff pattern:$0x75316420]
      %8145 = vst [vmem:[#allocation1] ss:$2 sm:$0xff] %v8118
      %8146 = vst [vmem:[%s8131] ss:$2 sm:$0xff] %v8119
      %8147 = vst [vmem:[%s8133] ss:$2 sm:$0xff] %v8120
      %8148 = vst [vmem:[%s8135] ss:$2 sm:$0xff] %v8121
      %v8149 = vld.sshfl [vmem:[#allocation1] sm:$0xff pattern:$0x75316420]
      %v8150 = vld.sshfl [vmem:[#allocation1 + $0x8] sm:$0xff pattern:$0x75316420]
      %v8151 = vld.sshfl [vmem:[#allocation1 + $0x10] sm:$0xff pattern:$0x75316420]
      %v8152 = vld.sshfl [vmem:[#allocation1 + $0x18] sm:$0xff pattern:$0x75316420]
      %v8153 = vld.sshfl [vmem:[#allocation1 + $0x20] sm:$0xff pattern:$0x75316420]
      %v8154 = vld.sshfl [vmem:[#allocation1 + $0x28] sm:$0xff pattern:$0x75316420]
      %v8155 = vld.sshfl [vmem:[#allocation1 + $0x30] sm:$0xff pattern:$0x75316420]
      %v8156 = vld.sshfl [vmem:[#allocation1 + $0x38] sm:$0xff pattern:$0x75316420]
      %v8173 = vpack.c.bf16 %v8137, %v8137
      %v8174 = vpack.c.bf16 %v8138, %v8138
      %v8175 = vpack.c.bf16 %v8139, %v8139
      %v8176 = vpack.c.bf16 %v8140, %v8140
      %v8177 = vpack.c.bf16 %v8141, %v8141
      %v8178 = vpack.c.bf16 %v8142, %v8142
      %v8179 = vpack.c.bf16 %v8143, %v8143
      %v8180 = vpack.c.bf16 %v8144, %v8144
      %v8181 = vpack.c.bf16 %v8149, %v8149
      %v8182 = vpack.c.bf16 %v8150, %v8150
      %v8183 = vpack.c.bf16 %v8151, %v8151
      %v8184 = vpack.c.bf16 %v8152, %v8152
      %v8185 = vpack.c.bf16 %v8153, %v8153
      %v8186 = vpack.c.bf16 %v8154, %v8154
      %v8187 = vpack.c.bf16 %v8155, %v8155
      %v8188 = vpack.c.bf16 %v8156, %v8156
      %v8189 = vld [vmem:[#allocation11] sm:$0xf]
      %v8190 = vld [vmem:[#allocation11 + $0x4] sm:$0xf]
      %v8191 = vld [vmem:[#allocation11 + $0x8] sm:$0xf]
      %v8192 = vld [vmem:[#allocation11 + $0xc] sm:$0xf]
      %v8193 = vld [vmem:[#allocation11 + $0x10] sm:$0xf]
      %v8194 = vld [vmem:[#allocation11 + $0x14] sm:$0xf]
      %v8195 = vld [vmem:[#allocation11 + $0x18] sm:$0xf]
      %v8196 = vld [vmem:[#allocation11 + $0x1c] sm:$0xf]
      %v8197 = vld [vmem:[#allocation11 + $0x20] sm:$0xf]
      %v8198 = vld [vmem:[#allocation11 + $0x24] sm:$0xf]
      %v8199 = vld [vmem:[#allocation11 + $0x28] sm:$0xf]
      %v8200 = vld [vmem:[#allocation11 + $0x2c] sm:$0xf]
      %v8201 = vld [vmem:[#allocation11 + $0x30] sm:$0xf]
      %v8202 = vld [vmem:[#allocation11 + $0x34] sm:$0xf]
      %v8203 = vld [vmem:[#allocation11 + $0x38] sm:$0xf]
      %v8204 = vld [vmem:[#allocation11 + $0x3c] sm:$0xf]
      %v8205 = vld [vmem:[#allocation11 + $0x40] sm:$0xf]
      %v8206 = vld [vmem:[#allocation11 + $0x44] sm:$0xf]
      %v8207 = vld [vmem:[#allocation11 + $0x48] sm:$0xf]
      %v8208 = vld [vmem:[#allocation11 + $0x4c] sm:$0xf]
      %v8209 = vld [vmem:[#allocation11 + $0x50] sm:$0xf]
      %v8210 = vld [vmem:[#allocation11 + $0x54] sm:$0xf]
      %v8211 = vld [vmem:[#allocation11 + $0x58] sm:$0xf]
      %v8212 = vld [vmem:[#allocation11 + $0x5c] sm:$0xf]
      %v8213 = vld [vmem:[#allocation11 + $0x60] sm:$0xf]
      %v8214 = vld [vmem:[#allocation11 + $0x64] sm:$0xf]
      %v8215 = vld [vmem:[#allocation11 + $0x68] sm:$0xf]
      %v8216 = vld [vmem:[#allocation11 + $0x6c] sm:$0xf]
      %v8217 = vld [vmem:[#allocation11 + $0x70] sm:$0xf]
      %v8218 = vld [vmem:[#allocation11 + $0x74] sm:$0xf]
      %v8219 = vld [vmem:[#allocation11 + $0x78] sm:$0xf]
      %v8220 = vld [vmem:[#allocation11 + $0x7c] sm:$0xf]
      %v8221 = vld [vmem:[#allocation11 + $0x80] sm:$0xf]
      %v8222 = vld [vmem:[#allocation11 + $0x84] sm:$0xf]
      %v8223 = vld [vmem:[#allocation11 + $0x88] sm:$0xf]
      %v8224 = vld [vmem:[#allocation11 + $0x8c] sm:$0xf]
      %v8225 = vld [vmem:[#allocation11 + $0x90] sm:$0xf]
      %v8226 = vld [vmem:[#allocation11 + $0x94] sm:$0xf]
      %v8227 = vld [vmem:[#allocation11 + $0x98] sm:$0xf]
      %v8228 = vld [vmem:[#allocation11 + $0x9c] sm:$0xf]
      %v8229 = vld [vmem:[#allocation11 + $0xa0] sm:$0xf]
      %v8230 = vld [vmem:[#allocation11 + $0xa4] sm:$0xf]
      %v8231 = vld [vmem:[#allocation11 + $0xa8] sm:$0xf]
      %v8232 = vld [vmem:[#allocation11 + $0xac] sm:$0xf]
      %v8233 = vld [vmem:[#allocation11 + $0xb0] sm:$0xf]
      %v8234 = vld [vmem:[#allocation11 + $0xb4] sm:$0xf]
      %v8235 = vld [vmem:[#allocation11 + $0xb8] sm:$0xf]
      %v8236 = vld [vmem:[#allocation11 + $0xbc] sm:$0xf]
      %v8237 = vld [vmem:[#allocation11 + $0xc0] sm:$0xf]
      %v8238 = vld [vmem:[#allocation11 + $0xc4] sm:$0xf]
      %v8239 = vld [vmem:[#allocation11 + $0xc8] sm:$0xf]
      %v8240 = vld [vmem:[#allocation11 + $0xcc] sm:$0xf]
      %v8241 = vld [vmem:[#allocation11 + $0xd0] sm:$0xf]
      %v8242 = vld [vmem:[#allocation11 + $0xd4] sm:$0xf]
      %v8243 = vld [vmem:[#allocation11 + $0xd8] sm:$0xf]
      %v8244 = vld [vmem:[#allocation11 + $0xdc] sm:$0xf]
      %v8245 = vld [vmem:[#allocation11 + $0xe0] sm:$0xf]
      %v8246 = vld [vmem:[#allocation11 + $0xe4] sm:$0xf]
      %v8247 = vld [vmem:[#allocation11 + $0xe8] sm:$0xf]
      %v8248 = vld [vmem:[#allocation11 + $0xec] sm:$0xf]
      %v8249 = vld [vmem:[#allocation11 + $0xf0] sm:$0xf]
      %v8250 = vld [vmem:[#allocation11 + $0xf4] sm:$0xf]
      %v8251 = vld [vmem:[#allocation11 + $0xf8] sm:$0xf]
      %v8252 = vld [vmem:[#allocation11 + $0xfc] sm:$0xf]
      %v8253 = vld [vmem:[#allocation11 + $0x100] sm:$0xf]
      %v8254 = vld [vmem:[#allocation11 + $0x104] sm:$0xf]
      %v8255 = vld [vmem:[#allocation11 + $0x108] sm:$0xf]
      %v8256 = vld [vmem:[#allocation11 + $0x10c] sm:$0xf]
      %v8257 = vld [vmem:[#allocation11 + $0x110] sm:$0xf]
      %v8258 = vld [vmem:[#allocation11 + $0x114] sm:$0xf]
      %v8259 = vld [vmem:[#allocation11 + $0x118] sm:$0xf]
      %v8260 = vld [vmem:[#allocation11 + $0x11c] sm:$0xf]
      %v8261 = vld [vmem:[#allocation11 + $0x120] sm:$0xf]
      %v8262 = vld [vmem:[#allocation11 + $0x124] sm:$0xf]
      %v8263 = vld [vmem:[#allocation11 + $0x128] sm:$0xf]
      %v8264 = vld [vmem:[#allocation11 + $0x12c] sm:$0xf]
      %v8265 = vld [vmem:[#allocation11 + $0x130] sm:$0xf]
      %v8266 = vld [vmem:[#allocation11 + $0x134] sm:$0xf]
      %v8267 = vld [vmem:[#allocation11 + $0x138] sm:$0xf]
      %v8268 = vld [vmem:[#allocation11 + $0x13c] sm:$0xf]
      %v8269 = vld [vmem:[#allocation11 + $0x140] sm:$0xf]
      %v8270 = vld [vmem:[#allocation11 + $0x144] sm:$0xf]
      %v8271 = vld [vmem:[#allocation11 + $0x148] sm:$0xf]
      %v8272 = vld [vmem:[#allocation11 + $0x14c] sm:$0xf]
      %v8273 = vld [vmem:[#allocation11 + $0x150] sm:$0xf]
      %v8274 = vld [vmem:[#allocation11 + $0x154] sm:$0xf]
      %v8275 = vld [vmem:[#allocation11 + $0x158] sm:$0xf]
      %v8276 = vld [vmem:[#allocation11 + $0x15c] sm:$0xf]
      %v8277 = vld [vmem:[#allocation11 + $0x160] sm:$0xf]
      %v8278 = vld [vmem:[#allocation11 + $0x164] sm:$0xf]
      %v8279 = vld [vmem:[#allocation11 + $0x168] sm:$0xf]
      %v8280 = vld [vmem:[#allocation11 + $0x16c] sm:$0xf]
      %v8281 = vld [vmem:[#allocation11 + $0x170] sm:$0xf]
      %v8282 = vld [vmem:[#allocation11 + $0x174] sm:$0xf]
      %v8283 = vld [vmem:[#allocation11 + $0x178] sm:$0xf]
      %v8284 = vld [vmem:[#allocation11 + $0x17c] sm:$0xf]
      %v8285 = vld [vmem:[#allocation11 + $0x180] sm:$0xf]
      %v8286 = vld [vmem:[#allocation11 + $0x184] sm:$0xf]
      %v8287 = vld [vmem:[#allocation11 + $0x188] sm:$0xf]
      %v8288 = vld [vmem:[#allocation11 + $0x18c] sm:$0xf]
      %v8289 = vld [vmem:[#allocation11 + $0x190] sm:$0xf]
      %v8290 = vld [vmem:[#allocation11 + $0x194] sm:$0xf]
      %v8291 = vld [vmem:[#allocation11 + $0x198] sm:$0xf]
      %v8292 = vld [vmem:[#allocation11 + $0x19c] sm:$0xf]
      %v8293 = vld [vmem:[#allocation11 + $0x1a0] sm:$0xf]
      %v8294 = vld [vmem:[#allocation11 + $0x1a4] sm:$0xf]
      %v8295 = vld [vmem:[#allocation11 + $0x1a8] sm:$0xf]
      %v8296 = vld [vmem:[#allocation11 + $0x1ac] sm:$0xf]
      %v8297 = vld [vmem:[#allocation11 + $0x1b0] sm:$0xf]
      %v8298 = vld [vmem:[#allocation11 + $0x1b4] sm:$0xf]
      %v8299 = vld [vmem:[#allocation11 + $0x1b8] sm:$0xf]
      %v8300 = vld [vmem:[#allocation11 + $0x1bc] sm:$0xf]
      %v8301 = vld [vmem:[#allocation11 + $0x1c0] sm:$0xf]
      %v8302 = vld [vmem:[#allocation11 + $0x1c4] sm:$0xf]
      %v8303 = vld [vmem:[#allocation11 + $0x1c8] sm:$0xf]
      %v8304 = vld [vmem:[#allocation11 + $0x1cc] sm:$0xf]
      %v8305 = vld [vmem:[#allocation11 + $0x1d0] sm:$0xf]
      %v8306 = vld [vmem:[#allocation11 + $0x1d4] sm:$0xf]
      %v8307 = vld [vmem:[#allocation11 + $0x1d8] sm:$0xf]
      %v8308 = vld [vmem:[#allocation11 + $0x1dc] sm:$0xf]
      %v8309 = vld [vmem:[#allocation11 + $0x1e0] sm:$0xf]
      %v8310 = vld [vmem:[#allocation11 + $0x1e4] sm:$0xf]
      %v8311 = vld [vmem:[#allocation11 + $0x1e8] sm:$0xf]
      %v8312 = vld [vmem:[#allocation11 + $0x1ec] sm:$0xf]
      %v8313 = vld [vmem:[#allocation11 + $0x1f0] sm:$0xf]
      %v8314 = vld [vmem:[#allocation11 + $0x1f4] sm:$0xf]
      %v8315 = vld [vmem:[#allocation11 + $0x1f8] sm:$0xf]
      %v8316 = vld [vmem:[#allocation11 + $0x1fc] sm:$0xf]
      %v8317 = vld [vmem:[#allocation11 + $0x200] sm:$0xf]
      %v8318 = vld [vmem:[#allocation11 + $0x204] sm:$0xf]
      %v8319 = vld [vmem:[#allocation11 + $0x208] sm:$0xf]
      %v8320 = vld [vmem:[#allocation11 + $0x20c] sm:$0xf]
      %v8321 = vld [vmem:[#allocation11 + $0x210] sm:$0xf]
      %v8322 = vld [vmem:[#allocation11 + $0x214] sm:$0xf]
      %v8323 = vld [vmem:[#allocation11 + $0x218] sm:$0xf]
      %v8324 = vld [vmem:[#allocation11 + $0x21c] sm:$0xf]
      %v8325 = vld [vmem:[#allocation11 + $0x220] sm:$0xf]
      %v8326 = vld [vmem:[#allocation11 + $0x224] sm:$0xf]
      %v8327 = vld [vmem:[#allocation11 + $0x228] sm:$0xf]
      %v8328 = vld [vmem:[#allocation11 + $0x22c] sm:$0xf]
      %v8329 = vld [vmem:[#allocation11 + $0x230] sm:$0xf]
      %v8330 = vld [vmem:[#allocation11 + $0x234] sm:$0xf]
      %v8331 = vld [vmem:[#allocation11 + $0x238] sm:$0xf]
      %v8332 = vld [vmem:[#allocation11 + $0x23c] sm:$0xf]
      %v8333 = vld [vmem:[#allocation11 + $0x240] sm:$0xf]
      %v8334 = vld [vmem:[#allocation11 + $0x244] sm:$0xf]
      %v8335 = vld [vmem:[#allocation11 + $0x248] sm:$0xf]
      %v8336 = vld [vmem:[#allocation11 + $0x24c] sm:$0xf]
      %v8337 = vld [vmem:[#allocation11 + $0x250] sm:$0xf]
      %v8338 = vld [vmem:[#allocation11 + $0x254] sm:$0xf]
      %v8339 = vld [vmem:[#allocation11 + $0x258] sm:$0xf]
      %v8340 = vld [vmem:[#allocation11 + $0x25c] sm:$0xf]
      %v8341 = vld [vmem:[#allocation11 + $0x260] sm:$0xf]
      %v8342 = vld [vmem:[#allocation11 + $0x264] sm:$0xf]
      %v8343 = vld [vmem:[#allocation11 + $0x268] sm:$0xf]
      %v8344 = vld [vmem:[#allocation11 + $0x26c] sm:$0xf]
      %v8345 = vld [vmem:[#allocation11 + $0x270] sm:$0xf]
      %v8346 = vld [vmem:[#allocation11 + $0x274] sm:$0xf]
      %v8347 = vld [vmem:[#allocation11 + $0x278] sm:$0xf]
      %v8348 = vld [vmem:[#allocation11 + $0x27c] sm:$0xf]
      %v8349 = vld [vmem:[#allocation11 + $0x280] sm:$0xf]
      %v8350 = vld [vmem:[#allocation11 + $0x284] sm:$0xf]
      %v8351 = vld [vmem:[#allocation11 + $0x288] sm:$0xf]
      %v8352 = vld [vmem:[#allocation11 + $0x28c] sm:$0xf]
      %v8353 = vld [vmem:[#allocation11 + $0x290] sm:$0xf]
      %v8354 = vld [vmem:[#allocation11 + $0x294] sm:$0xf]
      %v8355 = vld [vmem:[#allocation11 + $0x298] sm:$0xf]
      %v8356 = vld [vmem:[#allocation11 + $0x29c] sm:$0xf]
      %v8357 = vld [vmem:[#allocation11 + $0x2a0] sm:$0xf]
      %v8358 = vld [vmem:[#allocation11 + $0x2a4] sm:$0xf]
      %v8359 = vld [vmem:[#allocation11 + $0x2a8] sm:$0xf]
      %v8360 = vld [vmem:[#allocation11 + $0x2ac] sm:$0xf]
      %v8361 = vld [vmem:[#allocation11 + $0x2b0] sm:$0xf]
      %v8362 = vld [vmem:[#allocation11 + $0x2b4] sm:$0xf]
      %v8363 = vld [vmem:[#allocation11 + $0x2b8] sm:$0xf]
      %v8364 = vld [vmem:[#allocation11 + $0x2bc] sm:$0xf]
      %v8365 = vld [vmem:[#allocation11 + $0x2c0] sm:$0xf]
      %v8366 = vld [vmem:[#allocation11 + $0x2c4] sm:$0xf]
      %v8367 = vld [vmem:[#allocation11 + $0x2c8] sm:$0xf]
      %v8368 = vld [vmem:[#allocation11 + $0x2cc] sm:$0xf]
      %v8369 = vld [vmem:[#allocation11 + $0x2d0] sm:$0xf]
      %v8370 = vld [vmem:[#allocation11 + $0x2d4] sm:$0xf]
      %v8371 = vld [vmem:[#allocation11 + $0x2d8] sm:$0xf]
      %v8372 = vld [vmem:[#allocation11 + $0x2dc] sm:$0xf]
      %v8373 = vld [vmem:[#allocation11 + $0x2e0] sm:$0xf]
      %v8374 = vld [vmem:[#allocation11 + $0x2e4] sm:$0xf]
      %v8375 = vld [vmem:[#allocation11 + $0x2e8] sm:$0xf]
      %v8376 = vld [vmem:[#allocation11 + $0x2ec] sm:$0xf]
      %v8377 = vld [vmem:[#allocation11 + $0x2f0] sm:$0xf]
      %v8378 = vld [vmem:[#allocation11 + $0x2f4] sm:$0xf]
      %v8379 = vld [vmem:[#allocation11 + $0x2f8] sm:$0xf]
      %v8380 = vld [vmem:[#allocation11 + $0x2fc] sm:$0xf]
      %v8381 = vld [vmem:[#allocation11 + $0x300] sm:$0xf]
      %v8382 = vld [vmem:[#allocation11 + $0x304] sm:$0xf]
      %v8383 = vld [vmem:[#allocation11 + $0x308] sm:$0xf]
      %v8384 = vld [vmem:[#allocation11 + $0x30c] sm:$0xf]
      %v8385 = vld [vmem:[#allocation11 + $0x310] sm:$0xf]
      %v8386 = vld [vmem:[#allocation11 + $0x314] sm:$0xf]
      %v8387 = vld [vmem:[#allocation11 + $0x318] sm:$0xf]
      %v8388 = vld [vmem:[#allocation11 + $0x31c] sm:$0xf]
      %v8389 = vld [vmem:[#allocation11 + $0x320] sm:$0xf]
      %v8390 = vld [vmem:[#allocation11 + $0x324] sm:$0xf]
      %v8391 = vld [vmem:[#allocation11 + $0x328] sm:$0xf]
      %v8392 = vld [vmem:[#allocation11 + $0x32c] sm:$0xf]
      %v8393 = vld [vmem:[#allocation11 + $0x330] sm:$0xf]
      %v8394 = vld [vmem:[#allocation11 + $0x334] sm:$0xf]
      %v8395 = vld [vmem:[#allocation11 + $0x338] sm:$0xf]
      %v8396 = vld [vmem:[#allocation11 + $0x33c] sm:$0xf]
      %v8397 = vld [vmem:[#allocation11 + $0x340] sm:$0xf]
      %v8398 = vld [vmem:[#allocation11 + $0x344] sm:$0xf]
      %v8399 = vld [vmem:[#allocation11 + $0x348] sm:$0xf]
      %v8400 = vld [vmem:[#allocation11 + $0x34c] sm:$0xf]
      %v8401 = vld [vmem:[#allocation11 + $0x350] sm:$0xf]
      %v8402 = vld [vmem:[#allocation11 + $0x354] sm:$0xf]
      %v8403 = vld [vmem:[#allocation11 + $0x358] sm:$0xf]
      %v8404 = vld [vmem:[#allocation11 + $0x35c] sm:$0xf]
      %v8405 = vld [vmem:[#allocation11 + $0x360] sm:$0xf]
      %v8406 = vld [vmem:[#allocation11 + $0x364] sm:$0xf]
      %v8407 = vld [vmem:[#allocation11 + $0x368] sm:$0xf]
      %v8408 = vld [vmem:[#allocation11 + $0x36c] sm:$0xf]
      %v8409 = vld [vmem:[#allocation11 + $0x370] sm:$0xf]
      %v8410 = vld [vmem:[#allocation11 + $0x374] sm:$0xf]
      %v8411 = vld [vmem:[#allocation11 + $0x378] sm:$0xf]
      %v8412 = vld [vmem:[#allocation11 + $0x37c] sm:$0xf]
      %v8413 = vld [vmem:[#allocation11 + $0x380] sm:$0xf]
      %v8414 = vld [vmem:[#allocation11 + $0x384] sm:$0xf]
      %v8415 = vld [vmem:[#allocation11 + $0x388] sm:$0xf]
      %v8416 = vld [vmem:[#allocation11 + $0x38c] sm:$0xf]
      %v8417 = vld [vmem:[#allocation11 + $0x390] sm:$0xf]
      %v8418 = vld [vmem:[#allocation11 + $0x394] sm:$0xf]
      %v8419 = vld [vmem:[#allocation11 + $0x398] sm:$0xf]
      %v8420 = vld [vmem:[#allocation11 + $0x39c] sm:$0xf]
      %v8421 = vld [vmem:[#allocation11 + $0x3a0] sm:$0xf]
      %v8422 = vld [vmem:[#allocation11 + $0x3a4] sm:$0xf]
      %v8423 = vld [vmem:[#allocation11 + $0x3a8] sm:$0xf]
      %v8424 = vld [vmem:[#allocation11 + $0x3ac] sm:$0xf]
      %v8425 = vld [vmem:[#allocation11 + $0x3b0] sm:$0xf]
      %v8426 = vld [vmem:[#allocation11 + $0x3b4] sm:$0xf]
      %v8427 = vld [vmem:[#allocation11 + $0x3b8] sm:$0xf]
      %v8428 = vld [vmem:[#allocation11 + $0x3bc] sm:$0xf]
      %v8429 = vld [vmem:[#allocation11 + $0x3c0] sm:$0xf]
      %v8430 = vld [vmem:[#allocation11 + $0x3c4] sm:$0xf]
      %v8431 = vld [vmem:[#allocation11 + $0x3c8] sm:$0xf]
      %v8432 = vld [vmem:[#allocation11 + $0x3cc] sm:$0xf]
      %v8433 = vld [vmem:[#allocation11 + $0x3d0] sm:$0xf]
      %v8434 = vld [vmem:[#allocation11 + $0x3d4] sm:$0xf]
      %v8435 = vld [vmem:[#allocation11 + $0x3d8] sm:$0xf]
      %v8436 = vld [vmem:[#allocation11 + $0x3dc] sm:$0xf]
      %v8437 = vld [vmem:[#allocation11 + $0x3e0] sm:$0xf]
      %v8438 = vld [vmem:[#allocation11 + $0x3e4] sm:$0xf]
      %v8439 = vld [vmem:[#allocation11 + $0x3e8] sm:$0xf]
      %v8440 = vld [vmem:[#allocation11 + $0x3ec] sm:$0xf]
      %v8441 = vld [vmem:[#allocation11 + $0x3f0] sm:$0xf]
      %v8442 = vld [vmem:[#allocation11 + $0x3f4] sm:$0xf]
      %v8443 = vld [vmem:[#allocation11 + $0x3f8] sm:$0xf]
      %v8444 = vld [vmem:[#allocation11 + $0x3fc] sm:$0xf]
      %v8445 = vld [vmem:[#allocation12] sm:$0x1]
      %v8447 = vperm.slane %v8445, 0
      %v8705 = vunpack.c.l.b16 %v8189
      %v8706 = vunpack.c.l.b16 %v8190
      %v8707 = vunpack.c.l.b16 %v8191
      %v8708 = vunpack.c.l.b16 %v8192
      %v8709 = vunpack.c.l.b16 %v8193
      %v8710 = vunpack.c.l.b16 %v8194
      %v8711 = vunpack.c.l.b16 %v8195
      %v8712 = vunpack.c.l.b16 %v8196
      %v8713 = vunpack.c.l.b16 %v8197
      %v8714 = vunpack.c.l.b16 %v8198
      %v8715 = vunpack.c.l.b16 %v8199
      %v8716 = vunpack.c.l.b16 %v8200
      %v8717 = vunpack.c.l.b16 %v8201
      %v8718 = vunpack.c.l.b16 %v8202
      %v8719 = vunpack.c.l.b16 %v8203
      %v8720 = vunpack.c.l.b16 %v8204
      %v8721 = vunpack.c.l.b16 %v8205
      %v8722 = vunpack.c.l.b16 %v8206
      %v8723 = vunpack.c.l.b16 %v8207
      %v8724 = vunpack.c.l.b16 %v8208
      %v8725 = vunpack.c.l.b16 %v8209
      %v8726 = vunpack.c.l.b16 %v8210
      %v8727 = vunpack.c.l.b16 %v8211
      %v8728 = vunpack.c.l.b16 %v8212
      %v8729 = vunpack.c.l.b16 %v8213
      %v8730 = vunpack.c.l.b16 %v8214
      %v8731 = vunpack.c.l.b16 %v8215
      %v8732 = vunpack.c.l.b16 %v8216
      %v8733 = vunpack.c.l.b16 %v8217
      %v8734 = vunpack.c.l.b16 %v8218
      %v8735 = vunpack.c.l.b16 %v8219
      %v8736 = vunpack.c.l.b16 %v8220
      %v8737 = vunpack.c.l.b16 %v8221
      %v8738 = vunpack.c.l.b16 %v8222
      %v8739 = vunpack.c.l.b16 %v8223
      %v8740 = vunpack.c.l.b16 %v8224
      %v8741 = vunpack.c.l.b16 %v8225
      %v8742 = vunpack.c.l.b16 %v8226
      %v8743 = vunpack.c.l.b16 %v8227
      %v8744 = vunpack.c.l.b16 %v8228
      %v8745 = vunpack.c.l.b16 %v8229
      %v8746 = vunpack.c.l.b16 %v8230
      %v8747 = vunpack.c.l.b16 %v8231
      %v8748 = vunpack.c.l.b16 %v8232
      %v8749 = vunpack.c.l.b16 %v8233
      %v8750 = vunpack.c.l.b16 %v8234
      %v8751 = vunpack.c.l.b16 %v8235
      %v8752 = vunpack.c.l.b16 %v8236
      %v8753 = vunpack.c.l.b16 %v8237
      %v8754 = vunpack.c.l.b16 %v8238
      %v8755 = vunpack.c.l.b16 %v8239
      %v8756 = vunpack.c.l.b16 %v8240
      %v8757 = vunpack.c.l.b16 %v8241
      %v8758 = vunpack.c.l.b16 %v8242
      %v8759 = vunpack.c.l.b16 %v8243
      %v8760 = vunpack.c.l.b16 %v8244
      %v8761 = vunpack.c.l.b16 %v8245
      %v8762 = vunpack.c.l.b16 %v8246
      %v8763 = vunpack.c.l.b16 %v8247
      %v8764 = vunpack.c.l.b16 %v8248
      %v8765 = vunpack.c.l.b16 %v8249
      %v8766 = vunpack.c.l.b16 %v8250
      %v8767 = vunpack.c.l.b16 %v8251
      %v8768 = vunpack.c.l.b16 %v8252
      %v8769 = vunpack.c.l.b16 %v8253
      %v8770 = vunpack.c.l.b16 %v8254
      %v8771 = vunpack.c.l.b16 %v8255
      %v8772 = vunpack.c.l.b16 %v8256
      %v8773 = vunpack.c.l.b16 %v8257
      %v8774 = vunpack.c.l.b16 %v8258
      %v8775 = vunpack.c.l.b16 %v8259
      %v8776 = vunpack.c.l.b16 %v8260
      %v8777 = vunpack.c.l.b16 %v8261
      %v8778 = vunpack.c.l.b16 %v8262
      %v8779 = vunpack.c.l.b16 %v8263
      %v8780 = vunpack.c.l.b16 %v8264
      %v8781 = vunpack.c.l.b16 %v8265
      %v8782 = vunpack.c.l.b16 %v8266
      %v8783 = vunpack.c.l.b16 %v8267
      %v8784 = vunpack.c.l.b16 %v8268
      %v8785 = vunpack.c.l.b16 %v8269
      %v8786 = vunpack.c.l.b16 %v8270
      %v8787 = vunpack.c.l.b16 %v8271
      %v8788 = vunpack.c.l.b16 %v8272
      %v8789 = vunpack.c.l.b16 %v8273
      %v8790 = vunpack.c.l.b16 %v8274
      %v8791 = vunpack.c.l.b16 %v8275
      %v8792 = vunpack.c.l.b16 %v8276
      %v8793 = vunpack.c.l.b16 %v8277
      %v8794 = vunpack.c.l.b16 %v8278
      %v8795 = vunpack.c.l.b16 %v8279
      %v8796 = vunpack.c.l.b16 %v8280
      %v8797 = vunpack.c.l.b16 %v8281
      %v8798 = vunpack.c.l.b16 %v8282
      %v8799 = vunpack.c.l.b16 %v8283
      %v8800 = vunpack.c.l.b16 %v8284
      %v8801 = vunpack.c.l.b16 %v8285
      %v8802 = vunpack.c.l.b16 %v8286
      %v8803 = vunpack.c.l.b16 %v8287
      %v8804 = vunpack.c.l.b16 %v8288
      %v8805 = vunpack.c.l.b16 %v8289
      %v8806 = vunpack.c.l.b16 %v8290
      %v8807 = vunpack.c.l.b16 %v8291
      %v8808 = vunpack.c.l.b16 %v8292
      %v8809 = vunpack.c.l.b16 %v8293
      %v8810 = vunpack.c.l.b16 %v8294
      %v8811 = vunpack.c.l.b16 %v8295
      %v8812 = vunpack.c.l.b16 %v8296
      %v8813 = vunpack.c.l.b16 %v8297
      %v8814 = vunpack.c.l.b16 %v8298
      %v8815 = vunpack.c.l.b16 %v8299
      %v8816 = vunpack.c.l.b16 %v8300
      %v8817 = vunpack.c.l.b16 %v8301
      %v8818 = vunpack.c.l.b16 %v8302
      %v8819 = vunpack.c.l.b16 %v8303
      %v8820 = vunpack.c.l.b16 %v8304
      %v8821 = vunpack.c.l.b16 %v8305
      %v8822 = vunpack.c.l.b16 %v8306
      %v8823 = vunpack.c.l.b16 %v8307
      %v8824 = vunpack.c.l.b16 %v8308
      %v8825 = vunpack.c.l.b16 %v8309
      %v8826 = vunpack.c.l.b16 %v8310
      %v8827 = vunpack.c.l.b16 %v8311
      %v8828 = vunpack.c.l.b16 %v8312
      %v8829 = vunpack.c.l.b16 %v8313
      %v8830 = vunpack.c.l.b16 %v8314
      %v8831 = vunpack.c.l.b16 %v8315
      %v8832 = vunpack.c.l.b16 %v8316
      %v8833 = vunpack.c.l.b16 %v8317
      %v8834 = vunpack.c.l.b16 %v8318
      %v8835 = vunpack.c.l.b16 %v8319
      %v8836 = vunpack.c.l.b16 %v8320
      %v8837 = vunpack.c.l.b16 %v8321
      %v8838 = vunpack.c.l.b16 %v8322
      %v8839 = vunpack.c.l.b16 %v8323
      %v8840 = vunpack.c.l.b16 %v8324
      %v8841 = vunpack.c.l.b16 %v8325
      %v8842 = vunpack.c.l.b16 %v8326
      %v8843 = vunpack.c.l.b16 %v8327
      %v8844 = vunpack.c.l.b16 %v8328
      %v8845 = vunpack.c.l.b16 %v8329
      %v8846 = vunpack.c.l.b16 %v8330
      %v8847 = vunpack.c.l.b16 %v8331
      %v8848 = vunpack.c.l.b16 %v8332
      %v8849 = vunpack.c.l.b16 %v8333
      %v8850 = vunpack.c.l.b16 %v8334
      %v8851 = vunpack.c.l.b16 %v8335
      %v8852 = vunpack.c.l.b16 %v8336
      %v8853 = vunpack.c.l.b16 %v8337
      %v8854 = vunpack.c.l.b16 %v8338
      %v8855 = vunpack.c.l.b16 %v8339
      %v8856 = vunpack.c.l.b16 %v8340
      %v8857 = vunpack.c.l.b16 %v8341
      %v8858 = vunpack.c.l.b16 %v8342
      %v8859 = vunpack.c.l.b16 %v8343
      %v8860 = vunpack.c.l.b16 %v8344
      %v8861 = vunpack.c.l.b16 %v8345
      %v8862 = vunpack.c.l.b16 %v8346
      %v8863 = vunpack.c.l.b16 %v8347
      %v8864 = vunpack.c.l.b16 %v8348
      %v8865 = vunpack.c.l.b16 %v8349
      %v8866 = vunpack.c.l.b16 %v8350
      %v8867 = vunpack.c.l.b16 %v8351
      %v8868 = vunpack.c.l.b16 %v8352
      %v8869 = vunpack.c.l.b16 %v8353
      %v8870 = vunpack.c.l.b16 %v8354
      %v8871 = vunpack.c.l.b16 %v8355
      %v8872 = vunpack.c.l.b16 %v8356
      %v8873 = vunpack.c.l.b16 %v8357
      %v8874 = vunpack.c.l.b16 %v8358
      %v8875 = vunpack.c.l.b16 %v8359
      %v8876 = vunpack.c.l.b16 %v8360
      %v8877 = vunpack.c.l.b16 %v8361
      %v8878 = vunpack.c.l.b16 %v8362
      %v8879 = vunpack.c.l.b16 %v8363
      %v8880 = vunpack.c.l.b16 %v8364
      %v8881 = vunpack.c.l.b16 %v8365
      %v8882 = vunpack.c.l.b16 %v8366
      %v8883 = vunpack.c.l.b16 %v8367
      %v8884 = vunpack.c.l.b16 %v8368
      %v8885 = vunpack.c.l.b16 %v8369
      %v8886 = vunpack.c.l.b16 %v8370
      %v8887 = vunpack.c.l.b16 %v8371
      %v8888 = vunpack.c.l.b16 %v8372
      %v8889 = vunpack.c.l.b16 %v8373
      %v8890 = vunpack.c.l.b16 %v8374
      %v8891 = vunpack.c.l.b16 %v8375
      %v8892 = vunpack.c.l.b16 %v8376
      %v8893 = vunpack.c.l.b16 %v8377
      %v8894 = vunpack.c.l.b16 %v8378
      %v8895 = vunpack.c.l.b16 %v8379
      %v8896 = vunpack.c.l.b16 %v8380
      %v8897 = vunpack.c.l.b16 %v8381
      %v8898 = vunpack.c.l.b16 %v8382
      %v8899 = vunpack.c.l.b16 %v8383
      %v8900 = vunpack.c.l.b16 %v8384
      %v8901 = vunpack.c.l.b16 %v8385
      %v8902 = vunpack.c.l.b16 %v8386
      %v8903 = vunpack.c.l.b16 %v8387
      %v8904 = vunpack.c.l.b16 %v8388
      %v8905 = vunpack.c.l.b16 %v8389
      %v8906 = vunpack.c.l.b16 %v8390
      %v8907 = vunpack.c.l.b16 %v8391
      %v8908 = vunpack.c.l.b16 %v8392
      %v8909 = vunpack.c.l.b16 %v8393
      %v8910 = vunpack.c.l.b16 %v8394
      %v8911 = vunpack.c.l.b16 %v8395
      %v8912 = vunpack.c.l.b16 %v8396
      %v8913 = vunpack.c.l.b16 %v8397
      %v8914 = vunpack.c.l.b16 %v8398
      %v8915 = vunpack.c.l.b16 %v8399
      %v8916 = vunpack.c.l.b16 %v8400
      %v8917 = vunpack.c.l.b16 %v8401
      %v8918 = vunpack.c.l.b16 %v8402
      %v8919 = vunpack.c.l.b16 %v8403
      %v8920 = vunpack.c.l.b16 %v8404
      %v8921 = vunpack.c.l.b16 %v8405
      %v8922 = vunpack.c.l.b16 %v8406
      %v8923 = vunpack.c.l.b16 %v8407
      %v8924 = vunpack.c.l.b16 %v8408
      %v8925 = vunpack.c.l.b16 %v8409
      %v8926 = vunpack.c.l.b16 %v8410
      %v8927 = vunpack.c.l.b16 %v8411
      %v8928 = vunpack.c.l.b16 %v8412
      %v8929 = vunpack.c.l.b16 %v8413
      %v8930 = vunpack.c.l.b16 %v8414
      %v8931 = vunpack.c.l.b16 %v8415
      %v8932 = vunpack.c.l.b16 %v8416
      %v8933 = vunpack.c.l.b16 %v8417
      %v8934 = vunpack.c.l.b16 %v8418
      %v8935 = vunpack.c.l.b16 %v8419
      %v8936 = vunpack.c.l.b16 %v8420
      %v8937 = vunpack.c.l.b16 %v8421
      %v8938 = vunpack.c.l.b16 %v8422
      %v8939 = vunpack.c.l.b16 %v8423
      %v8940 = vunpack.c.l.b16 %v8424
      %v8941 = vunpack.c.l.b16 %v8425
      %v8942 = vunpack.c.l.b16 %v8426
      %v8943 = vunpack.c.l.b16 %v8427
      %v8944 = vunpack.c.l.b16 %v8428
      %v8945 = vunpack.c.l.b16 %v8429
      %v8946 = vunpack.c.l.b16 %v8430
      %v8947 = vunpack.c.l.b16 %v8431
      %v8948 = vunpack.c.l.b16 %v8432
      %v8949 = vunpack.c.l.b16 %v8433
      %v8950 = vunpack.c.l.b16 %v8434
      %v8951 = vunpack.c.l.b16 %v8435
      %v8952 = vunpack.c.l.b16 %v8436
      %v8953 = vunpack.c.l.b16 %v8437
      %v8954 = vunpack.c.l.b16 %v8438
      %v8955 = vunpack.c.l.b16 %v8439
      %v8956 = vunpack.c.l.b16 %v8440
      %v8957 = vunpack.c.l.b16 %v8441
      %v8958 = vunpack.c.l.b16 %v8442
      %v8959 = vunpack.c.l.b16 %v8443
      %v8960 = vunpack.c.l.b16 %v8444
      %v8961 = vpack.c.b16 %v8706, %v8705
      %v8962 = vpack.c.b16 %v8708, %v8707
      %v8963 = vpack.c.b16 %v8710, %v8709
      %v8964 = vpack.c.b16 %v8712, %v8711
      %v8965 = vpack.c.b16 %v8714, %v8713
      %v8966 = vpack.c.b16 %v8716, %v8715
      %v8967 = vpack.c.b16 %v8718, %v8717
      %v8968 = vpack.c.b16 %v8720, %v8719
      %v8969 = vpack.c.b16 %v8722, %v8721
      %v8970 = vpack.c.b16 %v8724, %v8723
      %v8971 = vpack.c.b16 %v8726, %v8725
      %v8972 = vpack.c.b16 %v8728, %v8727
      %v8973 = vpack.c.b16 %v8730, %v8729
      %v8974 = vpack.c.b16 %v8732, %v8731
      %v8975 = vpack.c.b16 %v8734, %v8733
      %v8976 = vpack.c.b16 %v8736, %v8735
      %v8977 = vpack.c.b16 %v8738, %v8737
      %v8978 = vpack.c.b16 %v8740, %v8739
      %v8979 = vpack.c.b16 %v8742, %v8741
      %v8980 = vpack.c.b16 %v8744, %v8743
      %v8981 = vpack.c.b16 %v8746, %v8745
      %v8982 = vpack.c.b16 %v8748, %v8747
      %v8983 = vpack.c.b16 %v8750, %v8749
      %v8984 = vpack.c.b16 %v8752, %v8751
      %v8985 = vpack.c.b16 %v8754, %v8753
      %v8986 = vpack.c.b16 %v8756, %v8755
      %v8987 = vpack.c.b16 %v8758, %v8757
      %v8988 = vpack.c.b16 %v8760, %v8759
      %v8989 = vpack.c.b16 %v8762, %v8761
      %v8990 = vpack.c.b16 %v8764, %v8763
      %v8991 = vpack.c.b16 %v8766, %v8765
      %v8992 = vpack.c.b16 %v8768, %v8767
      %v8993 = vpack.c.b16 %v8770, %v8769
      %v8994 = vpack.c.b16 %v8772, %v8771
      %v8995 = vpack.c.b16 %v8774, %v8773
      %v8996 = vpack.c.b16 %v8776, %v8775
      %v8997 = vpack.c.b16 %v8778, %v8777
      %v8998 = vpack.c.b16 %v8780, %v8779
      %v8999 = vpack.c.b16 %v8782, %v8781
      %v9000 = vpack.c.b16 %v8784, %v8783
      %v9001 = vpack.c.b16 %v8786, %v8785
      %v9002 = vpack.c.b16 %v8788, %v8787
      %v9003 = vpack.c.b16 %v8790, %v8789
      %v9004 = vpack.c.b16 %v8792, %v8791
      %v9005 = vpack.c.b16 %v8794, %v8793
      %v9006 = vpack.c.b16 %v8796, %v8795
      %v9007 = vpack.c.b16 %v8798, %v8797
      %v9008 = vpack.c.b16 %v8800, %v8799
      %v9009 = vpack.c.b16 %v8802, %v8801
      %v9010 = vpack.c.b16 %v8804, %v8803
      %v9011 = vpack.c.b16 %v8806, %v8805
      %v9012 = vpack.c.b16 %v8808, %v8807
      %v9013 = vpack.c.b16 %v8810, %v8809
      %v9014 = vpack.c.b16 %v8812, %v8811
      %v9015 = vpack.c.b16 %v8814, %v8813
      %v9016 = vpack.c.b16 %v8816, %v8815
      %v9017 = vpack.c.b16 %v8818, %v8817
      %v9018 = vpack.c.b16 %v8820, %v8819
      %v9019 = vpack.c.b16 %v8822, %v8821
      %v9020 = vpack.c.b16 %v8824, %v8823
      %v9021 = vpack.c.b16 %v8826, %v8825
      %v9022 = vpack.c.b16 %v8828, %v8827
      %v9023 = vpack.c.b16 %v8830, %v8829
      %v9024 = vpack.c.b16 %v8832, %v8831
      %v9025 = vpack.c.b16 %v8834, %v8833
      %v9026 = vpack.c.b16 %v8836, %v8835
      %v9027 = vpack.c.b16 %v8838, %v8837
      %v9028 = vpack.c.b16 %v8840, %v8839
      %v9029 = vpack.c.b16 %v8842, %v8841
      %v9030 = vpack.c.b16 %v8844, %v8843
      %v9031 = vpack.c.b16 %v8846, %v8845
      %v9032 = vpack.c.b16 %v8848, %v8847
      %v9033 = vpack.c.b16 %v8850, %v8849
      %v9034 = vpack.c.b16 %v8852, %v8851
      %v9035 = vpack.c.b16 %v8854, %v8853
      %v9036 = vpack.c.b16 %v8856, %v8855
      %v9037 = vpack.c.b16 %v8858, %v8857
      %v9038 = vpack.c.b16 %v8860, %v8859
      %v9039 = vpack.c.b16 %v8862, %v8861
      %v9040 = vpack.c.b16 %v8864, %v8863
      %v9041 = vpack.c.b16 %v8866, %v8865
      %v9042 = vpack.c.b16 %v8868, %v8867
      %v9043 = vpack.c.b16 %v8870, %v8869
      %v9044 = vpack.c.b16 %v8872, %v8871
      %v9045 = vpack.c.b16 %v8874, %v8873
      %v9046 = vpack.c.b16 %v8876, %v8875
      %v9047 = vpack.c.b16 %v8878, %v8877
      %v9048 = vpack.c.b16 %v8880, %v8879
      %v9049 = vpack.c.b16 %v8882, %v8881
      %v9050 = vpack.c.b16 %v8884, %v8883
      %v9051 = vpack.c.b16 %v8886, %v8885
      %v9052 = vpack.c.b16 %v8888, %v8887
      %v9053 = vpack.c.b16 %v8890, %v8889
      %v9054 = vpack.c.b16 %v8892, %v8891
      %v9055 = vpack.c.b16 %v8894, %v8893
      %v9056 = vpack.c.b16 %v8896, %v8895
      %v9057 = vpack.c.b16 %v8898, %v8897
      %v9058 = vpack.c.b16 %v8900, %v8899
      %v9059 = vpack.c.b16 %v8902, %v8901
      %v9060 = vpack.c.b16 %v8904, %v8903
      %v9061 = vpack.c.b16 %v8906, %v8905
      %v9062 = vpack.c.b16 %v8908, %v8907
      %v9063 = vpack.c.b16 %v8910, %v8909
      %v9064 = vpack.c.b16 %v8912, %v8911
      %v9065 = vpack.c.b16 %v8914, %v8913
      %v9066 = vpack.c.b16 %v8916, %v8915
      %v9067 = vpack.c.b16 %v8918, %v8917
      %v9068 = vpack.c.b16 %v8920, %v8919
      %v9069 = vpack.c.b16 %v8922, %v8921
      %v9070 = vpack.c.b16 %v8924, %v8923
      %v9071 = vpack.c.b16 %v8926, %v8925
      %v9072 = vpack.c.b16 %v8928, %v8927
      %v9073 = vpack.c.b16 %v8930, %v8929
      %v9074 = vpack.c.b16 %v8932, %v8931
      %v9075 = vpack.c.b16 %v8934, %v8933
      %v9076 = vpack.c.b16 %v8936, %v8935
      %v9077 = vpack.c.b16 %v8938, %v8937
      %v9078 = vpack.c.b16 %v8940, %v8939
      %v9079 = vpack.c.b16 %v8942, %v8941
      %v9080 = vpack.c.b16 %v8944, %v8943
      %v9081 = vpack.c.b16 %v8946, %v8945
      %v9082 = vpack.c.b16 %v8948, %v8947
      %v9083 = vpack.c.b16 %v8950, %v8949
      %v9084 = vpack.c.b16 %v8952, %v8951
      %v9085 = vpack.c.b16 %v8954, %v8953
      %v9086 = vpack.c.b16 %v8956, %v8955
      %v9087 = vpack.c.b16 %v8958, %v8957
      %v9088 = vpack.c.b16 %v8960, %v8959
      %9217 = vmatpush.bf16.msra.mxu0 %v8968
      %9218 = vmatpush.bf16.msra.mxu0 %v8967
      %9219 = vmatpush.bf16.msra.mxu0 %v8966
      %9220 = vmatpush.bf16.msra.mxu0 %v8965
      %9221 = vmatpush.bf16.msra.mxu0 %v8964
      %9222 = vmatpush.bf16.msra.mxu0 %v8963
      %9223 = vmatpush.bf16.msra.mxu0 %v8962
      %9224 = vmatpush.bf16.msra.mxu0 %v8961
      %9225 = vmatmul.bf16.gmra.mxu0 %v8173
      %v9226 = vpop.f32.mrf.mxu0
      %v9227 = vadd.f32 %v8447, %v9226
      %v9228 = vpop.f32.mrf.mxu0
      %9229 = vdwg.mxu0
      %9230 = vmatpush.bf16.msra.mxu0 %v8976
      %9231 = vmatpush.bf16.msra.mxu0 %v8975
      %9232 = vmatpush.bf16.msra.mxu0 %v8974
      %9233 = vmatpush.bf16.msra.mxu0 %v8973
      %9234 = vmatpush.bf16.msra.mxu0 %v8972
      %9235 = vmatpush.bf16.msra.mxu0 %v8971
      %9236 = vmatpush.bf16.msra.mxu0 %v8970
      %9237 = vmatpush.bf16.msra.mxu0 %v8969
      %9238 = vmatmul.bf16.gmra.mxu0 %v8174
      %v9239 = vpop.f32.mrf.mxu0
      %v9240 = vadd.f32 %v9227, %v9239
      %v9241 = vpop.f32.mrf.mxu0
      %9242 = vdwg.mxu0
      %9243 = vmatpush.bf16.msra.mxu0 %v8984
      %9244 = vmatpush.bf16.msra.mxu0 %v8983
      %9245 = vmatpush.bf16.msra.mxu0 %v8982
      %9246 = vmatpush.bf16.msra.mxu0 %v8981
      %9247 = vmatpush.bf16.msra.mxu0 %v8980
      %9248 = vmatpush.bf16.msra.mxu0 %v8979
      %9249 = vmatpush.bf16.msra.mxu0 %v8978
      %9250 = vmatpush.bf16.msra.mxu0 %v8977
      %9251 = vmatmul.bf16.gmra.mxu0 %v8175
      %v9252 = vpop.f32.mrf.mxu0
      %v9253 = vadd.f32 %v9240, %v9252
      %v9254 = vpop.f32.mrf.mxu0
      %9255 = vdwg.mxu0
      %9256 = vmatpush.bf16.msra.mxu0 %v8992
      %9257 = vmatpush.bf16.msra.mxu0 %v8991
      %9258 = vmatpush.bf16.msra.mxu0 %v8990
      %9259 = vmatpush.bf16.msra.mxu0 %v8989
      %9260 = vmatpush.bf16.msra.mxu0 %v8988
      %9261 = vmatpush.bf16.msra.mxu0 %v8987
      %9262 = vmatpush.bf16.msra.mxu0 %v8986
      %9263 = vmatpush.bf16.msra.mxu0 %v8985
      %9264 = vmatmul.bf16.gmra.mxu0 %v8176
      %v9265 = vpop.f32.mrf.mxu0
      %v9266 = vadd.f32 %v9253, %v9265
      %v9267 = vpop.f32.mrf.mxu0
      %9268 = vdwg.mxu0
      %9269 = vmatpush.bf16.msra.mxu0 %v9000
      %9270 = vmatpush.bf16.msra.mxu0 %v8999
      %9271 = vmatpush.bf16.msra.mxu0 %v8998
      %9272 = vmatpush.bf16.msra.mxu0 %v8997
      %9273 = vmatpush.bf16.msra.mxu0 %v8996
      %9274 = vmatpush.bf16.msra.mxu0 %v8995
      %9275 = vmatpush.bf16.msra.mxu0 %v8994
      %9276 = vmatpush.bf16.msra.mxu0 %v8993
      %9277 = vmatmul.bf16.gmra.mxu0 %v8177
      %v9278 = vpop.f32.mrf.mxu0
      %v9279 = vadd.f32 %v9266, %v9278
      %v9280 = vpop.f32.mrf.mxu0
      %9281 = vdwg.mxu0
      %9282 = vmatpush.bf16.msra.mxu0 %v9008
      %9283 = vmatpush.bf16.msra.mxu0 %v9007
      %9284 = vmatpush.bf16.msra.mxu0 %v9006
      %9285 = vmatpush.bf16.msra.mxu0 %v9005
      %9286 = vmatpush.bf16.msra.mxu0 %v9004
      %9287 = vmatpush.bf16.msra.mxu0 %v9003
      %9288 = vmatpush.bf16.msra.mxu0 %v9002
      %9289 = vmatpush.bf16.msra.mxu0 %v9001
      %9290 = vmatmul.bf16.gmra.mxu0 %v8178
      %v9291 = vpop.f32.mrf.mxu0
      %v9292 = vadd.f32 %v9279, %v9291
      %v9293 = vpop.f32.mrf.mxu0
      %9294 = vdwg.mxu0
      %9295 = vmatpush.bf16.msra.mxu0 %v9016
      %9296 = vmatpush.bf16.msra.mxu0 %v9015
      %9297 = vmatpush.bf16.msra.mxu0 %v9014
      %9298 = vmatpush.bf16.msra.mxu0 %v9013
      %9299 = vmatpush.bf16.msra.mxu0 %v9012
      %9300 = vmatpush.bf16.msra.mxu0 %v9011
      %9301 = vmatpush.bf16.msra.mxu0 %v9010
      %9302 = vmatpush.bf16.msra.mxu0 %v9009
      %9303 = vmatmul.bf16.gmra.mxu0 %v8179
      %v9304 = vpop.f32.mrf.mxu0
      %v9305 = vadd.f32 %v9292, %v9304
      %v9306 = vpop.f32.mrf.mxu0
      %9307 = vdwg.mxu0
      %9308 = vmatpush.bf16.msra.mxu0 %v9024
      %9309 = vmatpush.bf16.msra.mxu0 %v9023
      %9310 = vmatpush.bf16.msra.mxu0 %v9022
      %9311 = vmatpush.bf16.msra.mxu0 %v9021
      %9312 = vmatpush.bf16.msra.mxu0 %v9020
      %9313 = vmatpush.bf16.msra.mxu0 %v9019
      %9314 = vmatpush.bf16.msra.mxu0 %v9018
      %9315 = vmatpush.bf16.msra.mxu0 %v9017
      %9316 = vmatmul.bf16.gmra.mxu0 %v8180
      %v9317 = vpop.f32.mrf.mxu0
      %v9318 = vadd.f32 %v9305, %v9317
      %v9319 = vpop.f32.mrf.mxu0
      %9320 = vdwg.mxu0
      %9321 = vmatpush.bf16.msra.mxu0 %v9032
      %9322 = vmatpush.bf16.msra.mxu0 %v9031
      %9323 = vmatpush.bf16.msra.mxu0 %v9030
      %9324 = vmatpush.bf16.msra.mxu0 %v9029
      %9325 = vmatpush.bf16.msra.mxu0 %v9028
      %9326 = vmatpush.bf16.msra.mxu0 %v9027
      %9327 = vmatpush.bf16.msra.mxu0 %v9026
      %9328 = vmatpush.bf16.msra.mxu0 %v9025
      %9329 = vmatmul.bf16.gmra.mxu0 %v8181
      %v9330 = vpop.f32.mrf.mxu0
      %v9331 = vadd.f32 %v9318, %v9330
      %v9332 = vpop.f32.mrf.mxu0
      %9333 = vdwg.mxu0
      %9334 = vmatpush.bf16.msra.mxu0 %v9040
      %9335 = vmatpush.bf16.msra.mxu0 %v9039
      %9336 = vmatpush.bf16.msra.mxu0 %v9038
      %9337 = vmatpush.bf16.msra.mxu0 %v9037
      %9338 = vmatpush.bf16.msra.mxu0 %v9036
      %9339 = vmatpush.bf16.msra.mxu0 %v9035
      %9340 = vmatpush.bf16.msra.mxu0 %v9034
      %9341 = vmatpush.bf16.msra.mxu0 %v9033
      %9342 = vmatmul.bf16.gmra.mxu0 %v8182
      %v9343 = vpop.f32.mrf.mxu0
      %v9344 = vadd.f32 %v9331, %v9343
      %v9345 = vpop.f32.mrf.mxu0
      %9346 = vdwg.mxu0
      %9347 = vmatpush.bf16.msra.mxu0 %v9048
      %9348 = vmatpush.bf16.msra.mxu0 %v9047
      %9349 = vmatpush.bf16.msra.mxu0 %v9046
      %9350 = vmatpush.bf16.msra.mxu0 %v9045
      %9351 = vmatpush.bf16.msra.mxu0 %v9044
      %9352 = vmatpush.bf16.msra.mxu0 %v9043
      %9353 = vmatpush.bf16.msra.mxu0 %v9042
      %9354 = vmatpush.bf16.msra.mxu0 %v9041
      %9355 = vmatmul.bf16.gmra.mxu0 %v8183
      %v9356 = vpop.f32.mrf.mxu0
      %v9357 = vadd.f32 %v9344, %v9356
      %v9358 = vpop.f32.mrf.mxu0
      %9359 = vdwg.mxu0
      %9360 = vmatpush.bf16.msra.mxu0 %v9056
      %9361 = vmatpush.bf16.msra.mxu0 %v9055
      %9362 = vmatpush.bf16.msra.mxu0 %v9054
      %9363 = vmatpush.bf16.msra.mxu0 %v9053
      %9364 = vmatpush.bf16.msra.mxu0 %v9052
      %9365 = vmatpush.bf16.msra.mxu0 %v9051
      %9366 = vmatpush.bf16.msra.mxu0 %v9050
      %9367 = vmatpush.bf16.msra.mxu0 %v9049
      %9368 = vmatmul.bf16.gmra.mxu0 %v8184
      %v9369 = vpop.f32.mrf.mxu0
      %v9370 = vadd.f32 %v9357, %v9369
      %v9371 = vpop.f32.mrf.mxu0
      %9372 = vdwg.mxu0
      %9373 = vmatpush.bf16.msra.mxu0 %v9064
      %9374 = vmatpush.bf16.msra.mxu0 %v9063
      %9375 = vmatpush.bf16.msra.mxu0 %v9062
      %9376 = vmatpush.bf16.msra.mxu0 %v9061
      %9377 = vmatpush.bf16.msra.mxu0 %v9060
      %9378 = vmatpush.bf16.msra.mxu0 %v9059
      %9379 = vmatpush.bf16.msra.mxu0 %v9058
      %9380 = vmatpush.bf16.msra.mxu0 %v9057
      %9381 = vmatmul.bf16.gmra.mxu0 %v8185
      %v9382 = vpop.f32.mrf.mxu0
      %v9383 = vadd.f32 %v9370, %v9382
      %v9384 = vpop.f32.mrf.mxu0
      %9385 = vdwg.mxu0
      %9386 = vmatpush.bf16.msra.mxu0 %v9072
      %9387 = vmatpush.bf16.msra.mxu0 %v9071
      %9388 = vmatpush.bf16.msra.mxu0 %v9070
      %9389 = vmatpush.bf16.msra.mxu0 %v9069
      %9390 = vmatpush.bf16.msra.mxu0 %v9068
      %9391 = vmatpush.bf16.msra.mxu0 %v9067
      %9392 = vmatpush.bf16.msra.mxu0 %v9066
      %9393 = vmatpush.bf16.msra.mxu0 %v9065
      %9394 = vmatmul.bf16.gmra.mxu0 %v8186
      %v9395 = vpop.f32.mrf.mxu0
      %v9396 = vadd.f32 %v9383, %v9395
      %v9397 = vpop.f32.mrf.mxu0
      %9398 = vdwg.mxu0
      %9399 = vmatpush.bf16.msra.mxu0 %v9080
      %9400 = vmatpush.bf16.msra.mxu0 %v9079
      %9401 = vmatpush.bf16.msra.mxu0 %v9078
      %9402 = vmatpush.bf16.msra.mxu0 %v9077
      %9403 = vmatpush.bf16.msra.mxu0 %v9076
      %9404 = vmatpush.bf16.msra.mxu0 %v9075
      %9405 = vmatpush.bf16.msra.mxu0 %v9074
      %9406 = vmatpush.bf16.msra.mxu0 %v9073
      %9407 = vmatmul.bf16.gmra.mxu0 %v8187
      %v9408 = vpop.f32.mrf.mxu0
      %v9409 = vadd.f32 %v9396, %v9408
      %v9410 = vpop.f32.mrf.mxu0
      %9411 = vdwg.mxu0
      %9412 = vmatpush.bf16.msra.mxu0 %v9088
      %9413 = vmatpush.bf16.msra.mxu0 %v9087
      %9414 = vmatpush.bf16.msra.mxu0 %v9086
      %9415 = vmatpush.bf16.msra.mxu0 %v9085
      %9416 = vmatpush.bf16.msra.mxu0 %v9084
      %9417 = vmatpush.bf16.msra.mxu0 %v9083
      %9418 = vmatpush.bf16.msra.mxu0 %v9082
      %9419 = vmatpush.bf16.msra.mxu0 %v9081
      %9420 = vmatmul.bf16.gmra.mxu0 %v8188
      %v9421 = vpop.f32.mrf.mxu0
      %v9422 = vadd.f32 %v9409, %v9421
      %v9423 = vpop.f32.mrf.mxu0
      %9424 = vdwg.mxu0
      %9425 = vst [vmem:[#allocation14] sm:$0xf] %v9422
    $region57: #{tpu_custom_call.1} parent=1 // pred_fallthru
      _
    // Predicated region
    $region58: #{tpu_custom_call.1} parent=1 // pred_check
      _
    $region59: #{tpu_custom_call.1} parent=1 // pred_check_branch
      %9427 = sbr.rel (0) target = $region61
    $region60: #{tpu_custom_call.1} parent=1 // pred_region
      %9429 = vsyncadd [#allocation5], 0
      %s9431 = sshll.u32 [#allocation14], 4
      %s9432 = int_to_ptr.vmem [resolvable:$true] %s9431
      %s9433 = sshll.u32 %s6, 4
      %s9434 = int_to_ptr.hbm [resolvable:$true] %s9433
      %9436 = dma.vmem_to_hbm [thread:$0]  %s9432, 64, %s9434, [#allocation5]
    $region61: #{tpu_custom_call.1} parent=1 // pred_fallthru
      _
    // Predicated region
    $region62: #{tpu_custom_call.1} parent=1 // pred_check
      _
    $region63: #{tpu_custom_call.1} parent=1 // pred_check_branch
      %9438 = sbr.rel (0) target = $region65
    $region64: #{tpu_custom_call.1} parent=1 // pred_region
      %9440 = dma.done [#allocation5], 64
    $region65: #{tpu_custom_call.1} parent=1 // pred_fallthru
      _
    %9441 = vsyncpa [#allocation4], 1
    %9442 = vsyncpa [#allocation7], 1
    %9443 = vsyncpa [#allocation10], 1
    %9444 = vsyncpa [#allocation13], 1
    %9445 = vsyncpa [#allocation5], 1

</llo_original>
